<compile_context>
chip_gen: v7x
topology: tpu7x:2x2x1
jax: 0.10.0
libtpu: 0.0.40
codegen_flags: <defaults>
</compile_context>

<pallas_src>
import jax
import jax.numpy as jnp
from jax.experimental import pallas as pl
from jax.experimental.pallas import tpu as pltpu

NZ = 2
D_IN = 28 * 28
DIMS_ENC = [(D_IN, 128), (128, 64), (64, 12), (12, NZ)]
DIMS_DEC = [(NZ, 12), (12, 64), (64, 128), (128, D_IN)]
ALL_DIMS = DIMS_ENC + DIMS_DEC


def _ae_kernel(x_ref,
               w1, b1, w2, b2, w3, b3, w4, b4,     # encoder
               w45, b45, w6, b6, w7, b7, w8, b8,   # decoder (first layer folded)
               enc_ref, dec_ref):
    f32 = jnp.float32
    bf16 = jnp.bfloat16

    def dense_tanh(h, w_ref, b_ref):
        # bf16 MXU operands, f32 accumulation, f32 bias add, f32 tanh (EUP),
        # bf16 result (feeds the next matmul).
        pre = jnp.dot(h, w_ref[...], preferred_element_type=f32) + b_ref[...]
        return jnp.tanh(pre).astype(bf16)

    x = x_ref[...].astype(bf16)

    # ---- encoder ----
    h1 = dense_tanh(x, w1, b1)
    h2 = dense_tanh(h1, w2, b2)
    h3 = dense_tanh(h2, w3, b3)
    # Encoder head: narrow (TB, NZ) output; masked 2-lane store is fully
    # hidden under the DMA bottleneck and avoids a 64x-amplified padded write.
    z = jnp.dot(h3, w4[...], preferred_element_type=f32) + b4[...]
    enc_ref[...] = z.astype(enc_ref.dtype)

    # ---- decoder ----
    # First decoder layer is folded with the encoder head on the host
    # (w45 = w4 @ w5, b45 = b4 @ w5 + b5): no nonlinearity between them, so
    # the degenerate K=NZ matmul never hits the MXU.
    d1 = dense_tanh(h3, w45, b45)
    d2 = dense_tanh(d1, w6, b6)
    d3 = dense_tanh(d2, w7, b7)
    logits = jnp.dot(d3, w8[...], preferred_element_type=f32) + b8[...]
    # Sigmoid in f32, stored in dec_ref's dtype (bf16 by default: halves the
    # dominant output write of this HBM-bound kernel).
    dec_ref[...] = jax.nn.sigmoid(logits).astype(dec_ref.dtype)


def _prepare_params(params):
    """Host-side prep: f32 (in,out)/(1,out) params -> kernel operand list."""
    (w1, b1, w2, b2, w3, b3, w4, b4,
     w5, b5, w6, b6, w7, b7, w8, b8) = params
    bf16 = jnp.bfloat16

    # Fold encoder head + first decoder layer (pure linear chain).
    w45 = w4 @ w5
    b45 = b4 @ w5 + b5

    def w_(w):  # matmul operands in bf16 (f32 accumulation in-kernel)
        return w.astype(bf16)

    return [w_(w1), b1, w_(w2), b2, w_(w3), b3, w_(w4), b4,
            w_(w45), b45, w_(w6), b6, w_(w7), b7, w_(w8), b8]


def autoencoder_forward(x, params, *, batch_tile=512, dec_dtype=jnp.bfloat16):
    """x: (B, 784) float32 (or bf16 to halve input DMA).
    params: flat f32 list [w1,b1,...,w8,b8] with (in,out) weights, (1,out) biases.

    Returns (encoded (B, NZ) f32, decoded (B, 784) dec_dtype).
    """
    B, D = x.shape
    assert D == D_IN
    TB = batch_tile
    B_pad = pl.cdiv(B, TB) * TB
    if B_pad != B:                      # pad batch so callers need not align
        x = jnp.pad(x, ((0, B_pad - B), (0, 0)))
    grid = (B_pad // TB,)

    kparams = _prepare_params(params)

    in_specs = [pl.BlockSpec((TB, D), lambda i: (i, 0))]
    for _ in kparams:
        # Constant block index -> Pallas keeps the weight resident across the
        # batch-tile grid (no re-DMA per step).
        in_specs.append(pl.BlockSpec(None, None))  # placeholder, replaced below
    in_specs = [in_specs[0]] + [
        pl.BlockSpec(p.shape, lambda i: (0, 0)) for p in kparams
    ]

    out_specs = [
        pl.BlockSpec((TB, NZ), lambda i: (i, 0)),   # full last-dim block (NZ=2)
        pl.BlockSpec((TB, D), lambda i: (i, 0)),
    ]
    out_shape = (
        jax.ShapeDtypeStruct((B_pad, NZ), jnp.float32),
        jax.ShapeDtypeStruct((B_pad, D), dec_dtype),
    )

    # Advisory cost hint so XLA can overlap this mem-bound call with neighbors.
    flops_per_row = 2 * sum(fi * fo for fi, fo in ALL_DIMS)
    trans_per_row = 128 + 64 + 12 + 12 + 64 + 128 + D_IN      # tanh + sigmoid
    bytes_per_row = (D_IN * x.dtype.itemsize                   # x read
                     + D_IN * jnp.dtype(dec_dtype).itemsize    # dec write
                     + NZ * 4)                                 # enc write
    weight_bytes = sum(p.size * p.dtype.itemsize for p in kparams)
    cost = pl.CostEstimate(
        flops=B_pad * flops_per_row,
        transcendentals=B_pad * trans_per_row,
        bytes_accessed=B_pad * bytes_per_row + weight_bytes,
    )

    enc, dec = pl.pallas_call(
        _ae_kernel,
        grid_spec=pltpu.PrefetchScalarGridSpec(
            num_scalar_prefetch=0,
            grid=grid,
            in_specs=in_specs,
            out_specs=out_specs,
        ),
        out_shape=out_shape,
        compiler_params=pltpu.CompilerParams(
            dimension_semantics=("parallel",),
            vmem_limit_bytes=32 * 1024 * 1024,  # v5e default (16 MiB) is tight at TB=512
        ),
        cost_estimate=cost,
    )(x, *kparams)

    if B_pad != B:
        # NOTE: padded batch rows contain nonzero sigmoid outputs; they are
        # sliced off here and must not be reduced over before this slice.
        enc = enc[:B]
        dec = dec[:B]
    return enc, dec


def init_params(key):
    """Deterministic PyTorch-style uniform(-1/sqrt(fan_in), 1/sqrt(fan_in))."""
    params = []
    for (fan_in, fan_out) in ALL_DIMS:
        key, kw, kb = jax.random.split(key, 3)
        bound = 1.0 / jnp.sqrt(jnp.float32(fan_in))
        w = jax.random.uniform(kw, (fan_in, fan_out), jnp.float32, -bound, bound)
        b = jax.random.uniform(kb, (1, fan_out), jnp.float32, -bound, bound)
        params += [w, b]
    return params


def reference_forward(x, params):
    """Pure f32 JAX reference matching the PyTorch module."""
    h = x
    for li in range(4):
        w, b = params[2 * li], params[2 * li + 1]
        h = h @ w + b
        if li < 3:
            h = jnp.tanh(h)
    enc = h
    d = enc
    for li in range(4, 8):
        w, b = params[2 * li], params[2 * li + 1]
        d = d @ w + b
        d = jnp.tanh(d) if li < 7 else jax.nn.sigmoid(d)
    return enc, d


if __name__ == "__main__":
    key = jax.random.PRNGKey(0)
    kp, kx = jax.random.split(key)
    params = init_params(kp)

    B = 2048  # four 512-row grid steps (>=2 per TensorCore on v7x, pipelined)
    x = jax.random.uniform(kx, (B, D_IN), jnp.float32)

    enc, dec = autoencoder_forward(x, params, batch_tile=512)
    jax.block_until_ready((enc, dec))

    enc_ref, dec_ref = reference_forward(x, params)
    assert enc.shape == (B, NZ) and dec.shape == (B, D_IN)
    # Loosened tolerance: bf16 MXU operands / bf16 decoded output vs pure-f32 ref.
    assert jnp.allclose(enc, enc_ref, atol=4e-2, rtol=4e-2), \
        float(jnp.max(jnp.abs(enc - enc_ref)))
    dec_f32 = dec.astype(jnp.float32)
    assert jnp.allclose(dec_f32, dec_ref, atol=4e-2, rtol=4e-2), \
        float(jnp.max(jnp.abs(dec_f32 - dec_ref)))

    print("KERNEL_OK")
</pallas_src>

<mosaic_0001>
module attributes {stable_mosaic.version = 11 : i64} {
  func.func @_ae_kernel(%arg0: i32, %arg1: memref<512x784xf32, #tpu.memory_space<vmem>>, %arg2: memref<784x128xbf16, #tpu.memory_space<vmem>>, %arg3: memref<1x128xf32, #tpu.memory_space<vmem>>, %arg4: memref<128x64xbf16, #tpu.memory_space<vmem>>, %arg5: memref<1x64xf32, #tpu.memory_space<vmem>>, %arg6: memref<64x12xbf16, #tpu.memory_space<vmem>>, %arg7: memref<1x12xf32, #tpu.memory_space<vmem>>, %arg8: memref<12x2xbf16, #tpu.memory_space<vmem>>, %arg9: memref<1x2xf32, #tpu.memory_space<vmem>>, %arg10: memref<12x12xbf16, #tpu.memory_space<vmem>>, %arg11: memref<1x12xf32, #tpu.memory_space<vmem>>, %arg12: memref<12x64xbf16, #tpu.memory_space<vmem>>, %arg13: memref<1x64xf32, #tpu.memory_space<vmem>>, %arg14: memref<64x128xbf16, #tpu.memory_space<vmem>>, %arg15: memref<1x128xf32, #tpu.memory_space<vmem>>, %arg16: memref<128x784xbf16, #tpu.memory_space<vmem>>, %arg17: memref<1x784xf32, #tpu.memory_space<vmem>>, %arg18: memref<512x2xf32, #tpu.memory_space<vmem>>, %arg19: memref<512x784xbf16, #tpu.memory_space<vmem>>) attributes {dimension_semantics = [#tpu.dimension_semantics<parallel>], iteration_bounds = array<i64: 4>, scalar_prefetch = 0 : i64, scratch_operands = 0 : i64, tpu.core_type = #tpu.core_type<tc>, window_params = [{transform_indices = @transform_0, window_bounds = array<i64: 512, 784>}, {pipeline_mode = #tpu.pipeline_mode<synchronous>, transform_indices = @transform_1, window_bounds = array<i64: 784, 128>}, {pipeline_mode = #tpu.pipeline_mode<synchronous>, transform_indices = @transform_2, window_bounds = array<i64: 1, 128>}, {pipeline_mode = #tpu.pipeline_mode<synchronous>, transform_indices = @transform_3, window_bounds = array<i64: 128, 64>}, {pipeline_mode = #tpu.pipeline_mode<synchronous>, transform_indices = @transform_4, window_bounds = array<i64: 1, 64>}, {pipeline_mode = #tpu.pipeline_mode<synchronous>, transform_indices = @transform_5, window_bounds = array<i64: 64, 12>}, {pipeline_mode = #tpu.pipeline_mode<synchronous>, transform_indices = @transform_6, window_bounds = array<i64: 1, 12>}, {pipeline_mode = #tpu.pipeline_mode<synchronous>, transform_indices = @transform_7, window_bounds = array<i64: 12, 2>}, {pipeline_mode = #tpu.pipeline_mode<synchronous>, transform_indices = @transform_8, window_bounds = array<i64: 1, 2>}, {pipeline_mode = #tpu.pipeline_mode<synchronous>, transform_indices = @transform_9, window_bounds = array<i64: 12, 12>}, {pipeline_mode = #tpu.pipeline_mode<synchronous>, transform_indices = @transform_10, window_bounds = array<i64: 1, 12>}, {pipeline_mode = #tpu.pipeline_mode<synchronous>, transform_indices = @transform_11, window_bounds = array<i64: 12, 64>}, {pipeline_mode = #tpu.pipeline_mode<synchronous>, transform_indices = @transform_12, window_bounds = array<i64: 1, 64>}, {pipeline_mode = #tpu.pipeline_mode<synchronous>, transform_indices = @transform_13, window_bounds = array<i64: 64, 128>}, {pipeline_mode = #tpu.pipeline_mode<synchronous>, transform_indices = @transform_14, window_bounds = array<i64: 1, 128>}, {pipeline_mode = #tpu.pipeline_mode<synchronous>, transform_indices = @transform_15, window_bounds = array<i64: 128, 784>}, {pipeline_mode = #tpu.pipeline_mode<synchronous>, transform_indices = @transform_16, window_bounds = array<i64: 1, 784>}, {transform_indices = @transform_17, window_bounds = array<i64: 512, 2>}, {transform_indices = @transform_18, window_bounds = array<i64: 512, 784>}]} {
    %c0 = arith.constant 0 : index
    %c0_0 = arith.constant 0 : index
    %0 = vector.load %arg1[%c0, %c0_0] : memref<512x784xf32, #tpu.memory_space<vmem>>, vector<512x784xf32>
    %1 = arith.truncf %0 : vector<512x784xf32> to vector<512x784xbf16>
    %c0_1 = arith.constant 0 : index
    %c0_2 = arith.constant 0 : index
    %2 = vector.load %arg2[%c0_1, %c0_2] : memref<784x128xbf16, #tpu.memory_space<vmem>>, vector<784x128xbf16>
    %cst = arith.constant dense<0.000000e+00> : vector<512x128xf32>
    %3 = tpu.matmul %1, %2, %cst {dimension_numbers = #tpu.dot_dimension_numbers<[1], [0], [0], [1], [0, 0, 1, 1], [], []>} : vector<512x784xbf16>, vector<784x128xbf16>, vector<512x128xf32> -> vector<512x128xf32>
    %c0_3 = arith.constant 0 : index
    %c0_4 = arith.constant 0 : index
    %4 = vector.load %arg3[%c0_3, %c0_4] : memref<1x128xf32, #tpu.memory_space<vmem>>, vector<1x128xf32>
    %5 = vector.broadcast %4 : vector<1x128xf32> to vector<512x128xf32>
    %6 = arith.addf %3, %5 : vector<512x128xf32>
    %7 = math.tanh %6 : vector<512x128xf32>
    %8 = arith.truncf %7 : vector<512x128xf32> to vector<512x128xbf16>
    %c0_5 = arith.constant 0 : index
    %c0_6 = arith.constant 0 : index
    %9 = vector.load %arg4[%c0_5, %c0_6] : memref<128x64xbf16, #tpu.memory_space<vmem>>, vector<128x64xbf16>
    %cst_7 = arith.constant dense<0.000000e+00> : vector<512x64xf32>
    %10 = tpu.matmul %8, %9, %cst_7 {dimension_numbers = #tpu.dot_dimension_numbers<[1], [0], [0], [1], [0, 0, 1, 1], [], []>} : vector<512x128xbf16>, vector<128x64xbf16>, vector<512x64xf32> -> vector<512x64xf32>
    %c0_8 = arith.constant 0 : index
    %c0_9 = arith.constant 0 : index
    %11 = vector.load %arg5[%c0_8, %c0_9] : memref<1x64xf32, #tpu.memory_space<vmem>>, vector<1x64xf32>
    %12 = vector.broadcast %11 : vector<1x64xf32> to vector<512x64xf32>
    %13 = arith.addf %10, %12 : vector<512x64xf32>
    %14 = math.tanh %13 : vector<512x64xf32>
    %15 = arith.truncf %14 : vector<512x64xf32> to vector<512x64xbf16>
    %c0_10 = arith.constant 0 : index
    %c0_11 = arith.constant 0 : index
    %16 = vector.load %arg6[%c0_10, %c0_11] : memref<64x12xbf16, #tpu.memory_space<vmem>>, vector<64x12xbf16>
    %cst_12 = arith.constant dense<0.000000e+00> : vector<512x12xf32>
    %17 = tpu.matmul %15, %16, %cst_12 {dimension_numbers = #tpu.dot_dimension_numbers<[1], [0], [0], [1], [0, 0, 1, 1], [], []>} : vector<512x64xbf16>, vector<64x12xbf16>, vector<512x12xf32> -> vector<512x12xf32>
    %c0_13 = arith.constant 0 : index
    %c0_14 = arith.constant 0 : index
    %18 = vector.load %arg7[%c0_13, %c0_14] : memref<1x12xf32, #tpu.memory_space<vmem>>, vector<1x12xf32>
    %19 = vector.broadcast %18 : vector<1x12xf32> to vector<512x12xf32>
    %20 = arith.addf %17, %19 : vector<512x12xf32>
    %21 = math.tanh %20 : vector<512x12xf32>
    %22 = arith.truncf %21 : vector<512x12xf32> to vector<512x12xbf16>
    %c0_15 = arith.constant 0 : index
    %c0_16 = arith.constant 0 : index
    %23 = vector.load %arg8[%c0_15, %c0_16] : memref<12x2xbf16, #tpu.memory_space<vmem>>, vector<12x2xbf16>
    %cst_17 = arith.constant dense<0.000000e+00> : vector<512x2xf32>
    %24 = tpu.matmul %22, %23, %cst_17 {dimension_numbers = #tpu.dot_dimension_numbers<[1], [0], [0], [1], [0, 0, 1, 1], [], []>} : vector<512x12xbf16>, vector<12x2xbf16>, vector<512x2xf32> -> vector<512x2xf32>
    %c0_18 = arith.constant 0 : index
    %c0_19 = arith.constant 0 : index
    %25 = vector.load %arg9[%c0_18, %c0_19] : memref<1x2xf32, #tpu.memory_space<vmem>>, vector<1x2xf32>
    %26 = vector.broadcast %25 : vector<1x2xf32> to vector<512x2xf32>
    %27 = arith.addf %24, %26 : vector<512x2xf32>
    %c0_20 = arith.constant 0 : index
    %c0_21 = arith.constant 0 : index
    %28 = vector.load %arg18[%c0_20, %c0_21] : memref<512x2xf32, #tpu.memory_space<vmem>>, vector<512x2xf32>
    tpu.vector_store %arg18[%c0_20, %c0_21], %27 {strides = array<i32>} : memref<512x2xf32, #tpu.memory_space<vmem>>, vector<512x2xf32>,
    %c0_22 = arith.constant 0 : index
    %c0_23 = arith.constant 0 : index
    %29 = vector.load %arg10[%c0_22, %c0_23] : memref<12x12xbf16, #tpu.memory_space<vmem>>, vector<12x12xbf16>
    %cst_24 = arith.constant dense<0.000000e+00> : vector<512x12xf32>
    %30 = tpu.matmul %22, %29, %cst_24 {dimension_numbers = #tpu.dot_dimension_numbers<[1], [0], [0], [1], [0, 0, 1, 1], [], []>} : vector<512x12xbf16>, vector<12x12xbf16>, vector<512x12xf32> -> vector<512x12xf32>
    %c0_25 = arith.constant 0 : index
    %c0_26 = arith.constant 0 : index
    %31 = vector.load %arg11[%c0_25, %c0_26] : memref<1x12xf32, #tpu.memory_space<vmem>>, vector<1x12xf32>
    %32 = vector.broadcast %31 : vector<1x12xf32> to vector<512x12xf32>
    %33 = arith.addf %30, %32 : vector<512x12xf32>
    %34 = math.tanh %33 : vector<512x12xf32>
    %35 = arith.truncf %34 : vector<512x12xf32> to vector<512x12xbf16>
    %c0_27 = arith.constant 0 : index
    %c0_28 = arith.constant 0 : index
    %36 = vector.load %arg12[%c0_27, %c0_28] : memref<12x64xbf16, #tpu.memory_space<vmem>>, vector<12x64xbf16>
    %cst_29 = arith.constant dense<0.000000e+00> : vector<512x64xf32>
    %37 = tpu.matmul %35, %36, %cst_29 {dimension_numbers = #tpu.dot_dimension_numbers<[1], [0], [0], [1], [0, 0, 1, 1], [], []>} : vector<512x12xbf16>, vector<12x64xbf16>, vector<512x64xf32> -> vector<512x64xf32>
    %c0_30 = arith.constant 0 : index
    %c0_31 = arith.constant 0 : index
    %38 = vector.load %arg13[%c0_30, %c0_31] : memref<1x64xf32, #tpu.memory_space<vmem>>, vector<1x64xf32>
    %39 = vector.broadcast %38 : vector<1x64xf32> to vector<512x64xf32>
    %40 = arith.addf %37, %39 : vector<512x64xf32>
    %41 = math.tanh %40 : vector<512x64xf32>
    %42 = arith.truncf %41 : vector<512x64xf32> to vector<512x64xbf16>
    %c0_32 = arith.constant 0 : index
    %c0_33 = arith.constant 0 : index
    %43 = vector.load %arg14[%c0_32, %c0_33] : memref<64x128xbf16, #tpu.memory_space<vmem>>, vector<64x128xbf16>
    %cst_34 = arith.constant dense<0.000000e+00> : vector<512x128xf32>
    %44 = tpu.matmul %42, %43, %cst_34 {dimension_numbers = #tpu.dot_dimension_numbers<[1], [0], [0], [1], [0, 0, 1, 1], [], []>} : vector<512x64xbf16>, vector<64x128xbf16>, vector<512x128xf32> -> vector<512x128xf32>
    %c0_35 = arith.constant 0 : index
    %c0_36 = arith.constant 0 : index
    %45 = vector.load %arg15[%c0_35, %c0_36] : memref<1x128xf32, #tpu.memory_space<vmem>>, vector<1x128xf32>
    %46 = vector.broadcast %45 : vector<1x128xf32> to vector<512x128xf32>
    %47 = arith.addf %44, %46 : vector<512x128xf32>
    %48 = math.tanh %47 : vector<512x128xf32>
    %49 = arith.truncf %48 : vector<512x128xf32> to vector<512x128xbf16>
    %c0_37 = arith.constant 0 : index
    %c0_38 = arith.constant 0 : index
    %50 = vector.load %arg16[%c0_37, %c0_38] : memref<128x784xbf16, #tpu.memory_space<vmem>>, vector<128x784xbf16>
    %cst_39 = arith.constant dense<0.000000e+00> : vector<512x784xf32>
    %51 = tpu.matmul %49, %50, %cst_39 {dimension_numbers = #tpu.dot_dimension_numbers<[1], [0], [0], [1], [0, 0, 1, 1], [], []>} : vector<512x128xbf16>, vector<128x784xbf16>, vector<512x784xf32> -> vector<512x784xf32>
    %c0_40 = arith.constant 0 : index
    %c0_41 = arith.constant 0 : index
    %52 = vector.load %arg17[%c0_40, %c0_41] : memref<1x784xf32, #tpu.memory_space<vmem>>, vector<1x784xf32>
    %53 = vector.broadcast %52 : vector<1x784xf32> to vector<512x784xf32>
    %54 = arith.addf %51, %53 : vector<512x784xf32>
    %55 = arith.negf %54 : vector<512x784xf32>
    %56 = math.exp %55 : vector<512x784xf32>
    %cst_42 = arith.constant 1.000000e+00 : f32
    %57 = vector.broadcast %cst_42 : f32 to vector<512x784xf32>
    %58 = arith.addf %57, %56 : vector<512x784xf32>
    %59 = arith.divf %57, %58 : vector<512x784xf32>
    %60 = arith.truncf %59 : vector<512x784xf32> to vector<512x784xbf16>
    %c0_43 = arith.constant 0 : index
    %c0_44 = arith.constant 0 : index
    %61 = vector.load %arg19[%c0_43, %c0_44] : memref<512x784xbf16, #tpu.memory_space<vmem>>, vector<512x784xbf16>
    tpu.vector_store %arg19[%c0_43, %c0_44], %60 {strides = array<i32>} : memref<512x784xbf16, #tpu.memory_space<vmem>>, vector<512x784xbf16>,
    return
  }
  func.func @transform_0(%arg0: i32) -> (i32, i32) {
    %c0_i32 = arith.constant 0 : i32
    %c0_i32_0 = arith.constant 0 : i32
    return %arg0, %c0_i32 : i32, i32
  }
  func.func @transform_1(%arg0: i32) -> (i32, i32) {
    %c0_i32 = arith.constant 0 : i32
    %c0_i32_0 = arith.constant 0 : i32
    %c0_i32_1 = arith.constant 0 : i32
    return %c0_i32, %c0_i32_0 : i32, i32
  }
  func.func @transform_2(%arg0: i32) -> (i32, i32) {
    %c0_i32 = arith.constant 0 : i32
    %c0_i32_0 = arith.constant 0 : i32
    %c0_i32_1 = arith.constant 0 : i32
    return %c0_i32, %c0_i32_0 : i32, i32
  }
  func.func @transform_3(%arg0: i32) -> (i32, i32) {
    %c0_i32 = arith.constant 0 : i32
    %c0_i32_0 = arith.constant 0 : i32
    %c0_i32_1 = arith.constant 0 : i32
    return %c0_i32, %c0_i32_0 : i32, i32
  }
  func.func @transform_4(%arg0: i32) -> (i32, i32) {
    %c0_i32 = arith.constant 0 : i32
    %c0_i32_0 = arith.constant 0 : i32
    %c0_i32_1 = arith.constant 0 : i32
    return %c0_i32, %c0_i32_0 : i32, i32
  }
  func.func @transform_5(%arg0: i32) -> (i32, i32) {
    %c0_i32 = arith.constant 0 : i32
    %c0_i32_0 = arith.constant 0 : i32
    %c0_i32_1 = arith.constant 0 : i32
    return %c0_i32, %c0_i32_0 : i32, i32
  }
  func.func @transform_6(%arg0: i32) -> (i32, i32) {
    %c0_i32 = arith.constant 0 : i32
    %c0_i32_0 = arith.constant 0 : i32
    %c0_i32_1 = arith.constant 0 : i32
    return %c0_i32, %c0_i32_0 : i32, i32
  }
  func.func @transform_7(%arg0: i32) -> (i32, i32) {
    %c0_i32 = arith.constant 0 : i32
    %c0_i32_0 = arith.constant 0 : i32
    %c0_i32_1 = arith.constant 0 : i32
    return %c0_i32, %c0_i32_0 : i32, i32
  }
  func.func @transform_8(%arg0: i32) -> (i32, i32) {
    %c0_i32 = arith.constant 0 : i32
    %c0_i32_0 = arith.constant 0 : i32
    %c0_i32_1 = arith.constant 0 : i32
    return %c0_i32, %c0_i32_0 : i32, i32
  }
  func.func @transform_9(%arg0: i32) -> (i32, i32) {
    %c0_i32 = arith.constant 0 : i32
    %c0_i32_0 = arith.constant 0 : i32
    %c0_i32_1 = arith.constant 0 : i32
    return %c0_i32, %c0_i32_0 : i32, i32
  }
  func.func @transform_10(%arg0: i32) -> (i32, i32) {
    %c0_i32 = arith.constant 0 : i32
    %c0_i32_0 = arith.constant 0 : i32
    %c0_i32_1 = arith.constant 0 : i32
    return %c0_i32, %c0_i32_0 : i32, i32
  }
  func.func @transform_11(%arg0: i32) -> (i32, i32) {
    %c0_i32 = arith.constant 0 : i32
    %c0_i32_0 = arith.constant 0 : i32
    %c0_i32_1 = arith.constant 0 : i32
    return %c0_i32, %c0_i32_0 : i32, i32
  }
  func.func @transform_12(%arg0: i32) -> (i32, i32) {
    %c0_i32 = arith.constant 0 : i32
    %c0_i32_0 = arith.constant 0 : i32
    %c0_i32_1 = arith.constant 0 : i32
    return %c0_i32, %c0_i32_0 : i32, i32
  }
  func.func @transform_13(%arg0: i32) -> (i32, i32) {
    %c0_i32 = arith.constant 0 : i32
    %c0_i32_0 = arith.constant 0 : i32
    %c0_i32_1 = arith.constant 0 : i32
    return %c0_i32, %c0_i32_0 : i32, i32
  }
  func.func @transform_14(%arg0: i32) -> (i32, i32) {
    %c0_i32 = arith.constant 0 : i32
    %c0_i32_0 = arith.constant 0 : i32
    %c0_i32_1 = arith.constant 0 : i32
    return %c0_i32, %c0_i32_0 : i32, i32
  }
  func.func @transform_15(%arg0: i32) -> (i32, i32) {
    %c0_i32 = arith.constant 0 : i32
    %c0_i32_0 = arith.constant 0 : i32
    %c0_i32_1 = arith.constant 0 : i32
    return %c0_i32, %c0_i32_0 : i32, i32
  }
  func.func @transform_16(%arg0: i32) -> (i32, i32) {
    %c0_i32 = arith.constant 0 : i32
    %c0_i32_0 = arith.constant 0 : i32
    %c0_i32_1 = arith.constant 0 : i32
    return %c0_i32, %c0_i32_0 : i32, i32
  }
  func.func @transform_17(%arg0: i32) -> (i32, i32) {
    %c0_i32 = arith.constant 0 : i32
    %c0_i32_0 = arith.constant 0 : i32
    return %arg0, %c0_i32 : i32, i32
  }
  func.func @transform_18(%arg0: i32) -> (i32, i32) {
    %c0_i32 = arith.constant 0 : i32
    %c0_i32_0 = arith.constant 0 : i32
    return %arg0, %c0_i32 : i32, i32
  }
}

</mosaic_0001>

<llo_original>
// kernel: tpu_custom_call.1
$region0: #{tpu_custom_call.1}
  #allocation0 [shape = 'u32[]', space=smem, size = 0x4, offset = 0x4, fixed_abs, tag = 'smem constant byte address 0x4 - core index']
  #allocation1 [shape = 'u32[144,128]{1,0:T(1,128)}', space=vmem, size = 0x12000, scoped, tag = 'internal scratch']
  %s0 = inlined_call_operand.vmem [shape: f32[2048,784], index: 0, kind: input, shape index: {}]
  %s1 = inlined_call_operand.vmem [shape: bf16[784,128], index: 1, kind: input, shape index: {}]
  %s2 = inlined_call_operand.vmem [shape: f32[1,128], index: 2, kind: input, shape index: {}]
  %s3 = inlined_call_operand.vmem [shape: bf16[128,64], index: 3, kind: input, shape index: {}]
  %s4 = inlined_call_operand.vmem [shape: f32[1,64], index: 4, kind: input, shape index: {}]
  %s5 = inlined_call_operand.vmem [shape: bf16[64,12], index: 5, kind: input, shape index: {}]
  %s6 = inlined_call_operand.vmem [shape: f32[1,12], index: 6, kind: input, shape index: {}]
  %s7 = inlined_call_operand.vmem [shape: bf16[12,2], index: 7, kind: input, shape index: {}]
  %s8 = inlined_call_operand.vmem [shape: f32[1,2], index: 8, kind: input, shape index: {}]
  %s9 = inlined_call_operand.vmem [shape: bf16[12,12], index: 9, kind: input, shape index: {}]
  %s10 = inlined_call_operand.vmem [shape: f32[1,12], index: 10, kind: input, shape index: {}]
  %s11 = inlined_call_operand.vmem [shape: bf16[12,64], index: 11, kind: input, shape index: {}]
  %s12 = inlined_call_operand.vmem [shape: f32[1,64], index: 12, kind: input, shape index: {}]
  %s13 = inlined_call_operand.vmem [shape: bf16[64,128], index: 13, kind: input, shape index: {}]
  %s14 = inlined_call_operand.vmem [shape: f32[1,128], index: 14, kind: input, shape index: {}]
  %s15 = inlined_call_operand.vmem [shape: bf16[128,784], index: 15, kind: input, shape index: {}]
  %s16 = inlined_call_operand.vmem [shape: f32[1,784], index: 16, kind: input, shape index: {}]
  %s17 = inlined_call_operand.vmem [shape: f32[2048,2], index: 17, kind: output, shape index: {0}]
  %s18 = inlined_call_operand.vmem [shape: bf16[2048,784], index: 18, kind: output, shape index: {1}]
  %19 = xla_tuple %s17, %s18
  %s20 = sld [smem:[#allocation0]]
  $region109: #{tpu_custom_call.1} parent=0
    _
  %s22 = ssub.s32 1, %s20
  %s23 = scalar_select 0, %s22, %s20
  loop: start=0, step=1, limit=6
  $region2: #{tpu_custom_call.1} parent=0 // loop_pre_header
    _
  $region3: #{tpu_custom_call.1} parent=0 // loop_header
    %s25 = sphi 0, %s29
    %p26 = scmp.ge.s32.totalorder %s25, 6
    %s35 = sphi 0, %s37
    %s38 = sphi 0, %s35
    %s39 = sphi 0, %s38
    %s55 = sphi 0, %s39
    %s59 = sphi 0, %s59
    %s61 = sphi 0, %s59
    %s62 = sphi 0, %s61
    %s76 = sphi 0, %s62
    %s80 = sphi 0, %s80
    %s82 = sphi 0, %s80
    %s83 = sphi 0, %s82
    %s97 = sphi 0, %s83
    %s101 = sphi 0, %s101
    %s103 = sphi 0, %s101
    %s104 = sphi 0, %s103
    %s118 = sphi 0, %s104
    %s122 = sphi 0, %s122
    %s124 = sphi 0, %s122
    %s125 = sphi 0, %s124
    %s139 = sphi 0, %s125
    %s143 = sphi 0, %s143
    %s145 = sphi 0, %s143
    %s146 = sphi 0, %s145
    %s160 = sphi 0, %s146
    %s164 = sphi 0, %s164
    %s166 = sphi 0, %s164
    %s167 = sphi 0, %s166
    %s181 = sphi 0, %s167
    %s185 = sphi 0, %s185
    %s187 = sphi 0, %s185
    %s188 = sphi 0, %s187
    %s202 = sphi 0, %s188
    %s206 = sphi 0, %s206
    %s208 = sphi 0, %s206
    %s209 = sphi 0, %s208
    %s223 = sphi 0, %s209
    %s227 = sphi 0, %s227
    %s229 = sphi 0, %s227
    %s230 = sphi 0, %s229
    %s244 = sphi 0, %s230
    %s248 = sphi 0, %s248
    %s250 = sphi 0, %s248
    %s251 = sphi 0, %s250
    %s265 = sphi 0, %s251
    %s269 = sphi 0, %s269
    %s271 = sphi 0, %s269
    %s272 = sphi 0, %s271
    %s286 = sphi 0, %s272
    %s290 = sphi 0, %s290
    %s292 = sphi 0, %s290
    %s293 = sphi 0, %s292
    %s307 = sphi 0, %s293
    %s311 = sphi 0, %s311
    %s313 = sphi 0, %s311
    %s314 = sphi 0, %s313
    %s328 = sphi 0, %s314
    %s332 = sphi 0, %s332
    %s334 = sphi 0, %s332
    %s335 = sphi 0, %s334
    %s349 = sphi 0, %s335
    %s353 = sphi 0, %s353
    %s355 = sphi 0, %s353
    %s356 = sphi 0, %s355
    %s370 = sphi 0, %s356
    %s374 = sphi 0, %s374
    %s376 = sphi 0, %s374
    %s377 = sphi 0, %s376
    %s391 = sphi 0, %s377
    %s397 = sphi 0, %s399
    %s400 = sphi 0, %s397
    %s401 = sphi 0, %s400
    %s417 = sphi 0, %s401
    %s423 = sphi 0, %s425
    %s426 = sphi 0, %s423
    %s427 = sphi 0, %s426
    %s443 = sphi 0, %s427
  $region4: #{tpu_custom_call.1} parent=0 // loop_header_branch
    %28 = sbr.rel (%p26) target = $region8
  $region5: #{tpu_custom_call.1} parent=0 // loop_body
    %s30 = ssub.s32 %s25, 1
    %s31 = ssub.s32 %s25, 2
    %s32 = sadd.s32 %s25, 1
    %s33 = ssub.s32 %s25, %s32
    %p34 = scmp.eq.s32.totalorder %s33, 0
    %s36 = sadd.s32 %s35, 1
    %s37 = scalar_select %p34, %s35, %s36
    %p40 = pneg %p34
    %p41 = scmp.eq.s32.totalorder %s25, 3
    %p42 = por %p40, %p41
    %p43 = scmp.ne.s32.totalorder %s35, %s38
    %p44 = scmp.eq.s32.totalorder %s25, 0
    %p45 = por %p43, %p44
    %p46 = scmp.ne.s32.totalorder %s35, %s38
    %p47 = scmp.eq.s32.totalorder %s30, 3
    %p48 = por %p46, %p47
    %p49 = scmp.ne.s32.totalorder %s38, %s39
    %p50 = scmp.eq.s32.totalorder %s30, 0
    %p51 = por %p49, %p50
    %p52 = scmp.ne.s32.totalorder %s38, %s39
    %p53 = scmp.eq.s32.totalorder %s31, 3
    %p54 = por %p52, %p53
    %p56 = scmp.ne.s32.totalorder %s39, %s55
    %p57 = scmp.eq.s32.totalorder %s31, 0
    %p58 = por %p56, %p57
    %s60 = sadd.s32 %s59, 1
    %p63 = scmp.eq.s32.totalorder %s25, 3
    %p64 = scmp.ne.s32.totalorder %s59, %s61
    %p65 = scmp.eq.s32.totalorder %s25, 0
    %p66 = por %p64, %p65
    %p67 = scmp.ne.s32.totalorder %s59, %s61
    %p68 = scmp.eq.s32.totalorder %s30, 3
    %p69 = por %p67, %p68
    %p70 = scmp.ne.s32.totalorder %s61, %s62
    %p71 = scmp.eq.s32.totalorder %s30, 0
    %p72 = por %p70, %p71
    %p73 = scmp.ne.s32.totalorder %s61, %s62
    %p74 = scmp.eq.s32.totalorder %s31, 3
    %p75 = por %p73, %p74
    %p77 = scmp.ne.s32.totalorder %s62, %s76
    %p78 = scmp.eq.s32.totalorder %s31, 0
    %p79 = por %p77, %p78
    %s81 = sadd.s32 %s80, 1
    %p84 = scmp.eq.s32.totalorder %s25, 3
    %p85 = scmp.ne.s32.totalorder %s80, %s82
    %p86 = scmp.eq.s32.totalorder %s25, 0
    %p87 = por %p85, %p86
    %p88 = scmp.ne.s32.totalorder %s80, %s82
    %p89 = scmp.eq.s32.totalorder %s30, 3
    %p90 = por %p88, %p89
    %p91 = scmp.ne.s32.totalorder %s82, %s83
    %p92 = scmp.eq.s32.totalorder %s30, 0
    %p93 = por %p91, %p92
    %p94 = scmp.ne.s32.totalorder %s82, %s83
    %p95 = scmp.eq.s32.totalorder %s31, 3
    %p96 = por %p94, %p95
    %p98 = scmp.ne.s32.totalorder %s83, %s97
    %p99 = scmp.eq.s32.totalorder %s31, 0
    %p100 = por %p98, %p99
    %s102 = sadd.s32 %s101, 1
    %p105 = scmp.eq.s32.totalorder %s25, 3
    %p106 = scmp.ne.s32.totalorder %s101, %s103
    %p107 = scmp.eq.s32.totalorder %s25, 0
    %p108 = por %p106, %p107
    %p109 = scmp.ne.s32.totalorder %s101, %s103
    %p110 = scmp.eq.s32.totalorder %s30, 3
    %p111 = por %p109, %p110
    %p112 = scmp.ne.s32.totalorder %s103, %s104
    %p113 = scmp.eq.s32.totalorder %s30, 0
    %p114 = por %p112, %p113
    %p115 = scmp.ne.s32.totalorder %s103, %s104
    %p116 = scmp.eq.s32.totalorder %s31, 3
    %p117 = por %p115, %p116
    %p119 = scmp.ne.s32.totalorder %s104, %s118
    %p120 = scmp.eq.s32.totalorder %s31, 0
    %p121 = por %p119, %p120
    %s123 = sadd.s32 %s122, 1
    %p126 = scmp.eq.s32.totalorder %s25, 3
    %p127 = scmp.ne.s32.totalorder %s122, %s124
    %p128 = scmp.eq.s32.totalorder %s25, 0
    %p129 = por %p127, %p128
    %p130 = scmp.ne.s32.totalorder %s122, %s124
    %p131 = scmp.eq.s32.totalorder %s30, 3
    %p132 = por %p130, %p131
    %p133 = scmp.ne.s32.totalorder %s124, %s125
    %p134 = scmp.eq.s32.totalorder %s30, 0
    %p135 = por %p133, %p134
    %p136 = scmp.ne.s32.totalorder %s124, %s125
    %p137 = scmp.eq.s32.totalorder %s31, 3
    %p138 = por %p136, %p137
    %p140 = scmp.ne.s32.totalorder %s125, %s139
    %p141 = scmp.eq.s32.totalorder %s31, 0
    %p142 = por %p140, %p141
    %s144 = sadd.s32 %s143, 1
    %p147 = scmp.eq.s32.totalorder %s25, 3
    %p148 = scmp.ne.s32.totalorder %s143, %s145
    %p149 = scmp.eq.s32.totalorder %s25, 0
    %p150 = por %p148, %p149
    %p151 = scmp.ne.s32.totalorder %s143, %s145
    %p152 = scmp.eq.s32.totalorder %s30, 3
    %p153 = por %p151, %p152
    %p154 = scmp.ne.s32.totalorder %s145, %s146
    %p155 = scmp.eq.s32.totalorder %s30, 0
    %p156 = por %p154, %p155
    %p157 = scmp.ne.s32.totalorder %s145, %s146
    %p158 = scmp.eq.s32.totalorder %s31, 3
    %p159 = por %p157, %p158
    %p161 = scmp.ne.s32.totalorder %s146, %s160
    %p162 = scmp.eq.s32.totalorder %s31, 0
    %p163 = por %p161, %p162
    %s165 = sadd.s32 %s164, 1
    %p168 = scmp.eq.s32.totalorder %s25, 3
    %p169 = scmp.ne.s32.totalorder %s164, %s166
    %p170 = scmp.eq.s32.totalorder %s25, 0
    %p171 = por %p169, %p170
    %p172 = scmp.ne.s32.totalorder %s164, %s166
    %p173 = scmp.eq.s32.totalorder %s30, 3
    %p174 = por %p172, %p173
    %p175 = scmp.ne.s32.totalorder %s166, %s167
    %p176 = scmp.eq.s32.totalorder %s30, 0
    %p177 = por %p175, %p176
    %p178 = scmp.ne.s32.totalorder %s166, %s167
    %p179 = scmp.eq.s32.totalorder %s31, 3
    %p180 = por %p178, %p179
    %p182 = scmp.ne.s32.totalorder %s167, %s181
    %p183 = scmp.eq.s32.totalorder %s31, 0
    %p184 = por %p182, %p183
    %s186 = sadd.s32 %s185, 1
    %p189 = scmp.eq.s32.totalorder %s25, 3
    %p190 = scmp.ne.s32.totalorder %s185, %s187
    %p191 = scmp.eq.s32.totalorder %s25, 0
    %p192 = por %p190, %p191
    %p193 = scmp.ne.s32.totalorder %s185, %s187
    %p194 = scmp.eq.s32.totalorder %s30, 3
    %p195 = por %p193, %p194
    %p196 = scmp.ne.s32.totalorder %s187, %s188
    %p197 = scmp.eq.s32.totalorder %s30, 0
    %p198 = por %p196, %p197
    %p199 = scmp.ne.s32.totalorder %s187, %s188
    %p200 = scmp.eq.s32.totalorder %s31, 3
    %p201 = por %p199, %p200
    %p203 = scmp.ne.s32.totalorder %s188, %s202
    %p204 = scmp.eq.s32.totalorder %s31, 0
    %p205 = por %p203, %p204
    %s207 = sadd.s32 %s206, 1
    %p210 = scmp.eq.s32.totalorder %s25, 3
    %p211 = scmp.ne.s32.totalorder %s206, %s208
    %p212 = scmp.eq.s32.totalorder %s25, 0
    %p213 = por %p211, %p212
    %p214 = scmp.ne.s32.totalorder %s206, %s208
    %p215 = scmp.eq.s32.totalorder %s30, 3
    %p216 = por %p214, %p215
    %p217 = scmp.ne.s32.totalorder %s208, %s209
    %p218 = scmp.eq.s32.totalorder %s30, 0
    %p219 = por %p217, %p218
    %p220 = scmp.ne.s32.totalorder %s208, %s209
    %p221 = scmp.eq.s32.totalorder %s31, 3
    %p222 = por %p220, %p221
    %p224 = scmp.ne.s32.totalorder %s209, %s223
    %p225 = scmp.eq.s32.totalorder %s31, 0
    %p226 = por %p224, %p225
    %s228 = sadd.s32 %s227, 1
    %p231 = scmp.eq.s32.totalorder %s25, 3
    %p232 = scmp.ne.s32.totalorder %s227, %s229
    %p233 = scmp.eq.s32.totalorder %s25, 0
    %p234 = por %p232, %p233
    %p235 = scmp.ne.s32.totalorder %s227, %s229
    %p236 = scmp.eq.s32.totalorder %s30, 3
    %p237 = por %p235, %p236
    %p238 = scmp.ne.s32.totalorder %s229, %s230
    %p239 = scmp.eq.s32.totalorder %s30, 0
    %p240 = por %p238, %p239
    %p241 = scmp.ne.s32.totalorder %s229, %s230
    %p242 = scmp.eq.s32.totalorder %s31, 3
    %p243 = por %p241, %p242
    %p245 = scmp.ne.s32.totalorder %s230, %s244
    %p246 = scmp.eq.s32.totalorder %s31, 0
    %p247 = por %p245, %p246
    %s249 = sadd.s32 %s248, 1
    %p252 = scmp.eq.s32.totalorder %s25, 3
    %p253 = scmp.ne.s32.totalorder %s248, %s250
    %p254 = scmp.eq.s32.totalorder %s25, 0
    %p255 = por %p253, %p254
    %p256 = scmp.ne.s32.totalorder %s248, %s250
    %p257 = scmp.eq.s32.totalorder %s30, 3
    %p258 = por %p256, %p257
    %p259 = scmp.ne.s32.totalorder %s250, %s251
    %p260 = scmp.eq.s32.totalorder %s30, 0
    %p261 = por %p259, %p260
    %p262 = scmp.ne.s32.totalorder %s250, %s251
    %p263 = scmp.eq.s32.totalorder %s31, 3
    %p264 = por %p262, %p263
    %p266 = scmp.ne.s32.totalorder %s251, %s265
    %p267 = scmp.eq.s32.totalorder %s31, 0
    %p268 = por %p266, %p267
    %s270 = sadd.s32 %s269, 1
    %p273 = scmp.eq.s32.totalorder %s25, 3
    %p274 = scmp.ne.s32.totalorder %s269, %s271
    %p275 = scmp.eq.s32.totalorder %s25, 0
    %p276 = por %p274, %p275
    %p277 = scmp.ne.s32.totalorder %s269, %s271
    %p278 = scmp.eq.s32.totalorder %s30, 3
    %p279 = por %p277, %p278
    %p280 = scmp.ne.s32.totalorder %s271, %s272
    %p281 = scmp.eq.s32.totalorder %s30, 0
    %p282 = por %p280, %p281
    %p283 = scmp.ne.s32.totalorder %s271, %s272
    %p284 = scmp.eq.s32.totalorder %s31, 3
    %p285 = por %p283, %p284
    %p287 = scmp.ne.s32.totalorder %s272, %s286
    %p288 = scmp.eq.s32.totalorder %s31, 0
    %p289 = por %p287, %p288
    %s291 = sadd.s32 %s290, 1
    %p294 = scmp.eq.s32.totalorder %s25, 3
    %p295 = scmp.ne.s32.totalorder %s290, %s292
    %p296 = scmp.eq.s32.totalorder %s25, 0
    %p297 = por %p295, %p296
    %p298 = scmp.ne.s32.totalorder %s290, %s292
    %p299 = scmp.eq.s32.totalorder %s30, 3
    %p300 = por %p298, %p299
    %p301 = scmp.ne.s32.totalorder %s292, %s293
    %p302 = scmp.eq.s32.totalorder %s30, 0
    %p303 = por %p301, %p302
    %p304 = scmp.ne.s32.totalorder %s292, %s293
    %p305 = scmp.eq.s32.totalorder %s31, 3
    %p306 = por %p304, %p305
    %p308 = scmp.ne.s32.totalorder %s293, %s307
    %p309 = scmp.eq.s32.totalorder %s31, 0
    %p310 = por %p308, %p309
    %s312 = sadd.s32 %s311, 1
    %p315 = scmp.eq.s32.totalorder %s25, 3
    %p316 = scmp.ne.s32.totalorder %s311, %s313
    %p317 = scmp.eq.s32.totalorder %s25, 0
    %p318 = por %p316, %p317
    %p319 = scmp.ne.s32.totalorder %s311, %s313
    %p320 = scmp.eq.s32.totalorder %s30, 3
    %p321 = por %p319, %p320
    %p322 = scmp.ne.s32.totalorder %s313, %s314
    %p323 = scmp.eq.s32.totalorder %s30, 0
    %p324 = por %p322, %p323
    %p325 = scmp.ne.s32.totalorder %s313, %s314
    %p326 = scmp.eq.s32.totalorder %s31, 3
    %p327 = por %p325, %p326
    %p329 = scmp.ne.s32.totalorder %s314, %s328
    %p330 = scmp.eq.s32.totalorder %s31, 0
    %p331 = por %p329, %p330
    %s333 = sadd.s32 %s332, 1
    %p336 = scmp.eq.s32.totalorder %s25, 3
    %p337 = scmp.ne.s32.totalorder %s332, %s334
    %p338 = scmp.eq.s32.totalorder %s25, 0
    %p339 = por %p337, %p338
    %p340 = scmp.ne.s32.totalorder %s332, %s334
    %p341 = scmp.eq.s32.totalorder %s30, 3
    %p342 = por %p340, %p341
    %p343 = scmp.ne.s32.totalorder %s334, %s335
    %p344 = scmp.eq.s32.totalorder %s30, 0
    %p345 = por %p343, %p344
    %p346 = scmp.ne.s32.totalorder %s334, %s335
    %p347 = scmp.eq.s32.totalorder %s31, 3
    %p348 = por %p346, %p347
    %p350 = scmp.ne.s32.totalorder %s335, %s349
    %p351 = scmp.eq.s32.totalorder %s31, 0
    %p352 = por %p350, %p351
    %s354 = sadd.s32 %s353, 1
    %p357 = scmp.eq.s32.totalorder %s25, 3
    %p358 = scmp.ne.s32.totalorder %s353, %s355
    %p359 = scmp.eq.s32.totalorder %s25, 0
    %p360 = por %p358, %p359
    %p361 = scmp.ne.s32.totalorder %s353, %s355
    %p362 = scmp.eq.s32.totalorder %s30, 3
    %p363 = por %p361, %p362
    %p364 = scmp.ne.s32.totalorder %s355, %s356
    %p365 = scmp.eq.s32.totalorder %s30, 0
    %p366 = por %p364, %p365
    %p367 = scmp.ne.s32.totalorder %s355, %s356
    %p368 = scmp.eq.s32.totalorder %s31, 3
    %p369 = por %p367, %p368
    %p371 = scmp.ne.s32.totalorder %s356, %s370
    %p372 = scmp.eq.s32.totalorder %s31, 0
    %p373 = por %p371, %p372
    %s375 = sadd.s32 %s374, 1
    %p378 = scmp.eq.s32.totalorder %s25, 3
    %p379 = scmp.ne.s32.totalorder %s374, %s376
    %p380 = scmp.eq.s32.totalorder %s25, 0
    %p381 = por %p379, %p380
    %p382 = scmp.ne.s32.totalorder %s374, %s376
    %p383 = scmp.eq.s32.totalorder %s30, 3
    %p384 = por %p382, %p383
    %p385 = scmp.ne.s32.totalorder %s376, %s377
    %p386 = scmp.eq.s32.totalorder %s30, 0
    %p387 = por %p385, %p386
    %p388 = scmp.ne.s32.totalorder %s376, %s377
    %p389 = scmp.eq.s32.totalorder %s31, 3
    %p390 = por %p388, %p389
    %p392 = scmp.ne.s32.totalorder %s377, %s391
    %p393 = scmp.eq.s32.totalorder %s31, 0
    %p394 = por %p392, %p393
    %s395 = ssub.s32 %s25, %s32
    %p396 = scmp.eq.s32.totalorder %s395, 0
    %s398 = sadd.s32 %s397, 1
    %s399 = scalar_select %p396, %s397, %s398
    %p402 = pneg %p396
    %p403 = scmp.eq.s32.totalorder %s25, 3
    %p404 = por %p402, %p403
    %p405 = scmp.ne.s32.totalorder %s397, %s400
    %p406 = scmp.eq.s32.totalorder %s25, 0
    %p407 = por %p405, %p406
    %p408 = scmp.ne.s32.totalorder %s397, %s400
    %p409 = scmp.eq.s32.totalorder %s30, 3
    %p410 = por %p408, %p409
    %p411 = scmp.ne.s32.totalorder %s400, %s401
    %p412 = scmp.eq.s32.totalorder %s30, 0
    %p413 = por %p411, %p412
    %p414 = scmp.ne.s32.totalorder %s400, %s401
    %p415 = scmp.eq.s32.totalorder %s31, 3
    %p416 = por %p414, %p415
    %p418 = scmp.ne.s32.totalorder %s401, %s417
    %p419 = scmp.eq.s32.totalorder %s31, 0
    %p420 = por %p418, %p419
    %s421 = ssub.s32 %s25, %s32
    %p422 = scmp.eq.s32.totalorder %s421, 0
    %s424 = sadd.s32 %s423, 1
    %s425 = scalar_select %p422, %s423, %s424
    %p428 = pneg %p422
    %p429 = scmp.eq.s32.totalorder %s25, 3
    %p430 = por %p428, %p429
    %p431 = scmp.ne.s32.totalorder %s423, %s426
    %p432 = scmp.eq.s32.totalorder %s25, 0
    %p433 = por %p431, %p432
    %p434 = scmp.ne.s32.totalorder %s423, %s426
    %p435 = scmp.eq.s32.totalorder %s30, 3
    %p436 = por %p434, %p435
    %p437 = scmp.ne.s32.totalorder %s426, %s427
    %p438 = scmp.eq.s32.totalorder %s30, 0
    %p439 = por %p437, %p438
    %p440 = scmp.ne.s32.totalorder %s426, %s427
    %p441 = scmp.eq.s32.totalorder %s31, 3
    %p442 = por %p440, %p441
    %p444 = scmp.ne.s32.totalorder %s427, %s443
    %p445 = scmp.eq.s32.totalorder %s31, 0
    %p446 = por %p444, %p445
    %p447 = scmp.le.s32.totalorder 1, %s25
    %p448 = scmp.lt.s32.totalorder %s25, 5
    %p449 = pnand %p447, %p448
    %p450 = pneg %p449
    // Predicated region
    $region9: #{tpu_custom_call.1} parent=5 // pred_check
      _
    $region10: #{tpu_custom_call.1} parent=5 // pred_check_branch
      %452 = sbr.rel (%p449) target = $region12
    $region11: #{tpu_custom_call.1} parent=5 // pred_region
      %s453 = ssub.s32 %s25, 1
      // Predicated region
      $region13: #{tpu_custom_call.1} parent=11 // pred_check
        %p454 = pneg %p72
      $region14: #{tpu_custom_call.1} parent=11 // pred_check_branch
        %456 = sbr.rel (%p454) target = $region16
      $region15: #{tpu_custom_call.1} parent=11 // pred_region
        _
      $region16: #{tpu_custom_call.1} parent=11 // pred_fallthru
        _
      // Predicated region
      $region17: #{tpu_custom_call.1} parent=11 // pred_check
        %p457 = pneg %p93
      $region18: #{tpu_custom_call.1} parent=11 // pred_check_branch
        %459 = sbr.rel (%p457) target = $region20
      $region19: #{tpu_custom_call.1} parent=11 // pred_region
        _
      $region20: #{tpu_custom_call.1} parent=11 // pred_fallthru
        _
      // Predicated region
      $region21: #{tpu_custom_call.1} parent=11 // pred_check
        %p460 = pneg %p114
      $region22: #{tpu_custom_call.1} parent=11 // pred_check_branch
        %462 = sbr.rel (%p460) target = $region24
      $region23: #{tpu_custom_call.1} parent=11 // pred_region
        _
      $region24: #{tpu_custom_call.1} parent=11 // pred_fallthru
        _
      // Predicated region
      $region25: #{tpu_custom_call.1} parent=11 // pred_check
        %p463 = pneg %p135
      $region26: #{tpu_custom_call.1} parent=11 // pred_check_branch
        %465 = sbr.rel (%p463) target = $region28
      $region27: #{tpu_custom_call.1} parent=11 // pred_region
        _
      $region28: #{tpu_custom_call.1} parent=11 // pred_fallthru
        _
      // Predicated region
      $region29: #{tpu_custom_call.1} parent=11 // pred_check
        %p466 = pneg %p156
      $region30: #{tpu_custom_call.1} parent=11 // pred_check_branch
        %468 = sbr.rel (%p466) target = $region32
      $region31: #{tpu_custom_call.1} parent=11 // pred_region
        _
      $region32: #{tpu_custom_call.1} parent=11 // pred_fallthru
        _
      // Predicated region
      $region33: #{tpu_custom_call.1} parent=11 // pred_check
        %p469 = pneg %p177
      $region34: #{tpu_custom_call.1} parent=11 // pred_check_branch
        %471 = sbr.rel (%p469) target = $region36
      $region35: #{tpu_custom_call.1} parent=11 // pred_region
        _
      $region36: #{tpu_custom_call.1} parent=11 // pred_fallthru
        _
      // Predicated region
      $region37: #{tpu_custom_call.1} parent=11 // pred_check
        %p472 = pneg %p198
      $region38: #{tpu_custom_call.1} parent=11 // pred_check_branch
        %474 = sbr.rel (%p472) target = $region40
      $region39: #{tpu_custom_call.1} parent=11 // pred_region
        _
      $region40: #{tpu_custom_call.1} parent=11 // pred_fallthru
        _
      // Predicated region
      $region41: #{tpu_custom_call.1} parent=11 // pred_check
        %p475 = pneg %p219
      $region42: #{tpu_custom_call.1} parent=11 // pred_check_branch
        %477 = sbr.rel (%p475) target = $region44
      $region43: #{tpu_custom_call.1} parent=11 // pred_region
        _
      $region44: #{tpu_custom_call.1} parent=11 // pred_fallthru
        _
      // Predicated region
      $region45: #{tpu_custom_call.1} parent=11 // pred_check
        %p478 = pneg %p240
      $region46: #{tpu_custom_call.1} parent=11 // pred_check_branch
        %480 = sbr.rel (%p478) target = $region48
      $region47: #{tpu_custom_call.1} parent=11 // pred_region
        _
      $region48: #{tpu_custom_call.1} parent=11 // pred_fallthru
        _
      // Predicated region
      $region49: #{tpu_custom_call.1} parent=11 // pred_check
        %p481 = pneg %p261
      $region50: #{tpu_custom_call.1} parent=11 // pred_check_branch
        %483 = sbr.rel (%p481) target = $region52
      $region51: #{tpu_custom_call.1} parent=11 // pred_region
        _
      $region52: #{tpu_custom_call.1} parent=11 // pred_fallthru
        _
      // Predicated region
      $region53: #{tpu_custom_call.1} parent=11 // pred_check
        %p484 = pneg %p282
      $region54: #{tpu_custom_call.1} parent=11 // pred_check_branch
        %486 = sbr.rel (%p484) target = $region56
      $region55: #{tpu_custom_call.1} parent=11 // pred_region
        _
      $region56: #{tpu_custom_call.1} parent=11 // pred_fallthru
        _
      // Predicated region
      $region57: #{tpu_custom_call.1} parent=11 // pred_check
        %p487 = pneg %p303
      $region58: #{tpu_custom_call.1} parent=11 // pred_check_branch
        %489 = sbr.rel (%p487) target = $region60
      $region59: #{tpu_custom_call.1} parent=11 // pred_region
        _
      $region60: #{tpu_custom_call.1} parent=11 // pred_fallthru
        _
      // Predicated region
      $region61: #{tpu_custom_call.1} parent=11 // pred_check
        %p490 = pneg %p324
      $region62: #{tpu_custom_call.1} parent=11 // pred_check_branch
        %492 = sbr.rel (%p490) target = $region64
      $region63: #{tpu_custom_call.1} parent=11 // pred_region
        _
      $region64: #{tpu_custom_call.1} parent=11 // pred_fallthru
        _
      // Predicated region
      $region65: #{tpu_custom_call.1} parent=11 // pred_check
        %p493 = pneg %p345
      $region66: #{tpu_custom_call.1} parent=11 // pred_check_branch
        %495 = sbr.rel (%p493) target = $region68
      $region67: #{tpu_custom_call.1} parent=11 // pred_region
        _
      $region68: #{tpu_custom_call.1} parent=11 // pred_fallthru
        _
      // Predicated region
      $region69: #{tpu_custom_call.1} parent=11 // pred_check
        %p496 = pneg %p366
      $region70: #{tpu_custom_call.1} parent=11 // pred_check_branch
        %498 = sbr.rel (%p496) target = $region72
      $region71: #{tpu_custom_call.1} parent=11 // pred_region
        _
      $region72: #{tpu_custom_call.1} parent=11 // pred_fallthru
        _
      // Predicated region
      $region73: #{tpu_custom_call.1} parent=11 // pred_check
        %p499 = pneg %p387
      $region74: #{tpu_custom_call.1} parent=11 // pred_check_branch
        %501 = sbr.rel (%p499) target = $region76
      $region75: #{tpu_custom_call.1} parent=11 // pred_region
        _
      $region76: #{tpu_custom_call.1} parent=11 // pred_fallthru
        _
    $region12: #{tpu_custom_call.1} parent=5 // pred_fallthru
      _
    %p502 = scmp.lt.s32.totalorder %s25, 4
    // Predicated region
    $region77: #{tpu_custom_call.1} parent=5 // pred_check
      %p503 = pneg %p502
    $region78: #{tpu_custom_call.1} parent=5 // pred_check_branch
      %505 = sbr.rel (%p503) target = $region80
    $region79: #{tpu_custom_call.1} parent=5 // pred_region
      // Predicated region
      $region81: #{tpu_custom_call.1} parent=79 // pred_check
        %p506 = pneg %p45
      $region82: #{tpu_custom_call.1} parent=79 // pred_check_branch
        %508 = sbr.rel (%p506) target = $region84
      $region83: #{tpu_custom_call.1} parent=79 // pred_region
        %s509 = smul.u32 64, %s25
        %p510 = scmp.lt.s32.totalorder %s509, 255
        %s511 = scalar_select %p510, %s509, 255
        %s512 = smul.addr %s511, 7
        %s513 = smul.addr %s512, 8
        %s514 = scalar_lea.vmem %s0, %s513
        %s515 = smul.u32 64, %s25
      $region84: #{tpu_custom_call.1} parent=79 // pred_fallthru
        _
    $region80: #{tpu_custom_call.1} parent=5 // pred_fallthru
      _
    %p516 = scmp.le.s32.totalorder 1, %s25
    %p517 = scmp.lt.s32.totalorder %s25, 5
    %p518 = pnand %p516, %p517
    %p519 = pneg %p518
    // Predicated region
    $region85: #{tpu_custom_call.1} parent=5 // pred_check
      _
    $region86: #{tpu_custom_call.1} parent=5 // pred_check_branch
      %521 = sbr.rel (%p518) target = $region88
    $region87: #{tpu_custom_call.1} parent=5 // pred_region
      %s522 = ssub.s32 %s25, 1
      %s523 = smul.u32 64, %s30
      %p524 = scmp.lt.s32.totalorder %s523, 255
      %s525 = scalar_select %p524, %s523, 255
      %s526 = smul.addr %s525, 7
      %s527 = smul.addr %s526, 8
      %s528 = scalar_lea.vmem %s0, %s527
      %p529 = pneg %p51
      %p530 = pneg %p48
      %p531 = pneg %p72
      %p532 = pneg %p69
      %p533 = pneg %p93
      %p534 = pneg %p90
      %p535 = pneg %p114
      %p536 = pneg %p111
      %p537 = pneg %p135
      %p538 = pneg %p132
      %p539 = pneg %p156
      %p540 = pneg %p153
      %p541 = pneg %p177
      %p542 = pneg %p174
      %p543 = pneg %p198
      %p544 = pneg %p195
      %p545 = pneg %p219
      %p546 = pneg %p216
      %p547 = pneg %p240
      %p548 = pneg %p237
      %p549 = pneg %p261
      %p550 = pneg %p258
      %p551 = pneg %p282
      %p552 = pneg %p279
      %p553 = pneg %p303
      %p554 = pneg %p300
      %p555 = pneg %p324
      %p556 = pneg %p321
      %p557 = pneg %p345
      %p558 = pneg %p342
      %p559 = pneg %p366
      %p560 = pneg %p363
      %p561 = pneg %p387
      %p562 = pneg %p384
      %p563 = pneg %p413
      %p564 = pneg %p410
      %s565 = smul.u32 64, %s30
      %p566 = scmp.lt.s32.totalorder %s565, 255
      %s567 = scalar_select %p566, %s565, 255
      %s568 = smul.addr %s567, 8
      %s569 = scalar_lea.vmem %s17, %s568
      %p570 = pneg %p439
      %p571 = pneg %p436
      %s572 = smul.u32 64, %s30
      %p573 = scmp.lt.s32.totalorder %s572, 255
      %s574 = scalar_select %p573, %s572, 255
      %s575 = smul.addr %s574, 7
      %s576 = smul.addr %s575, 4
      %s577 = scalar_lea.vmem %s18, %s576
      %s578 = smul.u32 64, %s30
      %p579 = scmp.lt.s32.totalorder %s578, 255
      %s580 = scalar_select %p579, %s578, 255
      %s581 = smul.addr %s580, 7
      %s582 = smul.addr %s581, 8
      %s583 = scalar_lea.vmem %s0, %s582
      %s584 = smul.u32 64, %s30
      %s585 = smul.u32 64, %s30
      %p586 = scmp.lt.s32.totalorder %s585, 255
      %s587 = scalar_select %p586, %s585, 255
      %s588 = smul.addr %s587, 8
      %s589 = scalar_lea.vmem %s17, %s588
      %s590 = smul.u32 64, %s30
      %s591 = smul.u32 64, %s30
      %p592 = scmp.lt.s32.totalorder %s591, 255
      %s593 = scalar_select %p592, %s591, 255
      %s594 = smul.addr %s593, 7
      %s595 = smul.addr %s594, 4
      %s596 = scalar_lea.vmem %s18, %s595
      %s597 = smul.u32 64, %s30
      %v599 = vld [vmem:[%s583] sm:$0xff]
      %v600 = vld [vmem:[%s583 + $0x8] sm:$0xff]
      %v601 = vld [vmem:[%s583 + $0x10] sm:$0xff]
      %v602 = vld [vmem:[%s583 + $0x18] sm:$0xff]
      %v603 = vld [vmem:[%s583 + $0x20] sm:$0xff]
      %v604 = vld [vmem:[%s583 + $0x28] sm:$0xff]
      %v605 = vld [vmem:[%s583 + $0x30] sm:$0xff]
      %v606 = vld [vmem:[%s583 + $0x38] sm:$0xff]
      %v607 = vld [vmem:[%s583 + $0x40] sm:$0xff]
      %v608 = vld [vmem:[%s583 + $0x48] sm:$0xff]
      %v609 = vld [vmem:[%s583 + $0x50] sm:$0xff]
      %v610 = vld [vmem:[%s583 + $0x58] sm:$0xff]
      %v611 = vld [vmem:[%s583 + $0x60] sm:$0xff]
      %v612 = vld [vmem:[%s583 + $0x68] sm:$0xff]
      %v613 = vld [vmem:[%s583 + $0x70] sm:$0xff]
      %v614 = vld [vmem:[%s583 + $0x78] sm:$0xff]
      %v615 = vld [vmem:[%s583 + $0x80] sm:$0xff]
      %v616 = vld [vmem:[%s583 + $0x88] sm:$0xff]
      %v617 = vld [vmem:[%s583 + $0x90] sm:$0xff]
      %v618 = vld [vmem:[%s583 + $0x98] sm:$0xff]
      %v619 = vld [vmem:[%s583 + $0xa0] sm:$0xff]
      %v620 = vld [vmem:[%s583 + $0xa8] sm:$0xff]
      %v621 = vld [vmem:[%s583 + $0xb0] sm:$0xff]
      %v622 = vld [vmem:[%s583 + $0xb8] sm:$0xff]
      %v623 = vld [vmem:[%s583 + $0xc0] sm:$0xff]
      %v624 = vld [vmem:[%s583 + $0xc8] sm:$0xff]
      %v625 = vld [vmem:[%s583 + $0xd0] sm:$0xff]
      %v626 = vld [vmem:[%s583 + $0xd8] sm:$0xff]
      %v627 = vld [vmem:[%s583 + $0xe0] sm:$0xff]
      %v628 = vld [vmem:[%s583 + $0xe8] sm:$0xff]
      %v629 = vld [vmem:[%s583 + $0xf0] sm:$0xff]
      %v630 = vld [vmem:[%s583 + $0xf8] sm:$0xff]
      %v631 = vld [vmem:[%s583 + $0x100] sm:$0xff]
      %v632 = vld [vmem:[%s583 + $0x108] sm:$0xff]
      %v633 = vld [vmem:[%s583 + $0x110] sm:$0xff]
      %v634 = vld [vmem:[%s583 + $0x118] sm:$0xff]
      %v635 = vld [vmem:[%s583 + $0x120] sm:$0xff]
      %v636 = vld [vmem:[%s583 + $0x128] sm:$0xff]
      %v637 = vld [vmem:[%s583 + $0x130] sm:$0xff]
      %v638 = vld [vmem:[%s583 + $0x138] sm:$0xff]
      %v639 = vld [vmem:[%s583 + $0x140] sm:$0xff]
      %v640 = vld [vmem:[%s583 + $0x148] sm:$0xff]
      %v641 = vld [vmem:[%s583 + $0x150] sm:$0xff]
      %v642 = vld [vmem:[%s583 + $0x158] sm:$0xff]
      %v643 = vld [vmem:[%s583 + $0x160] sm:$0xff]
      %v644 = vld [vmem:[%s583 + $0x168] sm:$0xff]
      %v645 = vld [vmem:[%s583 + $0x170] sm:$0xff]
      %v646 = vld [vmem:[%s583 + $0x178] sm:$0xff]
      %v647 = vld [vmem:[%s583 + $0x180] sm:$0xff]
      %v648 = vld [vmem:[%s583 + $0x188] sm:$0xff]
      %v649 = vld [vmem:[%s583 + $0x190] sm:$0xff]
      %v650 = vld [vmem:[%s583 + $0x198] sm:$0xff]
      %v651 = vld [vmem:[%s583 + $0x1a0] sm:$0xff]
      %v652 = vld [vmem:[%s583 + $0x1a8] sm:$0xff]
      %v653 = vld [vmem:[%s583 + $0x1b0] sm:$0xff]
      %v654 = vld [vmem:[%s583 + $0x1b8] sm:$0xff]
      %v655 = vld [vmem:[%s583 + $0x1c0] sm:$0xff]
      %v656 = vld [vmem:[%s583 + $0x1c8] sm:$0xff]
      %v657 = vld [vmem:[%s583 + $0x1d0] sm:$0xff]
      %v658 = vld [vmem:[%s583 + $0x1d8] sm:$0xff]
      %v659 = vld [vmem:[%s583 + $0x1e0] sm:$0xff]
      %v660 = vld [vmem:[%s583 + $0x1e8] sm:$0xff]
      %v661 = vld [vmem:[%s583 + $0x1f0] sm:$0xff]
      %v662 = vld [vmem:[%s583 + $0x1f8] sm:$0xff]
      %v663 = vld [vmem:[%s583 + $0x200] sm:$0xff]
      %v664 = vld [vmem:[%s583 + $0x208] sm:$0xff]
      %v665 = vld [vmem:[%s583 + $0x210] sm:$0xff]
      %v666 = vld [vmem:[%s583 + $0x218] sm:$0xff]
      %v667 = vld [vmem:[%s583 + $0x220] sm:$0xff]
      %v668 = vld [vmem:[%s583 + $0x228] sm:$0xff]
      %v669 = vld [vmem:[%s583 + $0x230] sm:$0xff]
      %v670 = vld [vmem:[%s583 + $0x238] sm:$0xff]
      %v671 = vld [vmem:[%s583 + $0x240] sm:$0xff]
      %v672 = vld [vmem:[%s583 + $0x248] sm:$0xff]
      %v673 = vld [vmem:[%s583 + $0x250] sm:$0xff]
      %v674 = vld [vmem:[%s583 + $0x258] sm:$0xff]
      %v675 = vld [vmem:[%s583 + $0x260] sm:$0xff]
      %v676 = vld [vmem:[%s583 + $0x268] sm:$0xff]
      %v677 = vld [vmem:[%s583 + $0x270] sm:$0xff]
      %v678 = vld [vmem:[%s583 + $0x278] sm:$0xff]
      %v679 = vld [vmem:[%s583 + $0x280] sm:$0xff]
      %v680 = vld [vmem:[%s583 + $0x288] sm:$0xff]
      %v681 = vld [vmem:[%s583 + $0x290] sm:$0xff]
      %v682 = vld [vmem:[%s583 + $0x298] sm:$0xff]
      %v683 = vld [vmem:[%s583 + $0x2a0] sm:$0xff]
      %v684 = vld [vmem:[%s583 + $0x2a8] sm:$0xff]
      %v685 = vld [vmem:[%s583 + $0x2b0] sm:$0xff]
      %v686 = vld [vmem:[%s583 + $0x2b8] sm:$0xff]
      %v687 = vld [vmem:[%s583 + $0x2c0] sm:$0xff]
      %v688 = vld [vmem:[%s583 + $0x2c8] sm:$0xff]
      %v689 = vld [vmem:[%s583 + $0x2d0] sm:$0xff]
      %v690 = vld [vmem:[%s583 + $0x2d8] sm:$0xff]
      %v691 = vld [vmem:[%s583 + $0x2e0] sm:$0xff]
      %v692 = vld [vmem:[%s583 + $0x2e8] sm:$0xff]
      %v693 = vld [vmem:[%s583 + $0x2f0] sm:$0xff]
      %v694 = vld [vmem:[%s583 + $0x2f8] sm:$0xff]
      %v695 = vld [vmem:[%s583 + $0x300] sm:$0xff]
      %v696 = vld [vmem:[%s583 + $0x308] sm:$0xff]
      %v697 = vld [vmem:[%s583 + $0x310] sm:$0xff]
      %v698 = vld [vmem:[%s583 + $0x318] sm:$0xff]
      %v699 = vld [vmem:[%s583 + $0x320] sm:$0xff]
      %v700 = vld [vmem:[%s583 + $0x328] sm:$0xff]
      %v701 = vld [vmem:[%s583 + $0x330] sm:$0xff]
      %v702 = vld [vmem:[%s583 + $0x338] sm:$0xff]
      %v703 = vld [vmem:[%s583 + $0x340] sm:$0xff]
      %v704 = vld [vmem:[%s583 + $0x348] sm:$0xff]
      %v705 = vld [vmem:[%s583 + $0x350] sm:$0xff]
      %v706 = vld [vmem:[%s583 + $0x358] sm:$0xff]
      %v707 = vld [vmem:[%s583 + $0x360] sm:$0xff]
      %v708 = vld [vmem:[%s583 + $0x368] sm:$0xff]
      %v709 = vld [vmem:[%s583 + $0x370] sm:$0xff]
      %v710 = vld [vmem:[%s583 + $0x378] sm:$0xff]
      %v711 = vld [vmem:[%s583 + $0x380] sm:$0xff]
      %v712 = vld [vmem:[%s583 + $0x388] sm:$0xff]
      %v713 = vld [vmem:[%s583 + $0x390] sm:$0xff]
      %v714 = vld [vmem:[%s583 + $0x398] sm:$0xff]
      %v715 = vld [vmem:[%s583 + $0x3a0] sm:$0xff]
      %v716 = vld [vmem:[%s583 + $0x3a8] sm:$0xff]
      %v717 = vld [vmem:[%s583 + $0x3b0] sm:$0xff]
      %v718 = vld [vmem:[%s583 + $0x3b8] sm:$0xff]
      %v719 = vld [vmem:[%s583 + $0x3c0] sm:$0xff]
      %v720 = vld [vmem:[%s583 + $0x3c8] sm:$0xff]
      %v721 = vld [vmem:[%s583 + $0x3d0] sm:$0xff]
      %v722 = vld [vmem:[%s583 + $0x3d8] sm:$0xff]
      %v723 = vld [vmem:[%s583 + $0x3e0] sm:$0xff]
      %v724 = vld [vmem:[%s583 + $0x3e8] sm:$0xff]
      %v725 = vld [vmem:[%s583 + $0x3f0] sm:$0xff]
      %v726 = vld [vmem:[%s583 + $0x3f8] sm:$0xff]
      %v727 = vld [vmem:[%s583 + $0x400] sm:$0xff]
      %v728 = vld [vmem:[%s583 + $0x408] sm:$0xff]
      %v729 = vld [vmem:[%s583 + $0x410] sm:$0xff]
      %v730 = vld [vmem:[%s583 + $0x418] sm:$0xff]
      %v731 = vld [vmem:[%s583 + $0x420] sm:$0xff]
      %v732 = vld [vmem:[%s583 + $0x428] sm:$0xff]
      %v733 = vld [vmem:[%s583 + $0x430] sm:$0xff]
      %v734 = vld [vmem:[%s583 + $0x438] sm:$0xff]
      %v735 = vld [vmem:[%s583 + $0x440] sm:$0xff]
      %v736 = vld [vmem:[%s583 + $0x448] sm:$0xff]
      %v737 = vld [vmem:[%s583 + $0x450] sm:$0xff]
      %v738 = vld [vmem:[%s583 + $0x458] sm:$0xff]
      %v739 = vld [vmem:[%s583 + $0x460] sm:$0xff]
      %v740 = vld [vmem:[%s583 + $0x468] sm:$0xff]
      %v741 = vld [vmem:[%s583 + $0x470] sm:$0xff]
      %v742 = vld [vmem:[%s583 + $0x478] sm:$0xff]
      %v743 = vld [vmem:[%s583 + $0x480] sm:$0xff]
      %v744 = vld [vmem:[%s583 + $0x488] sm:$0xff]
      %v745 = vld [vmem:[%s583 + $0x490] sm:$0xff]
      %v746 = vld [vmem:[%s583 + $0x498] sm:$0xff]
      %v747 = vld [vmem:[%s583 + $0x4a0] sm:$0xff]
      %v748 = vld [vmem:[%s583 + $0x4a8] sm:$0xff]
      %v749 = vld [vmem:[%s583 + $0x4b0] sm:$0xff]
      %v750 = vld [vmem:[%s583 + $0x4b8] sm:$0xff]
      %v751 = vld [vmem:[%s583 + $0x4c0] sm:$0xff]
      %v752 = vld [vmem:[%s583 + $0x4c8] sm:$0xff]
      %v753 = vld [vmem:[%s583 + $0x4d0] sm:$0xff]
      %v754 = vld [vmem:[%s583 + $0x4d8] sm:$0xff]
      %v755 = vld [vmem:[%s583 + $0x4e0] sm:$0xff]
      %v756 = vld [vmem:[%s583 + $0x4e8] sm:$0xff]
      %v757 = vld [vmem:[%s583 + $0x4f0] sm:$0xff]
      %v758 = vld [vmem:[%s583 + $0x4f8] sm:$0xff]
      %v759 = vld [vmem:[%s583 + $0x500] sm:$0xff]
      %v760 = vld [vmem:[%s583 + $0x508] sm:$0xff]
      %v761 = vld [vmem:[%s583 + $0x510] sm:$0xff]
      %v762 = vld [vmem:[%s583 + $0x518] sm:$0xff]
      %v763 = vld [vmem:[%s583 + $0x520] sm:$0xff]
      %v764 = vld [vmem:[%s583 + $0x528] sm:$0xff]
      %v765 = vld [vmem:[%s583 + $0x530] sm:$0xff]
      %v766 = vld [vmem:[%s583 + $0x538] sm:$0xff]
      %v767 = vld [vmem:[%s583 + $0x540] sm:$0xff]
      %v768 = vld [vmem:[%s583 + $0x548] sm:$0xff]
      %v769 = vld [vmem:[%s583 + $0x550] sm:$0xff]
      %v770 = vld [vmem:[%s583 + $0x558] sm:$0xff]
      %v771 = vld [vmem:[%s583 + $0x560] sm:$0xff]
      %v772 = vld [vmem:[%s583 + $0x568] sm:$0xff]
      %v773 = vld [vmem:[%s583 + $0x570] sm:$0xff]
      %v774 = vld [vmem:[%s583 + $0x578] sm:$0xff]
      %v775 = vld [vmem:[%s583 + $0x580] sm:$0xff]
      %v776 = vld [vmem:[%s583 + $0x588] sm:$0xff]
      %v777 = vld [vmem:[%s583 + $0x590] sm:$0xff]
      %v778 = vld [vmem:[%s583 + $0x598] sm:$0xff]
      %v779 = vld [vmem:[%s583 + $0x5a0] sm:$0xff]
      %v780 = vld [vmem:[%s583 + $0x5a8] sm:$0xff]
      %v781 = vld [vmem:[%s583 + $0x5b0] sm:$0xff]
      %v782 = vld [vmem:[%s583 + $0x5b8] sm:$0xff]
      %v783 = vld [vmem:[%s583 + $0x5c0] sm:$0xff]
      %v784 = vld [vmem:[%s583 + $0x5c8] sm:$0xff]
      %v785 = vld [vmem:[%s583 + $0x5d0] sm:$0xff]
      %v786 = vld [vmem:[%s583 + $0x5d8] sm:$0xff]
      %v787 = vld [vmem:[%s583 + $0x5e0] sm:$0xff]
      %v788 = vld [vmem:[%s583 + $0x5e8] sm:$0xff]
      %v789 = vld [vmem:[%s583 + $0x5f0] sm:$0xff]
      %v790 = vld [vmem:[%s583 + $0x5f8] sm:$0xff]
      %v791 = vld [vmem:[%s583 + $0x600] sm:$0xff]
      %v792 = vld [vmem:[%s583 + $0x608] sm:$0xff]
      %v793 = vld [vmem:[%s583 + $0x610] sm:$0xff]
      %v794 = vld [vmem:[%s583 + $0x618] sm:$0xff]
      %v795 = vld [vmem:[%s583 + $0x620] sm:$0xff]
      %v796 = vld [vmem:[%s583 + $0x628] sm:$0xff]
      %v797 = vld [vmem:[%s583 + $0x630] sm:$0xff]
      %v798 = vld [vmem:[%s583 + $0x638] sm:$0xff]
      %v799 = vld [vmem:[%s583 + $0x640] sm:$0xff]
      %v800 = vld [vmem:[%s583 + $0x648] sm:$0xff]
      %v801 = vld [vmem:[%s583 + $0x650] sm:$0xff]
      %v802 = vld [vmem:[%s583 + $0x658] sm:$0xff]
      %v803 = vld [vmem:[%s583 + $0x660] sm:$0xff]
      %v804 = vld [vmem:[%s583 + $0x668] sm:$0xff]
      %v805 = vld [vmem:[%s583 + $0x670] sm:$0xff]
      %v806 = vld [vmem:[%s583 + $0x678] sm:$0xff]
      %v807 = vld [vmem:[%s583 + $0x680] sm:$0xff]
      %v808 = vld [vmem:[%s583 + $0x688] sm:$0xff]
      %v809 = vld [vmem:[%s583 + $0x690] sm:$0xff]
      %v810 = vld [vmem:[%s583 + $0x698] sm:$0xff]
      %v811 = vld [vmem:[%s583 + $0x6a0] sm:$0xff]
      %v812 = vld [vmem:[%s583 + $0x6a8] sm:$0xff]
      %v813 = vld [vmem:[%s583 + $0x6b0] sm:$0xff]
      %v814 = vld [vmem:[%s583 + $0x6b8] sm:$0xff]
      %v815 = vld [vmem:[%s583 + $0x6c0] sm:$0xff]
      %v816 = vld [vmem:[%s583 + $0x6c8] sm:$0xff]
      %v817 = vld [vmem:[%s583 + $0x6d0] sm:$0xff]
      %v818 = vld [vmem:[%s583 + $0x6d8] sm:$0xff]
      %v819 = vld [vmem:[%s583 + $0x6e0] sm:$0xff]
      %v820 = vld [vmem:[%s583 + $0x6e8] sm:$0xff]
      %v821 = vld [vmem:[%s583 + $0x6f0] sm:$0xff]
      %v822 = vld [vmem:[%s583 + $0x6f8] sm:$0xff]
      %v823 = vld [vmem:[%s583 + $0x700] sm:$0xff]
      %v824 = vld [vmem:[%s583 + $0x708] sm:$0xff]
      %v825 = vld [vmem:[%s583 + $0x710] sm:$0xff]
      %v826 = vld [vmem:[%s583 + $0x718] sm:$0xff]
      %v827 = vld [vmem:[%s583 + $0x720] sm:$0xff]
      %v828 = vld [vmem:[%s583 + $0x728] sm:$0xff]
      %v829 = vld [vmem:[%s583 + $0x730] sm:$0xff]
      %v830 = vld [vmem:[%s583 + $0x738] sm:$0xff]
      %v831 = vld [vmem:[%s583 + $0x740] sm:$0xff]
      %v832 = vld [vmem:[%s583 + $0x748] sm:$0xff]
      %v833 = vld [vmem:[%s583 + $0x750] sm:$0xff]
      %v834 = vld [vmem:[%s583 + $0x758] sm:$0xff]
      %v835 = vld [vmem:[%s583 + $0x760] sm:$0xff]
      %v836 = vld [vmem:[%s583 + $0x768] sm:$0xff]
      %v837 = vld [vmem:[%s583 + $0x770] sm:$0xff]
      %v838 = vld [vmem:[%s583 + $0x778] sm:$0xff]
      %v839 = vld [vmem:[%s583 + $0x780] sm:$0xff]
      %v840 = vld [vmem:[%s583 + $0x788] sm:$0xff]
      %v841 = vld [vmem:[%s583 + $0x790] sm:$0xff]
      %v842 = vld [vmem:[%s583 + $0x798] sm:$0xff]
      %v843 = vld [vmem:[%s583 + $0x7a0] sm:$0xff]
      %v844 = vld [vmem:[%s583 + $0x7a8] sm:$0xff]
      %v845 = vld [vmem:[%s583 + $0x7b0] sm:$0xff]
      %v846 = vld [vmem:[%s583 + $0x7b8] sm:$0xff]
      %v847 = vld [vmem:[%s583 + $0x7c0] sm:$0xff]
      %v848 = vld [vmem:[%s583 + $0x7c8] sm:$0xff]
      %v849 = vld [vmem:[%s583 + $0x7d0] sm:$0xff]
      %v850 = vld [vmem:[%s583 + $0x7d8] sm:$0xff]
      %v851 = vld [vmem:[%s583 + $0x7e0] sm:$0xff]
      %v852 = vld [vmem:[%s583 + $0x7e8] sm:$0xff]
      %v853 = vld [vmem:[%s583 + $0x7f0] sm:$0xff]
      %v854 = vld [vmem:[%s583 + $0x7f8] sm:$0xff]
      %v855 = vld [vmem:[%s583 + $0x800] sm:$0xff]
      %v856 = vld [vmem:[%s583 + $0x808] sm:$0xff]
      %v857 = vld [vmem:[%s583 + $0x810] sm:$0xff]
      %v858 = vld [vmem:[%s583 + $0x818] sm:$0xff]
      %v859 = vld [vmem:[%s583 + $0x820] sm:$0xff]
      %v860 = vld [vmem:[%s583 + $0x828] sm:$0xff]
      %v861 = vld [vmem:[%s583 + $0x830] sm:$0xff]
      %v862 = vld [vmem:[%s583 + $0x838] sm:$0xff]
      %v863 = vld [vmem:[%s583 + $0x840] sm:$0xff]
      %v864 = vld [vmem:[%s583 + $0x848] sm:$0xff]
      %v865 = vld [vmem:[%s583 + $0x850] sm:$0xff]
      %v866 = vld [vmem:[%s583 + $0x858] sm:$0xff]
      %v867 = vld [vmem:[%s583 + $0x860] sm:$0xff]
      %v868 = vld [vmem:[%s583 + $0x868] sm:$0xff]
      %v869 = vld [vmem:[%s583 + $0x870] sm:$0xff]
      %v870 = vld [vmem:[%s583 + $0x878] sm:$0xff]
      %v871 = vld [vmem:[%s583 + $0x880] sm:$0xff]
      %v872 = vld [vmem:[%s583 + $0x888] sm:$0xff]
      %v873 = vld [vmem:[%s583 + $0x890] sm:$0xff]
      %v874 = vld [vmem:[%s583 + $0x898] sm:$0xff]
      %v875 = vld [vmem:[%s583 + $0x8a0] sm:$0xff]
      %v876 = vld [vmem:[%s583 + $0x8a8] sm:$0xff]
      %v877 = vld [vmem:[%s583 + $0x8b0] sm:$0xff]
      %v878 = vld [vmem:[%s583 + $0x8b8] sm:$0xff]
      %v879 = vld [vmem:[%s583 + $0x8c0] sm:$0xff]
      %v880 = vld [vmem:[%s583 + $0x8c8] sm:$0xff]
      %v881 = vld [vmem:[%s583 + $0x8d0] sm:$0xff]
      %v882 = vld [vmem:[%s583 + $0x8d8] sm:$0xff]
      %v883 = vld [vmem:[%s583 + $0x8e0] sm:$0xff]
      %v884 = vld [vmem:[%s583 + $0x8e8] sm:$0xff]
      %v885 = vld [vmem:[%s583 + $0x8f0] sm:$0xff]
      %v886 = vld [vmem:[%s583 + $0x8f8] sm:$0xff]
      %v887 = vld [vmem:[%s583 + $0x900] sm:$0xff]
      %v888 = vld [vmem:[%s583 + $0x908] sm:$0xff]
      %v889 = vld [vmem:[%s583 + $0x910] sm:$0xff]
      %v890 = vld [vmem:[%s583 + $0x918] sm:$0xff]
      %v891 = vld [vmem:[%s583 + $0x920] sm:$0xff]
      %v892 = vld [vmem:[%s583 + $0x928] sm:$0xff]
      %v893 = vld [vmem:[%s583 + $0x930] sm:$0xff]
      %v894 = vld [vmem:[%s583 + $0x938] sm:$0xff]
      %v895 = vld [vmem:[%s583 + $0x940] sm:$0xff]
      %v896 = vld [vmem:[%s583 + $0x948] sm:$0xff]
      %v897 = vld [vmem:[%s583 + $0x950] sm:$0xff]
      %v898 = vld [vmem:[%s583 + $0x958] sm:$0xff]
      %v899 = vld [vmem:[%s583 + $0x960] sm:$0xff]
      %v900 = vld [vmem:[%s583 + $0x968] sm:$0xff]
      %v901 = vld [vmem:[%s583 + $0x970] sm:$0xff]
      %v902 = vld [vmem:[%s583 + $0x978] sm:$0xff]
      %v903 = vld [vmem:[%s583 + $0x980] sm:$0xff]
      %v904 = vld [vmem:[%s583 + $0x988] sm:$0xff]
      %v905 = vld [vmem:[%s583 + $0x990] sm:$0xff]
      %v906 = vld [vmem:[%s583 + $0x998] sm:$0xff]
      %v907 = vld [vmem:[%s583 + $0x9a0] sm:$0xff]
      %v908 = vld [vmem:[%s583 + $0x9a8] sm:$0xff]
      %v909 = vld [vmem:[%s583 + $0x9b0] sm:$0xff]
      %v910 = vld [vmem:[%s583 + $0x9b8] sm:$0xff]
      %v911 = vld [vmem:[%s583 + $0x9c0] sm:$0xff]
      %v912 = vld [vmem:[%s583 + $0x9c8] sm:$0xff]
      %v913 = vld [vmem:[%s583 + $0x9d0] sm:$0xff]
      %v914 = vld [vmem:[%s583 + $0x9d8] sm:$0xff]
      %v915 = vld [vmem:[%s583 + $0x9e0] sm:$0xff]
      %v916 = vld [vmem:[%s583 + $0x9e8] sm:$0xff]
      %v917 = vld [vmem:[%s583 + $0x9f0] sm:$0xff]
      %v918 = vld [vmem:[%s583 + $0x9f8] sm:$0xff]
      %v919 = vld [vmem:[%s583 + $0xa00] sm:$0xff]
      %v920 = vld [vmem:[%s583 + $0xa08] sm:$0xff]
      %v921 = vld [vmem:[%s583 + $0xa10] sm:$0xff]
      %v922 = vld [vmem:[%s583 + $0xa18] sm:$0xff]
      %v923 = vld [vmem:[%s583 + $0xa20] sm:$0xff]
      %v924 = vld [vmem:[%s583 + $0xa28] sm:$0xff]
      %v925 = vld [vmem:[%s583 + $0xa30] sm:$0xff]
      %v926 = vld [vmem:[%s583 + $0xa38] sm:$0xff]
      %v927 = vld [vmem:[%s583 + $0xa40] sm:$0xff]
      %v928 = vld [vmem:[%s583 + $0xa48] sm:$0xff]
      %v929 = vld [vmem:[%s583 + $0xa50] sm:$0xff]
      %v930 = vld [vmem:[%s583 + $0xa58] sm:$0xff]
      %v931 = vld [vmem:[%s583 + $0xa60] sm:$0xff]
      %v932 = vld [vmem:[%s583 + $0xa68] sm:$0xff]
      %v933 = vld [vmem:[%s583 + $0xa70] sm:$0xff]
      %v934 = vld [vmem:[%s583 + $0xa78] sm:$0xff]
      %v935 = vld [vmem:[%s583 + $0xa80] sm:$0xff]
      %v936 = vld [vmem:[%s583 + $0xa88] sm:$0xff]
      %v937 = vld [vmem:[%s583 + $0xa90] sm:$0xff]
      %v938 = vld [vmem:[%s583 + $0xa98] sm:$0xff]
      %v939 = vld [vmem:[%s583 + $0xaa0] sm:$0xff]
      %v940 = vld [vmem:[%s583 + $0xaa8] sm:$0xff]
      %v941 = vld [vmem:[%s583 + $0xab0] sm:$0xff]
      %v942 = vld [vmem:[%s583 + $0xab8] sm:$0xff]
      %v943 = vld [vmem:[%s583 + $0xac0] sm:$0xff]
      %v944 = vld [vmem:[%s583 + $0xac8] sm:$0xff]
      %v945 = vld [vmem:[%s583 + $0xad0] sm:$0xff]
      %v946 = vld [vmem:[%s583 + $0xad8] sm:$0xff]
      %v947 = vld [vmem:[%s583 + $0xae0] sm:$0xff]
      %v948 = vld [vmem:[%s583 + $0xae8] sm:$0xff]
      %v949 = vld [vmem:[%s583 + $0xaf0] sm:$0xff]
      %v950 = vld [vmem:[%s583 + $0xaf8] sm:$0xff]
      %v951 = vld [vmem:[%s583 + $0xb00] sm:$0xff]
      %v952 = vld [vmem:[%s583 + $0xb08] sm:$0xff]
      %v953 = vld [vmem:[%s583 + $0xb10] sm:$0xff]
      %v954 = vld [vmem:[%s583 + $0xb18] sm:$0xff]
      %v955 = vld [vmem:[%s583 + $0xb20] sm:$0xff]
      %v956 = vld [vmem:[%s583 + $0xb28] sm:$0xff]
      %v957 = vld [vmem:[%s583 + $0xb30] sm:$0xff]
      %v958 = vld [vmem:[%s583 + $0xb38] sm:$0xff]
      %v959 = vld [vmem:[%s583 + $0xb40] sm:$0xff]
      %v960 = vld [vmem:[%s583 + $0xb48] sm:$0xff]
      %v961 = vld [vmem:[%s583 + $0xb50] sm:$0xff]
      %v962 = vld [vmem:[%s583 + $0xb58] sm:$0xff]
      %v963 = vld [vmem:[%s583 + $0xb60] sm:$0xff]
      %v964 = vld [vmem:[%s583 + $0xb68] sm:$0xff]
      %v965 = vld [vmem:[%s583 + $0xb70] sm:$0xff]
      %v966 = vld [vmem:[%s583 + $0xb78] sm:$0xff]
      %v967 = vld [vmem:[%s583 + $0xb80] sm:$0xff]
      %v968 = vld [vmem:[%s583 + $0xb88] sm:$0xff]
      %v969 = vld [vmem:[%s583 + $0xb90] sm:$0xff]
      %v970 = vld [vmem:[%s583 + $0xb98] sm:$0xff]
      %v971 = vld [vmem:[%s583 + $0xba0] sm:$0xff]
      %v972 = vld [vmem:[%s583 + $0xba8] sm:$0xff]
      %v973 = vld [vmem:[%s583 + $0xbb0] sm:$0xff]
      %v974 = vld [vmem:[%s583 + $0xbb8] sm:$0xff]
      %v975 = vld [vmem:[%s583 + $0xbc0] sm:$0xff]
      %v976 = vld [vmem:[%s583 + $0xbc8] sm:$0xff]
      %v977 = vld [vmem:[%s583 + $0xbd0] sm:$0xff]
      %v978 = vld [vmem:[%s583 + $0xbd8] sm:$0xff]
      %v979 = vld [vmem:[%s583 + $0xbe0] sm:$0xff]
      %v980 = vld [vmem:[%s583 + $0xbe8] sm:$0xff]
      %v981 = vld [vmem:[%s583 + $0xbf0] sm:$0xff]
      %v982 = vld [vmem:[%s583 + $0xbf8] sm:$0xff]
      %v983 = vld [vmem:[%s583 + $0xc00] sm:$0xff]
      %v984 = vld [vmem:[%s583 + $0xc08] sm:$0xff]
      %v985 = vld [vmem:[%s583 + $0xc10] sm:$0xff]
      %v986 = vld [vmem:[%s583 + $0xc18] sm:$0xff]
      %v987 = vld [vmem:[%s583 + $0xc20] sm:$0xff]
      %v988 = vld [vmem:[%s583 + $0xc28] sm:$0xff]
      %v989 = vld [vmem:[%s583 + $0xc30] sm:$0xff]
      %v990 = vld [vmem:[%s583 + $0xc38] sm:$0xff]
      %v991 = vld [vmem:[%s583 + $0xc40] sm:$0xff]
      %v992 = vld [vmem:[%s583 + $0xc48] sm:$0xff]
      %v993 = vld [vmem:[%s583 + $0xc50] sm:$0xff]
      %v994 = vld [vmem:[%s583 + $0xc58] sm:$0xff]
      %v995 = vld [vmem:[%s583 + $0xc60] sm:$0xff]
      %v996 = vld [vmem:[%s583 + $0xc68] sm:$0xff]
      %v997 = vld [vmem:[%s583 + $0xc70] sm:$0xff]
      %v998 = vld [vmem:[%s583 + $0xc78] sm:$0xff]
      %v999 = vld [vmem:[%s583 + $0xc80] sm:$0xff]
      %v1000 = vld [vmem:[%s583 + $0xc88] sm:$0xff]
      %v1001 = vld [vmem:[%s583 + $0xc90] sm:$0xff]
      %v1002 = vld [vmem:[%s583 + $0xc98] sm:$0xff]
      %v1003 = vld [vmem:[%s583 + $0xca0] sm:$0xff]
      %v1004 = vld [vmem:[%s583 + $0xca8] sm:$0xff]
      %v1005 = vld [vmem:[%s583 + $0xcb0] sm:$0xff]
      %v1006 = vld [vmem:[%s583 + $0xcb8] sm:$0xff]
      %v1007 = vld [vmem:[%s583 + $0xcc0] sm:$0xff]
      %v1008 = vld [vmem:[%s583 + $0xcc8] sm:$0xff]
      %v1009 = vld [vmem:[%s583 + $0xcd0] sm:$0xff]
      %v1010 = vld [vmem:[%s583 + $0xcd8] sm:$0xff]
      %v1011 = vld [vmem:[%s583 + $0xce0] sm:$0xff]
      %v1012 = vld [vmem:[%s583 + $0xce8] sm:$0xff]
      %v1013 = vld [vmem:[%s583 + $0xcf0] sm:$0xff]
      %v1014 = vld [vmem:[%s583 + $0xcf8] sm:$0xff]
      %v1015 = vld [vmem:[%s583 + $0xd00] sm:$0xff]
      %v1016 = vld [vmem:[%s583 + $0xd08] sm:$0xff]
      %v1017 = vld [vmem:[%s583 + $0xd10] sm:$0xff]
      %v1018 = vld [vmem:[%s583 + $0xd18] sm:$0xff]
      %v1019 = vld [vmem:[%s583 + $0xd20] sm:$0xff]
      %v1020 = vld [vmem:[%s583 + $0xd28] sm:$0xff]
      %v1021 = vld [vmem:[%s583 + $0xd30] sm:$0xff]
      %v1022 = vld [vmem:[%s583 + $0xd38] sm:$0xff]
      %v1023 = vld [vmem:[%s583 + $0xd40] sm:$0xff]
      %v1024 = vld [vmem:[%s583 + $0xd48] sm:$0xff]
      %v1025 = vld [vmem:[%s583 + $0xd50] sm:$0xff]
      %v1026 = vld [vmem:[%s583 + $0xd58] sm:$0xff]
      %v1027 = vld [vmem:[%s583 + $0xd60] sm:$0xff]
      %v1028 = vld [vmem:[%s583 + $0xd68] sm:$0xff]
      %v1029 = vld [vmem:[%s583 + $0xd70] sm:$0xff]
      %v1030 = vld [vmem:[%s583 + $0xd78] sm:$0xff]
      %v1031 = vld [vmem:[%s583 + $0xd80] sm:$0xff]
      %v1032 = vld [vmem:[%s583 + $0xd88] sm:$0xff]
      %v1033 = vld [vmem:[%s583 + $0xd90] sm:$0xff]
      %v1034 = vld [vmem:[%s583 + $0xd98] sm:$0xff]
      %v1035 = vld [vmem:[%s583 + $0xda0] sm:$0xff]
      %v1036 = vld [vmem:[%s583 + $0xda8] sm:$0xff]
      %v1037 = vld [vmem:[%s583 + $0xdb0] sm:$0xff]
      %v1038 = vld [vmem:[%s583 + $0xdb8] sm:$0xff]
      %v1039 = vld [vmem:[%s583 + $0xdc0] sm:$0xff]
      %v1040 = vld [vmem:[%s583 + $0xdc8] sm:$0xff]
      %v1041 = vld [vmem:[%s583 + $0xdd0] sm:$0xff]
      %v1042 = vld [vmem:[%s583 + $0xdd8] sm:$0xff]
      %v1043 = vld [vmem:[%s583 + $0xde0] sm:$0xff]
      %v1044 = vld [vmem:[%s583 + $0xde8] sm:$0xff]
      %v1045 = vld [vmem:[%s583 + $0xdf0] sm:$0xff]
      %v1046 = vld [vmem:[%s583 + $0xdf8] sm:$0xff]
      %v1047 = vpack.c.bf16 %v606, %v599
      %v1048 = vpack.c.bf16 %v607, %v600
      %v1049 = vpack.c.bf16 %v608, %v601
      %v1050 = vpack.c.bf16 %v609, %v602
      %v1051 = vpack.c.bf16 %v610, %v603
      %v1052 = vpack.c.bf16 %v611, %v604
      %v1053 = vpack.c.bf16 %v612, %v605
      %v1054 = vpack.c.bf16 %v620, %v613
      %v1055 = vpack.c.bf16 %v621, %v614
      %v1056 = vpack.c.bf16 %v622, %v615
      %v1057 = vpack.c.bf16 %v623, %v616
      %v1058 = vpack.c.bf16 %v624, %v617
      %v1059 = vpack.c.bf16 %v625, %v618
      %v1060 = vpack.c.bf16 %v626, %v619
      %v1061 = vpack.c.bf16 %v634, %v627
      %v1062 = vpack.c.bf16 %v635, %v628
      %v1063 = vpack.c.bf16 %v636, %v629
      %v1064 = vpack.c.bf16 %v637, %v630
      %v1065 = vpack.c.bf16 %v638, %v631
      %v1066 = vpack.c.bf16 %v639, %v632
      %v1067 = vpack.c.bf16 %v640, %v633
      %v1068 = vpack.c.bf16 %v648, %v641
      %v1069 = vpack.c.bf16 %v649, %v642
      %v1070 = vpack.c.bf16 %v650, %v643
      %v1071 = vpack.c.bf16 %v651, %v644
      %v1072 = vpack.c.bf16 %v652, %v645
      %v1073 = vpack.c.bf16 %v653, %v646
      %v1074 = vpack.c.bf16 %v654, %v647
      %v1075 = vpack.c.bf16 %v662, %v655
      %v1076 = vpack.c.bf16 %v663, %v656
      %v1077 = vpack.c.bf16 %v664, %v657
      %v1078 = vpack.c.bf16 %v665, %v658
      %v1079 = vpack.c.bf16 %v666, %v659
      %v1080 = vpack.c.bf16 %v667, %v660
      %v1081 = vpack.c.bf16 %v668, %v661
      %v1082 = vpack.c.bf16 %v676, %v669
      %v1083 = vpack.c.bf16 %v677, %v670
      %v1084 = vpack.c.bf16 %v678, %v671
      %v1085 = vpack.c.bf16 %v679, %v672
      %v1086 = vpack.c.bf16 %v680, %v673
      %v1087 = vpack.c.bf16 %v681, %v674
      %v1088 = vpack.c.bf16 %v682, %v675
      %v1089 = vpack.c.bf16 %v690, %v683
      %v1090 = vpack.c.bf16 %v691, %v684
      %v1091 = vpack.c.bf16 %v692, %v685
      %v1092 = vpack.c.bf16 %v693, %v686
      %v1093 = vpack.c.bf16 %v694, %v687
      %v1094 = vpack.c.bf16 %v695, %v688
      %v1095 = vpack.c.bf16 %v696, %v689
      %v1096 = vpack.c.bf16 %v704, %v697
      %v1097 = vpack.c.bf16 %v705, %v698
      %v1098 = vpack.c.bf16 %v706, %v699
      %v1099 = vpack.c.bf16 %v707, %v700
      %v1100 = vpack.c.bf16 %v708, %v701
      %v1101 = vpack.c.bf16 %v709, %v702
      %v1102 = vpack.c.bf16 %v710, %v703
      %v1103 = vpack.c.bf16 %v718, %v711
      %v1104 = vpack.c.bf16 %v719, %v712
      %v1105 = vpack.c.bf16 %v720, %v713
      %v1106 = vpack.c.bf16 %v721, %v714
      %v1107 = vpack.c.bf16 %v722, %v715
      %v1108 = vpack.c.bf16 %v723, %v716
      %v1109 = vpack.c.bf16 %v724, %v717
      %v1110 = vpack.c.bf16 %v732, %v725
      %v1111 = vpack.c.bf16 %v733, %v726
      %v1112 = vpack.c.bf16 %v734, %v727
      %v1113 = vpack.c.bf16 %v735, %v728
      %v1114 = vpack.c.bf16 %v736, %v729
      %v1115 = vpack.c.bf16 %v737, %v730
      %v1116 = vpack.c.bf16 %v738, %v731
      %v1117 = vpack.c.bf16 %v746, %v739
      %v1118 = vpack.c.bf16 %v747, %v740
      %v1119 = vpack.c.bf16 %v748, %v741
      %v1120 = vpack.c.bf16 %v749, %v742
      %v1121 = vpack.c.bf16 %v750, %v743
      %v1122 = vpack.c.bf16 %v751, %v744
      %v1123 = vpack.c.bf16 %v752, %v745
      %v1124 = vpack.c.bf16 %v760, %v753
      %v1125 = vpack.c.bf16 %v761, %v754
      %v1126 = vpack.c.bf16 %v762, %v755
      %v1127 = vpack.c.bf16 %v763, %v756
      %v1128 = vpack.c.bf16 %v764, %v757
      %v1129 = vpack.c.bf16 %v765, %v758
      %v1130 = vpack.c.bf16 %v766, %v759
      %v1131 = vpack.c.bf16 %v774, %v767
      %v1132 = vpack.c.bf16 %v775, %v768
      %v1133 = vpack.c.bf16 %v776, %v769
      %v1134 = vpack.c.bf16 %v777, %v770
      %v1135 = vpack.c.bf16 %v778, %v771
      %v1136 = vpack.c.bf16 %v779, %v772
      %v1137 = vpack.c.bf16 %v780, %v773
      %v1138 = vpack.c.bf16 %v788, %v781
      %v1139 = vpack.c.bf16 %v789, %v782
      %v1140 = vpack.c.bf16 %v790, %v783
      %v1141 = vpack.c.bf16 %v791, %v784
      %v1142 = vpack.c.bf16 %v792, %v785
      %v1143 = vpack.c.bf16 %v793, %v786
      %v1144 = vpack.c.bf16 %v794, %v787
      %v1145 = vpack.c.bf16 %v802, %v795
      %v1146 = vpack.c.bf16 %v803, %v796
      %v1147 = vpack.c.bf16 %v804, %v797
      %v1148 = vpack.c.bf16 %v805, %v798
      %v1149 = vpack.c.bf16 %v806, %v799
      %v1150 = vpack.c.bf16 %v807, %v800
      %v1151 = vpack.c.bf16 %v808, %v801
      %v1152 = vpack.c.bf16 %v816, %v809
      %v1153 = vpack.c.bf16 %v817, %v810
      %v1154 = vpack.c.bf16 %v818, %v811
      %v1155 = vpack.c.bf16 %v819, %v812
      %v1156 = vpack.c.bf16 %v820, %v813
      %v1157 = vpack.c.bf16 %v821, %v814
      %v1158 = vpack.c.bf16 %v822, %v815
      %v1159 = vpack.c.bf16 %v830, %v823
      %v1160 = vpack.c.bf16 %v831, %v824
      %v1161 = vpack.c.bf16 %v832, %v825
      %v1162 = vpack.c.bf16 %v833, %v826
      %v1163 = vpack.c.bf16 %v834, %v827
      %v1164 = vpack.c.bf16 %v835, %v828
      %v1165 = vpack.c.bf16 %v836, %v829
      %v1166 = vpack.c.bf16 %v844, %v837
      %v1167 = vpack.c.bf16 %v845, %v838
      %v1168 = vpack.c.bf16 %v846, %v839
      %v1169 = vpack.c.bf16 %v847, %v840
      %v1170 = vpack.c.bf16 %v848, %v841
      %v1171 = vpack.c.bf16 %v849, %v842
      %v1172 = vpack.c.bf16 %v850, %v843
      %v1173 = vpack.c.bf16 %v858, %v851
      %v1174 = vpack.c.bf16 %v859, %v852
      %v1175 = vpack.c.bf16 %v860, %v853
      %v1176 = vpack.c.bf16 %v861, %v854
      %v1177 = vpack.c.bf16 %v862, %v855
      %v1178 = vpack.c.bf16 %v863, %v856
      %v1179 = vpack.c.bf16 %v864, %v857
      %v1180 = vpack.c.bf16 %v872, %v865
      %v1181 = vpack.c.bf16 %v873, %v866
      %v1182 = vpack.c.bf16 %v874, %v867
      %v1183 = vpack.c.bf16 %v875, %v868
      %v1184 = vpack.c.bf16 %v876, %v869
      %v1185 = vpack.c.bf16 %v877, %v870
      %v1186 = vpack.c.bf16 %v878, %v871
      %v1187 = vpack.c.bf16 %v886, %v879
      %v1188 = vpack.c.bf16 %v887, %v880
      %v1189 = vpack.c.bf16 %v888, %v881
      %v1190 = vpack.c.bf16 %v889, %v882
      %v1191 = vpack.c.bf16 %v890, %v883
      %v1192 = vpack.c.bf16 %v891, %v884
      %v1193 = vpack.c.bf16 %v892, %v885
      %v1194 = vpack.c.bf16 %v900, %v893
      %v1195 = vpack.c.bf16 %v901, %v894
      %v1196 = vpack.c.bf16 %v902, %v895
      %v1197 = vpack.c.bf16 %v903, %v896
      %v1198 = vpack.c.bf16 %v904, %v897
      %v1199 = vpack.c.bf16 %v905, %v898
      %v1200 = vpack.c.bf16 %v906, %v899
      %v1201 = vpack.c.bf16 %v914, %v907
      %v1202 = vpack.c.bf16 %v915, %v908
      %v1203 = vpack.c.bf16 %v916, %v909
      %v1204 = vpack.c.bf16 %v917, %v910
      %v1205 = vpack.c.bf16 %v918, %v911
      %v1206 = vpack.c.bf16 %v919, %v912
      %v1207 = vpack.c.bf16 %v920, %v913
      %v1208 = vpack.c.bf16 %v928, %v921
      %v1209 = vpack.c.bf16 %v929, %v922
      %v1210 = vpack.c.bf16 %v930, %v923
      %v1211 = vpack.c.bf16 %v931, %v924
      %v1212 = vpack.c.bf16 %v932, %v925
      %v1213 = vpack.c.bf16 %v933, %v926
      %v1214 = vpack.c.bf16 %v934, %v927
      %v1215 = vpack.c.bf16 %v942, %v935
      %v1216 = vpack.c.bf16 %v943, %v936
      %v1217 = vpack.c.bf16 %v944, %v937
      %v1218 = vpack.c.bf16 %v945, %v938
      %v1219 = vpack.c.bf16 %v946, %v939
      %v1220 = vpack.c.bf16 %v947, %v940
      %v1221 = vpack.c.bf16 %v948, %v941
      %v1222 = vpack.c.bf16 %v956, %v949
      %v1223 = vpack.c.bf16 %v957, %v950
      %v1224 = vpack.c.bf16 %v958, %v951
      %v1225 = vpack.c.bf16 %v959, %v952
      %v1226 = vpack.c.bf16 %v960, %v953
      %v1227 = vpack.c.bf16 %v961, %v954
      %v1228 = vpack.c.bf16 %v962, %v955
      %v1229 = vpack.c.bf16 %v970, %v963
      %v1230 = vpack.c.bf16 %v971, %v964
      %v1231 = vpack.c.bf16 %v972, %v965
      %v1232 = vpack.c.bf16 %v973, %v966
      %v1233 = vpack.c.bf16 %v974, %v967
      %v1234 = vpack.c.bf16 %v975, %v968
      %v1235 = vpack.c.bf16 %v976, %v969
      %v1236 = vpack.c.bf16 %v984, %v977
      %v1237 = vpack.c.bf16 %v985, %v978
      %v1238 = vpack.c.bf16 %v986, %v979
      %v1239 = vpack.c.bf16 %v987, %v980
      %v1240 = vpack.c.bf16 %v988, %v981
      %v1241 = vpack.c.bf16 %v989, %v982
      %v1242 = vpack.c.bf16 %v990, %v983
      %v1243 = vpack.c.bf16 %v998, %v991
      %v1244 = vpack.c.bf16 %v999, %v992
      %v1245 = vpack.c.bf16 %v1000, %v993
      %v1246 = vpack.c.bf16 %v1001, %v994
      %v1247 = vpack.c.bf16 %v1002, %v995
      %v1248 = vpack.c.bf16 %v1003, %v996
      %v1249 = vpack.c.bf16 %v1004, %v997
      %v1250 = vpack.c.bf16 %v1012, %v1005
      %v1251 = vpack.c.bf16 %v1013, %v1006
      %v1252 = vpack.c.bf16 %v1014, %v1007
      %v1253 = vpack.c.bf16 %v1015, %v1008
      %v1254 = vpack.c.bf16 %v1016, %v1009
      %v1255 = vpack.c.bf16 %v1017, %v1010
      %v1256 = vpack.c.bf16 %v1018, %v1011
      %v1257 = vpack.c.bf16 %v1026, %v1019
      %v1258 = vpack.c.bf16 %v1027, %v1020
      %v1259 = vpack.c.bf16 %v1028, %v1021
      %v1260 = vpack.c.bf16 %v1029, %v1022
      %v1261 = vpack.c.bf16 %v1030, %v1023
      %v1262 = vpack.c.bf16 %v1031, %v1024
      %v1263 = vpack.c.bf16 %v1032, %v1025
      %v1264 = vpack.c.bf16 %v1040, %v1033
      %v1265 = vpack.c.bf16 %v1041, %v1034
      %v1266 = vpack.c.bf16 %v1042, %v1035
      %v1267 = vpack.c.bf16 %v1043, %v1036
      %v1268 = vpack.c.bf16 %v1044, %v1037
      %v1269 = vpack.c.bf16 %v1045, %v1038
      %v1270 = vpack.c.bf16 %v1046, %v1039
      %v1271 = vld [vmem:[%s1] sm:$0xf]
      %v1272 = vld [vmem:[%s1 + $0x4] sm:$0xf]
      %v1273 = vld [vmem:[%s1 + $0x8] sm:$0xf]
      %v1274 = vld [vmem:[%s1 + $0xc] sm:$0xf]
      %v1275 = vld [vmem:[%s1 + $0x10] sm:$0xf]
      %v1276 = vld [vmem:[%s1 + $0x14] sm:$0xf]
      %v1277 = vld [vmem:[%s1 + $0x18] sm:$0xf]
      %v1278 = vld [vmem:[%s1 + $0x1c] sm:$0xf]
      %v1279 = vld [vmem:[%s1 + $0x20] sm:$0xf]
      %v1280 = vld [vmem:[%s1 + $0x24] sm:$0xf]
      %v1281 = vld [vmem:[%s1 + $0x28] sm:$0xf]
      %v1282 = vld [vmem:[%s1 + $0x2c] sm:$0xf]
      %v1283 = vld [vmem:[%s1 + $0x30] sm:$0xf]
      %v1284 = vld [vmem:[%s1 + $0x34] sm:$0xf]
      %v1285 = vld [vmem:[%s1 + $0x38] sm:$0xf]
      %v1286 = vld [vmem:[%s1 + $0x3c] sm:$0xf]
      %v1287 = vld [vmem:[%s1 + $0x40] sm:$0xf]
      %v1288 = vld [vmem:[%s1 + $0x44] sm:$0xf]
      %v1289 = vld [vmem:[%s1 + $0x48] sm:$0xf]
      %v1290 = vld [vmem:[%s1 + $0x4c] sm:$0xf]
      %v1291 = vld [vmem:[%s1 + $0x50] sm:$0xf]
      %v1292 = vld [vmem:[%s1 + $0x54] sm:$0xf]
      %v1293 = vld [vmem:[%s1 + $0x58] sm:$0xf]
      %v1294 = vld [vmem:[%s1 + $0x5c] sm:$0xf]
      %v1295 = vld [vmem:[%s1 + $0x60] sm:$0xf]
      %v1296 = vld [vmem:[%s1 + $0x64] sm:$0xf]
      %v1297 = vld [vmem:[%s1 + $0x68] sm:$0xf]
      %v1298 = vld [vmem:[%s1 + $0x6c] sm:$0xf]
      %v1299 = vld [vmem:[%s1 + $0x70] sm:$0xf]
      %v1300 = vld [vmem:[%s1 + $0x74] sm:$0xf]
      %v1301 = vld [vmem:[%s1 + $0x78] sm:$0xf]
      %v1302 = vld [vmem:[%s1 + $0x7c] sm:$0xf]
      %v1303 = vld [vmem:[%s1 + $0x80] sm:$0xf]
      %v1304 = vld [vmem:[%s1 + $0x84] sm:$0xf]
      %v1305 = vld [vmem:[%s1 + $0x88] sm:$0xf]
      %v1306 = vld [vmem:[%s1 + $0x8c] sm:$0xf]
      %v1307 = vld [vmem:[%s1 + $0x90] sm:$0xf]
      %v1308 = vld [vmem:[%s1 + $0x94] sm:$0xf]
      %v1309 = vld [vmem:[%s1 + $0x98] sm:$0xf]
      %v1310 = vld [vmem:[%s1 + $0x9c] sm:$0xf]
      %v1311 = vld [vmem:[%s1 + $0xa0] sm:$0xf]
      %v1312 = vld [vmem:[%s1 + $0xa4] sm:$0xf]
      %v1313 = vld [vmem:[%s1 + $0xa8] sm:$0xf]
      %v1314 = vld [vmem:[%s1 + $0xac] sm:$0xf]
      %v1315 = vld [vmem:[%s1 + $0xb0] sm:$0xf]
      %v1316 = vld [vmem:[%s1 + $0xb4] sm:$0xf]
      %v1317 = vld [vmem:[%s1 + $0xb8] sm:$0xf]
      %v1318 = vld [vmem:[%s1 + $0xbc] sm:$0xf]
      %v1319 = vld [vmem:[%s1 + $0xc0] sm:$0xf]
      %v1320 = vld [vmem:[%s1 + $0xc4] sm:$0xf]
      %v1321 = vld [vmem:[%s1 + $0xc8] sm:$0xf]
      %v1322 = vld [vmem:[%s1 + $0xcc] sm:$0xf]
      %v1323 = vld [vmem:[%s1 + $0xd0] sm:$0xf]
      %v1324 = vld [vmem:[%s1 + $0xd4] sm:$0xf]
      %v1325 = vld [vmem:[%s1 + $0xd8] sm:$0xf]
      %v1326 = vld [vmem:[%s1 + $0xdc] sm:$0xf]
      %v1327 = vld [vmem:[%s1 + $0xe0] sm:$0xf]
      %v1328 = vld [vmem:[%s1 + $0xe4] sm:$0xf]
      %v1329 = vld [vmem:[%s1 + $0xe8] sm:$0xf]
      %v1330 = vld [vmem:[%s1 + $0xec] sm:$0xf]
      %v1331 = vld [vmem:[%s1 + $0xf0] sm:$0xf]
      %v1332 = vld [vmem:[%s1 + $0xf4] sm:$0xf]
      %v1333 = vld [vmem:[%s1 + $0xf8] sm:$0xf]
      %v1334 = vld [vmem:[%s1 + $0xfc] sm:$0xf]
      %v1335 = vld [vmem:[%s1 + $0x100] sm:$0xf]
      %v1336 = vld [vmem:[%s1 + $0x104] sm:$0xf]
      %v1337 = vld [vmem:[%s1 + $0x108] sm:$0xf]
      %v1338 = vld [vmem:[%s1 + $0x10c] sm:$0xf]
      %v1339 = vld [vmem:[%s1 + $0x110] sm:$0xf]
      %v1340 = vld [vmem:[%s1 + $0x114] sm:$0xf]
      %v1341 = vld [vmem:[%s1 + $0x118] sm:$0xf]
      %v1342 = vld [vmem:[%s1 + $0x11c] sm:$0xf]
      %v1343 = vld [vmem:[%s1 + $0x120] sm:$0xf]
      %v1344 = vld [vmem:[%s1 + $0x124] sm:$0xf]
      %v1345 = vld [vmem:[%s1 + $0x128] sm:$0xf]
      %v1346 = vld [vmem:[%s1 + $0x12c] sm:$0xf]
      %v1347 = vld [vmem:[%s1 + $0x130] sm:$0xf]
      %v1348 = vld [vmem:[%s1 + $0x134] sm:$0xf]
      %v1349 = vld [vmem:[%s1 + $0x138] sm:$0xf]
      %v1350 = vld [vmem:[%s1 + $0x13c] sm:$0xf]
      %v1351 = vld [vmem:[%s1 + $0x140] sm:$0xf]
      %v1352 = vld [vmem:[%s1 + $0x144] sm:$0xf]
      %v1353 = vld [vmem:[%s1 + $0x148] sm:$0xf]
      %v1354 = vld [vmem:[%s1 + $0x14c] sm:$0xf]
      %v1355 = vld [vmem:[%s1 + $0x150] sm:$0xf]
      %v1356 = vld [vmem:[%s1 + $0x154] sm:$0xf]
      %v1357 = vld [vmem:[%s1 + $0x158] sm:$0xf]
      %v1358 = vld [vmem:[%s1 + $0x15c] sm:$0xf]
      %v1359 = vld [vmem:[%s1 + $0x160] sm:$0xf]
      %v1360 = vld [vmem:[%s1 + $0x164] sm:$0xf]
      %v1361 = vld [vmem:[%s1 + $0x168] sm:$0xf]
      %v1362 = vld [vmem:[%s1 + $0x16c] sm:$0xf]
      %v1363 = vld [vmem:[%s1 + $0x170] sm:$0xf]
      %v1364 = vld [vmem:[%s1 + $0x174] sm:$0xf]
      %v1365 = vld [vmem:[%s1 + $0x178] sm:$0xf]
      %v1366 = vld [vmem:[%s1 + $0x17c] sm:$0xf]
      %v1367 = vld [vmem:[%s1 + $0x180] sm:$0xf]
      %v1368 = vld [vmem:[%s1 + $0x184] sm:$0xf]
      %v1369 = vld [vmem:[%s2] sm:$0x1]
      %v1371 = vlaneseq
      %v1372 = vshrl.u32 %v1371, 7
      %v1373 = vsub.s32 0, %v1372
      %v1374 = vrot.slane %v1369, %v1373
      %v1474 = vunpack.c.l.b16 %v1271
      %v1475 = vunpack.c.l.b16 %v1272
      %v1476 = vunpack.c.l.b16 %v1273
      %v1477 = vunpack.c.l.b16 %v1274
      %v1478 = vunpack.c.l.b16 %v1275
      %v1479 = vunpack.c.l.b16 %v1276
      %v1480 = vunpack.c.l.b16 %v1277
      %v1481 = vunpack.c.l.b16 %v1278
      %v1482 = vunpack.c.l.b16 %v1279
      %v1483 = vunpack.c.l.b16 %v1280
      %v1484 = vunpack.c.l.b16 %v1281
      %v1485 = vunpack.c.l.b16 %v1282
      %v1486 = vunpack.c.l.b16 %v1283
      %v1487 = vunpack.c.l.b16 %v1284
      %v1488 = vunpack.c.l.b16 %v1285
      %v1489 = vunpack.c.l.b16 %v1286
      %v1490 = vunpack.c.l.b16 %v1287
      %v1491 = vunpack.c.l.b16 %v1288
      %v1492 = vunpack.c.l.b16 %v1289
      %v1493 = vunpack.c.l.b16 %v1290
      %v1494 = vunpack.c.l.b16 %v1291
      %v1495 = vunpack.c.l.b16 %v1292
      %v1496 = vunpack.c.l.b16 %v1293
      %v1497 = vunpack.c.l.b16 %v1294
      %v1498 = vunpack.c.l.b16 %v1295
      %v1499 = vunpack.c.l.b16 %v1296
      %v1500 = vunpack.c.l.b16 %v1297
      %v1501 = vunpack.c.l.b16 %v1298
      %v1502 = vunpack.c.l.b16 %v1299
      %v1503 = vunpack.c.l.b16 %v1300
      %v1504 = vunpack.c.l.b16 %v1301
      %v1505 = vunpack.c.l.b16 %v1302
      %v1506 = vunpack.c.l.b16 %v1303
      %v1507 = vunpack.c.l.b16 %v1304
      %v1508 = vunpack.c.l.b16 %v1305
      %v1509 = vunpack.c.l.b16 %v1306
      %v1510 = vunpack.c.l.b16 %v1307
      %v1511 = vunpack.c.l.b16 %v1308
      %v1512 = vunpack.c.l.b16 %v1309
      %v1513 = vunpack.c.l.b16 %v1310
      %v1514 = vunpack.c.l.b16 %v1311
      %v1515 = vunpack.c.l.b16 %v1312
      %v1516 = vunpack.c.l.b16 %v1313
      %v1517 = vunpack.c.l.b16 %v1314
      %v1518 = vunpack.c.l.b16 %v1315
      %v1519 = vunpack.c.l.b16 %v1316
      %v1520 = vunpack.c.l.b16 %v1317
      %v1521 = vunpack.c.l.b16 %v1318
      %v1522 = vunpack.c.l.b16 %v1319
      %v1523 = vunpack.c.l.b16 %v1320
      %v1524 = vunpack.c.l.b16 %v1321
      %v1525 = vunpack.c.l.b16 %v1322
      %v1526 = vunpack.c.l.b16 %v1323
      %v1527 = vunpack.c.l.b16 %v1324
      %v1528 = vunpack.c.l.b16 %v1325
      %v1529 = vunpack.c.l.b16 %v1326
      %v1530 = vunpack.c.l.b16 %v1327
      %v1531 = vunpack.c.l.b16 %v1328
      %v1532 = vunpack.c.l.b16 %v1329
      %v1533 = vunpack.c.l.b16 %v1330
      %v1534 = vunpack.c.l.b16 %v1331
      %v1535 = vunpack.c.l.b16 %v1332
      %v1536 = vunpack.c.l.b16 %v1333
      %v1537 = vunpack.c.l.b16 %v1334
      %v1538 = vunpack.c.l.b16 %v1335
      %v1539 = vunpack.c.l.b16 %v1336
      %v1540 = vunpack.c.l.b16 %v1337
      %v1541 = vunpack.c.l.b16 %v1338
      %v1542 = vunpack.c.l.b16 %v1339
      %v1543 = vunpack.c.l.b16 %v1340
      %v1544 = vunpack.c.l.b16 %v1341
      %v1545 = vunpack.c.l.b16 %v1342
      %v1546 = vunpack.c.l.b16 %v1343
      %v1547 = vunpack.c.l.b16 %v1344
      %v1548 = vunpack.c.l.b16 %v1345
      %v1549 = vunpack.c.l.b16 %v1346
      %v1550 = vunpack.c.l.b16 %v1347
      %v1551 = vunpack.c.l.b16 %v1348
      %v1552 = vunpack.c.l.b16 %v1349
      %v1553 = vunpack.c.l.b16 %v1350
      %v1554 = vunpack.c.l.b16 %v1351
      %v1555 = vunpack.c.l.b16 %v1352
      %v1556 = vunpack.c.l.b16 %v1353
      %v1557 = vunpack.c.l.b16 %v1354
      %v1558 = vunpack.c.l.b16 %v1355
      %v1559 = vunpack.c.l.b16 %v1356
      %v1560 = vunpack.c.l.b16 %v1357
      %v1561 = vunpack.c.l.b16 %v1358
      %v1562 = vunpack.c.l.b16 %v1359
      %v1563 = vunpack.c.l.b16 %v1360
      %v1564 = vunpack.c.l.b16 %v1361
      %v1565 = vunpack.c.l.b16 %v1362
      %v1566 = vunpack.c.l.b16 %v1363
      %v1567 = vunpack.c.l.b16 %v1364
      %v1568 = vunpack.c.l.b16 %v1365
      %v1569 = vunpack.c.l.b16 %v1366
      %v1570 = vunpack.c.l.b16 %v1367
      %v1571 = vunpack.c.l.b16 %v1368
      %v1572 = vpack.c.b16 %v1475, %v1474
      %v1573 = vpack.c.b16 %v1477, %v1476
      %v1574 = vpack.c.b16 %v1479, %v1478
      %v1575 = vpack.c.b16 %v1481, %v1480
      %v1576 = vpack.c.b16 %v1483, %v1482
      %v1577 = vpack.c.b16 %v1485, %v1484
      %v1578 = vpack.c.b16 %v1487, %v1486
      %v1579 = vpack.c.b16 %v1489, %v1488
      %v1580 = vpack.c.b16 %v1491, %v1490
      %v1581 = vpack.c.b16 %v1493, %v1492
      %v1582 = vpack.c.b16 %v1495, %v1494
      %v1583 = vpack.c.b16 %v1497, %v1496
      %v1584 = vpack.c.b16 %v1499, %v1498
      %v1585 = vpack.c.b16 %v1501, %v1500
      %v1586 = vpack.c.b16 %v1503, %v1502
      %v1587 = vpack.c.b16 %v1505, %v1504
      %v1588 = vpack.c.b16 %v1507, %v1506
      %v1589 = vpack.c.b16 %v1509, %v1508
      %v1590 = vpack.c.b16 %v1511, %v1510
      %v1591 = vpack.c.b16 %v1513, %v1512
      %v1592 = vpack.c.b16 %v1515, %v1514
      %v1593 = vpack.c.b16 %v1517, %v1516
      %v1594 = vpack.c.b16 %v1519, %v1518
      %v1595 = vpack.c.b16 %v1521, %v1520
      %v1596 = vpack.c.b16 %v1523, %v1522
      %v1597 = vpack.c.b16 %v1525, %v1524
      %v1598 = vpack.c.b16 %v1527, %v1526
      %v1599 = vpack.c.b16 %v1529, %v1528
      %v1600 = vpack.c.b16 %v1531, %v1530
      %v1601 = vpack.c.b16 %v1533, %v1532
      %v1602 = vpack.c.b16 %v1535, %v1534
      %v1603 = vpack.c.b16 %v1537, %v1536
      %v1604 = vpack.c.b16 %v1539, %v1538
      %v1605 = vpack.c.b16 %v1541, %v1540
      %v1606 = vpack.c.b16 %v1543, %v1542
      %v1607 = vpack.c.b16 %v1545, %v1544
      %v1608 = vpack.c.b16 %v1547, %v1546
      %v1609 = vpack.c.b16 %v1549, %v1548
      %v1610 = vpack.c.b16 %v1551, %v1550
      %v1611 = vpack.c.b16 %v1553, %v1552
      %v1612 = vpack.c.b16 %v1555, %v1554
      %v1613 = vpack.c.b16 %v1557, %v1556
      %v1614 = vpack.c.b16 %v1559, %v1558
      %v1615 = vpack.c.b16 %v1561, %v1560
      %v1616 = vpack.c.b16 %v1563, %v1562
      %v1617 = vpack.c.b16 %v1565, %v1564
      %v1618 = vpack.c.b16 %v1567, %v1566
      %v1619 = vpack.c.b16 %v1569, %v1568
      %v1620 = vpack.c.b16 %v1571, %v1570
      %vm1670 = vcmask 130048
      %v1672 = vsel %vm1670, %v1053, 0
      %v1675 = vsel %vm1670, %v1060, 0
      %v1678 = vsel %vm1670, %v1067, 0
      %v1681 = vsel %vm1670, %v1074, 0
      %v1684 = vsel %vm1670, %v1081, 0
      %v1687 = vsel %vm1670, %v1088, 0
      %v1690 = vsel %vm1670, %v1095, 0
      %v1693 = vsel %vm1670, %v1102, 0
      %v1696 = vsel %vm1670, %v1109, 0
      %v1699 = vsel %vm1670, %v1116, 0
      %v1702 = vsel %vm1670, %v1123, 0
      %v1705 = vsel %vm1670, %v1130, 0
      %v1708 = vsel %vm1670, %v1137, 0
      %v1711 = vsel %vm1670, %v1144, 0
      %v1714 = vsel %vm1670, %v1151, 0
      %v1717 = vsel %vm1670, %v1158, 0
      %v1720 = vsel %vm1670, %v1165, 0
      %v1723 = vsel %vm1670, %v1172, 0
      %v1726 = vsel %vm1670, %v1179, 0
      %v1729 = vsel %vm1670, %v1186, 0
      %v1732 = vsel %vm1670, %v1193, 0
      %v1735 = vsel %vm1670, %v1200, 0
      %v1738 = vsel %vm1670, %v1207, 0
      %v1741 = vsel %vm1670, %v1214, 0
      %v1744 = vsel %vm1670, %v1221, 0
      %v1747 = vsel %vm1670, %v1228, 0
      %v1750 = vsel %vm1670, %v1235, 0
      %v1753 = vsel %vm1670, %v1242, 0
      %v1756 = vsel %vm1670, %v1249, 0
      %v1759 = vsel %vm1670, %v1256, 0
      %v1762 = vsel %vm1670, %v1263, 0
      %v1765 = vsel %vm1670, %v1270, 0
      %1767 = vmatprep.subr.bf16.mxu0 0
      %1768 = vmatpush1.bf16.msra.mxu0 %v1572
      %1769 = vmatprep.subr.bf16.mxu0 0
      %1770 = vmatpush1.bf16.msra.mxu0 %v1573
      %1771 = vmatprep.subr.bf16.mxu0 0
      %1772 = vmatpush1.bf16.msra.mxu0 %v1574
      %1773 = vmatprep.subr.bf16.mxu0 0
      %1774 = vmatpush1.bf16.msra.mxu0 %v1575
      %1775 = vmatprep.subr.bf16.mxu0 0
      %1776 = vmatpush1.bf16.msra.mxu0 %v1576
      %1777 = vmatprep.subr.bf16.mxu0 0
      %1778 = vmatpush1.bf16.msra.mxu0 %v1577
      %1779 = vmatprep.subr.bf16.mxu0 0
      %1780 = vmatpush1.bf16.msra.mxu0 %v1578
      %1781 = vmatprep.subr.bf16.mxu0 0
      %1782 = vmatpush1.bf16.msra.mxu0 %v1579
      %1783 = vmatprep.subr.bf16.mxu0 0
      %1784 = vmatpush1.bf16.msra.mxu0 %v1580
      %1785 = vmatprep.subr.bf16.mxu0 0
      %1786 = vmatpush1.bf16.msra.mxu0 %v1581
      %1787 = vmatprep.subr.bf16.mxu0 0
      %1788 = vmatpush1.bf16.msra.mxu0 %v1582
      %1789 = vmatprep.subr.bf16.mxu0 0
      %1790 = vmatpush1.bf16.msra.mxu0 %v1583
      %1791 = vmatprep.subr.bf16.mxu0 0
      %1792 = vmatpush1.bf16.msra.mxu0 %v1584
      %1793 = vmatprep.subr.bf16.mxu0 0
      %1794 = vmatpush1.bf16.msra.mxu0 %v1585
      %1795 = vmatprep.subr.bf16.mxu0 0
      %1796 = vmatpush1.bf16.msra.mxu0 %v1586
      %1797 = vmatprep.subr.bf16.mxu0 0
      %1798 = vmatpush1.bf16.msra.mxu0 %v1587
      %1799 = vmatprep.mubr.bf16.mxu0 %v1048
      %1800 = vmatmul.mubr.bf16.gmra.mrb[0].mxu0 %v1047
      %v1801 = vpop.f32.mrb[0].mxu0
      %v1802 = vadd.f32 %v1374, %v1801
      %v1803 = vpop.f32.mrb[0].mxu0
      %v1804 = vpop.f32.mrb[0].mxu0
      %v1805 = vadd.f32 %v1374, %v1804
      %v1806 = vpop.f32.mrb[0].mxu0
      %1807 = vmatprep.mubr.bf16.mxu0 %v1055
      %1808 = vmatmul.mubr.bf16.gmra.mrb[0].mxu0 %v1054
      %v1809 = vpop.f32.mrb[0].mxu0
      %v1810 = vadd.f32 %v1374, %v1809
      %v1811 = vpop.f32.mrb[0].mxu0
      %v1812 = vpop.f32.mrb[0].mxu0
      %v1813 = vadd.f32 %v1374, %v1812
      %v1814 = vpop.f32.mrb[0].mxu0
      %1815 = vmatprep.mubr.bf16.mxu0 %v1062
      %1816 = vmatmul.mubr.bf16.gmra.mrb[0].mxu0 %v1061
      %v1817 = vpop.f32.mrb[0].mxu0
      %v1818 = vadd.f32 %v1374, %v1817
      %v1819 = vpop.f32.mrb[0].mxu0
      %v1820 = vpop.f32.mrb[0].mxu0
      %v1821 = vadd.f32 %v1374, %v1820
      %v1822 = vpop.f32.mrb[0].mxu0
      %1823 = vmatprep.mubr.bf16.mxu0 %v1069
      %1824 = vmatmul.mubr.bf16.gmra.mrb[0].mxu0 %v1068
      %v1825 = vpop.f32.mrb[0].mxu0
      %v1826 = vadd.f32 %v1374, %v1825
      %v1827 = vpop.f32.mrb[0].mxu0
      %v1828 = vpop.f32.mrb[0].mxu0
      %v1829 = vadd.f32 %v1374, %v1828
      %v1830 = vpop.f32.mrb[0].mxu0
      %1831 = vmatprep.mubr.bf16.mxu0 %v1076
      %1832 = vmatmul.mubr.bf16.gmra.mrb[0].mxu0 %v1075
      %v1833 = vpop.f32.mrb[0].mxu0
      %v1834 = vadd.f32 %v1374, %v1833
      %v1835 = vpop.f32.mrb[0].mxu0
      %v1836 = vpop.f32.mrb[0].mxu0
      %v1837 = vadd.f32 %v1374, %v1836
      %v1838 = vpop.f32.mrb[0].mxu0
      %1839 = vmatprep.mubr.bf16.mxu0 %v1083
      %1840 = vmatmul.mubr.bf16.gmra.mrb[0].mxu0 %v1082
      %v1841 = vpop.f32.mrb[0].mxu0
      %v1842 = vadd.f32 %v1374, %v1841
      %v1843 = vpop.f32.mrb[0].mxu0
      %v1844 = vpop.f32.mrb[0].mxu0
      %v1845 = vadd.f32 %v1374, %v1844
      %v1846 = vpop.f32.mrb[0].mxu0
      %1847 = vmatprep.mubr.bf16.mxu0 %v1090
      %1848 = vmatmul.mubr.bf16.gmra.mrb[0].mxu0 %v1089
      %v1849 = vpop.f32.mrb[0].mxu0
      %v1850 = vadd.f32 %v1374, %v1849
      %v1851 = vpop.f32.mrb[0].mxu0
      %v1852 = vpop.f32.mrb[0].mxu0
      %v1853 = vadd.f32 %v1374, %v1852
      %v1854 = vpop.f32.mrb[0].mxu0
      %1855 = vmatprep.mubr.bf16.mxu0 %v1097
      %1856 = vmatmul.mubr.bf16.gmra.mrb[0].mxu0 %v1096
      %v1857 = vpop.f32.mrb[0].mxu0
      %v1858 = vadd.f32 %v1374, %v1857
      %v1859 = vpop.f32.mrb[0].mxu0
      %v1860 = vpop.f32.mrb[0].mxu0
      %v1861 = vadd.f32 %v1374, %v1860
      %v1862 = vpop.f32.mrb[0].mxu0
      %1863 = vmatprep.mubr.bf16.mxu0 %v1104
      %1864 = vmatmul.mubr.bf16.gmra.mrb[0].mxu0 %v1103
      %v1865 = vpop.f32.mrb[0].mxu0
      %v1866 = vadd.f32 %v1374, %v1865
      %v1867 = vpop.f32.mrb[0].mxu0
      %v1868 = vpop.f32.mrb[0].mxu0
      %v1869 = vadd.f32 %v1374, %v1868
      %v1870 = vpop.f32.mrb[0].mxu0
      %1871 = vmatprep.mubr.bf16.mxu0 %v1111
      %1872 = vmatmul.mubr.bf16.gmra.mrb[0].mxu0 %v1110
      %v1873 = vpop.f32.mrb[0].mxu0
      %v1874 = vadd.f32 %v1374, %v1873
      %v1875 = vpop.f32.mrb[0].mxu0
      %v1876 = vpop.f32.mrb[0].mxu0
      %v1877 = vadd.f32 %v1374, %v1876
      %v1878 = vpop.f32.mrb[0].mxu0
      %1879 = vmatprep.mubr.bf16.mxu0 %v1118
      %1880 = vmatmul.mubr.bf16.gmra.mrb[0].mxu0 %v1117
      %v1881 = vpop.f32.mrb[0].mxu0
      %v1882 = vadd.f32 %v1374, %v1881
      %v1883 = vpop.f32.mrb[0].mxu0
      %v1884 = vpop.f32.mrb[0].mxu0
      %v1885 = vadd.f32 %v1374, %v1884
      %v1886 = vpop.f32.mrb[0].mxu0
      %1887 = vmatprep.mubr.bf16.mxu0 %v1125
      %1888 = vmatmul.mubr.bf16.gmra.mrb[0].mxu0 %v1124
      %v1889 = vpop.f32.mrb[0].mxu0
      %v1890 = vadd.f32 %v1374, %v1889
      %v1891 = vpop.f32.mrb[0].mxu0
      %v1892 = vpop.f32.mrb[0].mxu0
      %v1893 = vadd.f32 %v1374, %v1892
      %v1894 = vpop.f32.mrb[0].mxu0
      %1895 = vmatprep.mubr.bf16.mxu0 %v1132
      %1896 = vmatmul.mubr.bf16.gmra.mrb[0].mxu0 %v1131
      %v1897 = vpop.f32.mrb[0].mxu0
      %v1898 = vadd.f32 %v1374, %v1897
      %v1899 = vpop.f32.mrb[0].mxu0
      %v1900 = vpop.f32.mrb[0].mxu0
      %v1901 = vadd.f32 %v1374, %v1900
      %v1902 = vpop.f32.mrb[0].mxu0
      %1903 = vmatprep.mubr.bf16.mxu0 %v1139
      %1904 = vmatmul.mubr.bf16.gmra.mrb[0].mxu0 %v1138
      %v1905 = vpop.f32.mrb[0].mxu0
      %v1906 = vadd.f32 %v1374, %v1905
      %v1907 = vpop.f32.mrb[0].mxu0
      %v1908 = vpop.f32.mrb[0].mxu0
      %v1909 = vadd.f32 %v1374, %v1908
      %v1910 = vpop.f32.mrb[0].mxu0
      %1911 = vmatprep.mubr.bf16.mxu0 %v1146
      %1912 = vmatmul.mubr.bf16.gmra.mrb[0].mxu0 %v1145
      %v1913 = vpop.f32.mrb[0].mxu0
      %v1914 = vadd.f32 %v1374, %v1913
      %v1915 = vpop.f32.mrb[0].mxu0
      %v1916 = vpop.f32.mrb[0].mxu0
      %v1917 = vadd.f32 %v1374, %v1916
      %v1918 = vpop.f32.mrb[0].mxu0
      %1919 = vmatprep.mubr.bf16.mxu0 %v1153
      %1920 = vmatmul.mubr.bf16.gmra.mrb[0].mxu0 %v1152
      %v1921 = vpop.f32.mrb[0].mxu0
      %v1922 = vadd.f32 %v1374, %v1921
      %v1923 = vpop.f32.mrb[0].mxu0
      %v1924 = vpop.f32.mrb[0].mxu0
      %v1925 = vadd.f32 %v1374, %v1924
      %v1926 = vpop.f32.mrb[0].mxu0
      %1927 = vmatprep.mubr.bf16.mxu0 %v1160
      %1928 = vmatmul.mubr.bf16.gmra.mrb[0].mxu0 %v1159
      %v1929 = vpop.f32.mrb[0].mxu0
      %v1930 = vadd.f32 %v1374, %v1929
      %v1931 = vpop.f32.mrb[0].mxu0
      %v1932 = vpop.f32.mrb[0].mxu0
      %v1933 = vadd.f32 %v1374, %v1932
      %v1934 = vpop.f32.mrb[0].mxu0
      %1935 = vmatprep.mubr.bf16.mxu0 %v1167
      %1936 = vmatmul.mubr.bf16.gmra.mrb[0].mxu0 %v1166
      %v1937 = vpop.f32.mrb[0].mxu0
      %v1938 = vadd.f32 %v1374, %v1937
      %v1939 = vpop.f32.mrb[0].mxu0
      %v1940 = vpop.f32.mrb[0].mxu0
      %v1941 = vadd.f32 %v1374, %v1940
      %v1942 = vpop.f32.mrb[0].mxu0
      %1943 = vmatprep.mubr.bf16.mxu0 %v1174
      %1944 = vmatmul.mubr.bf16.gmra.mrb[0].mxu0 %v1173
      %v1945 = vpop.f32.mrb[0].mxu0
      %v1946 = vadd.f32 %v1374, %v1945
      %v1947 = vpop.f32.mrb[0].mxu0
      %v1948 = vpop.f32.mrb[0].mxu0
      %v1949 = vadd.f32 %v1374, %v1948
      %v1950 = vpop.f32.mrb[0].mxu0
      %1951 = vmatprep.mubr.bf16.mxu0 %v1181
      %1952 = vmatmul.mubr.bf16.gmra.mrb[0].mxu0 %v1180
      %v1953 = vpop.f32.mrb[0].mxu0
      %v1954 = vadd.f32 %v1374, %v1953
      %v1955 = vpop.f32.mrb[0].mxu0
      %v1956 = vpop.f32.mrb[0].mxu0
      %v1957 = vadd.f32 %v1374, %v1956
      %v1958 = vpop.f32.mrb[0].mxu0
      %1959 = vmatprep.mubr.bf16.mxu0 %v1188
      %1960 = vmatmul.mubr.bf16.gmra.mrb[0].mxu0 %v1187
      %v1961 = vpop.f32.mrb[0].mxu0
      %v1962 = vadd.f32 %v1374, %v1961
      %v1963 = vpop.f32.mrb[0].mxu0
      %v1964 = vpop.f32.mrb[0].mxu0
      %v1965 = vadd.f32 %v1374, %v1964
      %v1966 = vpop.f32.mrb[0].mxu0
      %1967 = vmatprep.mubr.bf16.mxu0 %v1195
      %1968 = vmatmul.mubr.bf16.gmra.mrb[0].mxu0 %v1194
      %v1969 = vpop.f32.mrb[0].mxu0
      %v1970 = vadd.f32 %v1374, %v1969
      %v1971 = vpop.f32.mrb[0].mxu0
      %v1972 = vpop.f32.mrb[0].mxu0
      %v1973 = vadd.f32 %v1374, %v1972
      %v1974 = vpop.f32.mrb[0].mxu0
      %1975 = vmatprep.mubr.bf16.mxu0 %v1202
      %1976 = vmatmul.mubr.bf16.gmra.mrb[0].mxu0 %v1201
      %v1977 = vpop.f32.mrb[0].mxu0
      %v1978 = vadd.f32 %v1374, %v1977
      %v1979 = vpop.f32.mrb[0].mxu0
      %v1980 = vpop.f32.mrb[0].mxu0
      %v1981 = vadd.f32 %v1374, %v1980
      %v1982 = vpop.f32.mrb[0].mxu0
      %1983 = vmatprep.mubr.bf16.mxu0 %v1209
      %1984 = vmatmul.mubr.bf16.gmra.mrb[0].mxu0 %v1208
      %v1985 = vpop.f32.mrb[0].mxu0
      %v1986 = vadd.f32 %v1374, %v1985
      %v1987 = vpop.f32.mrb[0].mxu0
      %v1988 = vpop.f32.mrb[0].mxu0
      %v1989 = vadd.f32 %v1374, %v1988
      %v1990 = vpop.f32.mrb[0].mxu0
      %1991 = vmatprep.mubr.bf16.mxu0 %v1216
      %1992 = vmatmul.mubr.bf16.gmra.mrb[0].mxu0 %v1215
      %v1993 = vpop.f32.mrb[0].mxu0
      %v1994 = vadd.f32 %v1374, %v1993
      %v1995 = vpop.f32.mrb[0].mxu0
      %v1996 = vpop.f32.mrb[0].mxu0
      %v1997 = vadd.f32 %v1374, %v1996
      %v1998 = vpop.f32.mrb[0].mxu0
      %1999 = vmatprep.mubr.bf16.mxu0 %v1223
      %2000 = vmatmul.mubr.bf16.gmra.mrb[0].mxu0 %v1222
      %v2001 = vpop.f32.mrb[0].mxu0
      %v2002 = vadd.f32 %v1374, %v2001
      %v2003 = vpop.f32.mrb[0].mxu0
      %v2004 = vpop.f32.mrb[0].mxu0
      %v2005 = vadd.f32 %v1374, %v2004
      %v2006 = vpop.f32.mrb[0].mxu0
      %2007 = vmatprep.mubr.bf16.mxu0 %v1230
      %2008 = vmatmul.mubr.bf16.gmra.mrb[0].mxu0 %v1229
      %v2009 = vpop.f32.mrb[0].mxu0
      %v2010 = vadd.f32 %v1374, %v2009
      %v2011 = vpop.f32.mrb[0].mxu0
      %v2012 = vpop.f32.mrb[0].mxu0
      %v2013 = vadd.f32 %v1374, %v2012
      %v2014 = vpop.f32.mrb[0].mxu0
      %2015 = vmatprep.mubr.bf16.mxu0 %v1237
      %2016 = vmatmul.mubr.bf16.gmra.mrb[0].mxu0 %v1236
      %v2017 = vpop.f32.mrb[0].mxu0
      %v2018 = vadd.f32 %v1374, %v2017
      %v2019 = vpop.f32.mrb[0].mxu0
      %v2020 = vpop.f32.mrb[0].mxu0
      %v2021 = vadd.f32 %v1374, %v2020
      %v2022 = vpop.f32.mrb[0].mxu0
      %2023 = vmatprep.mubr.bf16.mxu0 %v1244
      %2024 = vmatmul.mubr.bf16.gmra.mrb[0].mxu0 %v1243
      %v2025 = vpop.f32.mrb[0].mxu0
      %v2026 = vadd.f32 %v1374, %v2025
      %v2027 = vpop.f32.mrb[0].mxu0
      %v2028 = vpop.f32.mrb[0].mxu0
      %v2029 = vadd.f32 %v1374, %v2028
      %v2030 = vpop.f32.mrb[0].mxu0
      %2031 = vmatprep.mubr.bf16.mxu0 %v1251
      %2032 = vmatmul.mubr.bf16.gmra.mrb[0].mxu0 %v1250
      %v2033 = vpop.f32.mrb[0].mxu0
      %v2034 = vadd.f32 %v1374, %v2033
      %v2035 = vpop.f32.mrb[0].mxu0
      %v2036 = vpop.f32.mrb[0].mxu0
      %v2037 = vadd.f32 %v1374, %v2036
      %v2038 = vpop.f32.mrb[0].mxu0
      %2039 = vmatprep.mubr.bf16.mxu0 %v1258
      %2040 = vmatmul.mubr.bf16.gmra.mrb[0].mxu0 %v1257
      %v2041 = vpop.f32.mrb[0].mxu0
      %v2042 = vadd.f32 %v1374, %v2041
      %v2043 = vpop.f32.mrb[0].mxu0
      %v2044 = vpop.f32.mrb[0].mxu0
      %v2045 = vadd.f32 %v1374, %v2044
      %v2046 = vpop.f32.mrb[0].mxu0
      %2047 = vmatprep.mubr.bf16.mxu0 %v1265
      %2048 = vmatmul.mubr.bf16.gmra.mrb[0].mxu0 %v1264
      %v2049 = vpop.f32.mrb[0].mxu0
      %v2050 = vadd.f32 %v1374, %v2049
      %v2051 = vpop.f32.mrb[0].mxu0
      %v2052 = vpop.f32.mrb[0].mxu0
      %v2053 = vadd.f32 %v1374, %v2052
      %v2054 = vpop.f32.mrb[0].mxu0
      %2055 = vdwg.mxu0
      %2056 = vmatprep.subr.bf16.mxu0 0
      %2057 = vmatpush1.bf16.msra.mxu0 %v1588
      %2058 = vmatprep.subr.bf16.mxu0 0
      %2059 = vmatpush1.bf16.msra.mxu0 %v1589
      %2060 = vmatprep.subr.bf16.mxu0 0
      %2061 = vmatpush1.bf16.msra.mxu0 %v1590
      %2062 = vmatprep.subr.bf16.mxu0 0
      %2063 = vmatpush1.bf16.msra.mxu0 %v1591
      %2064 = vmatprep.subr.bf16.mxu0 0
      %2065 = vmatpush1.bf16.msra.mxu0 %v1592
      %2066 = vmatprep.subr.bf16.mxu0 0
      %2067 = vmatpush1.bf16.msra.mxu0 %v1593
      %2068 = vmatprep.subr.bf16.mxu0 0
      %2069 = vmatpush1.bf16.msra.mxu0 %v1594
      %2070 = vmatprep.subr.bf16.mxu0 0
      %2071 = vmatpush1.bf16.msra.mxu0 %v1595
      %2072 = vmatprep.subr.bf16.mxu0 0
      %2073 = vmatpush1.bf16.msra.mxu0 %v1596
      %2074 = vmatprep.subr.bf16.mxu0 0
      %2075 = vmatpush1.bf16.msra.mxu0 %v1597
      %2076 = vmatprep.subr.bf16.mxu0 0
      %2077 = vmatpush1.bf16.msra.mxu0 %v1598
      %2078 = vmatprep.subr.bf16.mxu0 0
      %2079 = vmatpush1.bf16.msra.mxu0 %v1599
      %2080 = vmatprep.subr.bf16.mxu0 0
      %2081 = vmatpush1.bf16.msra.mxu0 %v1600
      %2082 = vmatprep.subr.bf16.mxu0 0
      %2083 = vmatpush1.bf16.msra.mxu0 %v1601
      %2084 = vmatprep.subr.bf16.mxu0 0
      %2085 = vmatpush1.bf16.msra.mxu0 %v1602
      %2086 = vmatprep.subr.bf16.mxu0 0
      %2087 = vmatpush1.bf16.msra.mxu0 %v1603
      %2088 = vmatprep.mubr.bf16.mxu0 %v1050
      %2089 = vmatmul.mubr.bf16.gmra.mrb[0].mxu0 %v1049
      %v2090 = vpop.f32.mrb[0].mxu0
      %v2091 = vadd.f32 %v1802, %v2090
      %v2092 = vpop.f32.mrb[0].mxu0
      %v2093 = vpop.f32.mrb[0].mxu0
      %v2094 = vadd.f32 %v1805, %v2093
      %v2095 = vpop.f32.mrb[0].mxu0
      %2096 = vmatprep.mubr.bf16.mxu0 %v1057
      %2097 = vmatmul.mubr.bf16.gmra.mrb[0].mxu0 %v1056
      %v2098 = vpop.f32.mrb[0].mxu0
      %v2099 = vadd.f32 %v1810, %v2098
      %v2100 = vpop.f32.mrb[0].mxu0
      %v2101 = vpop.f32.mrb[0].mxu0
      %v2102 = vadd.f32 %v1813, %v2101
      %v2103 = vpop.f32.mrb[0].mxu0
      %2104 = vmatprep.mubr.bf16.mxu0 %v1064
      %2105 = vmatmul.mubr.bf16.gmra.mrb[0].mxu0 %v1063
      %v2106 = vpop.f32.mrb[0].mxu0
      %v2107 = vadd.f32 %v1818, %v2106
      %v2108 = vpop.f32.mrb[0].mxu0
      %v2109 = vpop.f32.mrb[0].mxu0
      %v2110 = vadd.f32 %v1821, %v2109
      %v2111 = vpop.f32.mrb[0].mxu0
      %2112 = vmatprep.mubr.bf16.mxu0 %v1071
      %2113 = vmatmul.mubr.bf16.gmra.mrb[0].mxu0 %v1070
      %v2114 = vpop.f32.mrb[0].mxu0
      %v2115 = vadd.f32 %v1826, %v2114
      %v2116 = vpop.f32.mrb[0].mxu0
      %v2117 = vpop.f32.mrb[0].mxu0
      %v2118 = vadd.f32 %v1829, %v2117
      %v2119 = vpop.f32.mrb[0].mxu0
      %2120 = vmatprep.mubr.bf16.mxu0 %v1078
      %2121 = vmatmul.mubr.bf16.gmra.mrb[0].mxu0 %v1077
      %v2122 = vpop.f32.mrb[0].mxu0
      %v2123 = vadd.f32 %v1834, %v2122
      %v2124 = vpop.f32.mrb[0].mxu0
      %v2125 = vpop.f32.mrb[0].mxu0
      %v2126 = vadd.f32 %v1837, %v2125
      %v2127 = vpop.f32.mrb[0].mxu0
      %2128 = vmatprep.mubr.bf16.mxu0 %v1085
      %2129 = vmatmul.mubr.bf16.gmra.mrb[0].mxu0 %v1084
      %v2130 = vpop.f32.mrb[0].mxu0
      %v2131 = vadd.f32 %v1842, %v2130
      %v2132 = vpop.f32.mrb[0].mxu0
      %v2133 = vpop.f32.mrb[0].mxu0
      %v2134 = vadd.f32 %v1845, %v2133
      %v2135 = vpop.f32.mrb[0].mxu0
      %2136 = vmatprep.mubr.bf16.mxu0 %v1092
      %2137 = vmatmul.mubr.bf16.gmra.mrb[0].mxu0 %v1091
      %v2138 = vpop.f32.mrb[0].mxu0
      %v2139 = vadd.f32 %v1850, %v2138
      %v2140 = vpop.f32.mrb[0].mxu0
      %v2141 = vpop.f32.mrb[0].mxu0
      %v2142 = vadd.f32 %v1853, %v2141
      %v2143 = vpop.f32.mrb[0].mxu0
      %2144 = vmatprep.mubr.bf16.mxu0 %v1099
      %2145 = vmatmul.mubr.bf16.gmra.mrb[0].mxu0 %v1098
      %v2146 = vpop.f32.mrb[0].mxu0
      %v2147 = vadd.f32 %v1858, %v2146
      %v2148 = vpop.f32.mrb[0].mxu0
      %v2149 = vpop.f32.mrb[0].mxu0
      %v2150 = vadd.f32 %v1861, %v2149
      %v2151 = vpop.f32.mrb[0].mxu0
      %2152 = vmatprep.mubr.bf16.mxu0 %v1106
      %2153 = vmatmul.mubr.bf16.gmra.mrb[0].mxu0 %v1105
      %v2154 = vpop.f32.mrb[0].mxu0
      %v2155 = vadd.f32 %v1866, %v2154
      %v2156 = vpop.f32.mrb[0].mxu0
      %v2157 = vpop.f32.mrb[0].mxu0
      %v2158 = vadd.f32 %v1869, %v2157
      %v2159 = vpop.f32.mrb[0].mxu0
      %2160 = vmatprep.mubr.bf16.mxu0 %v1113
      %2161 = vmatmul.mubr.bf16.gmra.mrb[0].mxu0 %v1112
      %v2162 = vpop.f32.mrb[0].mxu0
      %v2163 = vadd.f32 %v1874, %v2162
      %v2164 = vpop.f32.mrb[0].mxu0
      %v2165 = vpop.f32.mrb[0].mxu0
      %v2166 = vadd.f32 %v1877, %v2165
      %v2167 = vpop.f32.mrb[0].mxu0
      %2168 = vmatprep.mubr.bf16.mxu0 %v1120
      %2169 = vmatmul.mubr.bf16.gmra.mrb[0].mxu0 %v1119
      %v2170 = vpop.f32.mrb[0].mxu0
      %v2171 = vadd.f32 %v1882, %v2170
      %v2172 = vpop.f32.mrb[0].mxu0
      %v2173 = vpop.f32.mrb[0].mxu0
      %v2174 = vadd.f32 %v1885, %v2173
      %v2175 = vpop.f32.mrb[0].mxu0
      %2176 = vmatprep.mubr.bf16.mxu0 %v1127
      %2177 = vmatmul.mubr.bf16.gmra.mrb[0].mxu0 %v1126
      %v2178 = vpop.f32.mrb[0].mxu0
      %v2179 = vadd.f32 %v1890, %v2178
      %v2180 = vpop.f32.mrb[0].mxu0
      %v2181 = vpop.f32.mrb[0].mxu0
      %v2182 = vadd.f32 %v1893, %v2181
      %v2183 = vpop.f32.mrb[0].mxu0
      %2184 = vmatprep.mubr.bf16.mxu0 %v1134
      %2185 = vmatmul.mubr.bf16.gmra.mrb[0].mxu0 %v1133
      %v2186 = vpop.f32.mrb[0].mxu0
      %v2187 = vadd.f32 %v1898, %v2186
      %v2188 = vpop.f32.mrb[0].mxu0
      %v2189 = vpop.f32.mrb[0].mxu0
      %v2190 = vadd.f32 %v1901, %v2189
      %v2191 = vpop.f32.mrb[0].mxu0
      %2192 = vmatprep.mubr.bf16.mxu0 %v1141
      %2193 = vmatmul.mubr.bf16.gmra.mrb[0].mxu0 %v1140
      %v2194 = vpop.f32.mrb[0].mxu0
      %v2195 = vadd.f32 %v1906, %v2194
      %v2196 = vpop.f32.mrb[0].mxu0
      %v2197 = vpop.f32.mrb[0].mxu0
      %v2198 = vadd.f32 %v1909, %v2197
      %v2199 = vpop.f32.mrb[0].mxu0
      %2200 = vmatprep.mubr.bf16.mxu0 %v1148
      %2201 = vmatmul.mubr.bf16.gmra.mrb[0].mxu0 %v1147
      %v2202 = vpop.f32.mrb[0].mxu0
      %v2203 = vadd.f32 %v1914, %v2202
      %v2204 = vpop.f32.mrb[0].mxu0
      %v2205 = vpop.f32.mrb[0].mxu0
      %v2206 = vadd.f32 %v1917, %v2205
      %v2207 = vpop.f32.mrb[0].mxu0
      %2208 = vmatprep.mubr.bf16.mxu0 %v1155
      %2209 = vmatmul.mubr.bf16.gmra.mrb[0].mxu0 %v1154
      %v2210 = vpop.f32.mrb[0].mxu0
      %v2211 = vadd.f32 %v1922, %v2210
      %v2212 = vpop.f32.mrb[0].mxu0
      %v2213 = vpop.f32.mrb[0].mxu0
      %v2214 = vadd.f32 %v1925, %v2213
      %v2215 = vpop.f32.mrb[0].mxu0
      %2216 = vmatprep.mubr.bf16.mxu0 %v1162
      %2217 = vmatmul.mubr.bf16.gmra.mrb[0].mxu0 %v1161
      %v2218 = vpop.f32.mrb[0].mxu0
      %v2219 = vadd.f32 %v1930, %v2218
      %v2220 = vpop.f32.mrb[0].mxu0
      %v2221 = vpop.f32.mrb[0].mxu0
      %v2222 = vadd.f32 %v1933, %v2221
      %v2223 = vpop.f32.mrb[0].mxu0
      %2224 = vmatprep.mubr.bf16.mxu0 %v1169
      %2225 = vmatmul.mubr.bf16.gmra.mrb[0].mxu0 %v1168
      %v2226 = vpop.f32.mrb[0].mxu0
      %v2227 = vadd.f32 %v1938, %v2226
      %v2228 = vpop.f32.mrb[0].mxu0
      %v2229 = vpop.f32.mrb[0].mxu0
      %v2230 = vadd.f32 %v1941, %v2229
      %v2231 = vpop.f32.mrb[0].mxu0
      %2232 = vmatprep.mubr.bf16.mxu0 %v1176
      %2233 = vmatmul.mubr.bf16.gmra.mrb[0].mxu0 %v1175
      %v2234 = vpop.f32.mrb[0].mxu0
      %v2235 = vadd.f32 %v1946, %v2234
      %v2236 = vpop.f32.mrb[0].mxu0
      %v2237 = vpop.f32.mrb[0].mxu0
      %v2238 = vadd.f32 %v1949, %v2237
      %v2239 = vpop.f32.mrb[0].mxu0
      %2240 = vmatprep.mubr.bf16.mxu0 %v1183
      %2241 = vmatmul.mubr.bf16.gmra.mrb[0].mxu0 %v1182
      %v2242 = vpop.f32.mrb[0].mxu0
      %v2243 = vadd.f32 %v1954, %v2242
      %v2244 = vpop.f32.mrb[0].mxu0
      %v2245 = vpop.f32.mrb[0].mxu0
      %v2246 = vadd.f32 %v1957, %v2245
      %v2247 = vpop.f32.mrb[0].mxu0
      %2248 = vmatprep.mubr.bf16.mxu0 %v1190
      %2249 = vmatmul.mubr.bf16.gmra.mrb[0].mxu0 %v1189
      %v2250 = vpop.f32.mrb[0].mxu0
      %v2251 = vadd.f32 %v1962, %v2250
      %v2252 = vpop.f32.mrb[0].mxu0
      %v2253 = vpop.f32.mrb[0].mxu0
      %v2254 = vadd.f32 %v1965, %v2253
      %v2255 = vpop.f32.mrb[0].mxu0
      %2256 = vmatprep.mubr.bf16.mxu0 %v1197
      %2257 = vmatmul.mubr.bf16.gmra.mrb[0].mxu0 %v1196
      %v2258 = vpop.f32.mrb[0].mxu0
      %v2259 = vadd.f32 %v1970, %v2258
      %v2260 = vpop.f32.mrb[0].mxu0
      %v2261 = vpop.f32.mrb[0].mxu0
      %v2262 = vadd.f32 %v1973, %v2261
      %v2263 = vpop.f32.mrb[0].mxu0
      %2264 = vmatprep.mubr.bf16.mxu0 %v1204
      %2265 = vmatmul.mubr.bf16.gmra.mrb[0].mxu0 %v1203
      %v2266 = vpop.f32.mrb[0].mxu0
      %v2267 = vadd.f32 %v1978, %v2266
      %v2268 = vpop.f32.mrb[0].mxu0
      %v2269 = vpop.f32.mrb[0].mxu0
      %v2270 = vadd.f32 %v1981, %v2269
      %v2271 = vpop.f32.mrb[0].mxu0
      %2272 = vmatprep.mubr.bf16.mxu0 %v1211
      %2273 = vmatmul.mubr.bf16.gmra.mrb[0].mxu0 %v1210
      %v2274 = vpop.f32.mrb[0].mxu0
      %v2275 = vadd.f32 %v1986, %v2274
      %v2276 = vpop.f32.mrb[0].mxu0
      %v2277 = vpop.f32.mrb[0].mxu0
      %v2278 = vadd.f32 %v1989, %v2277
      %v2279 = vpop.f32.mrb[0].mxu0
      %2280 = vmatprep.mubr.bf16.mxu0 %v1218
      %2281 = vmatmul.mubr.bf16.gmra.mrb[0].mxu0 %v1217
      %v2282 = vpop.f32.mrb[0].mxu0
      %v2283 = vadd.f32 %v1994, %v2282
      %v2284 = vpop.f32.mrb[0].mxu0
      %v2285 = vpop.f32.mrb[0].mxu0
      %v2286 = vadd.f32 %v1997, %v2285
      %v2287 = vpop.f32.mrb[0].mxu0
      %2288 = vmatprep.mubr.bf16.mxu0 %v1225
      %2289 = vmatmul.mubr.bf16.gmra.mrb[0].mxu0 %v1224
      %v2290 = vpop.f32.mrb[0].mxu0
      %v2291 = vadd.f32 %v2002, %v2290
      %v2292 = vpop.f32.mrb[0].mxu0
      %v2293 = vpop.f32.mrb[0].mxu0
      %v2294 = vadd.f32 %v2005, %v2293
      %v2295 = vpop.f32.mrb[0].mxu0
      %2296 = vmatprep.mubr.bf16.mxu0 %v1232
      %2297 = vmatmul.mubr.bf16.gmra.mrb[0].mxu0 %v1231
      %v2298 = vpop.f32.mrb[0].mxu0
      %v2299 = vadd.f32 %v2010, %v2298
      %v2300 = vpop.f32.mrb[0].mxu0
      %v2301 = vpop.f32.mrb[0].mxu0
      %v2302 = vadd.f32 %v2013, %v2301
      %v2303 = vpop.f32.mrb[0].mxu0
      %2304 = vmatprep.mubr.bf16.mxu0 %v1239
      %2305 = vmatmul.mubr.bf16.gmra.mrb[0].mxu0 %v1238
      %v2306 = vpop.f32.mrb[0].mxu0
      %v2307 = vadd.f32 %v2018, %v2306
      %v2308 = vpop.f32.mrb[0].mxu0
      %v2309 = vpop.f32.mrb[0].mxu0
      %v2310 = vadd.f32 %v2021, %v2309
      %v2311 = vpop.f32.mrb[0].mxu0
      %2312 = vmatprep.mubr.bf16.mxu0 %v1246
      %2313 = vmatmul.mubr.bf16.gmra.mrb[0].mxu0 %v1245
      %v2314 = vpop.f32.mrb[0].mxu0
      %v2315 = vadd.f32 %v2026, %v2314
      %v2316 = vpop.f32.mrb[0].mxu0
      %v2317 = vpop.f32.mrb[0].mxu0
      %v2318 = vadd.f32 %v2029, %v2317
      %v2319 = vpop.f32.mrb[0].mxu0
      %2320 = vmatprep.mubr.bf16.mxu0 %v1253
      %2321 = vmatmul.mubr.bf16.gmra.mrb[0].mxu0 %v1252
      %v2322 = vpop.f32.mrb[0].mxu0
      %v2323 = vadd.f32 %v2034, %v2322
      %v2324 = vpop.f32.mrb[0].mxu0
      %v2325 = vpop.f32.mrb[0].mxu0
      %v2326 = vadd.f32 %v2037, %v2325
      %v2327 = vpop.f32.mrb[0].mxu0
      %2328 = vmatprep.mubr.bf16.mxu0 %v1260
      %2329 = vmatmul.mubr.bf16.gmra.mrb[0].mxu0 %v1259
      %v2330 = vpop.f32.mrb[0].mxu0
      %v2331 = vadd.f32 %v2042, %v2330
      %v2332 = vpop.f32.mrb[0].mxu0
      %v2333 = vpop.f32.mrb[0].mxu0
      %v2334 = vadd.f32 %v2045, %v2333
      %v2335 = vpop.f32.mrb[0].mxu0
      %2336 = vmatprep.mubr.bf16.mxu0 %v1267
      %2337 = vmatmul.mubr.bf16.gmra.mrb[0].mxu0 %v1266
      %v2338 = vpop.f32.mrb[0].mxu0
      %v2339 = vadd.f32 %v2050, %v2338
      %v2340 = vpop.f32.mrb[0].mxu0
      %v2341 = vpop.f32.mrb[0].mxu0
      %v2342 = vadd.f32 %v2053, %v2341
      %v2343 = vpop.f32.mrb[0].mxu0
      %2344 = vdwg.mxu0
      %2345 = vmatprep.subr.bf16.mxu0 0
      %2346 = vmatpush1.bf16.msra.mxu0 %v1604
      %2347 = vmatprep.subr.bf16.mxu0 0
      %2348 = vmatpush1.bf16.msra.mxu0 %v1605
      %2349 = vmatprep.subr.bf16.mxu0 0
      %2350 = vmatpush1.bf16.msra.mxu0 %v1606
      %2351 = vmatprep.subr.bf16.mxu0 0
      %2352 = vmatpush1.bf16.msra.mxu0 %v1607
      %2353 = vmatprep.subr.bf16.mxu0 0
      %2354 = vmatpush1.bf16.msra.mxu0 %v1608
      %2355 = vmatprep.subr.bf16.mxu0 0
      %2356 = vmatpush1.bf16.msra.mxu0 %v1609
      %2357 = vmatprep.subr.bf16.mxu0 0
      %2358 = vmatpush1.bf16.msra.mxu0 %v1610
      %2359 = vmatprep.subr.bf16.mxu0 0
      %2360 = vmatpush1.bf16.msra.mxu0 %v1611
      %2361 = vmatprep.subr.bf16.mxu0 0
      %2362 = vmatpush1.bf16.msra.mxu0 %v1612
      %2363 = vmatprep.subr.bf16.mxu0 0
      %2364 = vmatpush1.bf16.msra.mxu0 %v1613
      %2365 = vmatprep.subr.bf16.mxu0 0
      %2366 = vmatpush1.bf16.msra.mxu0 %v1614
      %2367 = vmatprep.subr.bf16.mxu0 0
      %2368 = vmatpush1.bf16.msra.mxu0 %v1615
      %2369 = vmatprep.subr.bf16.mxu0 0
      %2370 = vmatpush1.bf16.msra.mxu0 %v1616
      %2371 = vmatprep.subr.bf16.mxu0 0
      %2372 = vmatpush1.bf16.msra.mxu0 %v1617
      %2373 = vmatprep.subr.bf16.mxu0 0
      %2374 = vmatpush1.bf16.msra.mxu0 %v1618
      %2375 = vmatprep.subr.bf16.mxu0 0
      %2376 = vmatpush1.bf16.msra.mxu0 %v1619
      %2377 = vmatprep.mubr.bf16.mxu0 %v1052
      %2378 = vmatmul.mubr.bf16.gmra.mrb[0].mxu0 %v1051
      %v2379 = vpop.f32.mrb[0].mxu0
      %v2380 = vadd.f32 %v2091, %v2379
      %v2381 = vpop.f32.mrb[0].mxu0
      %v2382 = vpop.f32.mrb[0].mxu0
      %v2383 = vadd.f32 %v2094, %v2382
      %v2384 = vpop.f32.mrb[0].mxu0
      %2385 = vmatprep.mubr.bf16.mxu0 %v1059
      %2386 = vmatmul.mubr.bf16.gmra.mrb[0].mxu0 %v1058
      %v2387 = vpop.f32.mrb[0].mxu0
      %v2388 = vadd.f32 %v2099, %v2387
      %v2389 = vpop.f32.mrb[0].mxu0
      %v2390 = vpop.f32.mrb[0].mxu0
      %v2391 = vadd.f32 %v2102, %v2390
      %v2392 = vpop.f32.mrb[0].mxu0
      %2393 = vmatprep.mubr.bf16.mxu0 %v1066
      %2394 = vmatmul.mubr.bf16.gmra.mrb[0].mxu0 %v1065
      %v2395 = vpop.f32.mrb[0].mxu0
      %v2396 = vadd.f32 %v2107, %v2395
      %v2397 = vpop.f32.mrb[0].mxu0
      %v2398 = vpop.f32.mrb[0].mxu0
      %v2399 = vadd.f32 %v2110, %v2398
      %v2400 = vpop.f32.mrb[0].mxu0
      %2401 = vmatprep.mubr.bf16.mxu0 %v1073
      %2402 = vmatmul.mubr.bf16.gmra.mrb[0].mxu0 %v1072
      %v2403 = vpop.f32.mrb[0].mxu0
      %v2404 = vadd.f32 %v2115, %v2403
      %v2405 = vpop.f32.mrb[0].mxu0
      %v2406 = vpop.f32.mrb[0].mxu0
      %v2407 = vadd.f32 %v2118, %v2406
      %v2408 = vpop.f32.mrb[0].mxu0
      %2409 = vmatprep.mubr.bf16.mxu0 %v1080
      %2410 = vmatmul.mubr.bf16.gmra.mrb[0].mxu0 %v1079
      %v2411 = vpop.f32.mrb[0].mxu0
      %v2412 = vadd.f32 %v2123, %v2411
      %v2413 = vpop.f32.mrb[0].mxu0
      %v2414 = vpop.f32.mrb[0].mxu0
      %v2415 = vadd.f32 %v2126, %v2414
      %v2416 = vpop.f32.mrb[0].mxu0
      %2417 = vmatprep.mubr.bf16.mxu0 %v1087
      %2418 = vmatmul.mubr.bf16.gmra.mrb[0].mxu0 %v1086
      %v2419 = vpop.f32.mrb[0].mxu0
      %v2420 = vadd.f32 %v2131, %v2419
      %v2421 = vpop.f32.mrb[0].mxu0
      %v2422 = vpop.f32.mrb[0].mxu0
      %v2423 = vadd.f32 %v2134, %v2422
      %v2424 = vpop.f32.mrb[0].mxu0
      %2425 = vmatprep.mubr.bf16.mxu0 %v1094
      %2426 = vmatmul.mubr.bf16.gmra.mrb[0].mxu0 %v1093
      %v2427 = vpop.f32.mrb[0].mxu0
      %v2428 = vadd.f32 %v2139, %v2427
      %v2429 = vpop.f32.mrb[0].mxu0
      %v2430 = vpop.f32.mrb[0].mxu0
      %v2431 = vadd.f32 %v2142, %v2430
      %v2432 = vpop.f32.mrb[0].mxu0
      %2433 = vmatprep.mubr.bf16.mxu0 %v1101
      %2434 = vmatmul.mubr.bf16.gmra.mrb[0].mxu0 %v1100
      %v2435 = vpop.f32.mrb[0].mxu0
      %v2436 = vadd.f32 %v2147, %v2435
      %v2437 = vpop.f32.mrb[0].mxu0
      %v2438 = vpop.f32.mrb[0].mxu0
      %v2439 = vadd.f32 %v2150, %v2438
      %v2440 = vpop.f32.mrb[0].mxu0
      %2441 = vmatprep.mubr.bf16.mxu0 %v1108
      %2442 = vmatmul.mubr.bf16.gmra.mrb[0].mxu0 %v1107
      %v2443 = vpop.f32.mrb[0].mxu0
      %v2444 = vadd.f32 %v2155, %v2443
      %v2445 = vpop.f32.mrb[0].mxu0
      %v2446 = vpop.f32.mrb[0].mxu0
      %v2447 = vadd.f32 %v2158, %v2446
      %v2448 = vpop.f32.mrb[0].mxu0
      %2449 = vmatprep.mubr.bf16.mxu0 %v1115
      %2450 = vmatmul.mubr.bf16.gmra.mrb[0].mxu0 %v1114
      %v2451 = vpop.f32.mrb[0].mxu0
      %v2452 = vadd.f32 %v2163, %v2451
      %v2453 = vpop.f32.mrb[0].mxu0
      %v2454 = vpop.f32.mrb[0].mxu0
      %v2455 = vadd.f32 %v2166, %v2454
      %v2456 = vpop.f32.mrb[0].mxu0
      %2457 = vmatprep.mubr.bf16.mxu0 %v1122
      %2458 = vmatmul.mubr.bf16.gmra.mrb[0].mxu0 %v1121
      %v2459 = vpop.f32.mrb[0].mxu0
      %v2460 = vadd.f32 %v2171, %v2459
      %v2461 = vpop.f32.mrb[0].mxu0
      %v2462 = vpop.f32.mrb[0].mxu0
      %v2463 = vadd.f32 %v2174, %v2462
      %v2464 = vpop.f32.mrb[0].mxu0
      %2465 = vmatprep.mubr.bf16.mxu0 %v1129
      %2466 = vmatmul.mubr.bf16.gmra.mrb[0].mxu0 %v1128
      %v2467 = vpop.f32.mrb[0].mxu0
      %v2468 = vadd.f32 %v2179, %v2467
      %v2469 = vpop.f32.mrb[0].mxu0
      %v2470 = vpop.f32.mrb[0].mxu0
      %v2471 = vadd.f32 %v2182, %v2470
      %v2472 = vpop.f32.mrb[0].mxu0
      %2473 = vmatprep.mubr.bf16.mxu0 %v1136
      %2474 = vmatmul.mubr.bf16.gmra.mrb[0].mxu0 %v1135
      %v2475 = vpop.f32.mrb[0].mxu0
      %v2476 = vadd.f32 %v2187, %v2475
      %v2477 = vpop.f32.mrb[0].mxu0
      %v2478 = vpop.f32.mrb[0].mxu0
      %v2479 = vadd.f32 %v2190, %v2478
      %v2480 = vpop.f32.mrb[0].mxu0
      %2481 = vmatprep.mubr.bf16.mxu0 %v1143
      %2482 = vmatmul.mubr.bf16.gmra.mrb[0].mxu0 %v1142
      %v2483 = vpop.f32.mrb[0].mxu0
      %v2484 = vadd.f32 %v2195, %v2483
      %v2485 = vpop.f32.mrb[0].mxu0
      %v2486 = vpop.f32.mrb[0].mxu0
      %v2487 = vadd.f32 %v2198, %v2486
      %v2488 = vpop.f32.mrb[0].mxu0
      %2489 = vmatprep.mubr.bf16.mxu0 %v1150
      %2490 = vmatmul.mubr.bf16.gmra.mrb[0].mxu0 %v1149
      %v2491 = vpop.f32.mrb[0].mxu0
      %v2492 = vadd.f32 %v2203, %v2491
      %v2493 = vpop.f32.mrb[0].mxu0
      %v2494 = vpop.f32.mrb[0].mxu0
      %v2495 = vadd.f32 %v2206, %v2494
      %v2496 = vpop.f32.mrb[0].mxu0
      %2497 = vmatprep.mubr.bf16.mxu0 %v1157
      %2498 = vmatmul.mubr.bf16.gmra.mrb[0].mxu0 %v1156
      %v2499 = vpop.f32.mrb[0].mxu0
      %v2500 = vadd.f32 %v2211, %v2499
      %v2501 = vpop.f32.mrb[0].mxu0
      %v2502 = vpop.f32.mrb[0].mxu0
      %v2503 = vadd.f32 %v2214, %v2502
      %v2504 = vpop.f32.mrb[0].mxu0
      %2505 = vmatprep.mubr.bf16.mxu0 %v1164
      %2506 = vmatmul.mubr.bf16.gmra.mrb[0].mxu0 %v1163
      %v2507 = vpop.f32.mrb[0].mxu0
      %v2508 = vadd.f32 %v2219, %v2507
      %v2509 = vpop.f32.mrb[0].mxu0
      %v2510 = vpop.f32.mrb[0].mxu0
      %v2511 = vadd.f32 %v2222, %v2510
      %v2512 = vpop.f32.mrb[0].mxu0
      %2513 = vmatprep.mubr.bf16.mxu0 %v1171
      %2514 = vmatmul.mubr.bf16.gmra.mrb[0].mxu0 %v1170
      %v2515 = vpop.f32.mrb[0].mxu0
      %v2516 = vadd.f32 %v2227, %v2515
      %v2517 = vpop.f32.mrb[0].mxu0
      %v2518 = vpop.f32.mrb[0].mxu0
      %v2519 = vadd.f32 %v2230, %v2518
      %v2520 = vpop.f32.mrb[0].mxu0
      %2521 = vmatprep.mubr.bf16.mxu0 %v1178
      %2522 = vmatmul.mubr.bf16.gmra.mrb[0].mxu0 %v1177
      %v2523 = vpop.f32.mrb[0].mxu0
      %v2524 = vadd.f32 %v2235, %v2523
      %v2525 = vpop.f32.mrb[0].mxu0
      %v2526 = vpop.f32.mrb[0].mxu0
      %v2527 = vadd.f32 %v2238, %v2526
      %v2528 = vpop.f32.mrb[0].mxu0
      %2529 = vmatprep.mubr.bf16.mxu0 %v1185
      %2530 = vmatmul.mubr.bf16.gmra.mrb[0].mxu0 %v1184
      %v2531 = vpop.f32.mrb[0].mxu0
      %v2532 = vadd.f32 %v2243, %v2531
      %v2533 = vpop.f32.mrb[0].mxu0
      %v2534 = vpop.f32.mrb[0].mxu0
      %v2535 = vadd.f32 %v2246, %v2534
      %v2536 = vpop.f32.mrb[0].mxu0
      %2537 = vmatprep.mubr.bf16.mxu0 %v1192
      %2538 = vmatmul.mubr.bf16.gmra.mrb[0].mxu0 %v1191
      %v2539 = vpop.f32.mrb[0].mxu0
      %v2540 = vadd.f32 %v2251, %v2539
      %v2541 = vpop.f32.mrb[0].mxu0
      %v2542 = vpop.f32.mrb[0].mxu0
      %v2543 = vadd.f32 %v2254, %v2542
      %v2544 = vpop.f32.mrb[0].mxu0
      %2545 = vmatprep.mubr.bf16.mxu0 %v1199
      %2546 = vmatmul.mubr.bf16.gmra.mrb[0].mxu0 %v1198
      %v2547 = vpop.f32.mrb[0].mxu0
      %v2548 = vadd.f32 %v2259, %v2547
      %v2549 = vpop.f32.mrb[0].mxu0
      %v2550 = vpop.f32.mrb[0].mxu0
      %v2551 = vadd.f32 %v2262, %v2550
      %v2552 = vpop.f32.mrb[0].mxu0
      %2553 = vmatprep.mubr.bf16.mxu0 %v1206
      %2554 = vmatmul.mubr.bf16.gmra.mrb[0].mxu0 %v1205
      %v2555 = vpop.f32.mrb[0].mxu0
      %v2556 = vadd.f32 %v2267, %v2555
      %v2557 = vpop.f32.mrb[0].mxu0
      %v2558 = vpop.f32.mrb[0].mxu0
      %v2559 = vadd.f32 %v2270, %v2558
      %v2560 = vpop.f32.mrb[0].mxu0
      %2561 = vmatprep.mubr.bf16.mxu0 %v1213
      %2562 = vmatmul.mubr.bf16.gmra.mrb[0].mxu0 %v1212
      %v2563 = vpop.f32.mrb[0].mxu0
      %v2564 = vadd.f32 %v2275, %v2563
      %v2565 = vpop.f32.mrb[0].mxu0
      %v2566 = vpop.f32.mrb[0].mxu0
      %v2567 = vadd.f32 %v2278, %v2566
      %v2568 = vpop.f32.mrb[0].mxu0
      %2569 = vmatprep.mubr.bf16.mxu0 %v1220
      %2570 = vmatmul.mubr.bf16.gmra.mrb[0].mxu0 %v1219
      %v2571 = vpop.f32.mrb[0].mxu0
      %v2572 = vadd.f32 %v2283, %v2571
      %v2573 = vpop.f32.mrb[0].mxu0
      %v2574 = vpop.f32.mrb[0].mxu0
      %v2575 = vadd.f32 %v2286, %v2574
      %v2576 = vpop.f32.mrb[0].mxu0
      %2577 = vmatprep.mubr.bf16.mxu0 %v1227
      %2578 = vmatmul.mubr.bf16.gmra.mrb[0].mxu0 %v1226
      %v2579 = vpop.f32.mrb[0].mxu0
      %v2580 = vadd.f32 %v2291, %v2579
      %v2581 = vpop.f32.mrb[0].mxu0
      %v2582 = vpop.f32.mrb[0].mxu0
      %v2583 = vadd.f32 %v2294, %v2582
      %v2584 = vpop.f32.mrb[0].mxu0
      %2585 = vmatprep.mubr.bf16.mxu0 %v1234
      %2586 = vmatmul.mubr.bf16.gmra.mrb[0].mxu0 %v1233
      %v2587 = vpop.f32.mrb[0].mxu0
      %v2588 = vadd.f32 %v2299, %v2587
      %v2589 = vpop.f32.mrb[0].mxu0
      %v2590 = vpop.f32.mrb[0].mxu0
      %v2591 = vadd.f32 %v2302, %v2590
      %v2592 = vpop.f32.mrb[0].mxu0
      %2593 = vmatprep.mubr.bf16.mxu0 %v1241
      %2594 = vmatmul.mubr.bf16.gmra.mrb[0].mxu0 %v1240
      %v2595 = vpop.f32.mrb[0].mxu0
      %v2596 = vadd.f32 %v2307, %v2595
      %v2597 = vpop.f32.mrb[0].mxu0
      %v2598 = vpop.f32.mrb[0].mxu0
      %v2599 = vadd.f32 %v2310, %v2598
      %v2600 = vpop.f32.mrb[0].mxu0
      %2601 = vmatprep.mubr.bf16.mxu0 %v1248
      %2602 = vmatmul.mubr.bf16.gmra.mrb[0].mxu0 %v1247
      %v2603 = vpop.f32.mrb[0].mxu0
      %v2604 = vadd.f32 %v2315, %v2603
      %v2605 = vpop.f32.mrb[0].mxu0
      %v2606 = vpop.f32.mrb[0].mxu0
      %v2607 = vadd.f32 %v2318, %v2606
      %v2608 = vpop.f32.mrb[0].mxu0
      %2609 = vmatprep.mubr.bf16.mxu0 %v1255
      %2610 = vmatmul.mubr.bf16.gmra.mrb[0].mxu0 %v1254
      %v2611 = vpop.f32.mrb[0].mxu0
      %v2612 = vadd.f32 %v2323, %v2611
      %v2613 = vpop.f32.mrb[0].mxu0
      %v2614 = vpop.f32.mrb[0].mxu0
      %v2615 = vadd.f32 %v2326, %v2614
      %v2616 = vpop.f32.mrb[0].mxu0
      %2617 = vmatprep.mubr.bf16.mxu0 %v1262
      %2618 = vmatmul.mubr.bf16.gmra.mrb[0].mxu0 %v1261
      %v2619 = vpop.f32.mrb[0].mxu0
      %v2620 = vadd.f32 %v2331, %v2619
      %v2621 = vpop.f32.mrb[0].mxu0
      %v2622 = vpop.f32.mrb[0].mxu0
      %v2623 = vadd.f32 %v2334, %v2622
      %v2624 = vpop.f32.mrb[0].mxu0
      %2625 = vmatprep.mubr.bf16.mxu0 %v1269
      %2626 = vmatmul.mubr.bf16.gmra.mrb[0].mxu0 %v1268
      %v2627 = vpop.f32.mrb[0].mxu0
      %v2628 = vadd.f32 %v2339, %v2627
      %v2629 = vpop.f32.mrb[0].mxu0
      %v2630 = vpop.f32.mrb[0].mxu0
      %v2631 = vadd.f32 %v2342, %v2630
      %v2632 = vpop.f32.mrb[0].mxu0
      %2633 = vdwg.mxu0
      %2634 = vmatprep.subr.bf16.mxu0 0
      %2635 = vmatpush1.bf16.msra.mxu0 %v1620
      %2636 = vmatprep.subr.bf16.mxu0 0
      %2637 = vmatpush1.bf16.msra.mxu0 0
      %2638 = vmatprep.subr.bf16.mxu0 0
      %2639 = vmatpush1.bf16.msra.mxu0 0
      %2640 = vmatprep.subr.bf16.mxu0 0
      %2641 = vmatpush1.bf16.msra.mxu0 0
      %2642 = vmatprep.subr.bf16.mxu0 0
      %2643 = vmatpush1.bf16.msra.mxu0 0
      %2644 = vmatprep.subr.bf16.mxu0 0
      %2645 = vmatpush1.bf16.msra.mxu0 0
      %2646 = vmatprep.subr.bf16.mxu0 0
      %2647 = vmatpush1.bf16.msra.mxu0 0
      %2648 = vmatprep.subr.bf16.mxu0 0
      %2649 = vmatpush1.bf16.msra.mxu0 0
      %2650 = vmatprep.subr.bf16.mxu0 0
      %2651 = vmatpush1.bf16.msra.mxu0 0
      %2652 = vmatprep.subr.bf16.mxu0 0
      %2653 = vmatpush1.bf16.msra.mxu0 0
      %2654 = vmatprep.subr.bf16.mxu0 0
      %2655 = vmatpush1.bf16.msra.mxu0 0
      %2656 = vmatprep.subr.bf16.mxu0 0
      %2657 = vmatpush1.bf16.msra.mxu0 0
      %2658 = vmatprep.subr.bf16.mxu0 0
      %2659 = vmatpush1.bf16.msra.mxu0 0
      %2660 = vmatprep.subr.bf16.mxu0 0
      %2661 = vmatpush1.bf16.msra.mxu0 0
      %2662 = vmatprep.subr.bf16.mxu0 0
      %2663 = vmatpush1.bf16.msra.mxu0 0
      %2664 = vmatprep.subr.bf16.mxu0 0
      %2665 = vmatpush1.bf16.msra.mxu0 0
      %2666 = vmatprep.mubr.bf16.mxu0 0
      %2667 = vmatmul.mubr.bf16.gmra.mrb[0].mxu0 %v1672
      %v2668 = vpop.f32.mrb[0].mxu0
      %v2669 = vadd.f32 %v2380, %v2668
      %v2670 = vpop.f32.mrb[0].mxu0
      %v2671 = vpop.f32.mrb[0].mxu0
      %v2672 = vadd.f32 %v2383, %v2671
      %v2673 = vpop.f32.mrb[0].mxu0
      %2674 = vmatprep.mubr.bf16.mxu0 0
      %2675 = vmatmul.mubr.bf16.gmra.mrb[0].mxu0 %v1675
      %v2676 = vpop.f32.mrb[0].mxu0
      %v2677 = vadd.f32 %v2388, %v2676
      %v2678 = vpop.f32.mrb[0].mxu0
      %v2679 = vpop.f32.mrb[0].mxu0
      %v2680 = vadd.f32 %v2391, %v2679
      %v2681 = vpop.f32.mrb[0].mxu0
      %2682 = vmatprep.mubr.bf16.mxu0 0
      %2683 = vmatmul.mubr.bf16.gmra.mrb[0].mxu0 %v1678
      %v2684 = vpop.f32.mrb[0].mxu0
      %v2685 = vadd.f32 %v2396, %v2684
      %v2686 = vpop.f32.mrb[0].mxu0
      %v2687 = vpop.f32.mrb[0].mxu0
      %v2688 = vadd.f32 %v2399, %v2687
      %v2689 = vpop.f32.mrb[0].mxu0
      %2690 = vmatprep.mubr.bf16.mxu0 0
      %2691 = vmatmul.mubr.bf16.gmra.mrb[0].mxu0 %v1681
      %v2692 = vpop.f32.mrb[0].mxu0
      %v2693 = vadd.f32 %v2404, %v2692
      %v2694 = vpop.f32.mrb[0].mxu0
      %v2695 = vpop.f32.mrb[0].mxu0
      %v2696 = vadd.f32 %v2407, %v2695
      %v2697 = vpop.f32.mrb[0].mxu0
      %2698 = vmatprep.mubr.bf16.mxu0 0
      %2699 = vmatmul.mubr.bf16.gmra.mrb[0].mxu0 %v1684
      %v2700 = vpop.f32.mrb[0].mxu0
      %v2701 = vadd.f32 %v2412, %v2700
      %v2702 = vpop.f32.mrb[0].mxu0
      %v2703 = vpop.f32.mrb[0].mxu0
      %v2704 = vadd.f32 %v2415, %v2703
      %v2705 = vpop.f32.mrb[0].mxu0
      %2706 = vmatprep.mubr.bf16.mxu0 0
      %2707 = vmatmul.mubr.bf16.gmra.mrb[0].mxu0 %v1687
      %v2708 = vpop.f32.mrb[0].mxu0
      %v2709 = vadd.f32 %v2420, %v2708
      %v2710 = vpop.f32.mrb[0].mxu0
      %v2711 = vpop.f32.mrb[0].mxu0
      %v2712 = vadd.f32 %v2423, %v2711
      %v2713 = vpop.f32.mrb[0].mxu0
      %2714 = vmatprep.mubr.bf16.mxu0 0
      %2715 = vmatmul.mubr.bf16.gmra.mrb[0].mxu0 %v1690
      %v2716 = vpop.f32.mrb[0].mxu0
      %v2717 = vadd.f32 %v2428, %v2716
      %v2718 = vpop.f32.mrb[0].mxu0
      %v2719 = vpop.f32.mrb[0].mxu0
      %v2720 = vadd.f32 %v2431, %v2719
      %v2721 = vpop.f32.mrb[0].mxu0
      %2722 = vmatprep.mubr.bf16.mxu0 0
      %2723 = vmatmul.mubr.bf16.gmra.mrb[0].mxu0 %v1693
      %v2724 = vpop.f32.mrb[0].mxu0
      %v2725 = vadd.f32 %v2436, %v2724
      %v2726 = vpop.f32.mrb[0].mxu0
      %v2727 = vpop.f32.mrb[0].mxu0
      %v2728 = vadd.f32 %v2439, %v2727
      %v2729 = vpop.f32.mrb[0].mxu0
      %2730 = vmatprep.mubr.bf16.mxu0 0
      %2731 = vmatmul.mubr.bf16.gmra.mrb[0].mxu0 %v1696
      %v2732 = vpop.f32.mrb[0].mxu0
      %v2733 = vadd.f32 %v2444, %v2732
      %v2734 = vpop.f32.mrb[0].mxu0
      %v2735 = vpop.f32.mrb[0].mxu0
      %v2736 = vadd.f32 %v2447, %v2735
      %v2737 = vpop.f32.mrb[0].mxu0
      %2738 = vmatprep.mubr.bf16.mxu0 0
      %2739 = vmatmul.mubr.bf16.gmra.mrb[0].mxu0 %v1699
      %v2740 = vpop.f32.mrb[0].mxu0
      %v2741 = vadd.f32 %v2452, %v2740
      %v2742 = vpop.f32.mrb[0].mxu0
      %v2743 = vpop.f32.mrb[0].mxu0
      %v2744 = vadd.f32 %v2455, %v2743
      %v2745 = vpop.f32.mrb[0].mxu0
      %2746 = vmatprep.mubr.bf16.mxu0 0
      %2747 = vmatmul.mubr.bf16.gmra.mrb[0].mxu0 %v1702
      %v2748 = vpop.f32.mrb[0].mxu0
      %v2749 = vadd.f32 %v2460, %v2748
      %v2750 = vpop.f32.mrb[0].mxu0
      %v2751 = vpop.f32.mrb[0].mxu0
      %v2752 = vadd.f32 %v2463, %v2751
      %v2753 = vpop.f32.mrb[0].mxu0
      %2754 = vmatprep.mubr.bf16.mxu0 0
      %2755 = vmatmul.mubr.bf16.gmra.mrb[0].mxu0 %v1705
      %v2756 = vpop.f32.mrb[0].mxu0
      %v2757 = vadd.f32 %v2468, %v2756
      %v2758 = vpop.f32.mrb[0].mxu0
      %v2759 = vpop.f32.mrb[0].mxu0
      %v2760 = vadd.f32 %v2471, %v2759
      %v2761 = vpop.f32.mrb[0].mxu0
      %2762 = vmatprep.mubr.bf16.mxu0 0
      %2763 = vmatmul.mubr.bf16.gmra.mrb[0].mxu0 %v1708
      %v2764 = vpop.f32.mrb[0].mxu0
      %v2765 = vadd.f32 %v2476, %v2764
      %v2766 = vpop.f32.mrb[0].mxu0
      %v2767 = vpop.f32.mrb[0].mxu0
      %v2768 = vadd.f32 %v2479, %v2767
      %v2769 = vpop.f32.mrb[0].mxu0
      %2770 = vmatprep.mubr.bf16.mxu0 0
      %2771 = vmatmul.mubr.bf16.gmra.mrb[0].mxu0 %v1711
      %v2772 = vpop.f32.mrb[0].mxu0
      %v2773 = vadd.f32 %v2484, %v2772
      %v2774 = vpop.f32.mrb[0].mxu0
      %v2775 = vpop.f32.mrb[0].mxu0
      %v2776 = vadd.f32 %v2487, %v2775
      %v2777 = vpop.f32.mrb[0].mxu0
      %2778 = vmatprep.mubr.bf16.mxu0 0
      %2779 = vmatmul.mubr.bf16.gmra.mrb[0].mxu0 %v1714
      %v2780 = vpop.f32.mrb[0].mxu0
      %v2781 = vadd.f32 %v2492, %v2780
      %v2782 = vpop.f32.mrb[0].mxu0
      %v2783 = vpop.f32.mrb[0].mxu0
      %v2784 = vadd.f32 %v2495, %v2783
      %v2785 = vpop.f32.mrb[0].mxu0
      %2786 = vmatprep.mubr.bf16.mxu0 0
      %2787 = vmatmul.mubr.bf16.gmra.mrb[0].mxu0 %v1717
      %v2788 = vpop.f32.mrb[0].mxu0
      %v2789 = vadd.f32 %v2500, %v2788
      %v2790 = vpop.f32.mrb[0].mxu0
      %v2791 = vpop.f32.mrb[0].mxu0
      %v2792 = vadd.f32 %v2503, %v2791
      %v2793 = vpop.f32.mrb[0].mxu0
      %2794 = vmatprep.mubr.bf16.mxu0 0
      %2795 = vmatmul.mubr.bf16.gmra.mrb[0].mxu0 %v1720
      %v2796 = vpop.f32.mrb[0].mxu0
      %v2797 = vadd.f32 %v2508, %v2796
      %v2798 = vpop.f32.mrb[0].mxu0
      %v2799 = vpop.f32.mrb[0].mxu0
      %v2800 = vadd.f32 %v2511, %v2799
      %v2801 = vpop.f32.mrb[0].mxu0
      %2802 = vmatprep.mubr.bf16.mxu0 0
      %2803 = vmatmul.mubr.bf16.gmra.mrb[0].mxu0 %v1723
      %v2804 = vpop.f32.mrb[0].mxu0
      %v2805 = vadd.f32 %v2516, %v2804
      %v2806 = vpop.f32.mrb[0].mxu0
      %v2807 = vpop.f32.mrb[0].mxu0
      %v2808 = vadd.f32 %v2519, %v2807
      %v2809 = vpop.f32.mrb[0].mxu0
      %2810 = vmatprep.mubr.bf16.mxu0 0
      %2811 = vmatmul.mubr.bf16.gmra.mrb[0].mxu0 %v1726
      %v2812 = vpop.f32.mrb[0].mxu0
      %v2813 = vadd.f32 %v2524, %v2812
      %v2814 = vpop.f32.mrb[0].mxu0
      %v2815 = vpop.f32.mrb[0].mxu0
      %v2816 = vadd.f32 %v2527, %v2815
      %v2817 = vpop.f32.mrb[0].mxu0
      %2818 = vmatprep.mubr.bf16.mxu0 0
      %2819 = vmatmul.mubr.bf16.gmra.mrb[0].mxu0 %v1729
      %v2820 = vpop.f32.mrb[0].mxu0
      %v2821 = vadd.f32 %v2532, %v2820
      %v2822 = vpop.f32.mrb[0].mxu0
      %v2823 = vpop.f32.mrb[0].mxu0
      %v2824 = vadd.f32 %v2535, %v2823
      %v2825 = vpop.f32.mrb[0].mxu0
      %2826 = vmatprep.mubr.bf16.mxu0 0
      %2827 = vmatmul.mubr.bf16.gmra.mrb[0].mxu0 %v1732
      %v2828 = vpop.f32.mrb[0].mxu0
      %v2829 = vadd.f32 %v2540, %v2828
      %v2830 = vpop.f32.mrb[0].mxu0
      %v2831 = vpop.f32.mrb[0].mxu0
      %v2832 = vadd.f32 %v2543, %v2831
      %v2833 = vpop.f32.mrb[0].mxu0
      %2834 = vmatprep.mubr.bf16.mxu0 0
      %2835 = vmatmul.mubr.bf16.gmra.mrb[0].mxu0 %v1735
      %v2836 = vpop.f32.mrb[0].mxu0
      %v2837 = vadd.f32 %v2548, %v2836
      %v2838 = vpop.f32.mrb[0].mxu0
      %v2839 = vpop.f32.mrb[0].mxu0
      %v2840 = vadd.f32 %v2551, %v2839
      %v2841 = vpop.f32.mrb[0].mxu0
      %2842 = vmatprep.mubr.bf16.mxu0 0
      %2843 = vmatmul.mubr.bf16.gmra.mrb[0].mxu0 %v1738
      %v2844 = vpop.f32.mrb[0].mxu0
      %v2845 = vadd.f32 %v2556, %v2844
      %v2846 = vpop.f32.mrb[0].mxu0
      %v2847 = vpop.f32.mrb[0].mxu0
      %v2848 = vadd.f32 %v2559, %v2847
      %v2849 = vpop.f32.mrb[0].mxu0
      %2850 = vmatprep.mubr.bf16.mxu0 0
      %2851 = vmatmul.mubr.bf16.gmra.mrb[0].mxu0 %v1741
      %v2852 = vpop.f32.mrb[0].mxu0
      %v2853 = vadd.f32 %v2564, %v2852
      %v2854 = vpop.f32.mrb[0].mxu0
      %v2855 = vpop.f32.mrb[0].mxu0
      %v2856 = vadd.f32 %v2567, %v2855
      %v2857 = vpop.f32.mrb[0].mxu0
      %2858 = vmatprep.mubr.bf16.mxu0 0
      %2859 = vmatmul.mubr.bf16.gmra.mrb[0].mxu0 %v1744
      %v2860 = vpop.f32.mrb[0].mxu0
      %v2861 = vadd.f32 %v2572, %v2860
      %v2862 = vpop.f32.mrb[0].mxu0
      %v2863 = vpop.f32.mrb[0].mxu0
      %v2864 = vadd.f32 %v2575, %v2863
      %v2865 = vpop.f32.mrb[0].mxu0
      %2866 = vmatprep.mubr.bf16.mxu0 0
      %2867 = vmatmul.mubr.bf16.gmra.mrb[0].mxu0 %v1747
      %v2868 = vpop.f32.mrb[0].mxu0
      %v2869 = vadd.f32 %v2580, %v2868
      %v2870 = vpop.f32.mrb[0].mxu0
      %v2871 = vpop.f32.mrb[0].mxu0
      %v2872 = vadd.f32 %v2583, %v2871
      %v2873 = vpop.f32.mrb[0].mxu0
      %2874 = vmatprep.mubr.bf16.mxu0 0
      %2875 = vmatmul.mubr.bf16.gmra.mrb[0].mxu0 %v1750
      %v2876 = vpop.f32.mrb[0].mxu0
      %v2877 = vadd.f32 %v2588, %v2876
      %v2878 = vpop.f32.mrb[0].mxu0
      %v2879 = vpop.f32.mrb[0].mxu0
      %v2880 = vadd.f32 %v2591, %v2879
      %v2881 = vpop.f32.mrb[0].mxu0
      %2882 = vmatprep.mubr.bf16.mxu0 0
      %2883 = vmatmul.mubr.bf16.gmra.mrb[0].mxu0 %v1753
      %v2884 = vpop.f32.mrb[0].mxu0
      %v2885 = vadd.f32 %v2596, %v2884
      %v2886 = vpop.f32.mrb[0].mxu0
      %v2887 = vpop.f32.mrb[0].mxu0
      %v2888 = vadd.f32 %v2599, %v2887
      %v2889 = vpop.f32.mrb[0].mxu0
      %2890 = vmatprep.mubr.bf16.mxu0 0
      %2891 = vmatmul.mubr.bf16.gmra.mrb[0].mxu0 %v1756
      %v2892 = vpop.f32.mrb[0].mxu0
      %v2893 = vadd.f32 %v2604, %v2892
      %v2894 = vpop.f32.mrb[0].mxu0
      %v2895 = vpop.f32.mrb[0].mxu0
      %v2896 = vadd.f32 %v2607, %v2895
      %v2897 = vpop.f32.mrb[0].mxu0
      %2898 = vmatprep.mubr.bf16.mxu0 0
      %2899 = vmatmul.mubr.bf16.gmra.mrb[0].mxu0 %v1759
      %v2900 = vpop.f32.mrb[0].mxu0
      %v2901 = vadd.f32 %v2612, %v2900
      %v2902 = vpop.f32.mrb[0].mxu0
      %v2903 = vpop.f32.mrb[0].mxu0
      %v2904 = vadd.f32 %v2615, %v2903
      %v2905 = vpop.f32.mrb[0].mxu0
      %2906 = vmatprep.mubr.bf16.mxu0 0
      %2907 = vmatmul.mubr.bf16.gmra.mrb[0].mxu0 %v1762
      %v2908 = vpop.f32.mrb[0].mxu0
      %v2909 = vadd.f32 %v2620, %v2908
      %v2910 = vpop.f32.mrb[0].mxu0
      %v2911 = vpop.f32.mrb[0].mxu0
      %v2912 = vadd.f32 %v2623, %v2911
      %v2913 = vpop.f32.mrb[0].mxu0
      %2914 = vmatprep.mubr.bf16.mxu0 0
      %2915 = vmatmul.mubr.bf16.gmra.mrb[0].mxu0 %v1765
      %v2916 = vpop.f32.mrb[0].mxu0
      %v2917 = vadd.f32 %v2628, %v2916
      %v2918 = vpop.f32.mrb[0].mxu0
      %v2919 = vpop.f32.mrb[0].mxu0
      %v2920 = vadd.f32 %v2631, %v2919
      %v2921 = vpop.f32.mrb[0].mxu0
      %2922 = vdwg.mxu0
      %v2923 = vtanh.pop %v2669
      %v2924 = vtanh.pop %v2672
      %v2925 = vtanh.pop %v2677
      %v2926 = vtanh.pop %v2680
      %v2927 = vtanh.pop %v2685
      %v2928 = vtanh.pop %v2688
      %v2929 = vtanh.pop %v2693
      %v2930 = vtanh.pop %v2696
      %v2931 = vtanh.pop %v2701
      %v2932 = vtanh.pop %v2704
      %v2933 = vtanh.pop %v2709
      %v2934 = vtanh.pop %v2712
      %v2935 = vtanh.pop %v2717
      %v2936 = vtanh.pop %v2720
      %v2937 = vtanh.pop %v2725
      %v2938 = vtanh.pop %v2728
      %v2939 = vtanh.pop %v2733
      %v2940 = vtanh.pop %v2736
      %v2941 = vtanh.pop %v2741
      %v2942 = vtanh.pop %v2744
      %v2943 = vtanh.pop %v2749
      %v2944 = vtanh.pop %v2752
      %v2945 = vtanh.pop %v2757
      %v2946 = vtanh.pop %v2760
      %v2947 = vtanh.pop %v2765
      %v2948 = vtanh.pop %v2768
      %v2949 = vtanh.pop %v2773
      %v2950 = vtanh.pop %v2776
      %v2951 = vtanh.pop %v2781
      %v2952 = vtanh.pop %v2784
      %v2953 = vtanh.pop %v2789
      %v2954 = vtanh.pop %v2792
      %v2955 = vtanh.pop %v2797
      %v2956 = vtanh.pop %v2800
      %v2957 = vtanh.pop %v2805
      %v2958 = vtanh.pop %v2808
      %v2959 = vtanh.pop %v2813
      %v2960 = vtanh.pop %v2816
      %v2961 = vtanh.pop %v2821
      %v2962 = vtanh.pop %v2824
      %v2963 = vtanh.pop %v2829
      %v2964 = vtanh.pop %v2832
      %v2965 = vtanh.pop %v2837
      %v2966 = vtanh.pop %v2840
      %v2967 = vtanh.pop %v2845
      %v2968 = vtanh.pop %v2848
      %v2969 = vtanh.pop %v2853
      %v2970 = vtanh.pop %v2856
      %v2971 = vtanh.pop %v2861
      %v2972 = vtanh.pop %v2864
      %v2973 = vtanh.pop %v2869
      %v2974 = vtanh.pop %v2872
      %v2975 = vtanh.pop %v2877
      %v2976 = vtanh.pop %v2880
      %v2977 = vtanh.pop %v2885
      %v2978 = vtanh.pop %v2888
      %v2979 = vtanh.pop %v2893
      %v2980 = vtanh.pop %v2896
      %v2981 = vtanh.pop %v2901
      %v2982 = vtanh.pop %v2904
      %v2983 = vtanh.pop %v2909
      %v2984 = vtanh.pop %v2912
      %v2985 = vtanh.pop %v2917
      %v2986 = vtanh.pop %v2920
      %v2987 = vpack.c.bf16 %v2924, %v2923
      %v2988 = vpack.c.bf16 %v2926, %v2925
      %v2989 = vpack.c.bf16 %v2928, %v2927
      %v2990 = vpack.c.bf16 %v2930, %v2929
      %v2991 = vpack.c.bf16 %v2932, %v2931
      %v2992 = vpack.c.bf16 %v2934, %v2933
      %v2993 = vpack.c.bf16 %v2936, %v2935
      %v2994 = vpack.c.bf16 %v2938, %v2937
      %v2995 = vpack.c.bf16 %v2940, %v2939
      %v2996 = vpack.c.bf16 %v2942, %v2941
      %v2997 = vpack.c.bf16 %v2944, %v2943
      %v2998 = vpack.c.bf16 %v2946, %v2945
      %v2999 = vpack.c.bf16 %v2948, %v2947
      %v3000 = vpack.c.bf16 %v2950, %v2949
      %v3001 = vpack.c.bf16 %v2952, %v2951
      %v3002 = vpack.c.bf16 %v2954, %v2953
      %v3003 = vpack.c.bf16 %v2956, %v2955
      %v3004 = vpack.c.bf16 %v2958, %v2957
      %v3005 = vpack.c.bf16 %v2960, %v2959
      %v3006 = vpack.c.bf16 %v2962, %v2961
      %v3007 = vpack.c.bf16 %v2964, %v2963
      %v3008 = vpack.c.bf16 %v2966, %v2965
      %v3009 = vpack.c.bf16 %v2968, %v2967
      %v3010 = vpack.c.bf16 %v2970, %v2969
      %v3011 = vpack.c.bf16 %v2972, %v2971
      %v3012 = vpack.c.bf16 %v2974, %v2973
      %v3013 = vpack.c.bf16 %v2976, %v2975
      %v3014 = vpack.c.bf16 %v2978, %v2977
      %v3015 = vpack.c.bf16 %v2980, %v2979
      %v3016 = vpack.c.bf16 %v2982, %v2981
      %v3017 = vpack.c.bf16 %v2984, %v2983
      %v3018 = vpack.c.bf16 %v2986, %v2985
      %v3019 = vld [vmem:[%s3] sm:$0xf]
      %v3020 = vld [vmem:[%s3 + $0x4] sm:$0xf]
      %v3021 = vld [vmem:[%s3 + $0x8] sm:$0xf]
      %v3022 = vld [vmem:[%s3 + $0xc] sm:$0xf]
      %v3023 = vld [vmem:[%s3 + $0x10] sm:$0xf]
      %v3024 = vld [vmem:[%s3 + $0x14] sm:$0xf]
      %v3025 = vld [vmem:[%s3 + $0x18] sm:$0xf]
      %v3026 = vld [vmem:[%s3 + $0x1c] sm:$0xf]
      %v3027 = vld [vmem:[%s3 + $0x20] sm:$0xf]
      %v3028 = vld [vmem:[%s3 + $0x24] sm:$0xf]
      %v3029 = vld [vmem:[%s3 + $0x28] sm:$0xf]
      %v3030 = vld [vmem:[%s3 + $0x2c] sm:$0xf]
      %v3031 = vld [vmem:[%s3 + $0x30] sm:$0xf]
      %v3032 = vld [vmem:[%s3 + $0x34] sm:$0xf]
      %v3033 = vld [vmem:[%s3 + $0x38] sm:$0xf]
      %v3034 = vld [vmem:[%s3 + $0x3c] sm:$0xf]
      %v3035 = vld [vmem:[%s4] sm:$0x1]
      %v3037 = vlaneseq
      %v3038 = vshrl.u32 %v3037, 7
      %v3039 = vsub.s32 0, %v3038
      %v3040 = vrot.slane %v3035, %v3039
      %v3058 = vunpack.c.l.b16 %v3019
      %v3059 = vunpack.c.l.b16 %v3020
      %v3060 = vunpack.c.l.b16 %v3021
      %v3061 = vunpack.c.l.b16 %v3022
      %v3062 = vunpack.c.l.b16 %v3023
      %v3063 = vunpack.c.l.b16 %v3024
      %v3064 = vunpack.c.l.b16 %v3025
      %v3065 = vunpack.c.l.b16 %v3026
      %v3066 = vunpack.c.l.b16 %v3027
      %v3067 = vunpack.c.l.b16 %v3028
      %v3068 = vunpack.c.l.b16 %v3029
      %v3069 = vunpack.c.l.b16 %v3030
      %v3070 = vunpack.c.l.b16 %v3031
      %v3071 = vunpack.c.l.b16 %v3032
      %v3072 = vunpack.c.l.b16 %v3033
      %v3073 = vunpack.c.l.b16 %v3034
      %v3074 = vpack.c.b16 %v3059, %v3058
      %v3075 = vpack.c.b16 %v3061, %v3060
      %v3076 = vpack.c.b16 %v3063, %v3062
      %v3077 = vpack.c.b16 %v3065, %v3064
      %v3078 = vpack.c.b16 %v3067, %v3066
      %v3079 = vpack.c.b16 %v3069, %v3068
      %v3080 = vpack.c.b16 %v3071, %v3070
      %v3081 = vpack.c.b16 %v3073, %v3072
      %3090 = vmatprep.subr.bf16.mxu0 0
      %3091 = vmatpush1.bf16.msra.mxu0 %v3074
      %3092 = vmatprep.subr.bf16.mxu0 0
      %3093 = vmatpush1.bf16.msra.mxu0 %v3075
      %3094 = vmatprep.subr.bf16.mxu0 0
      %3095 = vmatpush1.bf16.msra.mxu0 %v3076
      %3096 = vmatprep.subr.bf16.mxu0 0
      %3097 = vmatpush1.bf16.msra.mxu0 %v3077
      %3098 = vmatprep.subr.bf16.mxu0 0
      %3099 = vmatpush1.bf16.msra.mxu0 %v3078
      %3100 = vmatprep.subr.bf16.mxu0 0
      %3101 = vmatpush1.bf16.msra.mxu0 %v3079
      %3102 = vmatprep.subr.bf16.mxu0 0
      %3103 = vmatpush1.bf16.msra.mxu0 %v3080
      %3104 = vmatprep.subr.bf16.mxu0 0
      %3105 = vmatpush1.bf16.msra.mxu0 %v3081
      %3106 = vmatprep.subr.bf16.mxu0 0
      %3107 = vmatpush1.bf16.msra.mxu0 0
      %3108 = vmatprep.subr.bf16.mxu0 0
      %3109 = vmatpush1.bf16.msra.mxu0 0
      %3110 = vmatprep.subr.bf16.mxu0 0
      %3111 = vmatpush1.bf16.msra.mxu0 0
      %3112 = vmatprep.subr.bf16.mxu0 0
      %3113 = vmatpush1.bf16.msra.mxu0 0
      %3114 = vmatprep.subr.bf16.mxu0 0
      %3115 = vmatpush1.bf16.msra.mxu0 0
      %3116 = vmatprep.subr.bf16.mxu0 0
      %3117 = vmatpush1.bf16.msra.mxu0 0
      %3118 = vmatprep.subr.bf16.mxu0 0
      %3119 = vmatpush1.bf16.msra.mxu0 0
      %3120 = vmatprep.subr.bf16.mxu0 0
      %3121 = vmatpush1.bf16.msra.mxu0 0
      %3122 = vmatprep.mubr.bf16.mxu0 0
      %3123 = vmatmul.mubr.bf16.gmra.mrb[0].mxu0 %v2987
      %v3124 = vpop.f32.mrb[0].mxu0
      %v3125 = vadd.f32 %v3040, %v3124
      %v3126 = vpop.f32.mrb[0].mxu0
      %v3127 = vpop.f32.mrb[0].mxu0
      %v3128 = vadd.f32 %v3040, %v3127
      %v3129 = vpop.f32.mrb[0].mxu0
      %3130 = vmatprep.mubr.bf16.mxu0 0
      %3131 = vmatmul.mubr.bf16.gmra.mrb[0].mxu0 %v2988
      %v3132 = vpop.f32.mrb[0].mxu0
      %v3133 = vadd.f32 %v3040, %v3132
      %v3134 = vpop.f32.mrb[0].mxu0
      %v3135 = vpop.f32.mrb[0].mxu0
      %v3136 = vadd.f32 %v3040, %v3135
      %v3137 = vpop.f32.mrb[0].mxu0
      %3138 = vmatprep.mubr.bf16.mxu0 0
      %3139 = vmatmul.mubr.bf16.gmra.mrb[0].mxu0 %v2989
      %v3140 = vpop.f32.mrb[0].mxu0
      %v3141 = vadd.f32 %v3040, %v3140
      %v3142 = vpop.f32.mrb[0].mxu0
      %v3143 = vpop.f32.mrb[0].mxu0
      %v3144 = vadd.f32 %v3040, %v3143
      %v3145 = vpop.f32.mrb[0].mxu0
      %3146 = vmatprep.mubr.bf16.mxu0 0
      %3147 = vmatmul.mubr.bf16.gmra.mrb[0].mxu0 %v2990
      %v3148 = vpop.f32.mrb[0].mxu0
      %v3149 = vadd.f32 %v3040, %v3148
      %v3150 = vpop.f32.mrb[0].mxu0
      %v3151 = vpop.f32.mrb[0].mxu0
      %v3152 = vadd.f32 %v3040, %v3151
      %v3153 = vpop.f32.mrb[0].mxu0
      %3154 = vmatprep.mubr.bf16.mxu0 0
      %3155 = vmatmul.mubr.bf16.gmra.mrb[0].mxu0 %v2991
      %v3156 = vpop.f32.mrb[0].mxu0
      %v3157 = vadd.f32 %v3040, %v3156
      %v3158 = vpop.f32.mrb[0].mxu0
      %v3159 = vpop.f32.mrb[0].mxu0
      %v3160 = vadd.f32 %v3040, %v3159
      %v3161 = vpop.f32.mrb[0].mxu0
      %3162 = vmatprep.mubr.bf16.mxu0 0
      %3163 = vmatmul.mubr.bf16.gmra.mrb[0].mxu0 %v2992
      %v3164 = vpop.f32.mrb[0].mxu0
      %v3165 = vadd.f32 %v3040, %v3164
      %v3166 = vpop.f32.mrb[0].mxu0
      %v3167 = vpop.f32.mrb[0].mxu0
      %v3168 = vadd.f32 %v3040, %v3167
      %v3169 = vpop.f32.mrb[0].mxu0
      %3170 = vmatprep.mubr.bf16.mxu0 0
      %3171 = vmatmul.mubr.bf16.gmra.mrb[0].mxu0 %v2993
      %v3172 = vpop.f32.mrb[0].mxu0
      %v3173 = vadd.f32 %v3040, %v3172
      %v3174 = vpop.f32.mrb[0].mxu0
      %v3175 = vpop.f32.mrb[0].mxu0
      %v3176 = vadd.f32 %v3040, %v3175
      %v3177 = vpop.f32.mrb[0].mxu0
      %3178 = vmatprep.mubr.bf16.mxu0 0
      %3179 = vmatmul.mubr.bf16.gmra.mrb[0].mxu0 %v2994
      %v3180 = vpop.f32.mrb[0].mxu0
      %v3181 = vadd.f32 %v3040, %v3180
      %v3182 = vpop.f32.mrb[0].mxu0
      %v3183 = vpop.f32.mrb[0].mxu0
      %v3184 = vadd.f32 %v3040, %v3183
      %v3185 = vpop.f32.mrb[0].mxu0
      %3186 = vmatprep.mubr.bf16.mxu0 0
      %3187 = vmatmul.mubr.bf16.gmra.mrb[0].mxu0 %v2995
      %v3188 = vpop.f32.mrb[0].mxu0
      %v3189 = vadd.f32 %v3040, %v3188
      %v3190 = vpop.f32.mrb[0].mxu0
      %v3191 = vpop.f32.mrb[0].mxu0
      %v3192 = vadd.f32 %v3040, %v3191
      %v3193 = vpop.f32.mrb[0].mxu0
      %3194 = vmatprep.mubr.bf16.mxu0 0
      %3195 = vmatmul.mubr.bf16.gmra.mrb[0].mxu0 %v2996
      %v3196 = vpop.f32.mrb[0].mxu0
      %v3197 = vadd.f32 %v3040, %v3196
      %v3198 = vpop.f32.mrb[0].mxu0
      %v3199 = vpop.f32.mrb[0].mxu0
      %v3200 = vadd.f32 %v3040, %v3199
      %v3201 = vpop.f32.mrb[0].mxu0
      %3202 = vmatprep.mubr.bf16.mxu0 0
      %3203 = vmatmul.mubr.bf16.gmra.mrb[0].mxu0 %v2997
      %v3204 = vpop.f32.mrb[0].mxu0
      %v3205 = vadd.f32 %v3040, %v3204
      %v3206 = vpop.f32.mrb[0].mxu0
      %v3207 = vpop.f32.mrb[0].mxu0
      %v3208 = vadd.f32 %v3040, %v3207
      %v3209 = vpop.f32.mrb[0].mxu0
      %3210 = vmatprep.mubr.bf16.mxu0 0
      %3211 = vmatmul.mubr.bf16.gmra.mrb[0].mxu0 %v2998
      %v3212 = vpop.f32.mrb[0].mxu0
      %v3213 = vadd.f32 %v3040, %v3212
      %v3214 = vpop.f32.mrb[0].mxu0
      %v3215 = vpop.f32.mrb[0].mxu0
      %v3216 = vadd.f32 %v3040, %v3215
      %v3217 = vpop.f32.mrb[0].mxu0
      %3218 = vmatprep.mubr.bf16.mxu0 0
      %3219 = vmatmul.mubr.bf16.gmra.mrb[0].mxu0 %v2999
      %v3220 = vpop.f32.mrb[0].mxu0
      %v3221 = vadd.f32 %v3040, %v3220
      %v3222 = vpop.f32.mrb[0].mxu0
      %v3223 = vpop.f32.mrb[0].mxu0
      %v3224 = vadd.f32 %v3040, %v3223
      %v3225 = vpop.f32.mrb[0].mxu0
      %3226 = vmatprep.mubr.bf16.mxu0 0
      %3227 = vmatmul.mubr.bf16.gmra.mrb[0].mxu0 %v3000
      %v3228 = vpop.f32.mrb[0].mxu0
      %v3229 = vadd.f32 %v3040, %v3228
      %v3230 = vpop.f32.mrb[0].mxu0
      %v3231 = vpop.f32.mrb[0].mxu0
      %v3232 = vadd.f32 %v3040, %v3231
      %v3233 = vpop.f32.mrb[0].mxu0
      %3234 = vmatprep.mubr.bf16.mxu0 0
      %3235 = vmatmul.mubr.bf16.gmra.mrb[0].mxu0 %v3001
      %v3236 = vpop.f32.mrb[0].mxu0
      %v3237 = vadd.f32 %v3040, %v3236
      %v3238 = vpop.f32.mrb[0].mxu0
      %v3239 = vpop.f32.mrb[0].mxu0
      %v3240 = vadd.f32 %v3040, %v3239
      %v3241 = vpop.f32.mrb[0].mxu0
      %3242 = vmatprep.mubr.bf16.mxu0 0
      %3243 = vmatmul.mubr.bf16.gmra.mrb[0].mxu0 %v3002
      %v3244 = vpop.f32.mrb[0].mxu0
      %v3245 = vadd.f32 %v3040, %v3244
      %v3246 = vpop.f32.mrb[0].mxu0
      %v3247 = vpop.f32.mrb[0].mxu0
      %v3248 = vadd.f32 %v3040, %v3247
      %v3249 = vpop.f32.mrb[0].mxu0
      %3250 = vmatprep.mubr.bf16.mxu0 0
      %3251 = vmatmul.mubr.bf16.gmra.mrb[0].mxu0 %v3003
      %v3252 = vpop.f32.mrb[0].mxu0
      %v3253 = vadd.f32 %v3040, %v3252
      %v3254 = vpop.f32.mrb[0].mxu0
      %v3255 = vpop.f32.mrb[0].mxu0
      %v3256 = vadd.f32 %v3040, %v3255
      %v3257 = vpop.f32.mrb[0].mxu0
      %3258 = vmatprep.mubr.bf16.mxu0 0
      %3259 = vmatmul.mubr.bf16.gmra.mrb[0].mxu0 %v3004
      %v3260 = vpop.f32.mrb[0].mxu0
      %v3261 = vadd.f32 %v3040, %v3260
      %v3262 = vpop.f32.mrb[0].mxu0
      %v3263 = vpop.f32.mrb[0].mxu0
      %v3264 = vadd.f32 %v3040, %v3263
      %v3265 = vpop.f32.mrb[0].mxu0
      %3266 = vmatprep.mubr.bf16.mxu0 0
      %3267 = vmatmul.mubr.bf16.gmra.mrb[0].mxu0 %v3005
      %v3268 = vpop.f32.mrb[0].mxu0
      %v3269 = vadd.f32 %v3040, %v3268
      %v3270 = vpop.f32.mrb[0].mxu0
      %v3271 = vpop.f32.mrb[0].mxu0
      %v3272 = vadd.f32 %v3040, %v3271
      %v3273 = vpop.f32.mrb[0].mxu0
      %3274 = vmatprep.mubr.bf16.mxu0 0
      %3275 = vmatmul.mubr.bf16.gmra.mrb[0].mxu0 %v3006
      %v3276 = vpop.f32.mrb[0].mxu0
      %v3277 = vadd.f32 %v3040, %v3276
      %v3278 = vpop.f32.mrb[0].mxu0
      %v3279 = vpop.f32.mrb[0].mxu0
      %v3280 = vadd.f32 %v3040, %v3279
      %v3281 = vpop.f32.mrb[0].mxu0
      %3282 = vmatprep.mubr.bf16.mxu0 0
      %3283 = vmatmul.mubr.bf16.gmra.mrb[0].mxu0 %v3007
      %v3284 = vpop.f32.mrb[0].mxu0
      %v3285 = vadd.f32 %v3040, %v3284
      %v3286 = vpop.f32.mrb[0].mxu0
      %v3287 = vpop.f32.mrb[0].mxu0
      %v3288 = vadd.f32 %v3040, %v3287
      %v3289 = vpop.f32.mrb[0].mxu0
      %3290 = vmatprep.mubr.bf16.mxu0 0
      %3291 = vmatmul.mubr.bf16.gmra.mrb[0].mxu0 %v3008
      %v3292 = vpop.f32.mrb[0].mxu0
      %v3293 = vadd.f32 %v3040, %v3292
      %v3294 = vpop.f32.mrb[0].mxu0
      %v3295 = vpop.f32.mrb[0].mxu0
      %v3296 = vadd.f32 %v3040, %v3295
      %v3297 = vpop.f32.mrb[0].mxu0
      %3298 = vmatprep.mubr.bf16.mxu0 0
      %3299 = vmatmul.mubr.bf16.gmra.mrb[0].mxu0 %v3009
      %v3300 = vpop.f32.mrb[0].mxu0
      %v3301 = vadd.f32 %v3040, %v3300
      %v3302 = vpop.f32.mrb[0].mxu0
      %v3303 = vpop.f32.mrb[0].mxu0
      %v3304 = vadd.f32 %v3040, %v3303
      %v3305 = vpop.f32.mrb[0].mxu0
      %3306 = vmatprep.mubr.bf16.mxu0 0
      %3307 = vmatmul.mubr.bf16.gmra.mrb[0].mxu0 %v3010
      %v3308 = vpop.f32.mrb[0].mxu0
      %v3309 = vadd.f32 %v3040, %v3308
      %v3310 = vpop.f32.mrb[0].mxu0
      %v3311 = vpop.f32.mrb[0].mxu0
      %v3312 = vadd.f32 %v3040, %v3311
      %v3313 = vpop.f32.mrb[0].mxu0
      %3314 = vmatprep.mubr.bf16.mxu0 0
      %3315 = vmatmul.mubr.bf16.gmra.mrb[0].mxu0 %v3011
      %v3316 = vpop.f32.mrb[0].mxu0
      %v3317 = vadd.f32 %v3040, %v3316
      %v3318 = vpop.f32.mrb[0].mxu0
      %v3319 = vpop.f32.mrb[0].mxu0
      %v3320 = vadd.f32 %v3040, %v3319
      %v3321 = vpop.f32.mrb[0].mxu0
      %3322 = vmatprep.mubr.bf16.mxu0 0
      %3323 = vmatmul.mubr.bf16.gmra.mrb[0].mxu0 %v3012
      %v3324 = vpop.f32.mrb[0].mxu0
      %v3325 = vadd.f32 %v3040, %v3324
      %v3326 = vpop.f32.mrb[0].mxu0
      %v3327 = vpop.f32.mrb[0].mxu0
      %v3328 = vadd.f32 %v3040, %v3327
      %v3329 = vpop.f32.mrb[0].mxu0
      %3330 = vmatprep.mubr.bf16.mxu0 0
      %3331 = vmatmul.mubr.bf16.gmra.mrb[0].mxu0 %v3013
      %v3332 = vpop.f32.mrb[0].mxu0
      %v3333 = vadd.f32 %v3040, %v3332
      %v3334 = vpop.f32.mrb[0].mxu0
      %v3335 = vpop.f32.mrb[0].mxu0
      %v3336 = vadd.f32 %v3040, %v3335
      %v3337 = vpop.f32.mrb[0].mxu0
      %3338 = vmatprep.mubr.bf16.mxu0 0
      %3339 = vmatmul.mubr.bf16.gmra.mrb[0].mxu0 %v3014
      %v3340 = vpop.f32.mrb[0].mxu0
      %v3341 = vadd.f32 %v3040, %v3340
      %v3342 = vpop.f32.mrb[0].mxu0
      %v3343 = vpop.f32.mrb[0].mxu0
      %v3344 = vadd.f32 %v3040, %v3343
      %v3345 = vpop.f32.mrb[0].mxu0
      %3346 = vmatprep.mubr.bf16.mxu0 0
      %3347 = vmatmul.mubr.bf16.gmra.mrb[0].mxu0 %v3015
      %v3348 = vpop.f32.mrb[0].mxu0
      %v3349 = vadd.f32 %v3040, %v3348
      %v3350 = vpop.f32.mrb[0].mxu0
      %v3351 = vpop.f32.mrb[0].mxu0
      %v3352 = vadd.f32 %v3040, %v3351
      %v3353 = vpop.f32.mrb[0].mxu0
      %3354 = vmatprep.mubr.bf16.mxu0 0
      %3355 = vmatmul.mubr.bf16.gmra.mrb[0].mxu0 %v3016
      %v3356 = vpop.f32.mrb[0].mxu0
      %v3357 = vadd.f32 %v3040, %v3356
      %v3358 = vpop.f32.mrb[0].mxu0
      %v3359 = vpop.f32.mrb[0].mxu0
      %v3360 = vadd.f32 %v3040, %v3359
      %v3361 = vpop.f32.mrb[0].mxu0
      %3362 = vmatprep.mubr.bf16.mxu0 0
      %3363 = vmatmul.mubr.bf16.gmra.mrb[0].mxu0 %v3017
      %v3364 = vpop.f32.mrb[0].mxu0
      %v3365 = vadd.f32 %v3040, %v3364
      %v3366 = vpop.f32.mrb[0].mxu0
      %v3367 = vpop.f32.mrb[0].mxu0
      %v3368 = vadd.f32 %v3040, %v3367
      %v3369 = vpop.f32.mrb[0].mxu0
      %3370 = vmatprep.mubr.bf16.mxu0 0
      %3371 = vmatmul.mubr.bf16.gmra.mrb[0].mxu0 %v3018
      %v3372 = vpop.f32.mrb[0].mxu0
      %v3373 = vadd.f32 %v3040, %v3372
      %v3374 = vpop.f32.mrb[0].mxu0
      %v3375 = vpop.f32.mrb[0].mxu0
      %v3376 = vadd.f32 %v3040, %v3375
      %v3377 = vpop.f32.mrb[0].mxu0
      %3378 = vdwg.mxu0
      %v3379 = vtanh.pop %v3125
      %v3380 = vtanh.pop %v3128
      %v3381 = vtanh.pop %v3133
      %v3382 = vtanh.pop %v3136
      %v3383 = vtanh.pop %v3141
      %v3384 = vtanh.pop %v3144
      %v3385 = vtanh.pop %v3149
      %v3386 = vtanh.pop %v3152
      %v3387 = vtanh.pop %v3157
      %v3388 = vtanh.pop %v3160
      %v3389 = vtanh.pop %v3165
      %v3390 = vtanh.pop %v3168
      %v3391 = vtanh.pop %v3173
      %v3392 = vtanh.pop %v3176
      %v3393 = vtanh.pop %v3181
      %v3394 = vtanh.pop %v3184
      %v3395 = vtanh.pop %v3189
      %v3396 = vtanh.pop %v3192
      %v3397 = vtanh.pop %v3197
      %v3398 = vtanh.pop %v3200
      %v3399 = vtanh.pop %v3205
      %v3400 = vtanh.pop %v3208
      %v3401 = vtanh.pop %v3213
      %v3402 = vtanh.pop %v3216
      %v3403 = vtanh.pop %v3221
      %v3404 = vtanh.pop %v3224
      %v3405 = vtanh.pop %v3229
      %v3406 = vtanh.pop %v3232
      %v3407 = vtanh.pop %v3237
      %v3408 = vtanh.pop %v3240
      %v3409 = vtanh.pop %v3245
      %v3410 = vtanh.pop %v3248
      %v3411 = vtanh.pop %v3253
      %v3412 = vtanh.pop %v3256
      %v3413 = vtanh.pop %v3261
      %v3414 = vtanh.pop %v3264
      %v3415 = vtanh.pop %v3269
      %v3416 = vtanh.pop %v3272
      %v3417 = vtanh.pop %v3277
      %v3418 = vtanh.pop %v3280
      %v3419 = vtanh.pop %v3285
      %v3420 = vtanh.pop %v3288
      %v3421 = vtanh.pop %v3293
      %v3422 = vtanh.pop %v3296
      %v3423 = vtanh.pop %v3301
      %v3424 = vtanh.pop %v3304
      %v3425 = vtanh.pop %v3309
      %v3426 = vtanh.pop %v3312
      %v3427 = vtanh.pop %v3317
      %v3428 = vtanh.pop %v3320
      %v3429 = vtanh.pop %v3325
      %v3430 = vtanh.pop %v3328
      %v3431 = vtanh.pop %v3333
      %v3432 = vtanh.pop %v3336
      %v3433 = vtanh.pop %v3341
      %v3434 = vtanh.pop %v3344
      %v3435 = vtanh.pop %v3349
      %v3436 = vtanh.pop %v3352
      %v3437 = vtanh.pop %v3357
      %v3438 = vtanh.pop %v3360
      %v3439 = vtanh.pop %v3365
      %v3440 = vtanh.pop %v3368
      %v3441 = vtanh.pop %v3373
      %v3442 = vtanh.pop %v3376
      %v3443 = vpack.c.bf16 %v3380, %v3379
      %v3444 = vpack.c.bf16 %v3382, %v3381
      %v3445 = vpack.c.bf16 %v3384, %v3383
      %v3446 = vpack.c.bf16 %v3386, %v3385
      %v3447 = vpack.c.bf16 %v3388, %v3387
      %v3448 = vpack.c.bf16 %v3390, %v3389
      %v3449 = vpack.c.bf16 %v3392, %v3391
      %v3450 = vpack.c.bf16 %v3394, %v3393
      %v3451 = vpack.c.bf16 %v3396, %v3395
      %v3452 = vpack.c.bf16 %v3398, %v3397
      %v3453 = vpack.c.bf16 %v3400, %v3399
      %v3454 = vpack.c.bf16 %v3402, %v3401
      %v3455 = vpack.c.bf16 %v3404, %v3403
      %v3456 = vpack.c.bf16 %v3406, %v3405
      %v3457 = vpack.c.bf16 %v3408, %v3407
      %v3458 = vpack.c.bf16 %v3410, %v3409
      %v3459 = vpack.c.bf16 %v3412, %v3411
      %v3460 = vpack.c.bf16 %v3414, %v3413
      %v3461 = vpack.c.bf16 %v3416, %v3415
      %v3462 = vpack.c.bf16 %v3418, %v3417
      %v3463 = vpack.c.bf16 %v3420, %v3419
      %v3464 = vpack.c.bf16 %v3422, %v3421
      %v3465 = vpack.c.bf16 %v3424, %v3423
      %v3466 = vpack.c.bf16 %v3426, %v3425
      %v3467 = vpack.c.bf16 %v3428, %v3427
      %v3468 = vpack.c.bf16 %v3430, %v3429
      %v3469 = vpack.c.bf16 %v3432, %v3431
      %v3470 = vpack.c.bf16 %v3434, %v3433
      %v3471 = vpack.c.bf16 %v3436, %v3435
      %v3472 = vpack.c.bf16 %v3438, %v3437
      %v3473 = vpack.c.bf16 %v3440, %v3439
      %v3474 = vpack.c.bf16 %v3442, %v3441
      %v3475 = vld [vmem:[%s5] sm:$0xf]
      %v3476 = vld [vmem:[%s5 + $0x4] sm:$0xf]
      %v3477 = vld [vmem:[%s5 + $0x8] sm:$0xf]
      %v3478 = vld [vmem:[%s5 + $0xc] sm:$0xf]
      %v3479 = vld [vmem:[%s5 + $0x10] sm:$0xf]
      %v3480 = vld [vmem:[%s5 + $0x14] sm:$0xf]
      %v3481 = vld [vmem:[%s5 + $0x18] sm:$0xf]
      %v3482 = vld [vmem:[%s5 + $0x1c] sm:$0xf]
      %v3483 = vld [vmem:[%s6] sm:$0x1]
      %v3485 = vlaneseq
      %v3486 = vshrl.u32 %v3485, 7
      %v3487 = vsub.s32 0, %v3486
      %v3488 = vrot.slane %v3483, %v3487
      %v3498 = vunpack.c.l.b16 %v3475
      %v3499 = vunpack.c.l.b16 %v3476
      %v3500 = vunpack.c.l.b16 %v3477
      %v3501 = vunpack.c.l.b16 %v3478
      %v3502 = vunpack.c.l.b16 %v3479
      %v3503 = vunpack.c.l.b16 %v3480
      %v3504 = vunpack.c.l.b16 %v3481
      %v3505 = vunpack.c.l.b16 %v3482
      %v3506 = vpack.c.b16 %v3499, %v3498
      %v3507 = vpack.c.b16 %v3501, %v3500
      %v3508 = vpack.c.b16 %v3503, %v3502
      %v3509 = vpack.c.b16 %v3505, %v3504
      %vm3514 = vcmask 523264
      %v3516 = vsel %vm3514, %v3443, 0
      %v3519 = vsel %vm3514, %v3444, 0
      %v3522 = vsel %vm3514, %v3445, 0
      %v3525 = vsel %vm3514, %v3446, 0
      %v3528 = vsel %vm3514, %v3447, 0
      %v3531 = vsel %vm3514, %v3448, 0
      %v3534 = vsel %vm3514, %v3449, 0
      %v3537 = vsel %vm3514, %v3450, 0
      %v3540 = vsel %vm3514, %v3451, 0
      %v3543 = vsel %vm3514, %v3452, 0
      %v3546 = vsel %vm3514, %v3453, 0
      %v3549 = vsel %vm3514, %v3454, 0
      %v3552 = vsel %vm3514, %v3455, 0
      %v3555 = vsel %vm3514, %v3456, 0
      %v3558 = vsel %vm3514, %v3457, 0
      %v3561 = vsel %vm3514, %v3458, 0
      %v3564 = vsel %vm3514, %v3459, 0
      %v3567 = vsel %vm3514, %v3460, 0
      %v3570 = vsel %vm3514, %v3461, 0
      %v3573 = vsel %vm3514, %v3462, 0
      %v3576 = vsel %vm3514, %v3463, 0
      %v3579 = vsel %vm3514, %v3464, 0
      %v3582 = vsel %vm3514, %v3465, 0
      %v3585 = vsel %vm3514, %v3466, 0
      %v3588 = vsel %vm3514, %v3467, 0
      %v3591 = vsel %vm3514, %v3468, 0
      %v3594 = vsel %vm3514, %v3469, 0
      %v3597 = vsel %vm3514, %v3470, 0
      %v3600 = vsel %vm3514, %v3471, 0
      %v3603 = vsel %vm3514, %v3472, 0
      %v3606 = vsel %vm3514, %v3473, 0
      %v3609 = vsel %vm3514, %v3474, 0
      %3611 = vmatprep.subr.bf16.mxu0 0
      %3612 = vmatpush1.bf16.msra.mxu0 %v3506
      %3613 = vmatprep.subr.bf16.mxu0 0
      %3614 = vmatpush1.bf16.msra.mxu0 %v3507
      %3615 = vmatprep.subr.bf16.mxu0 0
      %3616 = vmatpush1.bf16.msra.mxu0 %v3508
      %3617 = vmatprep.subr.bf16.mxu0 0
      %3618 = vmatpush1.bf16.msra.mxu0 %v3509
      %3619 = vmatprep.subr.bf16.mxu0 0
      %3620 = vmatpush1.bf16.msra.mxu0 0
      %3621 = vmatprep.subr.bf16.mxu0 0
      %3622 = vmatpush1.bf16.msra.mxu0 0
      %3623 = vmatprep.subr.bf16.mxu0 0
      %3624 = vmatpush1.bf16.msra.mxu0 0
      %3625 = vmatprep.subr.bf16.mxu0 0
      %3626 = vmatpush1.bf16.msra.mxu0 0
      %3627 = vmatprep.subr.bf16.mxu0 0
      %3628 = vmatpush1.bf16.msra.mxu0 0
      %3629 = vmatprep.subr.bf16.mxu0 0
      %3630 = vmatpush1.bf16.msra.mxu0 0
      %3631 = vmatprep.subr.bf16.mxu0 0
      %3632 = vmatpush1.bf16.msra.mxu0 0
      %3633 = vmatprep.subr.bf16.mxu0 0
      %3634 = vmatpush1.bf16.msra.mxu0 0
      %3635 = vmatprep.subr.bf16.mxu0 0
      %3636 = vmatpush1.bf16.msra.mxu0 0
      %3637 = vmatprep.subr.bf16.mxu0 0
      %3638 = vmatpush1.bf16.msra.mxu0 0
      %3639 = vmatprep.subr.bf16.mxu0 0
      %3640 = vmatpush1.bf16.msra.mxu0 0
      %3641 = vmatprep.subr.bf16.mxu0 0
      %3642 = vmatpush1.bf16.msra.mxu0 0
      %3643 = vmatprep.mubr.bf16.mxu0 0
      %3644 = vmatmul.mubr.bf16.gmra.mrb[0].mxu0 %v3516
      %v3645 = vpop.f32.mrb[0].mxu0
      %v3646 = vadd.f32 %v3488, %v3645
      %v3647 = vpop.f32.mrb[0].mxu0
      %v3648 = vpop.f32.mrb[0].mxu0
      %v3649 = vadd.f32 %v3488, %v3648
      %v3650 = vpop.f32.mrb[0].mxu0
      %3651 = vmatprep.mubr.bf16.mxu0 0
      %3652 = vmatmul.mubr.bf16.gmra.mrb[0].mxu0 %v3519
      %v3653 = vpop.f32.mrb[0].mxu0
      %v3654 = vadd.f32 %v3488, %v3653
      %v3655 = vpop.f32.mrb[0].mxu0
      %v3656 = vpop.f32.mrb[0].mxu0
      %v3657 = vadd.f32 %v3488, %v3656
      %v3658 = vpop.f32.mrb[0].mxu0
      %3659 = vmatprep.mubr.bf16.mxu0 0
      %3660 = vmatmul.mubr.bf16.gmra.mrb[0].mxu0 %v3522
      %v3661 = vpop.f32.mrb[0].mxu0
      %v3662 = vadd.f32 %v3488, %v3661
      %v3663 = vpop.f32.mrb[0].mxu0
      %v3664 = vpop.f32.mrb[0].mxu0
      %v3665 = vadd.f32 %v3488, %v3664
      %v3666 = vpop.f32.mrb[0].mxu0
      %3667 = vmatprep.mubr.bf16.mxu0 0
      %3668 = vmatmul.mubr.bf16.gmra.mrb[0].mxu0 %v3525
      %v3669 = vpop.f32.mrb[0].mxu0
      %v3670 = vadd.f32 %v3488, %v3669
      %v3671 = vpop.f32.mrb[0].mxu0
      %v3672 = vpop.f32.mrb[0].mxu0
      %v3673 = vadd.f32 %v3488, %v3672
      %v3674 = vpop.f32.mrb[0].mxu0
      %3675 = vmatprep.mubr.bf16.mxu0 0
      %3676 = vmatmul.mubr.bf16.gmra.mrb[0].mxu0 %v3528
      %v3677 = vpop.f32.mrb[0].mxu0
      %v3678 = vadd.f32 %v3488, %v3677
      %v3679 = vpop.f32.mrb[0].mxu0
      %v3680 = vpop.f32.mrb[0].mxu0
      %v3681 = vadd.f32 %v3488, %v3680
      %v3682 = vpop.f32.mrb[0].mxu0
      %3683 = vmatprep.mubr.bf16.mxu0 0
      %3684 = vmatmul.mubr.bf16.gmra.mrb[0].mxu0 %v3531
      %v3685 = vpop.f32.mrb[0].mxu0
      %v3686 = vadd.f32 %v3488, %v3685
      %v3687 = vpop.f32.mrb[0].mxu0
      %v3688 = vpop.f32.mrb[0].mxu0
      %v3689 = vadd.f32 %v3488, %v3688
      %v3690 = vpop.f32.mrb[0].mxu0
      %3691 = vmatprep.mubr.bf16.mxu0 0
      %3692 = vmatmul.mubr.bf16.gmra.mrb[0].mxu0 %v3534
      %v3693 = vpop.f32.mrb[0].mxu0
      %v3694 = vadd.f32 %v3488, %v3693
      %v3695 = vpop.f32.mrb[0].mxu0
      %v3696 = vpop.f32.mrb[0].mxu0
      %v3697 = vadd.f32 %v3488, %v3696
      %v3698 = vpop.f32.mrb[0].mxu0
      %3699 = vmatprep.mubr.bf16.mxu0 0
      %3700 = vmatmul.mubr.bf16.gmra.mrb[0].mxu0 %v3537
      %v3701 = vpop.f32.mrb[0].mxu0
      %v3702 = vadd.f32 %v3488, %v3701
      %v3703 = vpop.f32.mrb[0].mxu0
      %v3704 = vpop.f32.mrb[0].mxu0
      %v3705 = vadd.f32 %v3488, %v3704
      %v3706 = vpop.f32.mrb[0].mxu0
      %3707 = vmatprep.mubr.bf16.mxu0 0
      %3708 = vmatmul.mubr.bf16.gmra.mrb[0].mxu0 %v3540
      %v3709 = vpop.f32.mrb[0].mxu0
      %v3710 = vadd.f32 %v3488, %v3709
      %v3711 = vpop.f32.mrb[0].mxu0
      %v3712 = vpop.f32.mrb[0].mxu0
      %v3713 = vadd.f32 %v3488, %v3712
      %v3714 = vpop.f32.mrb[0].mxu0
      %3715 = vmatprep.mubr.bf16.mxu0 0
      %3716 = vmatmul.mubr.bf16.gmra.mrb[0].mxu0 %v3543
      %v3717 = vpop.f32.mrb[0].mxu0
      %v3718 = vadd.f32 %v3488, %v3717
      %v3719 = vpop.f32.mrb[0].mxu0
      %v3720 = vpop.f32.mrb[0].mxu0
      %v3721 = vadd.f32 %v3488, %v3720
      %v3722 = vpop.f32.mrb[0].mxu0
      %3723 = vmatprep.mubr.bf16.mxu0 0
      %3724 = vmatmul.mubr.bf16.gmra.mrb[0].mxu0 %v3546
      %v3725 = vpop.f32.mrb[0].mxu0
      %v3726 = vadd.f32 %v3488, %v3725
      %v3727 = vpop.f32.mrb[0].mxu0
      %v3728 = vpop.f32.mrb[0].mxu0
      %v3729 = vadd.f32 %v3488, %v3728
      %v3730 = vpop.f32.mrb[0].mxu0
      %3731 = vmatprep.mubr.bf16.mxu0 0
      %3732 = vmatmul.mubr.bf16.gmra.mrb[0].mxu0 %v3549
      %v3733 = vpop.f32.mrb[0].mxu0
      %v3734 = vadd.f32 %v3488, %v3733
      %v3735 = vpop.f32.mrb[0].mxu0
      %v3736 = vpop.f32.mrb[0].mxu0
      %v3737 = vadd.f32 %v3488, %v3736
      %v3738 = vpop.f32.mrb[0].mxu0
      %3739 = vmatprep.mubr.bf16.mxu0 0
      %3740 = vmatmul.mubr.bf16.gmra.mrb[0].mxu0 %v3552
      %v3741 = vpop.f32.mrb[0].mxu0
      %v3742 = vadd.f32 %v3488, %v3741
      %v3743 = vpop.f32.mrb[0].mxu0
      %v3744 = vpop.f32.mrb[0].mxu0
      %v3745 = vadd.f32 %v3488, %v3744
      %v3746 = vpop.f32.mrb[0].mxu0
      %3747 = vmatprep.mubr.bf16.mxu0 0
      %3748 = vmatmul.mubr.bf16.gmra.mrb[0].mxu0 %v3555
      %v3749 = vpop.f32.mrb[0].mxu0
      %v3750 = vadd.f32 %v3488, %v3749
      %v3751 = vpop.f32.mrb[0].mxu0
      %v3752 = vpop.f32.mrb[0].mxu0
      %v3753 = vadd.f32 %v3488, %v3752
      %v3754 = vpop.f32.mrb[0].mxu0
      %3755 = vmatprep.mubr.bf16.mxu0 0
      %3756 = vmatmul.mubr.bf16.gmra.mrb[0].mxu0 %v3558
      %v3757 = vpop.f32.mrb[0].mxu0
      %v3758 = vadd.f32 %v3488, %v3757
      %v3759 = vpop.f32.mrb[0].mxu0
      %v3760 = vpop.f32.mrb[0].mxu0
      %v3761 = vadd.f32 %v3488, %v3760
      %v3762 = vpop.f32.mrb[0].mxu0
      %3763 = vmatprep.mubr.bf16.mxu0 0
      %3764 = vmatmul.mubr.bf16.gmra.mrb[0].mxu0 %v3561
      %v3765 = vpop.f32.mrb[0].mxu0
      %v3766 = vadd.f32 %v3488, %v3765
      %v3767 = vpop.f32.mrb[0].mxu0
      %v3768 = vpop.f32.mrb[0].mxu0
      %v3769 = vadd.f32 %v3488, %v3768
      %v3770 = vpop.f32.mrb[0].mxu0
      %3771 = vmatprep.mubr.bf16.mxu0 0
      %3772 = vmatmul.mubr.bf16.gmra.mrb[0].mxu0 %v3564
      %v3773 = vpop.f32.mrb[0].mxu0
      %v3774 = vadd.f32 %v3488, %v3773
      %v3775 = vpop.f32.mrb[0].mxu0
      %v3776 = vpop.f32.mrb[0].mxu0
      %v3777 = vadd.f32 %v3488, %v3776
      %v3778 = vpop.f32.mrb[0].mxu0
      %3779 = vmatprep.mubr.bf16.mxu0 0
      %3780 = vmatmul.mubr.bf16.gmra.mrb[0].mxu0 %v3567
      %v3781 = vpop.f32.mrb[0].mxu0
      %v3782 = vadd.f32 %v3488, %v3781
      %v3783 = vpop.f32.mrb[0].mxu0
      %v3784 = vpop.f32.mrb[0].mxu0
      %v3785 = vadd.f32 %v3488, %v3784
      %v3786 = vpop.f32.mrb[0].mxu0
      %3787 = vmatprep.mubr.bf16.mxu0 0
      %3788 = vmatmul.mubr.bf16.gmra.mrb[0].mxu0 %v3570
      %v3789 = vpop.f32.mrb[0].mxu0
      %v3790 = vadd.f32 %v3488, %v3789
      %v3791 = vpop.f32.mrb[0].mxu0
      %v3792 = vpop.f32.mrb[0].mxu0
      %v3793 = vadd.f32 %v3488, %v3792
      %v3794 = vpop.f32.mrb[0].mxu0
      %3795 = vmatprep.mubr.bf16.mxu0 0
      %3796 = vmatmul.mubr.bf16.gmra.mrb[0].mxu0 %v3573
      %v3797 = vpop.f32.mrb[0].mxu0
      %v3798 = vadd.f32 %v3488, %v3797
      %v3799 = vpop.f32.mrb[0].mxu0
      %v3800 = vpop.f32.mrb[0].mxu0
      %v3801 = vadd.f32 %v3488, %v3800
      %v3802 = vpop.f32.mrb[0].mxu0
      %3803 = vmatprep.mubr.bf16.mxu0 0
      %3804 = vmatmul.mubr.bf16.gmra.mrb[0].mxu0 %v3576
      %v3805 = vpop.f32.mrb[0].mxu0
      %v3806 = vadd.f32 %v3488, %v3805
      %v3807 = vpop.f32.mrb[0].mxu0
      %v3808 = vpop.f32.mrb[0].mxu0
      %v3809 = vadd.f32 %v3488, %v3808
      %v3810 = vpop.f32.mrb[0].mxu0
      %3811 = vmatprep.mubr.bf16.mxu0 0
      %3812 = vmatmul.mubr.bf16.gmra.mrb[0].mxu0 %v3579
      %v3813 = vpop.f32.mrb[0].mxu0
      %v3814 = vadd.f32 %v3488, %v3813
      %v3815 = vpop.f32.mrb[0].mxu0
      %v3816 = vpop.f32.mrb[0].mxu0
      %v3817 = vadd.f32 %v3488, %v3816
      %v3818 = vpop.f32.mrb[0].mxu0
      %3819 = vmatprep.mubr.bf16.mxu0 0
      %3820 = vmatmul.mubr.bf16.gmra.mrb[0].mxu0 %v3582
      %v3821 = vpop.f32.mrb[0].mxu0
      %v3822 = vadd.f32 %v3488, %v3821
      %v3823 = vpop.f32.mrb[0].mxu0
      %v3824 = vpop.f32.mrb[0].mxu0
      %v3825 = vadd.f32 %v3488, %v3824
      %v3826 = vpop.f32.mrb[0].mxu0
      %3827 = vmatprep.mubr.bf16.mxu0 0
      %3828 = vmatmul.mubr.bf16.gmra.mrb[0].mxu0 %v3585
      %v3829 = vpop.f32.mrb[0].mxu0
      %v3830 = vadd.f32 %v3488, %v3829
      %v3831 = vpop.f32.mrb[0].mxu0
      %v3832 = vpop.f32.mrb[0].mxu0
      %v3833 = vadd.f32 %v3488, %v3832
      %v3834 = vpop.f32.mrb[0].mxu0
      %3835 = vmatprep.mubr.bf16.mxu0 0
      %3836 = vmatmul.mubr.bf16.gmra.mrb[0].mxu0 %v3588
      %v3837 = vpop.f32.mrb[0].mxu0
      %v3838 = vadd.f32 %v3488, %v3837
      %v3839 = vpop.f32.mrb[0].mxu0
      %v3840 = vpop.f32.mrb[0].mxu0
      %v3841 = vadd.f32 %v3488, %v3840
      %v3842 = vpop.f32.mrb[0].mxu0
      %3843 = vmatprep.mubr.bf16.mxu0 0
      %3844 = vmatmul.mubr.bf16.gmra.mrb[0].mxu0 %v3591
      %v3845 = vpop.f32.mrb[0].mxu0
      %v3846 = vadd.f32 %v3488, %v3845
      %v3847 = vpop.f32.mrb[0].mxu0
      %v3848 = vpop.f32.mrb[0].mxu0
      %v3849 = vadd.f32 %v3488, %v3848
      %v3850 = vpop.f32.mrb[0].mxu0
      %3851 = vmatprep.mubr.bf16.mxu0 0
      %3852 = vmatmul.mubr.bf16.gmra.mrb[0].mxu0 %v3594
      %v3853 = vpop.f32.mrb[0].mxu0
      %v3854 = vadd.f32 %v3488, %v3853
      %v3855 = vpop.f32.mrb[0].mxu0
      %v3856 = vpop.f32.mrb[0].mxu0
      %v3857 = vadd.f32 %v3488, %v3856
      %v3858 = vpop.f32.mrb[0].mxu0
      %3859 = vmatprep.mubr.bf16.mxu0 0
      %3860 = vmatmul.mubr.bf16.gmra.mrb[0].mxu0 %v3597
      %v3861 = vpop.f32.mrb[0].mxu0
      %v3862 = vadd.f32 %v3488, %v3861
      %v3863 = vpop.f32.mrb[0].mxu0
      %v3864 = vpop.f32.mrb[0].mxu0
      %v3865 = vadd.f32 %v3488, %v3864
      %v3866 = vpop.f32.mrb[0].mxu0
      %3867 = vmatprep.mubr.bf16.mxu0 0
      %3868 = vmatmul.mubr.bf16.gmra.mrb[0].mxu0 %v3600
      %v3869 = vpop.f32.mrb[0].mxu0
      %v3870 = vadd.f32 %v3488, %v3869
      %v3871 = vpop.f32.mrb[0].mxu0
      %v3872 = vpop.f32.mrb[0].mxu0
      %v3873 = vadd.f32 %v3488, %v3872
      %v3874 = vpop.f32.mrb[0].mxu0
      %3875 = vmatprep.mubr.bf16.mxu0 0
      %3876 = vmatmul.mubr.bf16.gmra.mrb[0].mxu0 %v3603
      %v3877 = vpop.f32.mrb[0].mxu0
      %v3878 = vadd.f32 %v3488, %v3877
      %v3879 = vpop.f32.mrb[0].mxu0
      %v3880 = vpop.f32.mrb[0].mxu0
      %v3881 = vadd.f32 %v3488, %v3880
      %v3882 = vpop.f32.mrb[0].mxu0
      %3883 = vmatprep.mubr.bf16.mxu0 0
      %3884 = vmatmul.mubr.bf16.gmra.mrb[0].mxu0 %v3606
      %v3885 = vpop.f32.mrb[0].mxu0
      %v3886 = vadd.f32 %v3488, %v3885
      %v3887 = vpop.f32.mrb[0].mxu0
      %v3888 = vpop.f32.mrb[0].mxu0
      %v3889 = vadd.f32 %v3488, %v3888
      %v3890 = vpop.f32.mrb[0].mxu0
      %3891 = vmatprep.mubr.bf16.mxu0 0
      %3892 = vmatmul.mubr.bf16.gmra.mrb[0].mxu0 %v3609
      %v3893 = vpop.f32.mrb[0].mxu0
      %v3894 = vadd.f32 %v3488, %v3893
      %v3895 = vpop.f32.mrb[0].mxu0
      %v3896 = vpop.f32.mrb[0].mxu0
      %v3897 = vadd.f32 %v3488, %v3896
      %v3898 = vpop.f32.mrb[0].mxu0
      %3899 = vdwg.mxu0
      %v3900 = vtanh.pop %v3646
      %v3901 = vtanh.pop %v3649
      %v3902 = vtanh.pop %v3654
      %v3903 = vtanh.pop %v3657
      %v3904 = vtanh.pop %v3662
      %v3905 = vtanh.pop %v3665
      %v3906 = vtanh.pop %v3670
      %v3907 = vtanh.pop %v3673
      %v3908 = vtanh.pop %v3678
      %v3909 = vtanh.pop %v3681
      %v3910 = vtanh.pop %v3686
      %v3911 = vtanh.pop %v3689
      %v3912 = vtanh.pop %v3694
      %v3913 = vtanh.pop %v3697
      %v3914 = vtanh.pop %v3702
      %v3915 = vtanh.pop %v3705
      %v3916 = vtanh.pop %v3710
      %v3917 = vtanh.pop %v3713
      %v3918 = vtanh.pop %v3718
      %v3919 = vtanh.pop %v3721
      %v3920 = vtanh.pop %v3726
      %v3921 = vtanh.pop %v3729
      %v3922 = vtanh.pop %v3734
      %v3923 = vtanh.pop %v3737
      %v3924 = vtanh.pop %v3742
      %v3925 = vtanh.pop %v3745
      %v3926 = vtanh.pop %v3750
      %v3927 = vtanh.pop %v3753
      %v3928 = vtanh.pop %v3758
      %v3929 = vtanh.pop %v3761
      %v3930 = vtanh.pop %v3766
      %v3931 = vtanh.pop %v3769
      %v3932 = vtanh.pop %v3774
      %v3933 = vtanh.pop %v3777
      %v3934 = vtanh.pop %v3782
      %v3935 = vtanh.pop %v3785
      %v3936 = vtanh.pop %v3790
      %v3937 = vtanh.pop %v3793
      %v3938 = vtanh.pop %v3798
      %v3939 = vtanh.pop %v3801
      %v3940 = vtanh.pop %v3806
      %v3941 = vtanh.pop %v3809
      %v3942 = vtanh.pop %v3814
      %v3943 = vtanh.pop %v3817
      %v3944 = vtanh.pop %v3822
      %v3945 = vtanh.pop %v3825
      %v3946 = vtanh.pop %v3830
      %v3947 = vtanh.pop %v3833
      %v3948 = vtanh.pop %v3838
      %v3949 = vtanh.pop %v3841
      %v3950 = vtanh.pop %v3846
      %v3951 = vtanh.pop %v3849
      %v3952 = vtanh.pop %v3854
      %v3953 = vtanh.pop %v3857
      %v3954 = vtanh.pop %v3862
      %v3955 = vtanh.pop %v3865
      %v3956 = vtanh.pop %v3870
      %v3957 = vtanh.pop %v3873
      %v3958 = vtanh.pop %v3878
      %v3959 = vtanh.pop %v3881
      %v3960 = vtanh.pop %v3886
      %v3961 = vtanh.pop %v3889
      %v3962 = vtanh.pop %v3894
      %v3963 = vtanh.pop %v3897
      %v3964 = vpack.c.bf16 %v3901, %v3900
      %v3965 = vpack.c.bf16 %v3903, %v3902
      %v3966 = vpack.c.bf16 %v3905, %v3904
      %v3967 = vpack.c.bf16 %v3907, %v3906
      %v3968 = vpack.c.bf16 %v3909, %v3908
      %v3969 = vpack.c.bf16 %v3911, %v3910
      %v3970 = vpack.c.bf16 %v3913, %v3912
      %v3971 = vpack.c.bf16 %v3915, %v3914
      %v3972 = vpack.c.bf16 %v3917, %v3916
      %v3973 = vpack.c.bf16 %v3919, %v3918
      %v3974 = vpack.c.bf16 %v3921, %v3920
      %v3975 = vpack.c.bf16 %v3923, %v3922
      %v3976 = vpack.c.bf16 %v3925, %v3924
      %v3977 = vpack.c.bf16 %v3927, %v3926
      %v3978 = vpack.c.bf16 %v3929, %v3928
      %v3979 = vpack.c.bf16 %v3931, %v3930
      %v3980 = vpack.c.bf16 %v3933, %v3932
      %v3981 = vpack.c.bf16 %v3935, %v3934
      %v3982 = vpack.c.bf16 %v3937, %v3936
      %v3983 = vpack.c.bf16 %v3939, %v3938
      %v3984 = vpack.c.bf16 %v3941, %v3940
      %v3985 = vpack.c.bf16 %v3943, %v3942
      %v3986 = vpack.c.bf16 %v3945, %v3944
      %v3987 = vpack.c.bf16 %v3947, %v3946
      %v3988 = vpack.c.bf16 %v3949, %v3948
      %v3989 = vpack.c.bf16 %v3951, %v3950
      %v3990 = vpack.c.bf16 %v3953, %v3952
      %v3991 = vpack.c.bf16 %v3955, %v3954
      %v3992 = vpack.c.bf16 %v3957, %v3956
      %v3993 = vpack.c.bf16 %v3959, %v3958
      %v3994 = vpack.c.bf16 %v3961, %v3960
      %v3995 = vpack.c.bf16 %v3963, %v3962
      %v3996 = vld [vmem:[%s7] sm:$0xf]
      %v3997 = vld [vmem:[%s7 + $0x4] sm:$0x3]
      %v3998 = vld [vmem:[%s8] sm:$0x1]
      %v4000 = vlaneseq
      %v4001 = vshrl.u32 %v4000, 7
      %v4002 = vsub.s32 0, %v4001
      %v4003 = vrot.slane %v3998, %v4002
      %v4007 = vunpack.c.l.b16 %v3996
      %v4008 = vunpack.c.l.b16 %v3997
      %v4009 = vpack.c.b16 %v4008, %v4007
      %vm4010 = vcmask 97280
      %v4012 = vsel %vm4010, %v3964, 0
      %v4015 = vsel %vm4010, %v3965, 0
      %v4018 = vsel %vm4010, %v3966, 0
      %v4021 = vsel %vm4010, %v3967, 0
      %v4024 = vsel %vm4010, %v3968, 0
      %v4027 = vsel %vm4010, %v3969, 0
      %v4030 = vsel %vm4010, %v3970, 0
      %v4033 = vsel %vm4010, %v3971, 0
      %v4036 = vsel %vm4010, %v3972, 0
      %v4039 = vsel %vm4010, %v3973, 0
      %v4042 = vsel %vm4010, %v3974, 0
      %v4045 = vsel %vm4010, %v3975, 0
      %v4048 = vsel %vm4010, %v3976, 0
      %v4051 = vsel %vm4010, %v3977, 0
      %v4054 = vsel %vm4010, %v3978, 0
      %v4057 = vsel %vm4010, %v3979, 0
      %v4060 = vsel %vm4010, %v3980, 0
      %v4063 = vsel %vm4010, %v3981, 0
      %v4066 = vsel %vm4010, %v3982, 0
      %v4069 = vsel %vm4010, %v3983, 0
      %v4072 = vsel %vm4010, %v3984, 0
      %v4075 = vsel %vm4010, %v3985, 0
      %v4078 = vsel %vm4010, %v3986, 0
      %v4081 = vsel %vm4010, %v3987, 0
      %v4084 = vsel %vm4010, %v3988, 0
      %v4087 = vsel %vm4010, %v3989, 0
      %v4090 = vsel %vm4010, %v3990, 0
      %v4093 = vsel %vm4010, %v3991, 0
      %v4096 = vsel %vm4010, %v3992, 0
      %v4099 = vsel %vm4010, %v3993, 0
      %v4102 = vsel %vm4010, %v3994, 0
      %v4105 = vsel %vm4010, %v3995, 0
      %vm4107 = vcmask 1045504
      %v4109 = vsel %vm4107, %v4009, 0
      %4111 = vmatprep.subr.bf16.mxu0 0
      %4112 = vmatpush1.bf16.msra.mxu0 %v4109
      %4113 = vmatprep.subr.bf16.mxu0 0
      %4114 = vmatpush1.bf16.msra.mxu0 0
      %4115 = vmatprep.subr.bf16.mxu0 0
      %4116 = vmatpush1.bf16.msra.mxu0 0
      %4117 = vmatprep.subr.bf16.mxu0 0
      %4118 = vmatpush1.bf16.msra.mxu0 0
      %4119 = vmatprep.subr.bf16.mxu0 0
      %4120 = vmatpush1.bf16.msra.mxu0 0
      %4121 = vmatprep.subr.bf16.mxu0 0
      %4122 = vmatpush1.bf16.msra.mxu0 0
      %4123 = vmatprep.subr.bf16.mxu0 0
      %4124 = vmatpush1.bf16.msra.mxu0 0
      %4125 = vmatprep.subr.bf16.mxu0 0
      %4126 = vmatpush1.bf16.msra.mxu0 0
      %4127 = vmatprep.subr.bf16.mxu0 0
      %4128 = vmatpush1.bf16.msra.mxu0 0
      %4129 = vmatprep.subr.bf16.mxu0 0
      %4130 = vmatpush1.bf16.msra.mxu0 0
      %4131 = vmatprep.subr.bf16.mxu0 0
      %4132 = vmatpush1.bf16.msra.mxu0 0
      %4133 = vmatprep.subr.bf16.mxu0 0
      %4134 = vmatpush1.bf16.msra.mxu0 0
      %4135 = vmatprep.subr.bf16.mxu0 0
      %4136 = vmatpush1.bf16.msra.mxu0 0
      %4137 = vmatprep.subr.bf16.mxu0 0
      %4138 = vmatpush1.bf16.msra.mxu0 0
      %4139 = vmatprep.subr.bf16.mxu0 0
      %4140 = vmatpush1.bf16.msra.mxu0 0
      %4141 = vmatprep.subr.bf16.mxu0 0
      %4142 = vmatpush1.bf16.msra.mxu0 0
      %4143 = vmatprep.mubr.bf16.mxu0 0
      %4144 = vmatmul.mubr.bf16.gmra.mrb[0].mxu0 %v4012
      %v4145 = vpop.f32.mrb[0].mxu0
      %v4146 = vadd.f32 %v4003, %v4145
      %v4147 = vpop.f32.mrb[0].mxu0
      %v4148 = vpop.f32.mrb[0].mxu0
      %v4149 = vadd.f32 %v4003, %v4148
      %v4150 = vpop.f32.mrb[0].mxu0
      %4151 = vmatprep.mubr.bf16.mxu0 0
      %4152 = vmatmul.mubr.bf16.gmra.mrb[0].mxu0 %v4015
      %v4153 = vpop.f32.mrb[0].mxu0
      %v4154 = vadd.f32 %v4003, %v4153
      %v4155 = vpop.f32.mrb[0].mxu0
      %v4156 = vpop.f32.mrb[0].mxu0
      %v4157 = vadd.f32 %v4003, %v4156
      %v4158 = vpop.f32.mrb[0].mxu0
      %4159 = vmatprep.mubr.bf16.mxu0 0
      %4160 = vmatmul.mubr.bf16.gmra.mrb[0].mxu0 %v4018
      %v4161 = vpop.f32.mrb[0].mxu0
      %v4162 = vadd.f32 %v4003, %v4161
      %v4163 = vpop.f32.mrb[0].mxu0
      %v4164 = vpop.f32.mrb[0].mxu0
      %v4165 = vadd.f32 %v4003, %v4164
      %v4166 = vpop.f32.mrb[0].mxu0
      %4167 = vmatprep.mubr.bf16.mxu0 0
      %4168 = vmatmul.mubr.bf16.gmra.mrb[0].mxu0 %v4021
      %v4169 = vpop.f32.mrb[0].mxu0
      %v4170 = vadd.f32 %v4003, %v4169
      %v4171 = vpop.f32.mrb[0].mxu0
      %v4172 = vpop.f32.mrb[0].mxu0
      %v4173 = vadd.f32 %v4003, %v4172
      %v4174 = vpop.f32.mrb[0].mxu0
      %4175 = vmatprep.mubr.bf16.mxu0 0
      %4176 = vmatmul.mubr.bf16.gmra.mrb[0].mxu0 %v4024
      %v4177 = vpop.f32.mrb[0].mxu0
      %v4178 = vadd.f32 %v4003, %v4177
      %v4179 = vpop.f32.mrb[0].mxu0
      %v4180 = vpop.f32.mrb[0].mxu0
      %v4181 = vadd.f32 %v4003, %v4180
      %v4182 = vpop.f32.mrb[0].mxu0
      %4183 = vmatprep.mubr.bf16.mxu0 0
      %4184 = vmatmul.mubr.bf16.gmra.mrb[0].mxu0 %v4027
      %v4185 = vpop.f32.mrb[0].mxu0
      %v4186 = vadd.f32 %v4003, %v4185
      %v4187 = vpop.f32.mrb[0].mxu0
      %v4188 = vpop.f32.mrb[0].mxu0
      %v4189 = vadd.f32 %v4003, %v4188
      %v4190 = vpop.f32.mrb[0].mxu0
      %4191 = vmatprep.mubr.bf16.mxu0 0
      %4192 = vmatmul.mubr.bf16.gmra.mrb[0].mxu0 %v4030
      %v4193 = vpop.f32.mrb[0].mxu0
      %v4194 = vadd.f32 %v4003, %v4193
      %v4195 = vpop.f32.mrb[0].mxu0
      %v4196 = vpop.f32.mrb[0].mxu0
      %v4197 = vadd.f32 %v4003, %v4196
      %v4198 = vpop.f32.mrb[0].mxu0
      %4199 = vmatprep.mubr.bf16.mxu0 0
      %4200 = vmatmul.mubr.bf16.gmra.mrb[0].mxu0 %v4033
      %v4201 = vpop.f32.mrb[0].mxu0
      %v4202 = vadd.f32 %v4003, %v4201
      %v4203 = vpop.f32.mrb[0].mxu0
      %v4204 = vpop.f32.mrb[0].mxu0
      %v4205 = vadd.f32 %v4003, %v4204
      %v4206 = vpop.f32.mrb[0].mxu0
      %4207 = vmatprep.mubr.bf16.mxu0 0
      %4208 = vmatmul.mubr.bf16.gmra.mrb[0].mxu0 %v4036
      %v4209 = vpop.f32.mrb[0].mxu0
      %v4210 = vadd.f32 %v4003, %v4209
      %v4211 = vpop.f32.mrb[0].mxu0
      %v4212 = vpop.f32.mrb[0].mxu0
      %v4213 = vadd.f32 %v4003, %v4212
      %v4214 = vpop.f32.mrb[0].mxu0
      %4215 = vmatprep.mubr.bf16.mxu0 0
      %4216 = vmatmul.mubr.bf16.gmra.mrb[0].mxu0 %v4039
      %v4217 = vpop.f32.mrb[0].mxu0
      %v4218 = vadd.f32 %v4003, %v4217
      %v4219 = vpop.f32.mrb[0].mxu0
      %v4220 = vpop.f32.mrb[0].mxu0
      %v4221 = vadd.f32 %v4003, %v4220
      %v4222 = vpop.f32.mrb[0].mxu0
      %4223 = vmatprep.mubr.bf16.mxu0 0
      %4224 = vmatmul.mubr.bf16.gmra.mrb[0].mxu0 %v4042
      %v4225 = vpop.f32.mrb[0].mxu0
      %v4226 = vadd.f32 %v4003, %v4225
      %v4227 = vpop.f32.mrb[0].mxu0
      %v4228 = vpop.f32.mrb[0].mxu0
      %v4229 = vadd.f32 %v4003, %v4228
      %v4230 = vpop.f32.mrb[0].mxu0
      %4231 = vmatprep.mubr.bf16.mxu0 0
      %4232 = vmatmul.mubr.bf16.gmra.mrb[0].mxu0 %v4045
      %v4233 = vpop.f32.mrb[0].mxu0
      %v4234 = vadd.f32 %v4003, %v4233
      %v4235 = vpop.f32.mrb[0].mxu0
      %v4236 = vpop.f32.mrb[0].mxu0
      %v4237 = vadd.f32 %v4003, %v4236
      %v4238 = vpop.f32.mrb[0].mxu0
      %4239 = vmatprep.mubr.bf16.mxu0 0
      %4240 = vmatmul.mubr.bf16.gmra.mrb[0].mxu0 %v4048
      %v4241 = vpop.f32.mrb[0].mxu0
      %v4242 = vadd.f32 %v4003, %v4241
      %v4243 = vpop.f32.mrb[0].mxu0
      %v4244 = vpop.f32.mrb[0].mxu0
      %v4245 = vadd.f32 %v4003, %v4244
      %v4246 = vpop.f32.mrb[0].mxu0
      %4247 = vmatprep.mubr.bf16.mxu0 0
      %4248 = vmatmul.mubr.bf16.gmra.mrb[0].mxu0 %v4051
      %v4249 = vpop.f32.mrb[0].mxu0
      %v4250 = vadd.f32 %v4003, %v4249
      %v4251 = vpop.f32.mrb[0].mxu0
      %v4252 = vpop.f32.mrb[0].mxu0
      %v4253 = vadd.f32 %v4003, %v4252
      %v4254 = vpop.f32.mrb[0].mxu0
      %4255 = vmatprep.mubr.bf16.mxu0 0
      %4256 = vmatmul.mubr.bf16.gmra.mrb[0].mxu0 %v4054
      %v4257 = vpop.f32.mrb[0].mxu0
      %v4258 = vadd.f32 %v4003, %v4257
      %v4259 = vpop.f32.mrb[0].mxu0
      %v4260 = vpop.f32.mrb[0].mxu0
      %v4261 = vadd.f32 %v4003, %v4260
      %v4262 = vpop.f32.mrb[0].mxu0
      %4263 = vmatprep.mubr.bf16.mxu0 0
      %4264 = vmatmul.mubr.bf16.gmra.mrb[0].mxu0 %v4057
      %v4265 = vpop.f32.mrb[0].mxu0
      %v4266 = vadd.f32 %v4003, %v4265
      %v4267 = vpop.f32.mrb[0].mxu0
      %v4268 = vpop.f32.mrb[0].mxu0
      %v4269 = vadd.f32 %v4003, %v4268
      %v4270 = vpop.f32.mrb[0].mxu0
      %4271 = vmatprep.mubr.bf16.mxu0 0
      %4272 = vmatmul.mubr.bf16.gmra.mrb[0].mxu0 %v4060
      %v4273 = vpop.f32.mrb[0].mxu0
      %v4274 = vadd.f32 %v4003, %v4273
      %v4275 = vpop.f32.mrb[0].mxu0
      %v4276 = vpop.f32.mrb[0].mxu0
      %v4277 = vadd.f32 %v4003, %v4276
      %v4278 = vpop.f32.mrb[0].mxu0
      %4279 = vmatprep.mubr.bf16.mxu0 0
      %4280 = vmatmul.mubr.bf16.gmra.mrb[0].mxu0 %v4063
      %v4281 = vpop.f32.mrb[0].mxu0
      %v4282 = vadd.f32 %v4003, %v4281
      %v4283 = vpop.f32.mrb[0].mxu0
      %v4284 = vpop.f32.mrb[0].mxu0
      %v4285 = vadd.f32 %v4003, %v4284
      %v4286 = vpop.f32.mrb[0].mxu0
      %4287 = vmatprep.mubr.bf16.mxu0 0
      %4288 = vmatmul.mubr.bf16.gmra.mrb[0].mxu0 %v4066
      %v4289 = vpop.f32.mrb[0].mxu0
      %v4290 = vadd.f32 %v4003, %v4289
      %v4291 = vpop.f32.mrb[0].mxu0
      %v4292 = vpop.f32.mrb[0].mxu0
      %v4293 = vadd.f32 %v4003, %v4292
      %v4294 = vpop.f32.mrb[0].mxu0
      %4295 = vmatprep.mubr.bf16.mxu0 0
      %4296 = vmatmul.mubr.bf16.gmra.mrb[0].mxu0 %v4069
      %v4297 = vpop.f32.mrb[0].mxu0
      %v4298 = vadd.f32 %v4003, %v4297
      %v4299 = vpop.f32.mrb[0].mxu0
      %v4300 = vpop.f32.mrb[0].mxu0
      %v4301 = vadd.f32 %v4003, %v4300
      %v4302 = vpop.f32.mrb[0].mxu0
      %4303 = vmatprep.mubr.bf16.mxu0 0
      %4304 = vmatmul.mubr.bf16.gmra.mrb[0].mxu0 %v4072
      %v4305 = vpop.f32.mrb[0].mxu0
      %v4306 = vadd.f32 %v4003, %v4305
      %v4307 = vpop.f32.mrb[0].mxu0
      %v4308 = vpop.f32.mrb[0].mxu0
      %v4309 = vadd.f32 %v4003, %v4308
      %v4310 = vpop.f32.mrb[0].mxu0
      %4311 = vmatprep.mubr.bf16.mxu0 0
      %4312 = vmatmul.mubr.bf16.gmra.mrb[0].mxu0 %v4075
      %v4313 = vpop.f32.mrb[0].mxu0
      %v4314 = vadd.f32 %v4003, %v4313
      %v4315 = vpop.f32.mrb[0].mxu0
      %v4316 = vpop.f32.mrb[0].mxu0
      %v4317 = vadd.f32 %v4003, %v4316
      %v4318 = vpop.f32.mrb[0].mxu0
      %4319 = vmatprep.mubr.bf16.mxu0 0
      %4320 = vmatmul.mubr.bf16.gmra.mrb[0].mxu0 %v4078
      %v4321 = vpop.f32.mrb[0].mxu0
      %v4322 = vadd.f32 %v4003, %v4321
      %v4323 = vpop.f32.mrb[0].mxu0
      %v4324 = vpop.f32.mrb[0].mxu0
      %v4325 = vadd.f32 %v4003, %v4324
      %v4326 = vpop.f32.mrb[0].mxu0
      %4327 = vmatprep.mubr.bf16.mxu0 0
      %4328 = vmatmul.mubr.bf16.gmra.mrb[0].mxu0 %v4081
      %v4329 = vpop.f32.mrb[0].mxu0
      %v4330 = vadd.f32 %v4003, %v4329
      %v4331 = vpop.f32.mrb[0].mxu0
      %v4332 = vpop.f32.mrb[0].mxu0
      %v4333 = vadd.f32 %v4003, %v4332
      %v4334 = vpop.f32.mrb[0].mxu0
      %4335 = vmatprep.mubr.bf16.mxu0 0
      %4336 = vmatmul.mubr.bf16.gmra.mrb[0].mxu0 %v4084
      %v4337 = vpop.f32.mrb[0].mxu0
      %v4338 = vadd.f32 %v4003, %v4337
      %v4339 = vpop.f32.mrb[0].mxu0
      %v4340 = vpop.f32.mrb[0].mxu0
      %v4341 = vadd.f32 %v4003, %v4340
      %v4342 = vpop.f32.mrb[0].mxu0
      %4343 = vmatprep.mubr.bf16.mxu0 0
      %4344 = vmatmul.mubr.bf16.gmra.mrb[0].mxu0 %v4087
      %v4345 = vpop.f32.mrb[0].mxu0
      %v4346 = vadd.f32 %v4003, %v4345
      %v4347 = vpop.f32.mrb[0].mxu0
      %v4348 = vpop.f32.mrb[0].mxu0
      %v4349 = vadd.f32 %v4003, %v4348
      %v4350 = vpop.f32.mrb[0].mxu0
      %4351 = vmatprep.mubr.bf16.mxu0 0
      %4352 = vmatmul.mubr.bf16.gmra.mrb[0].mxu0 %v4090
      %v4353 = vpop.f32.mrb[0].mxu0
      %v4354 = vadd.f32 %v4003, %v4353
      %v4355 = vpop.f32.mrb[0].mxu0
      %v4356 = vpop.f32.mrb[0].mxu0
      %v4357 = vadd.f32 %v4003, %v4356
      %v4358 = vpop.f32.mrb[0].mxu0
      %4359 = vmatprep.mubr.bf16.mxu0 0
      %4360 = vmatmul.mubr.bf16.gmra.mrb[0].mxu0 %v4093
      %v4361 = vpop.f32.mrb[0].mxu0
      %v4362 = vadd.f32 %v4003, %v4361
      %v4363 = vpop.f32.mrb[0].mxu0
      %v4364 = vpop.f32.mrb[0].mxu0
      %v4365 = vadd.f32 %v4003, %v4364
      %v4366 = vpop.f32.mrb[0].mxu0
      %4367 = vmatprep.mubr.bf16.mxu0 0
      %4368 = vmatmul.mubr.bf16.gmra.mrb[0].mxu0 %v4096
      %v4369 = vpop.f32.mrb[0].mxu0
      %v4370 = vadd.f32 %v4003, %v4369
      %v4371 = vpop.f32.mrb[0].mxu0
      %v4372 = vpop.f32.mrb[0].mxu0
      %v4373 = vadd.f32 %v4003, %v4372
      %v4374 = vpop.f32.mrb[0].mxu0
      %4375 = vmatprep.mubr.bf16.mxu0 0
      %4376 = vmatmul.mubr.bf16.gmra.mrb[0].mxu0 %v4099
      %v4377 = vpop.f32.mrb[0].mxu0
      %v4378 = vadd.f32 %v4003, %v4377
      %v4379 = vpop.f32.mrb[0].mxu0
      %v4380 = vpop.f32.mrb[0].mxu0
      %v4381 = vadd.f32 %v4003, %v4380
      %v4382 = vpop.f32.mrb[0].mxu0
      %4383 = vmatprep.mubr.bf16.mxu0 0
      %4384 = vmatmul.mubr.bf16.gmra.mrb[0].mxu0 %v4102
      %v4385 = vpop.f32.mrb[0].mxu0
      %v4386 = vadd.f32 %v4003, %v4385
      %v4387 = vpop.f32.mrb[0].mxu0
      %v4388 = vpop.f32.mrb[0].mxu0
      %v4389 = vadd.f32 %v4003, %v4388
      %v4390 = vpop.f32.mrb[0].mxu0
      %4391 = vmatprep.mubr.bf16.mxu0 0
      %4392 = vmatmul.mubr.bf16.gmra.mrb[0].mxu0 %v4105
      %v4393 = vpop.f32.mrb[0].mxu0
      %v4394 = vadd.f32 %v4003, %v4393
      %v4395 = vpop.f32.mrb[0].mxu0
      %v4396 = vpop.f32.mrb[0].mxu0
      %v4397 = vadd.f32 %v4003, %v4396
      %v4398 = vpop.f32.mrb[0].mxu0
      %4399 = vdwg.mxu0
      %vm4400 = vcmask 15360
      %4401 = vst.msk [vmem:[%s589] sm:$0xff] %vm4400, %v4146
      %4402 = vst.msk [vmem:[%s589 + $0x8] sm:$0xff] %vm4400, %v4149
      %4403 = vst.msk [vmem:[%s589 + $0x10] sm:$0xff] %vm4400, %v4154
      %4404 = vst.msk [vmem:[%s589 + $0x18] sm:$0xff] %vm4400, %v4157
      %4405 = vst.msk [vmem:[%s589 + $0x20] sm:$0xff] %vm4400, %v4162
      %4406 = vst.msk [vmem:[%s589 + $0x28] sm:$0xff] %vm4400, %v4165
      %4407 = vst.msk [vmem:[%s589 + $0x30] sm:$0xff] %vm4400, %v4170
      %4408 = vst.msk [vmem:[%s589 + $0x38] sm:$0xff] %vm4400, %v4173
      %4409 = vst.msk [vmem:[%s589 + $0x40] sm:$0xff] %vm4400, %v4178
      %4410 = vst.msk [vmem:[%s589 + $0x48] sm:$0xff] %vm4400, %v4181
      %4411 = vst.msk [vmem:[%s589 + $0x50] sm:$0xff] %vm4400, %v4186
      %4412 = vst.msk [vmem:[%s589 + $0x58] sm:$0xff] %vm4400, %v4189
      %4413 = vst.msk [vmem:[%s589 + $0x60] sm:$0xff] %vm4400, %v4194
      %4414 = vst.msk [vmem:[%s589 + $0x68] sm:$0xff] %vm4400, %v4197
      %4415 = vst.msk [vmem:[%s589 + $0x70] sm:$0xff] %vm4400, %v4202
      %4416 = vst.msk [vmem:[%s589 + $0x78] sm:$0xff] %vm4400, %v4205
      %4417 = vst.msk [vmem:[%s589 + $0x80] sm:$0xff] %vm4400, %v4210
      %4418 = vst.msk [vmem:[%s589 + $0x88] sm:$0xff] %vm4400, %v4213
      %4419 = vst.msk [vmem:[%s589 + $0x90] sm:$0xff] %vm4400, %v4218
      %4420 = vst.msk [vmem:[%s589 + $0x98] sm:$0xff] %vm4400, %v4221
      %4421 = vst.msk [vmem:[%s589 + $0xa0] sm:$0xff] %vm4400, %v4226
      %4422 = vst.msk [vmem:[%s589 + $0xa8] sm:$0xff] %vm4400, %v4229
      %4423 = vst.msk [vmem:[%s589 + $0xb0] sm:$0xff] %vm4400, %v4234
      %4424 = vst.msk [vmem:[%s589 + $0xb8] sm:$0xff] %vm4400, %v4237
      %4425 = vst.msk [vmem:[%s589 + $0xc0] sm:$0xff] %vm4400, %v4242
      %4426 = vst.msk [vmem:[%s589 + $0xc8] sm:$0xff] %vm4400, %v4245
      %4427 = vst.msk [vmem:[%s589 + $0xd0] sm:$0xff] %vm4400, %v4250
      %4428 = vst.msk [vmem:[%s589 + $0xd8] sm:$0xff] %vm4400, %v4253
      %4429 = vst.msk [vmem:[%s589 + $0xe0] sm:$0xff] %vm4400, %v4258
      %4430 = vst.msk [vmem:[%s589 + $0xe8] sm:$0xff] %vm4400, %v4261
      %4431 = vst.msk [vmem:[%s589 + $0xf0] sm:$0xff] %vm4400, %v4266
      %4432 = vst.msk [vmem:[%s589 + $0xf8] sm:$0xff] %vm4400, %v4269
      %4433 = vst.msk [vmem:[%s589 + $0x100] sm:$0xff] %vm4400, %v4274
      %4434 = vst.msk [vmem:[%s589 + $0x108] sm:$0xff] %vm4400, %v4277
      %4435 = vst.msk [vmem:[%s589 + $0x110] sm:$0xff] %vm4400, %v4282
      %4436 = vst.msk [vmem:[%s589 + $0x118] sm:$0xff] %vm4400, %v4285
      %4437 = vst.msk [vmem:[%s589 + $0x120] sm:$0xff] %vm4400, %v4290
      %4438 = vst.msk [vmem:[%s589 + $0x128] sm:$0xff] %vm4400, %v4293
      %4439 = vst.msk [vmem:[%s589 + $0x130] sm:$0xff] %vm4400, %v4298
      %4440 = vst.msk [vmem:[%s589 + $0x138] sm:$0xff] %vm4400, %v4301
      %4441 = vst.msk [vmem:[%s589 + $0x140] sm:$0xff] %vm4400, %v4306
      %4442 = vst.msk [vmem:[%s589 + $0x148] sm:$0xff] %vm4400, %v4309
      %4443 = vst.msk [vmem:[%s589 + $0x150] sm:$0xff] %vm4400, %v4314
      %4444 = vst.msk [vmem:[%s589 + $0x158] sm:$0xff] %vm4400, %v4317
      %4445 = vst.msk [vmem:[%s589 + $0x160] sm:$0xff] %vm4400, %v4322
      %4446 = vst.msk [vmem:[%s589 + $0x168] sm:$0xff] %vm4400, %v4325
      %4447 = vst.msk [vmem:[%s589 + $0x170] sm:$0xff] %vm4400, %v4330
      %4448 = vst.msk [vmem:[%s589 + $0x178] sm:$0xff] %vm4400, %v4333
      %4449 = vst.msk [vmem:[%s589 + $0x180] sm:$0xff] %vm4400, %v4338
      %4450 = vst.msk [vmem:[%s589 + $0x188] sm:$0xff] %vm4400, %v4341
      %4451 = vst.msk [vmem:[%s589 + $0x190] sm:$0xff] %vm4400, %v4346
      %4452 = vst.msk [vmem:[%s589 + $0x198] sm:$0xff] %vm4400, %v4349
      %4453 = vst.msk [vmem:[%s589 + $0x1a0] sm:$0xff] %vm4400, %v4354
      %4454 = vst.msk [vmem:[%s589 + $0x1a8] sm:$0xff] %vm4400, %v4357
      %4455 = vst.msk [vmem:[%s589 + $0x1b0] sm:$0xff] %vm4400, %v4362
      %4456 = vst.msk [vmem:[%s589 + $0x1b8] sm:$0xff] %vm4400, %v4365
      %4457 = vst.msk [vmem:[%s589 + $0x1c0] sm:$0xff] %vm4400, %v4370
      %4458 = vst.msk [vmem:[%s589 + $0x1c8] sm:$0xff] %vm4400, %v4373
      %4459 = vst.msk [vmem:[%s589 + $0x1d0] sm:$0xff] %vm4400, %v4378
      %4460 = vst.msk [vmem:[%s589 + $0x1d8] sm:$0xff] %vm4400, %v4381
      %4461 = vst.msk [vmem:[%s589 + $0x1e0] sm:$0xff] %vm4400, %v4386
      %4462 = vst.msk [vmem:[%s589 + $0x1e8] sm:$0xff] %vm4400, %v4389
      %4463 = vst.msk [vmem:[%s589 + $0x1f0] sm:$0xff] %vm4400, %v4394
      %4464 = vst.msk [vmem:[%s589 + $0x1f8] sm:$0xff] %vm4400, %v4397
      %v4465 = vld [vmem:[%s9] sm:$0xf]
      %v4466 = vld [vmem:[%s9 + $0x4] sm:$0x3]
      %v4467 = vld [vmem:[%s10] sm:$0x1]
      %v4469 = vlaneseq
      %v4470 = vshrl.u32 %v4469, 7
      %v4471 = vsub.s32 0, %v4470
      %v4472 = vrot.slane %v4467, %v4471
      %v4476 = vunpack.c.l.b16 %v4465
      %v4477 = vunpack.c.l.b16 %v4466
      %v4478 = vpack.c.b16 %v4477, %v4476
      %v4480 = vsel %vm4107, %v4478, 0
      %4482 = vmatprep.subr.bf16.mxu0 0
      %4483 = vmatpush1.bf16.msra.mxu0 %v4480
      %4484 = vmatprep.subr.bf16.mxu0 0
      %4485 = vmatpush1.bf16.msra.mxu0 0
      %4486 = vmatprep.subr.bf16.mxu0 0
      %4487 = vmatpush1.bf16.msra.mxu0 0
      %4488 = vmatprep.subr.bf16.mxu0 0
      %4489 = vmatpush1.bf16.msra.mxu0 0
      %4490 = vmatprep.subr.bf16.mxu0 0
      %4491 = vmatpush1.bf16.msra.mxu0 0
      %4492 = vmatprep.subr.bf16.mxu0 0
      %4493 = vmatpush1.bf16.msra.mxu0 0
      %4494 = vmatprep.subr.bf16.mxu0 0
      %4495 = vmatpush1.bf16.msra.mxu0 0
      %4496 = vmatprep.subr.bf16.mxu0 0
      %4497 = vmatpush1.bf16.msra.mxu0 0
      %4498 = vmatprep.subr.bf16.mxu0 0
      %4499 = vmatpush1.bf16.msra.mxu0 0
      %4500 = vmatprep.subr.bf16.mxu0 0
      %4501 = vmatpush1.bf16.msra.mxu0 0
      %4502 = vmatprep.subr.bf16.mxu0 0
      %4503 = vmatpush1.bf16.msra.mxu0 0
      %4504 = vmatprep.subr.bf16.mxu0 0
      %4505 = vmatpush1.bf16.msra.mxu0 0
      %4506 = vmatprep.subr.bf16.mxu0 0
      %4507 = vmatpush1.bf16.msra.mxu0 0
      %4508 = vmatprep.subr.bf16.mxu0 0
      %4509 = vmatpush1.bf16.msra.mxu0 0
      %4510 = vmatprep.subr.bf16.mxu0 0
      %4511 = vmatpush1.bf16.msra.mxu0 0
      %4512 = vmatprep.subr.bf16.mxu0 0
      %4513 = vmatpush1.bf16.msra.mxu0 0
      %4514 = vmatprep.mubr.bf16.mxu0 0
      %4515 = vmatmul.mubr.bf16.gmra.mrb[0].mxu0 %v4012
      %v4516 = vpop.f32.mrb[0].mxu0
      %v4517 = vadd.f32 %v4472, %v4516
      %v4518 = vpop.f32.mrb[0].mxu0
      %v4519 = vpop.f32.mrb[0].mxu0
      %v4520 = vadd.f32 %v4472, %v4519
      %v4521 = vpop.f32.mrb[0].mxu0
      %4522 = vmatprep.mubr.bf16.mxu0 0
      %4523 = vmatmul.mubr.bf16.gmra.mrb[0].mxu0 %v4015
      %v4524 = vpop.f32.mrb[0].mxu0
      %v4525 = vadd.f32 %v4472, %v4524
      %v4526 = vpop.f32.mrb[0].mxu0
      %v4527 = vpop.f32.mrb[0].mxu0
      %v4528 = vadd.f32 %v4472, %v4527
      %v4529 = vpop.f32.mrb[0].mxu0
      %4530 = vmatprep.mubr.bf16.mxu0 0
      %4531 = vmatmul.mubr.bf16.gmra.mrb[0].mxu0 %v4018
      %v4532 = vpop.f32.mrb[0].mxu0
      %v4533 = vadd.f32 %v4472, %v4532
      %v4534 = vpop.f32.mrb[0].mxu0
      %v4535 = vpop.f32.mrb[0].mxu0
      %v4536 = vadd.f32 %v4472, %v4535
      %v4537 = vpop.f32.mrb[0].mxu0
      %4538 = vmatprep.mubr.bf16.mxu0 0
      %4539 = vmatmul.mubr.bf16.gmra.mrb[0].mxu0 %v4021
      %v4540 = vpop.f32.mrb[0].mxu0
      %v4541 = vadd.f32 %v4472, %v4540
      %v4542 = vpop.f32.mrb[0].mxu0
      %v4543 = vpop.f32.mrb[0].mxu0
      %v4544 = vadd.f32 %v4472, %v4543
      %v4545 = vpop.f32.mrb[0].mxu0
      %4546 = vmatprep.mubr.bf16.mxu0 0
      %4547 = vmatmul.mubr.bf16.gmra.mrb[0].mxu0 %v4024
      %v4548 = vpop.f32.mrb[0].mxu0
      %v4549 = vadd.f32 %v4472, %v4548
      %v4550 = vpop.f32.mrb[0].mxu0
      %v4551 = vpop.f32.mrb[0].mxu0
      %v4552 = vadd.f32 %v4472, %v4551
      %v4553 = vpop.f32.mrb[0].mxu0
      %4554 = vmatprep.mubr.bf16.mxu0 0
      %4555 = vmatmul.mubr.bf16.gmra.mrb[0].mxu0 %v4027
      %v4556 = vpop.f32.mrb[0].mxu0
      %v4557 = vadd.f32 %v4472, %v4556
      %v4558 = vpop.f32.mrb[0].mxu0
      %v4559 = vpop.f32.mrb[0].mxu0
      %v4560 = vadd.f32 %v4472, %v4559
      %v4561 = vpop.f32.mrb[0].mxu0
      %4562 = vmatprep.mubr.bf16.mxu0 0
      %4563 = vmatmul.mubr.bf16.gmra.mrb[0].mxu0 %v4030
      %v4564 = vpop.f32.mrb[0].mxu0
      %v4565 = vadd.f32 %v4472, %v4564
      %v4566 = vpop.f32.mrb[0].mxu0
      %v4567 = vpop.f32.mrb[0].mxu0
      %v4568 = vadd.f32 %v4472, %v4567
      %v4569 = vpop.f32.mrb[0].mxu0
      %4570 = vmatprep.mubr.bf16.mxu0 0
      %4571 = vmatmul.mubr.bf16.gmra.mrb[0].mxu0 %v4033
      %v4572 = vpop.f32.mrb[0].mxu0
      %v4573 = vadd.f32 %v4472, %v4572
      %v4574 = vpop.f32.mrb[0].mxu0
      %v4575 = vpop.f32.mrb[0].mxu0
      %v4576 = vadd.f32 %v4472, %v4575
      %v4577 = vpop.f32.mrb[0].mxu0
      %4578 = vmatprep.mubr.bf16.mxu0 0
      %4579 = vmatmul.mubr.bf16.gmra.mrb[0].mxu0 %v4036
      %v4580 = vpop.f32.mrb[0].mxu0
      %v4581 = vadd.f32 %v4472, %v4580
      %v4582 = vpop.f32.mrb[0].mxu0
      %v4583 = vpop.f32.mrb[0].mxu0
      %v4584 = vadd.f32 %v4472, %v4583
      %v4585 = vpop.f32.mrb[0].mxu0
      %4586 = vmatprep.mubr.bf16.mxu0 0
      %4587 = vmatmul.mubr.bf16.gmra.mrb[0].mxu0 %v4039
      %v4588 = vpop.f32.mrb[0].mxu0
      %v4589 = vadd.f32 %v4472, %v4588
      %v4590 = vpop.f32.mrb[0].mxu0
      %v4591 = vpop.f32.mrb[0].mxu0
      %v4592 = vadd.f32 %v4472, %v4591
      %v4593 = vpop.f32.mrb[0].mxu0
      %4594 = vmatprep.mubr.bf16.mxu0 0
      %4595 = vmatmul.mubr.bf16.gmra.mrb[0].mxu0 %v4042
      %v4596 = vpop.f32.mrb[0].mxu0
      %v4597 = vadd.f32 %v4472, %v4596
      %v4598 = vpop.f32.mrb[0].mxu0
      %v4599 = vpop.f32.mrb[0].mxu0
      %v4600 = vadd.f32 %v4472, %v4599
      %v4601 = vpop.f32.mrb[0].mxu0
      %4602 = vmatprep.mubr.bf16.mxu0 0
      %4603 = vmatmul.mubr.bf16.gmra.mrb[0].mxu0 %v4045
      %v4604 = vpop.f32.mrb[0].mxu0
      %v4605 = vadd.f32 %v4472, %v4604
      %v4606 = vpop.f32.mrb[0].mxu0
      %v4607 = vpop.f32.mrb[0].mxu0
      %v4608 = vadd.f32 %v4472, %v4607
      %v4609 = vpop.f32.mrb[0].mxu0
      %4610 = vmatprep.mubr.bf16.mxu0 0
      %4611 = vmatmul.mubr.bf16.gmra.mrb[0].mxu0 %v4048
      %v4612 = vpop.f32.mrb[0].mxu0
      %v4613 = vadd.f32 %v4472, %v4612
      %v4614 = vpop.f32.mrb[0].mxu0
      %v4615 = vpop.f32.mrb[0].mxu0
      %v4616 = vadd.f32 %v4472, %v4615
      %v4617 = vpop.f32.mrb[0].mxu0
      %4618 = vmatprep.mubr.bf16.mxu0 0
      %4619 = vmatmul.mubr.bf16.gmra.mrb[0].mxu0 %v4051
      %v4620 = vpop.f32.mrb[0].mxu0
      %v4621 = vadd.f32 %v4472, %v4620
      %v4622 = vpop.f32.mrb[0].mxu0
      %v4623 = vpop.f32.mrb[0].mxu0
      %v4624 = vadd.f32 %v4472, %v4623
      %v4625 = vpop.f32.mrb[0].mxu0
      %4626 = vmatprep.mubr.bf16.mxu0 0
      %4627 = vmatmul.mubr.bf16.gmra.mrb[0].mxu0 %v4054
      %v4628 = vpop.f32.mrb[0].mxu0
      %v4629 = vadd.f32 %v4472, %v4628
      %v4630 = vpop.f32.mrb[0].mxu0
      %v4631 = vpop.f32.mrb[0].mxu0
      %v4632 = vadd.f32 %v4472, %v4631
      %v4633 = vpop.f32.mrb[0].mxu0
      %4634 = vmatprep.mubr.bf16.mxu0 0
      %4635 = vmatmul.mubr.bf16.gmra.mrb[0].mxu0 %v4057
      %v4636 = vpop.f32.mrb[0].mxu0
      %v4637 = vadd.f32 %v4472, %v4636
      %v4638 = vpop.f32.mrb[0].mxu0
      %v4639 = vpop.f32.mrb[0].mxu0
      %v4640 = vadd.f32 %v4472, %v4639
      %v4641 = vpop.f32.mrb[0].mxu0
      %4642 = vmatprep.mubr.bf16.mxu0 0
      %4643 = vmatmul.mubr.bf16.gmra.mrb[0].mxu0 %v4060
      %v4644 = vpop.f32.mrb[0].mxu0
      %v4645 = vadd.f32 %v4472, %v4644
      %v4646 = vpop.f32.mrb[0].mxu0
      %v4647 = vpop.f32.mrb[0].mxu0
      %v4648 = vadd.f32 %v4472, %v4647
      %v4649 = vpop.f32.mrb[0].mxu0
      %4650 = vmatprep.mubr.bf16.mxu0 0
      %4651 = vmatmul.mubr.bf16.gmra.mrb[0].mxu0 %v4063
      %v4652 = vpop.f32.mrb[0].mxu0
      %v4653 = vadd.f32 %v4472, %v4652
      %v4654 = vpop.f32.mrb[0].mxu0
      %v4655 = vpop.f32.mrb[0].mxu0
      %v4656 = vadd.f32 %v4472, %v4655
      %v4657 = vpop.f32.mrb[0].mxu0
      %4658 = vmatprep.mubr.bf16.mxu0 0
      %4659 = vmatmul.mubr.bf16.gmra.mrb[0].mxu0 %v4066
      %v4660 = vpop.f32.mrb[0].mxu0
      %v4661 = vadd.f32 %v4472, %v4660
      %v4662 = vpop.f32.mrb[0].mxu0
      %v4663 = vpop.f32.mrb[0].mxu0
      %v4664 = vadd.f32 %v4472, %v4663
      %v4665 = vpop.f32.mrb[0].mxu0
      %4666 = vmatprep.mubr.bf16.mxu0 0
      %4667 = vmatmul.mubr.bf16.gmra.mrb[0].mxu0 %v4069
      %v4668 = vpop.f32.mrb[0].mxu0
      %v4669 = vadd.f32 %v4472, %v4668
      %v4670 = vpop.f32.mrb[0].mxu0
      %v4671 = vpop.f32.mrb[0].mxu0
      %v4672 = vadd.f32 %v4472, %v4671
      %v4673 = vpop.f32.mrb[0].mxu0
      %4674 = vmatprep.mubr.bf16.mxu0 0
      %4675 = vmatmul.mubr.bf16.gmra.mrb[0].mxu0 %v4072
      %v4676 = vpop.f32.mrb[0].mxu0
      %v4677 = vadd.f32 %v4472, %v4676
      %v4678 = vpop.f32.mrb[0].mxu0
      %v4679 = vpop.f32.mrb[0].mxu0
      %v4680 = vadd.f32 %v4472, %v4679
      %v4681 = vpop.f32.mrb[0].mxu0
      %4682 = vmatprep.mubr.bf16.mxu0 0
      %4683 = vmatmul.mubr.bf16.gmra.mrb[0].mxu0 %v4075
      %v4684 = vpop.f32.mrb[0].mxu0
      %v4685 = vadd.f32 %v4472, %v4684
      %v4686 = vpop.f32.mrb[0].mxu0
      %v4687 = vpop.f32.mrb[0].mxu0
      %v4688 = vadd.f32 %v4472, %v4687
      %v4689 = vpop.f32.mrb[0].mxu0
      %4690 = vmatprep.mubr.bf16.mxu0 0
      %4691 = vmatmul.mubr.bf16.gmra.mrb[0].mxu0 %v4078
      %v4692 = vpop.f32.mrb[0].mxu0
      %v4693 = vadd.f32 %v4472, %v4692
      %v4694 = vpop.f32.mrb[0].mxu0
      %v4695 = vpop.f32.mrb[0].mxu0
      %v4696 = vadd.f32 %v4472, %v4695
      %v4697 = vpop.f32.mrb[0].mxu0
      %4698 = vmatprep.mubr.bf16.mxu0 0
      %4699 = vmatmul.mubr.bf16.gmra.mrb[0].mxu0 %v4081
      %v4700 = vpop.f32.mrb[0].mxu0
      %v4701 = vadd.f32 %v4472, %v4700
      %v4702 = vpop.f32.mrb[0].mxu0
      %v4703 = vpop.f32.mrb[0].mxu0
      %v4704 = vadd.f32 %v4472, %v4703
      %v4705 = vpop.f32.mrb[0].mxu0
      %4706 = vmatprep.mubr.bf16.mxu0 0
      %4707 = vmatmul.mubr.bf16.gmra.mrb[0].mxu0 %v4084
      %v4708 = vpop.f32.mrb[0].mxu0
      %v4709 = vadd.f32 %v4472, %v4708
      %v4710 = vpop.f32.mrb[0].mxu0
      %v4711 = vpop.f32.mrb[0].mxu0
      %v4712 = vadd.f32 %v4472, %v4711
      %v4713 = vpop.f32.mrb[0].mxu0
      %4714 = vmatprep.mubr.bf16.mxu0 0
      %4715 = vmatmul.mubr.bf16.gmra.mrb[0].mxu0 %v4087
      %v4716 = vpop.f32.mrb[0].mxu0
      %v4717 = vadd.f32 %v4472, %v4716
      %v4718 = vpop.f32.mrb[0].mxu0
      %v4719 = vpop.f32.mrb[0].mxu0
      %v4720 = vadd.f32 %v4472, %v4719
      %v4721 = vpop.f32.mrb[0].mxu0
      %4722 = vmatprep.mubr.bf16.mxu0 0
      %4723 = vmatmul.mubr.bf16.gmra.mrb[0].mxu0 %v4090
      %v4724 = vpop.f32.mrb[0].mxu0
      %v4725 = vadd.f32 %v4472, %v4724
      %v4726 = vpop.f32.mrb[0].mxu0
      %v4727 = vpop.f32.mrb[0].mxu0
      %v4728 = vadd.f32 %v4472, %v4727
      %v4729 = vpop.f32.mrb[0].mxu0
      %4730 = vmatprep.mubr.bf16.mxu0 0
      %4731 = vmatmul.mubr.bf16.gmra.mrb[0].mxu0 %v4093
      %v4732 = vpop.f32.mrb[0].mxu0
      %v4733 = vadd.f32 %v4472, %v4732
      %v4734 = vpop.f32.mrb[0].mxu0
      %v4735 = vpop.f32.mrb[0].mxu0
      %v4736 = vadd.f32 %v4472, %v4735
      %v4737 = vpop.f32.mrb[0].mxu0
      %4738 = vmatprep.mubr.bf16.mxu0 0
      %4739 = vmatmul.mubr.bf16.gmra.mrb[0].mxu0 %v4096
      %v4740 = vpop.f32.mrb[0].mxu0
      %v4741 = vadd.f32 %v4472, %v4740
      %v4742 = vpop.f32.mrb[0].mxu0
      %v4743 = vpop.f32.mrb[0].mxu0
      %v4744 = vadd.f32 %v4472, %v4743
      %v4745 = vpop.f32.mrb[0].mxu0
      %4746 = vmatprep.mubr.bf16.mxu0 0
      %4747 = vmatmul.mubr.bf16.gmra.mrb[0].mxu0 %v4099
      %v4748 = vpop.f32.mrb[0].mxu0
      %v4749 = vadd.f32 %v4472, %v4748
      %v4750 = vpop.f32.mrb[0].mxu0
      %v4751 = vpop.f32.mrb[0].mxu0
      %v4752 = vadd.f32 %v4472, %v4751
      %v4753 = vpop.f32.mrb[0].mxu0
      %4754 = vmatprep.mubr.bf16.mxu0 0
      %4755 = vmatmul.mubr.bf16.gmra.mrb[0].mxu0 %v4102
      %v4756 = vpop.f32.mrb[0].mxu0
      %v4757 = vadd.f32 %v4472, %v4756
      %v4758 = vpop.f32.mrb[0].mxu0
      %v4759 = vpop.f32.mrb[0].mxu0
      %v4760 = vadd.f32 %v4472, %v4759
      %v4761 = vpop.f32.mrb[0].mxu0
      %4762 = vmatprep.mubr.bf16.mxu0 0
      %4763 = vmatmul.mubr.bf16.gmra.mrb[0].mxu0 %v4105
      %v4764 = vpop.f32.mrb[0].mxu0
      %v4765 = vadd.f32 %v4472, %v4764
      %v4766 = vpop.f32.mrb[0].mxu0
      %v4767 = vpop.f32.mrb[0].mxu0
      %v4768 = vadd.f32 %v4472, %v4767
      %v4769 = vpop.f32.mrb[0].mxu0
      %4770 = vdwg.mxu0
      %v4771 = vtanh.pop %v4517
      %v4772 = vtanh.pop %v4520
      %v4773 = vtanh.pop %v4525
      %v4774 = vtanh.pop %v4528
      %v4775 = vtanh.pop %v4533
      %v4776 = vtanh.pop %v4536
      %v4777 = vtanh.pop %v4541
      %v4778 = vtanh.pop %v4544
      %v4779 = vtanh.pop %v4549
      %v4780 = vtanh.pop %v4552
      %v4781 = vtanh.pop %v4557
      %v4782 = vtanh.pop %v4560
      %v4783 = vtanh.pop %v4565
      %v4784 = vtanh.pop %v4568
      %v4785 = vtanh.pop %v4573
      %v4786 = vtanh.pop %v4576
      %v4787 = vtanh.pop %v4581
      %v4788 = vtanh.pop %v4584
      %v4789 = vtanh.pop %v4589
      %v4790 = vtanh.pop %v4592
      %v4791 = vtanh.pop %v4597
      %v4792 = vtanh.pop %v4600
      %v4793 = vtanh.pop %v4605
      %v4794 = vtanh.pop %v4608
      %v4795 = vtanh.pop %v4613
      %v4796 = vtanh.pop %v4616
      %v4797 = vtanh.pop %v4621
      %v4798 = vtanh.pop %v4624
      %v4799 = vtanh.pop %v4629
      %v4800 = vtanh.pop %v4632
      %v4801 = vtanh.pop %v4637
      %v4802 = vtanh.pop %v4640
      %v4803 = vtanh.pop %v4645
      %v4804 = vtanh.pop %v4648
      %v4805 = vtanh.pop %v4653
      %v4806 = vtanh.pop %v4656
      %v4807 = vtanh.pop %v4661
      %v4808 = vtanh.pop %v4664
      %v4809 = vtanh.pop %v4669
      %v4810 = vtanh.pop %v4672
      %v4811 = vtanh.pop %v4677
      %v4812 = vtanh.pop %v4680
      %v4813 = vtanh.pop %v4685
      %v4814 = vtanh.pop %v4688
      %v4815 = vtanh.pop %v4693
      %v4816 = vtanh.pop %v4696
      %v4817 = vtanh.pop %v4701
      %v4818 = vtanh.pop %v4704
      %v4819 = vtanh.pop %v4709
      %v4820 = vtanh.pop %v4712
      %v4821 = vtanh.pop %v4717
      %v4822 = vtanh.pop %v4720
      %v4823 = vtanh.pop %v4725
      %v4824 = vtanh.pop %v4728
      %v4825 = vtanh.pop %v4733
      %v4826 = vtanh.pop %v4736
      %v4827 = vtanh.pop %v4741
      %v4828 = vtanh.pop %v4744
      %v4829 = vtanh.pop %v4749
      %v4830 = vtanh.pop %v4752
      %v4831 = vtanh.pop %v4757
      %v4832 = vtanh.pop %v4760
      %v4833 = vtanh.pop %v4765
      %v4834 = vtanh.pop %v4768
      %v4835 = vpack.c.bf16 %v4772, %v4771
      %v4836 = vpack.c.bf16 %v4774, %v4773
      %v4837 = vpack.c.bf16 %v4776, %v4775
      %v4838 = vpack.c.bf16 %v4778, %v4777
      %v4839 = vpack.c.bf16 %v4780, %v4779
      %v4840 = vpack.c.bf16 %v4782, %v4781
      %v4841 = vpack.c.bf16 %v4784, %v4783
      %v4842 = vpack.c.bf16 %v4786, %v4785
      %v4843 = vpack.c.bf16 %v4788, %v4787
      %v4844 = vpack.c.bf16 %v4790, %v4789
      %v4845 = vpack.c.bf16 %v4792, %v4791
      %v4846 = vpack.c.bf16 %v4794, %v4793
      %v4847 = vpack.c.bf16 %v4796, %v4795
      %v4848 = vpack.c.bf16 %v4798, %v4797
      %v4849 = vpack.c.bf16 %v4800, %v4799
      %v4850 = vpack.c.bf16 %v4802, %v4801
      %v4851 = vpack.c.bf16 %v4804, %v4803
      %v4852 = vpack.c.bf16 %v4806, %v4805
      %v4853 = vpack.c.bf16 %v4808, %v4807
      %v4854 = vpack.c.bf16 %v4810, %v4809
      %v4855 = vpack.c.bf16 %v4812, %v4811
      %v4856 = vpack.c.bf16 %v4814, %v4813
      %v4857 = vpack.c.bf16 %v4816, %v4815
      %v4858 = vpack.c.bf16 %v4818, %v4817
      %v4859 = vpack.c.bf16 %v4820, %v4819
      %v4860 = vpack.c.bf16 %v4822, %v4821
      %v4861 = vpack.c.bf16 %v4824, %v4823
      %v4862 = vpack.c.bf16 %v4826, %v4825
      %v4863 = vpack.c.bf16 %v4828, %v4827
      %v4864 = vpack.c.bf16 %v4830, %v4829
      %v4865 = vpack.c.bf16 %v4832, %v4831
      %v4866 = vpack.c.bf16 %v4834, %v4833
      %v4867 = vld [vmem:[%s11] sm:$0xf]
      %v4868 = vld [vmem:[%s11 + $0x4] sm:$0x3]
      %v4869 = vld [vmem:[%s12] sm:$0x1]
      %v4871 = vlaneseq
      %v4872 = vshrl.u32 %v4871, 7
      %v4873 = vsub.s32 0, %v4872
      %v4874 = vrot.slane %v4869, %v4873
      %v4878 = vunpack.c.l.b16 %v4867
      %v4879 = vunpack.c.l.b16 %v4868
      %v4880 = vpack.c.b16 %v4879, %v4878
      %v4882 = vsel %vm4010, %v4835, 0
      %v4885 = vsel %vm4010, %v4836, 0
      %v4888 = vsel %vm4010, %v4837, 0
      %v4891 = vsel %vm4010, %v4838, 0
      %v4894 = vsel %vm4010, %v4839, 0
      %v4897 = vsel %vm4010, %v4840, 0
      %v4900 = vsel %vm4010, %v4841, 0
      %v4903 = vsel %vm4010, %v4842, 0
      %v4906 = vsel %vm4010, %v4843, 0
      %v4909 = vsel %vm4010, %v4844, 0
      %v4912 = vsel %vm4010, %v4845, 0
      %v4915 = vsel %vm4010, %v4846, 0
      %v4918 = vsel %vm4010, %v4847, 0
      %v4921 = vsel %vm4010, %v4848, 0
      %v4924 = vsel %vm4010, %v4849, 0
      %v4927 = vsel %vm4010, %v4850, 0
      %v4930 = vsel %vm4010, %v4851, 0
      %v4933 = vsel %vm4010, %v4852, 0
      %v4936 = vsel %vm4010, %v4853, 0
      %v4939 = vsel %vm4010, %v4854, 0
      %v4942 = vsel %vm4010, %v4855, 0
      %v4945 = vsel %vm4010, %v4856, 0
      %v4948 = vsel %vm4010, %v4857, 0
      %v4951 = vsel %vm4010, %v4858, 0
      %v4954 = vsel %vm4010, %v4859, 0
      %v4957 = vsel %vm4010, %v4860, 0
      %v4960 = vsel %vm4010, %v4861, 0
      %v4963 = vsel %vm4010, %v4862, 0
      %v4966 = vsel %vm4010, %v4863, 0
      %v4969 = vsel %vm4010, %v4864, 0
      %v4972 = vsel %vm4010, %v4865, 0
      %v4975 = vsel %vm4010, %v4866, 0
      %v4978 = vsel %vm4107, %v4880, 0
      %4980 = vmatprep.subr.bf16.mxu0 0
      %4981 = vmatpush1.bf16.msra.mxu0 %v4978
      %4982 = vmatprep.subr.bf16.mxu0 0
      %4983 = vmatpush1.bf16.msra.mxu0 0
      %4984 = vmatprep.subr.bf16.mxu0 0
      %4985 = vmatpush1.bf16.msra.mxu0 0
      %4986 = vmatprep.subr.bf16.mxu0 0
      %4987 = vmatpush1.bf16.msra.mxu0 0
      %4988 = vmatprep.subr.bf16.mxu0 0
      %4989 = vmatpush1.bf16.msra.mxu0 0
      %4990 = vmatprep.subr.bf16.mxu0 0
      %4991 = vmatpush1.bf16.msra.mxu0 0
      %4992 = vmatprep.subr.bf16.mxu0 0
      %4993 = vmatpush1.bf16.msra.mxu0 0
      %4994 = vmatprep.subr.bf16.mxu0 0
      %4995 = vmatpush1.bf16.msra.mxu0 0
      %4996 = vmatprep.subr.bf16.mxu0 0
      %4997 = vmatpush1.bf16.msra.mxu0 0
      %4998 = vmatprep.subr.bf16.mxu0 0
      %4999 = vmatpush1.bf16.msra.mxu0 0
      %5000 = vmatprep.subr.bf16.mxu0 0
      %5001 = vmatpush1.bf16.msra.mxu0 0
      %5002 = vmatprep.subr.bf16.mxu0 0
      %5003 = vmatpush1.bf16.msra.mxu0 0
      %5004 = vmatprep.subr.bf16.mxu0 0
      %5005 = vmatpush1.bf16.msra.mxu0 0
      %5006 = vmatprep.subr.bf16.mxu0 0
      %5007 = vmatpush1.bf16.msra.mxu0 0
      %5008 = vmatprep.subr.bf16.mxu0 0
      %5009 = vmatpush1.bf16.msra.mxu0 0
      %5010 = vmatprep.subr.bf16.mxu0 0
      %5011 = vmatpush1.bf16.msra.mxu0 0
      %5012 = vmatprep.mubr.bf16.mxu0 0
      %5013 = vmatmul.mubr.bf16.gmra.mrb[0].mxu0 %v4882
      %v5014 = vpop.f32.mrb[0].mxu0
      %v5015 = vadd.f32 %v4874, %v5014
      %v5016 = vpop.f32.mrb[0].mxu0
      %v5017 = vpop.f32.mrb[0].mxu0
      %v5018 = vadd.f32 %v4874, %v5017
      %v5019 = vpop.f32.mrb[0].mxu0
      %5020 = vmatprep.mubr.bf16.mxu0 0
      %5021 = vmatmul.mubr.bf16.gmra.mrb[0].mxu0 %v4885
      %v5022 = vpop.f32.mrb[0].mxu0
      %v5023 = vadd.f32 %v4874, %v5022
      %v5024 = vpop.f32.mrb[0].mxu0
      %v5025 = vpop.f32.mrb[0].mxu0
      %v5026 = vadd.f32 %v4874, %v5025
      %v5027 = vpop.f32.mrb[0].mxu0
      %5028 = vmatprep.mubr.bf16.mxu0 0
      %5029 = vmatmul.mubr.bf16.gmra.mrb[0].mxu0 %v4888
      %v5030 = vpop.f32.mrb[0].mxu0
      %v5031 = vadd.f32 %v4874, %v5030
      %v5032 = vpop.f32.mrb[0].mxu0
      %v5033 = vpop.f32.mrb[0].mxu0
      %v5034 = vadd.f32 %v4874, %v5033
      %v5035 = vpop.f32.mrb[0].mxu0
      %5036 = vmatprep.mubr.bf16.mxu0 0
      %5037 = vmatmul.mubr.bf16.gmra.mrb[0].mxu0 %v4891
      %v5038 = vpop.f32.mrb[0].mxu0
      %v5039 = vadd.f32 %v4874, %v5038
      %v5040 = vpop.f32.mrb[0].mxu0
      %v5041 = vpop.f32.mrb[0].mxu0
      %v5042 = vadd.f32 %v4874, %v5041
      %v5043 = vpop.f32.mrb[0].mxu0
      %5044 = vmatprep.mubr.bf16.mxu0 0
      %5045 = vmatmul.mubr.bf16.gmra.mrb[0].mxu0 %v4894
      %v5046 = vpop.f32.mrb[0].mxu0
      %v5047 = vadd.f32 %v4874, %v5046
      %v5048 = vpop.f32.mrb[0].mxu0
      %v5049 = vpop.f32.mrb[0].mxu0
      %v5050 = vadd.f32 %v4874, %v5049
      %v5051 = vpop.f32.mrb[0].mxu0
      %5052 = vmatprep.mubr.bf16.mxu0 0
      %5053 = vmatmul.mubr.bf16.gmra.mrb[0].mxu0 %v4897
      %v5054 = vpop.f32.mrb[0].mxu0
      %v5055 = vadd.f32 %v4874, %v5054
      %v5056 = vpop.f32.mrb[0].mxu0
      %v5057 = vpop.f32.mrb[0].mxu0
      %v5058 = vadd.f32 %v4874, %v5057
      %v5059 = vpop.f32.mrb[0].mxu0
      %5060 = vmatprep.mubr.bf16.mxu0 0
      %5061 = vmatmul.mubr.bf16.gmra.mrb[0].mxu0 %v4900
      %v5062 = vpop.f32.mrb[0].mxu0
      %v5063 = vadd.f32 %v4874, %v5062
      %v5064 = vpop.f32.mrb[0].mxu0
      %v5065 = vpop.f32.mrb[0].mxu0
      %v5066 = vadd.f32 %v4874, %v5065
      %v5067 = vpop.f32.mrb[0].mxu0
      %5068 = vmatprep.mubr.bf16.mxu0 0
      %5069 = vmatmul.mubr.bf16.gmra.mrb[0].mxu0 %v4903
      %v5070 = vpop.f32.mrb[0].mxu0
      %v5071 = vadd.f32 %v4874, %v5070
      %v5072 = vpop.f32.mrb[0].mxu0
      %v5073 = vpop.f32.mrb[0].mxu0
      %v5074 = vadd.f32 %v4874, %v5073
      %v5075 = vpop.f32.mrb[0].mxu0
      %5076 = vmatprep.mubr.bf16.mxu0 0
      %5077 = vmatmul.mubr.bf16.gmra.mrb[0].mxu0 %v4906
      %v5078 = vpop.f32.mrb[0].mxu0
      %v5079 = vadd.f32 %v4874, %v5078
      %v5080 = vpop.f32.mrb[0].mxu0
      %v5081 = vpop.f32.mrb[0].mxu0
      %v5082 = vadd.f32 %v4874, %v5081
      %v5083 = vpop.f32.mrb[0].mxu0
      %5084 = vmatprep.mubr.bf16.mxu0 0
      %5085 = vmatmul.mubr.bf16.gmra.mrb[0].mxu0 %v4909
      %v5086 = vpop.f32.mrb[0].mxu0
      %v5087 = vadd.f32 %v4874, %v5086
      %v5088 = vpop.f32.mrb[0].mxu0
      %v5089 = vpop.f32.mrb[0].mxu0
      %v5090 = vadd.f32 %v4874, %v5089
      %v5091 = vpop.f32.mrb[0].mxu0
      %5092 = vmatprep.mubr.bf16.mxu0 0
      %5093 = vmatmul.mubr.bf16.gmra.mrb[0].mxu0 %v4912
      %v5094 = vpop.f32.mrb[0].mxu0
      %v5095 = vadd.f32 %v4874, %v5094
      %v5096 = vpop.f32.mrb[0].mxu0
      %v5097 = vpop.f32.mrb[0].mxu0
      %v5098 = vadd.f32 %v4874, %v5097
      %v5099 = vpop.f32.mrb[0].mxu0
      %5100 = vmatprep.mubr.bf16.mxu0 0
      %5101 = vmatmul.mubr.bf16.gmra.mrb[0].mxu0 %v4915
      %v5102 = vpop.f32.mrb[0].mxu0
      %v5103 = vadd.f32 %v4874, %v5102
      %v5104 = vpop.f32.mrb[0].mxu0
      %v5105 = vpop.f32.mrb[0].mxu0
      %v5106 = vadd.f32 %v4874, %v5105
      %v5107 = vpop.f32.mrb[0].mxu0
      %5108 = vmatprep.mubr.bf16.mxu0 0
      %5109 = vmatmul.mubr.bf16.gmra.mrb[0].mxu0 %v4918
      %v5110 = vpop.f32.mrb[0].mxu0
      %v5111 = vadd.f32 %v4874, %v5110
      %v5112 = vpop.f32.mrb[0].mxu0
      %v5113 = vpop.f32.mrb[0].mxu0
      %v5114 = vadd.f32 %v4874, %v5113
      %v5115 = vpop.f32.mrb[0].mxu0
      %5116 = vmatprep.mubr.bf16.mxu0 0
      %5117 = vmatmul.mubr.bf16.gmra.mrb[0].mxu0 %v4921
      %v5118 = vpop.f32.mrb[0].mxu0
      %v5119 = vadd.f32 %v4874, %v5118
      %v5120 = vpop.f32.mrb[0].mxu0
      %v5121 = vpop.f32.mrb[0].mxu0
      %v5122 = vadd.f32 %v4874, %v5121
      %v5123 = vpop.f32.mrb[0].mxu0
      %5124 = vmatprep.mubr.bf16.mxu0 0
      %5125 = vmatmul.mubr.bf16.gmra.mrb[0].mxu0 %v4924
      %v5126 = vpop.f32.mrb[0].mxu0
      %v5127 = vadd.f32 %v4874, %v5126
      %v5128 = vpop.f32.mrb[0].mxu0
      %v5129 = vpop.f32.mrb[0].mxu0
      %v5130 = vadd.f32 %v4874, %v5129
      %v5131 = vpop.f32.mrb[0].mxu0
      %5132 = vmatprep.mubr.bf16.mxu0 0
      %5133 = vmatmul.mubr.bf16.gmra.mrb[0].mxu0 %v4927
      %v5134 = vpop.f32.mrb[0].mxu0
      %v5135 = vadd.f32 %v4874, %v5134
      %v5136 = vpop.f32.mrb[0].mxu0
      %v5137 = vpop.f32.mrb[0].mxu0
      %v5138 = vadd.f32 %v4874, %v5137
      %v5139 = vpop.f32.mrb[0].mxu0
      %5140 = vmatprep.mubr.bf16.mxu0 0
      %5141 = vmatmul.mubr.bf16.gmra.mrb[0].mxu0 %v4930
      %v5142 = vpop.f32.mrb[0].mxu0
      %v5143 = vadd.f32 %v4874, %v5142
      %v5144 = vpop.f32.mrb[0].mxu0
      %v5145 = vpop.f32.mrb[0].mxu0
      %v5146 = vadd.f32 %v4874, %v5145
      %v5147 = vpop.f32.mrb[0].mxu0
      %5148 = vmatprep.mubr.bf16.mxu0 0
      %5149 = vmatmul.mubr.bf16.gmra.mrb[0].mxu0 %v4933
      %v5150 = vpop.f32.mrb[0].mxu0
      %v5151 = vadd.f32 %v4874, %v5150
      %v5152 = vpop.f32.mrb[0].mxu0
      %v5153 = vpop.f32.mrb[0].mxu0
      %v5154 = vadd.f32 %v4874, %v5153
      %v5155 = vpop.f32.mrb[0].mxu0
      %5156 = vmatprep.mubr.bf16.mxu0 0
      %5157 = vmatmul.mubr.bf16.gmra.mrb[0].mxu0 %v4936
      %v5158 = vpop.f32.mrb[0].mxu0
      %v5159 = vadd.f32 %v4874, %v5158
      %v5160 = vpop.f32.mrb[0].mxu0
      %v5161 = vpop.f32.mrb[0].mxu0
      %v5162 = vadd.f32 %v4874, %v5161
      %v5163 = vpop.f32.mrb[0].mxu0
      %5164 = vmatprep.mubr.bf16.mxu0 0
      %5165 = vmatmul.mubr.bf16.gmra.mrb[0].mxu0 %v4939
      %v5166 = vpop.f32.mrb[0].mxu0
      %v5167 = vadd.f32 %v4874, %v5166
      %v5168 = vpop.f32.mrb[0].mxu0
      %v5169 = vpop.f32.mrb[0].mxu0
      %v5170 = vadd.f32 %v4874, %v5169
      %v5171 = vpop.f32.mrb[0].mxu0
      %5172 = vmatprep.mubr.bf16.mxu0 0
      %5173 = vmatmul.mubr.bf16.gmra.mrb[0].mxu0 %v4942
      %v5174 = vpop.f32.mrb[0].mxu0
      %v5175 = vadd.f32 %v4874, %v5174
      %v5176 = vpop.f32.mrb[0].mxu0
      %v5177 = vpop.f32.mrb[0].mxu0
      %v5178 = vadd.f32 %v4874, %v5177
      %v5179 = vpop.f32.mrb[0].mxu0
      %5180 = vmatprep.mubr.bf16.mxu0 0
      %5181 = vmatmul.mubr.bf16.gmra.mrb[0].mxu0 %v4945
      %v5182 = vpop.f32.mrb[0].mxu0
      %v5183 = vadd.f32 %v4874, %v5182
      %v5184 = vpop.f32.mrb[0].mxu0
      %v5185 = vpop.f32.mrb[0].mxu0
      %v5186 = vadd.f32 %v4874, %v5185
      %v5187 = vpop.f32.mrb[0].mxu0
      %5188 = vmatprep.mubr.bf16.mxu0 0
      %5189 = vmatmul.mubr.bf16.gmra.mrb[0].mxu0 %v4948
      %v5190 = vpop.f32.mrb[0].mxu0
      %v5191 = vadd.f32 %v4874, %v5190
      %v5192 = vpop.f32.mrb[0].mxu0
      %v5193 = vpop.f32.mrb[0].mxu0
      %v5194 = vadd.f32 %v4874, %v5193
      %v5195 = vpop.f32.mrb[0].mxu0
      %5196 = vmatprep.mubr.bf16.mxu0 0
      %5197 = vmatmul.mubr.bf16.gmra.mrb[0].mxu0 %v4951
      %v5198 = vpop.f32.mrb[0].mxu0
      %v5199 = vadd.f32 %v4874, %v5198
      %v5200 = vpop.f32.mrb[0].mxu0
      %v5201 = vpop.f32.mrb[0].mxu0
      %v5202 = vadd.f32 %v4874, %v5201
      %v5203 = vpop.f32.mrb[0].mxu0
      %5204 = vmatprep.mubr.bf16.mxu0 0
      %5205 = vmatmul.mubr.bf16.gmra.mrb[0].mxu0 %v4954
      %v5206 = vpop.f32.mrb[0].mxu0
      %v5207 = vadd.f32 %v4874, %v5206
      %v5208 = vpop.f32.mrb[0].mxu0
      %v5209 = vpop.f32.mrb[0].mxu0
      %v5210 = vadd.f32 %v4874, %v5209
      %v5211 = vpop.f32.mrb[0].mxu0
      %5212 = vmatprep.mubr.bf16.mxu0 0
      %5213 = vmatmul.mubr.bf16.gmra.mrb[0].mxu0 %v4957
      %v5214 = vpop.f32.mrb[0].mxu0
      %v5215 = vadd.f32 %v4874, %v5214
      %v5216 = vpop.f32.mrb[0].mxu0
      %v5217 = vpop.f32.mrb[0].mxu0
      %v5218 = vadd.f32 %v4874, %v5217
      %v5219 = vpop.f32.mrb[0].mxu0
      %5220 = vmatprep.mubr.bf16.mxu0 0
      %5221 = vmatmul.mubr.bf16.gmra.mrb[0].mxu0 %v4960
      %v5222 = vpop.f32.mrb[0].mxu0
      %v5223 = vadd.f32 %v4874, %v5222
      %v5224 = vpop.f32.mrb[0].mxu0
      %v5225 = vpop.f32.mrb[0].mxu0
      %v5226 = vadd.f32 %v4874, %v5225
      %v5227 = vpop.f32.mrb[0].mxu0
      %5228 = vmatprep.mubr.bf16.mxu0 0
      %5229 = vmatmul.mubr.bf16.gmra.mrb[0].mxu0 %v4963
      %v5230 = vpop.f32.mrb[0].mxu0
      %v5231 = vadd.f32 %v4874, %v5230
      %v5232 = vpop.f32.mrb[0].mxu0
      %v5233 = vpop.f32.mrb[0].mxu0
      %v5234 = vadd.f32 %v4874, %v5233
      %v5235 = vpop.f32.mrb[0].mxu0
      %5236 = vmatprep.mubr.bf16.mxu0 0
      %5237 = vmatmul.mubr.bf16.gmra.mrb[0].mxu0 %v4966
      %v5238 = vpop.f32.mrb[0].mxu0
      %v5239 = vadd.f32 %v4874, %v5238
      %v5240 = vpop.f32.mrb[0].mxu0
      %v5241 = vpop.f32.mrb[0].mxu0
      %v5242 = vadd.f32 %v4874, %v5241
      %v5243 = vpop.f32.mrb[0].mxu0
      %5244 = vmatprep.mubr.bf16.mxu0 0
      %5245 = vmatmul.mubr.bf16.gmra.mrb[0].mxu0 %v4969
      %v5246 = vpop.f32.mrb[0].mxu0
      %v5247 = vadd.f32 %v4874, %v5246
      %v5248 = vpop.f32.mrb[0].mxu0
      %v5249 = vpop.f32.mrb[0].mxu0
      %v5250 = vadd.f32 %v4874, %v5249
      %v5251 = vpop.f32.mrb[0].mxu0
      %5252 = vmatprep.mubr.bf16.mxu0 0
      %5253 = vmatmul.mubr.bf16.gmra.mrb[0].mxu0 %v4972
      %v5254 = vpop.f32.mrb[0].mxu0
      %v5255 = vadd.f32 %v4874, %v5254
      %v5256 = vpop.f32.mrb[0].mxu0
      %v5257 = vpop.f32.mrb[0].mxu0
      %v5258 = vadd.f32 %v4874, %v5257
      %v5259 = vpop.f32.mrb[0].mxu0
      %5260 = vmatprep.mubr.bf16.mxu0 0
      %5261 = vmatmul.mubr.bf16.gmra.mrb[0].mxu0 %v4975
      %v5262 = vpop.f32.mrb[0].mxu0
      %v5263 = vadd.f32 %v4874, %v5262
      %v5264 = vpop.f32.mrb[0].mxu0
      %v5265 = vpop.f32.mrb[0].mxu0
      %v5266 = vadd.f32 %v4874, %v5265
      %v5267 = vpop.f32.mrb[0].mxu0
      %5268 = vdwg.mxu0
      %v5269 = vtanh.pop %v5015
      %v5270 = vtanh.pop %v5018
      %v5271 = vtanh.pop %v5023
      %v5272 = vtanh.pop %v5026
      %v5273 = vtanh.pop %v5031
      %v5274 = vtanh.pop %v5034
      %v5275 = vtanh.pop %v5039
      %v5276 = vtanh.pop %v5042
      %v5277 = vtanh.pop %v5047
      %v5278 = vtanh.pop %v5050
      %v5279 = vtanh.pop %v5055
      %v5280 = vtanh.pop %v5058
      %v5281 = vtanh.pop %v5063
      %v5282 = vtanh.pop %v5066
      %v5283 = vtanh.pop %v5071
      %v5284 = vtanh.pop %v5074
      %v5285 = vtanh.pop %v5079
      %v5286 = vtanh.pop %v5082
      %v5287 = vtanh.pop %v5087
      %v5288 = vtanh.pop %v5090
      %v5289 = vtanh.pop %v5095
      %v5290 = vtanh.pop %v5098
      %v5291 = vtanh.pop %v5103
      %v5292 = vtanh.pop %v5106
      %v5293 = vtanh.pop %v5111
      %v5294 = vtanh.pop %v5114
      %v5295 = vtanh.pop %v5119
      %v5296 = vtanh.pop %v5122
      %v5297 = vtanh.pop %v5127
      %v5298 = vtanh.pop %v5130
      %v5299 = vtanh.pop %v5135
      %v5300 = vtanh.pop %v5138
      %v5301 = vtanh.pop %v5143
      %v5302 = vtanh.pop %v5146
      %v5303 = vtanh.pop %v5151
      %v5304 = vtanh.pop %v5154
      %v5305 = vtanh.pop %v5159
      %v5306 = vtanh.pop %v5162
      %v5307 = vtanh.pop %v5167
      %v5308 = vtanh.pop %v5170
      %v5309 = vtanh.pop %v5175
      %v5310 = vtanh.pop %v5178
      %v5311 = vtanh.pop %v5183
      %v5312 = vtanh.pop %v5186
      %v5313 = vtanh.pop %v5191
      %v5314 = vtanh.pop %v5194
      %v5315 = vtanh.pop %v5199
      %v5316 = vtanh.pop %v5202
      %v5317 = vtanh.pop %v5207
      %v5318 = vtanh.pop %v5210
      %v5319 = vtanh.pop %v5215
      %v5320 = vtanh.pop %v5218
      %v5321 = vtanh.pop %v5223
      %v5322 = vtanh.pop %v5226
      %v5323 = vtanh.pop %v5231
      %v5324 = vtanh.pop %v5234
      %v5325 = vtanh.pop %v5239
      %v5326 = vtanh.pop %v5242
      %v5327 = vtanh.pop %v5247
      %v5328 = vtanh.pop %v5250
      %v5329 = vtanh.pop %v5255
      %v5330 = vtanh.pop %v5258
      %v5331 = vtanh.pop %v5263
      %v5332 = vtanh.pop %v5266
      %v5333 = vpack.c.bf16 %v5270, %v5269
      %v5334 = vpack.c.bf16 %v5272, %v5271
      %v5335 = vpack.c.bf16 %v5274, %v5273
      %v5336 = vpack.c.bf16 %v5276, %v5275
      %v5337 = vpack.c.bf16 %v5278, %v5277
      %v5338 = vpack.c.bf16 %v5280, %v5279
      %v5339 = vpack.c.bf16 %v5282, %v5281
      %v5340 = vpack.c.bf16 %v5284, %v5283
      %v5341 = vpack.c.bf16 %v5286, %v5285
      %v5342 = vpack.c.bf16 %v5288, %v5287
      %v5343 = vpack.c.bf16 %v5290, %v5289
      %v5344 = vpack.c.bf16 %v5292, %v5291
      %v5345 = vpack.c.bf16 %v5294, %v5293
      %v5346 = vpack.c.bf16 %v5296, %v5295
      %v5347 = vpack.c.bf16 %v5298, %v5297
      %v5348 = vpack.c.bf16 %v5300, %v5299
      %v5349 = vpack.c.bf16 %v5302, %v5301
      %v5350 = vpack.c.bf16 %v5304, %v5303
      %v5351 = vpack.c.bf16 %v5306, %v5305
      %v5352 = vpack.c.bf16 %v5308, %v5307
      %v5353 = vpack.c.bf16 %v5310, %v5309
      %v5354 = vpack.c.bf16 %v5312, %v5311
      %v5355 = vpack.c.bf16 %v5314, %v5313
      %v5356 = vpack.c.bf16 %v5316, %v5315
      %v5357 = vpack.c.bf16 %v5318, %v5317
      %v5358 = vpack.c.bf16 %v5320, %v5319
      %v5359 = vpack.c.bf16 %v5322, %v5321
      %v5360 = vpack.c.bf16 %v5324, %v5323
      %v5361 = vpack.c.bf16 %v5326, %v5325
      %v5362 = vpack.c.bf16 %v5328, %v5327
      %v5363 = vpack.c.bf16 %v5330, %v5329
      %v5364 = vpack.c.bf16 %v5332, %v5331
      %v5365 = vld [vmem:[%s13] sm:$0xf]
      %v5366 = vld [vmem:[%s13 + $0x4] sm:$0xf]
      %v5367 = vld [vmem:[%s13 + $0x8] sm:$0xf]
      %v5368 = vld [vmem:[%s13 + $0xc] sm:$0xf]
      %v5369 = vld [vmem:[%s13 + $0x10] sm:$0xf]
      %v5370 = vld [vmem:[%s13 + $0x14] sm:$0xf]
      %v5371 = vld [vmem:[%s13 + $0x18] sm:$0xf]
      %v5372 = vld [vmem:[%s13 + $0x1c] sm:$0xf]
      %v5373 = vld [vmem:[%s14] sm:$0x1]
      %v5375 = vlaneseq
      %v5376 = vshrl.u32 %v5375, 7
      %v5377 = vsub.s32 0, %v5376
      %v5378 = vrot.slane %v5373, %v5377
      %v5388 = vunpack.c.l.b16 %v5365
      %v5389 = vunpack.c.l.b16 %v5366
      %v5390 = vunpack.c.l.b16 %v5367
      %v5391 = vunpack.c.l.b16 %v5368
      %v5392 = vunpack.c.l.b16 %v5369
      %v5393 = vunpack.c.l.b16 %v5370
      %v5394 = vunpack.c.l.b16 %v5371
      %v5395 = vunpack.c.l.b16 %v5372
      %v5396 = vpack.c.b16 %v5389, %v5388
      %v5397 = vpack.c.b16 %v5391, %v5390
      %v5398 = vpack.c.b16 %v5393, %v5392
      %v5399 = vpack.c.b16 %v5395, %v5394
      %v5405 = vsel %vm3514, %v5333, 0
      %v5408 = vsel %vm3514, %v5334, 0
      %v5411 = vsel %vm3514, %v5335, 0
      %v5414 = vsel %vm3514, %v5336, 0
      %v5417 = vsel %vm3514, %v5337, 0
      %v5420 = vsel %vm3514, %v5338, 0
      %v5423 = vsel %vm3514, %v5339, 0
      %v5426 = vsel %vm3514, %v5340, 0
      %v5429 = vsel %vm3514, %v5341, 0
      %v5432 = vsel %vm3514, %v5342, 0
      %v5435 = vsel %vm3514, %v5343, 0
      %v5438 = vsel %vm3514, %v5344, 0
      %v5441 = vsel %vm3514, %v5345, 0
      %v5444 = vsel %vm3514, %v5346, 0
      %v5447 = vsel %vm3514, %v5347, 0
      %v5450 = vsel %vm3514, %v5348, 0
      %v5453 = vsel %vm3514, %v5349, 0
      %v5456 = vsel %vm3514, %v5350, 0
      %v5459 = vsel %vm3514, %v5351, 0
      %v5462 = vsel %vm3514, %v5352, 0
      %v5465 = vsel %vm3514, %v5353, 0
      %v5468 = vsel %vm3514, %v5354, 0
      %v5471 = vsel %vm3514, %v5355, 0
      %v5474 = vsel %vm3514, %v5356, 0
      %v5477 = vsel %vm3514, %v5357, 0
      %v5480 = vsel %vm3514, %v5358, 0
      %v5483 = vsel %vm3514, %v5359, 0
      %v5486 = vsel %vm3514, %v5360, 0
      %v5489 = vsel %vm3514, %v5361, 0
      %v5492 = vsel %vm3514, %v5362, 0
      %v5495 = vsel %vm3514, %v5363, 0
      %v5498 = vsel %vm3514, %v5364, 0
      %5500 = vmatprep.subr.bf16.mxu0 0
      %5501 = vmatpush1.bf16.msra.mxu0 %v5396
      %5502 = vmatprep.subr.bf16.mxu0 0
      %5503 = vmatpush1.bf16.msra.mxu0 %v5397
      %5504 = vmatprep.subr.bf16.mxu0 0
      %5505 = vmatpush1.bf16.msra.mxu0 %v5398
      %5506 = vmatprep.subr.bf16.mxu0 0
      %5507 = vmatpush1.bf16.msra.mxu0 %v5399
      %5508 = vmatprep.subr.bf16.mxu0 0
      %5509 = vmatpush1.bf16.msra.mxu0 0
      %5510 = vmatprep.subr.bf16.mxu0 0
      %5511 = vmatpush1.bf16.msra.mxu0 0
      %5512 = vmatprep.subr.bf16.mxu0 0
      %5513 = vmatpush1.bf16.msra.mxu0 0
      %5514 = vmatprep.subr.bf16.mxu0 0
      %5515 = vmatpush1.bf16.msra.mxu0 0
      %5516 = vmatprep.subr.bf16.mxu0 0
      %5517 = vmatpush1.bf16.msra.mxu0 0
      %5518 = vmatprep.subr.bf16.mxu0 0
      %5519 = vmatpush1.bf16.msra.mxu0 0
      %5520 = vmatprep.subr.bf16.mxu0 0
      %5521 = vmatpush1.bf16.msra.mxu0 0
      %5522 = vmatprep.subr.bf16.mxu0 0
      %5523 = vmatpush1.bf16.msra.mxu0 0
      %5524 = vmatprep.subr.bf16.mxu0 0
      %5525 = vmatpush1.bf16.msra.mxu0 0
      %5526 = vmatprep.subr.bf16.mxu0 0
      %5527 = vmatpush1.bf16.msra.mxu0 0
      %5528 = vmatprep.subr.bf16.mxu0 0
      %5529 = vmatpush1.bf16.msra.mxu0 0
      %5530 = vmatprep.subr.bf16.mxu0 0
      %5531 = vmatpush1.bf16.msra.mxu0 0
      %5532 = vmatprep.mubr.bf16.mxu0 0
      %5533 = vmatmul.mubr.bf16.gmra.mrb[0].mxu0 %v5405
      %v5534 = vpop.f32.mrb[0].mxu0
      %v5535 = vadd.f32 %v5378, %v5534
      %v5536 = vpop.f32.mrb[0].mxu0
      %v5537 = vpop.f32.mrb[0].mxu0
      %v5538 = vadd.f32 %v5378, %v5537
      %v5539 = vpop.f32.mrb[0].mxu0
      %5540 = vmatprep.mubr.bf16.mxu0 0
      %5541 = vmatmul.mubr.bf16.gmra.mrb[0].mxu0 %v5408
      %v5542 = vpop.f32.mrb[0].mxu0
      %v5543 = vadd.f32 %v5378, %v5542
      %v5544 = vpop.f32.mrb[0].mxu0
      %v5545 = vpop.f32.mrb[0].mxu0
      %v5546 = vadd.f32 %v5378, %v5545
      %v5547 = vpop.f32.mrb[0].mxu0
      %5548 = vmatprep.mubr.bf16.mxu0 0
      %5549 = vmatmul.mubr.bf16.gmra.mrb[0].mxu0 %v5411
      %v5550 = vpop.f32.mrb[0].mxu0
      %v5551 = vadd.f32 %v5378, %v5550
      %v5552 = vpop.f32.mrb[0].mxu0
      %v5553 = vpop.f32.mrb[0].mxu0
      %v5554 = vadd.f32 %v5378, %v5553
      %v5555 = vpop.f32.mrb[0].mxu0
      %5556 = vmatprep.mubr.bf16.mxu0 0
      %5557 = vmatmul.mubr.bf16.gmra.mrb[0].mxu0 %v5414
      %v5558 = vpop.f32.mrb[0].mxu0
      %v5559 = vadd.f32 %v5378, %v5558
      %v5560 = vpop.f32.mrb[0].mxu0
      %v5561 = vpop.f32.mrb[0].mxu0
      %v5562 = vadd.f32 %v5378, %v5561
      %v5563 = vpop.f32.mrb[0].mxu0
      %5564 = vmatprep.mubr.bf16.mxu0 0
      %5565 = vmatmul.mubr.bf16.gmra.mrb[0].mxu0 %v5417
      %v5566 = vpop.f32.mrb[0].mxu0
      %v5567 = vadd.f32 %v5378, %v5566
      %v5568 = vpop.f32.mrb[0].mxu0
      %v5569 = vpop.f32.mrb[0].mxu0
      %v5570 = vadd.f32 %v5378, %v5569
      %v5571 = vpop.f32.mrb[0].mxu0
      %5572 = vmatprep.mubr.bf16.mxu0 0
      %5573 = vmatmul.mubr.bf16.gmra.mrb[0].mxu0 %v5420
      %v5574 = vpop.f32.mrb[0].mxu0
      %v5575 = vadd.f32 %v5378, %v5574
      %v5576 = vpop.f32.mrb[0].mxu0
      %v5577 = vpop.f32.mrb[0].mxu0
      %v5578 = vadd.f32 %v5378, %v5577
      %v5579 = vpop.f32.mrb[0].mxu0
      %5580 = vmatprep.mubr.bf16.mxu0 0
      %5581 = vmatmul.mubr.bf16.gmra.mrb[0].mxu0 %v5423
      %v5582 = vpop.f32.mrb[0].mxu0
      %v5583 = vadd.f32 %v5378, %v5582
      %v5584 = vpop.f32.mrb[0].mxu0
      %v5585 = vpop.f32.mrb[0].mxu0
      %v5586 = vadd.f32 %v5378, %v5585
      %v5587 = vpop.f32.mrb[0].mxu0
      %5588 = vmatprep.mubr.bf16.mxu0 0
      %5589 = vmatmul.mubr.bf16.gmra.mrb[0].mxu0 %v5426
      %v5590 = vpop.f32.mrb[0].mxu0
      %v5591 = vadd.f32 %v5378, %v5590
      %v5592 = vpop.f32.mrb[0].mxu0
      %v5593 = vpop.f32.mrb[0].mxu0
      %v5594 = vadd.f32 %v5378, %v5593
      %v5595 = vpop.f32.mrb[0].mxu0
      %5596 = vmatprep.mubr.bf16.mxu0 0
      %5597 = vmatmul.mubr.bf16.gmra.mrb[0].mxu0 %v5429
      %v5598 = vpop.f32.mrb[0].mxu0
      %v5599 = vadd.f32 %v5378, %v5598
      %v5600 = vpop.f32.mrb[0].mxu0
      %v5601 = vpop.f32.mrb[0].mxu0
      %v5602 = vadd.f32 %v5378, %v5601
      %v5603 = vpop.f32.mrb[0].mxu0
      %5604 = vmatprep.mubr.bf16.mxu0 0
      %5605 = vmatmul.mubr.bf16.gmra.mrb[0].mxu0 %v5432
      %v5606 = vpop.f32.mrb[0].mxu0
      %v5607 = vadd.f32 %v5378, %v5606
      %v5608 = vpop.f32.mrb[0].mxu0
      %v5609 = vpop.f32.mrb[0].mxu0
      %v5610 = vadd.f32 %v5378, %v5609
      %v5611 = vpop.f32.mrb[0].mxu0
      %5612 = vmatprep.mubr.bf16.mxu0 0
      %5613 = vmatmul.mubr.bf16.gmra.mrb[0].mxu0 %v5435
      %v5614 = vpop.f32.mrb[0].mxu0
      %v5615 = vadd.f32 %v5378, %v5614
      %v5616 = vpop.f32.mrb[0].mxu0
      %v5617 = vpop.f32.mrb[0].mxu0
      %v5618 = vadd.f32 %v5378, %v5617
      %v5619 = vpop.f32.mrb[0].mxu0
      %5620 = vmatprep.mubr.bf16.mxu0 0
      %5621 = vmatmul.mubr.bf16.gmra.mrb[0].mxu0 %v5438
      %v5622 = vpop.f32.mrb[0].mxu0
      %v5623 = vadd.f32 %v5378, %v5622
      %v5624 = vpop.f32.mrb[0].mxu0
      %v5625 = vpop.f32.mrb[0].mxu0
      %v5626 = vadd.f32 %v5378, %v5625
      %v5627 = vpop.f32.mrb[0].mxu0
      %5628 = vmatprep.mubr.bf16.mxu0 0
      %5629 = vmatmul.mubr.bf16.gmra.mrb[0].mxu0 %v5441
      %v5630 = vpop.f32.mrb[0].mxu0
      %v5631 = vadd.f32 %v5378, %v5630
      %v5632 = vpop.f32.mrb[0].mxu0
      %v5633 = vpop.f32.mrb[0].mxu0
      %v5634 = vadd.f32 %v5378, %v5633
      %v5635 = vpop.f32.mrb[0].mxu0
      %5636 = vmatprep.mubr.bf16.mxu0 0
      %5637 = vmatmul.mubr.bf16.gmra.mrb[0].mxu0 %v5444
      %v5638 = vpop.f32.mrb[0].mxu0
      %v5639 = vadd.f32 %v5378, %v5638
      %v5640 = vpop.f32.mrb[0].mxu0
      %v5641 = vpop.f32.mrb[0].mxu0
      %v5642 = vadd.f32 %v5378, %v5641
      %v5643 = vpop.f32.mrb[0].mxu0
      %5644 = vmatprep.mubr.bf16.mxu0 0
      %5645 = vmatmul.mubr.bf16.gmra.mrb[0].mxu0 %v5447
      %v5646 = vpop.f32.mrb[0].mxu0
      %v5647 = vadd.f32 %v5378, %v5646
      %v5648 = vpop.f32.mrb[0].mxu0
      %v5649 = vpop.f32.mrb[0].mxu0
      %v5650 = vadd.f32 %v5378, %v5649
      %v5651 = vpop.f32.mrb[0].mxu0
      %5652 = vmatprep.mubr.bf16.mxu0 0
      %5653 = vmatmul.mubr.bf16.gmra.mrb[0].mxu0 %v5450
      %v5654 = vpop.f32.mrb[0].mxu0
      %v5655 = vadd.f32 %v5378, %v5654
      %v5656 = vpop.f32.mrb[0].mxu0
      %v5657 = vpop.f32.mrb[0].mxu0
      %v5658 = vadd.f32 %v5378, %v5657
      %v5659 = vpop.f32.mrb[0].mxu0
      %5660 = vmatprep.mubr.bf16.mxu0 0
      %5661 = vmatmul.mubr.bf16.gmra.mrb[0].mxu0 %v5453
      %v5662 = vpop.f32.mrb[0].mxu0
      %v5663 = vadd.f32 %v5378, %v5662
      %v5664 = vpop.f32.mrb[0].mxu0
      %v5665 = vpop.f32.mrb[0].mxu0
      %v5666 = vadd.f32 %v5378, %v5665
      %v5667 = vpop.f32.mrb[0].mxu0
      %5668 = vmatprep.mubr.bf16.mxu0 0
      %5669 = vmatmul.mubr.bf16.gmra.mrb[0].mxu0 %v5456
      %v5670 = vpop.f32.mrb[0].mxu0
      %v5671 = vadd.f32 %v5378, %v5670
      %v5672 = vpop.f32.mrb[0].mxu0
      %v5673 = vpop.f32.mrb[0].mxu0
      %v5674 = vadd.f32 %v5378, %v5673
      %v5675 = vpop.f32.mrb[0].mxu0
      %5676 = vmatprep.mubr.bf16.mxu0 0
      %5677 = vmatmul.mubr.bf16.gmra.mrb[0].mxu0 %v5459
      %v5678 = vpop.f32.mrb[0].mxu0
      %v5679 = vadd.f32 %v5378, %v5678
      %v5680 = vpop.f32.mrb[0].mxu0
      %v5681 = vpop.f32.mrb[0].mxu0
      %v5682 = vadd.f32 %v5378, %v5681
      %v5683 = vpop.f32.mrb[0].mxu0
      %5684 = vmatprep.mubr.bf16.mxu0 0
      %5685 = vmatmul.mubr.bf16.gmra.mrb[0].mxu0 %v5462
      %v5686 = vpop.f32.mrb[0].mxu0
      %v5687 = vadd.f32 %v5378, %v5686
      %v5688 = vpop.f32.mrb[0].mxu0
      %v5689 = vpop.f32.mrb[0].mxu0
      %v5690 = vadd.f32 %v5378, %v5689
      %v5691 = vpop.f32.mrb[0].mxu0
      %5692 = vmatprep.mubr.bf16.mxu0 0
      %5693 = vmatmul.mubr.bf16.gmra.mrb[0].mxu0 %v5465
      %v5694 = vpop.f32.mrb[0].mxu0
      %v5695 = vadd.f32 %v5378, %v5694
      %v5696 = vpop.f32.mrb[0].mxu0
      %v5697 = vpop.f32.mrb[0].mxu0
      %v5698 = vadd.f32 %v5378, %v5697
      %v5699 = vpop.f32.mrb[0].mxu0
      %5700 = vmatprep.mubr.bf16.mxu0 0
      %5701 = vmatmul.mubr.bf16.gmra.mrb[0].mxu0 %v5468
      %v5702 = vpop.f32.mrb[0].mxu0
      %v5703 = vadd.f32 %v5378, %v5702
      %v5704 = vpop.f32.mrb[0].mxu0
      %v5705 = vpop.f32.mrb[0].mxu0
      %v5706 = vadd.f32 %v5378, %v5705
      %v5707 = vpop.f32.mrb[0].mxu0
      %5708 = vmatprep.mubr.bf16.mxu0 0
      %5709 = vmatmul.mubr.bf16.gmra.mrb[0].mxu0 %v5471
      %v5710 = vpop.f32.mrb[0].mxu0
      %v5711 = vadd.f32 %v5378, %v5710
      %v5712 = vpop.f32.mrb[0].mxu0
      %v5713 = vpop.f32.mrb[0].mxu0
      %v5714 = vadd.f32 %v5378, %v5713
      %v5715 = vpop.f32.mrb[0].mxu0
      %5716 = vmatprep.mubr.bf16.mxu0 0
      %5717 = vmatmul.mubr.bf16.gmra.mrb[0].mxu0 %v5474
      %v5718 = vpop.f32.mrb[0].mxu0
      %v5719 = vadd.f32 %v5378, %v5718
      %v5720 = vpop.f32.mrb[0].mxu0
      %v5721 = vpop.f32.mrb[0].mxu0
      %v5722 = vadd.f32 %v5378, %v5721
      %v5723 = vpop.f32.mrb[0].mxu0
      %5724 = vmatprep.mubr.bf16.mxu0 0
      %5725 = vmatmul.mubr.bf16.gmra.mrb[0].mxu0 %v5477
      %v5726 = vpop.f32.mrb[0].mxu0
      %v5727 = vadd.f32 %v5378, %v5726
      %v5728 = vpop.f32.mrb[0].mxu0
      %v5729 = vpop.f32.mrb[0].mxu0
      %v5730 = vadd.f32 %v5378, %v5729
      %v5731 = vpop.f32.mrb[0].mxu0
      %5732 = vmatprep.mubr.bf16.mxu0 0
      %5733 = vmatmul.mubr.bf16.gmra.mrb[0].mxu0 %v5480
      %v5734 = vpop.f32.mrb[0].mxu0
      %v5735 = vadd.f32 %v5378, %v5734
      %v5736 = vpop.f32.mrb[0].mxu0
      %v5737 = vpop.f32.mrb[0].mxu0
      %v5738 = vadd.f32 %v5378, %v5737
      %v5739 = vpop.f32.mrb[0].mxu0
      %5740 = vmatprep.mubr.bf16.mxu0 0
      %5741 = vmatmul.mubr.bf16.gmra.mrb[0].mxu0 %v5483
      %v5742 = vpop.f32.mrb[0].mxu0
      %v5743 = vadd.f32 %v5378, %v5742
      %v5744 = vpop.f32.mrb[0].mxu0
      %v5745 = vpop.f32.mrb[0].mxu0
      %v5746 = vadd.f32 %v5378, %v5745
      %v5747 = vpop.f32.mrb[0].mxu0
      %5748 = vmatprep.mubr.bf16.mxu0 0
      %5749 = vmatmul.mubr.bf16.gmra.mrb[0].mxu0 %v5486
      %v5750 = vpop.f32.mrb[0].mxu0
      %v5751 = vadd.f32 %v5378, %v5750
      %v5752 = vpop.f32.mrb[0].mxu0
      %v5753 = vpop.f32.mrb[0].mxu0
      %v5754 = vadd.f32 %v5378, %v5753
      %v5755 = vpop.f32.mrb[0].mxu0
      %5756 = vmatprep.mubr.bf16.mxu0 0
      %5757 = vmatmul.mubr.bf16.gmra.mrb[0].mxu0 %v5489
      %v5758 = vpop.f32.mrb[0].mxu0
      %v5759 = vadd.f32 %v5378, %v5758
      %v5760 = vpop.f32.mrb[0].mxu0
      %v5761 = vpop.f32.mrb[0].mxu0
      %v5762 = vadd.f32 %v5378, %v5761
      %v5763 = vpop.f32.mrb[0].mxu0
      %5764 = vmatprep.mubr.bf16.mxu0 0
      %5765 = vmatmul.mubr.bf16.gmra.mrb[0].mxu0 %v5492
      %v5766 = vpop.f32.mrb[0].mxu0
      %v5767 = vadd.f32 %v5378, %v5766
      %v5768 = vpop.f32.mrb[0].mxu0
      %v5769 = vpop.f32.mrb[0].mxu0
      %v5770 = vadd.f32 %v5378, %v5769
      %v5771 = vpop.f32.mrb[0].mxu0
      %5772 = vmatprep.mubr.bf16.mxu0 0
      %5773 = vmatmul.mubr.bf16.gmra.mrb[0].mxu0 %v5495
      %v5774 = vpop.f32.mrb[0].mxu0
      %v5775 = vadd.f32 %v5378, %v5774
      %v5776 = vpop.f32.mrb[0].mxu0
      %v5777 = vpop.f32.mrb[0].mxu0
      %v5778 = vadd.f32 %v5378, %v5777
      %v5779 = vpop.f32.mrb[0].mxu0
      %5780 = vmatprep.mubr.bf16.mxu0 0
      %5781 = vmatmul.mubr.bf16.gmra.mrb[0].mxu0 %v5498
      %v5782 = vpop.f32.mrb[0].mxu0
      %v5783 = vadd.f32 %v5378, %v5782
      %v5784 = vpop.f32.mrb[0].mxu0
      %v5785 = vpop.f32.mrb[0].mxu0
      %v5786 = vadd.f32 %v5378, %v5785
      %v5787 = vpop.f32.mrb[0].mxu0
      %5788 = vdwg.mxu0
      %v5789 = vtanh.pop %v5535
      %v5790 = vtanh.pop %v5538
      %v5791 = vtanh.pop %v5543
      %v5792 = vtanh.pop %v5546
      %v5793 = vtanh.pop %v5551
      %v5794 = vtanh.pop %v5554
      %v5795 = vtanh.pop %v5559
      %v5796 = vtanh.pop %v5562
      %v5797 = vtanh.pop %v5567
      %v5798 = vtanh.pop %v5570
      %v5799 = vtanh.pop %v5575
      %v5800 = vtanh.pop %v5578
      %v5801 = vtanh.pop %v5583
      %v5802 = vtanh.pop %v5586
      %v5803 = vtanh.pop %v5591
      %v5804 = vtanh.pop %v5594
      %v5805 = vtanh.pop %v5599
      %v5806 = vtanh.pop %v5602
      %v5807 = vtanh.pop %v5607
      %v5808 = vtanh.pop %v5610
      %v5809 = vtanh.pop %v5615
      %v5810 = vtanh.pop %v5618
      %v5811 = vtanh.pop %v5623
      %v5812 = vtanh.pop %v5626
      %v5813 = vtanh.pop %v5631
      %v5814 = vtanh.pop %v5634
      %v5815 = vtanh.pop %v5639
      %v5816 = vtanh.pop %v5642
      %v5817 = vtanh.pop %v5647
      %v5818 = vtanh.pop %v5650
      %v5819 = vtanh.pop %v5655
      %v5820 = vtanh.pop %v5658
      %v5821 = vtanh.pop %v5663
      %v5822 = vtanh.pop %v5666
      %v5823 = vtanh.pop %v5671
      %v5824 = vtanh.pop %v5674
      %v5825 = vtanh.pop %v5679
      %v5826 = vtanh.pop %v5682
      %v5827 = vtanh.pop %v5687
      %v5828 = vtanh.pop %v5690
      %v5829 = vtanh.pop %v5695
      %v5830 = vtanh.pop %v5698
      %v5831 = vtanh.pop %v5703
      %v5832 = vtanh.pop %v5706
      %v5833 = vtanh.pop %v5711
      %v5834 = vtanh.pop %v5714
      %v5835 = vtanh.pop %v5719
      %v5836 = vtanh.pop %v5722
      %v5837 = vtanh.pop %v5727
      %v5838 = vtanh.pop %v5730
      %v5839 = vtanh.pop %v5735
      %v5840 = vtanh.pop %v5738
      %v5841 = vtanh.pop %v5743
      %v5842 = vtanh.pop %v5746
      %v5843 = vtanh.pop %v5751
      %v5844 = vtanh.pop %v5754
      %v5845 = vtanh.pop %v5759
      %v5846 = vtanh.pop %v5762
      %v5847 = vtanh.pop %v5767
      %v5848 = vtanh.pop %v5770
      %v5849 = vtanh.pop %v5775
      %v5850 = vtanh.pop %v5778
      %v5851 = vtanh.pop %v5783
      %v5852 = vtanh.pop %v5786
      %v5853 = vpack.c.bf16 %v5790, %v5789
      %v5854 = vpack.c.bf16 %v5792, %v5791
      %v5855 = vpack.c.bf16 %v5794, %v5793
      %v5856 = vpack.c.bf16 %v5796, %v5795
      %v5857 = vpack.c.bf16 %v5798, %v5797
      %v5858 = vpack.c.bf16 %v5800, %v5799
      %v5859 = vpack.c.bf16 %v5802, %v5801
      %v5860 = vpack.c.bf16 %v5804, %v5803
      %v5861 = vpack.c.bf16 %v5806, %v5805
      %v5862 = vpack.c.bf16 %v5808, %v5807
      %v5863 = vpack.c.bf16 %v5810, %v5809
      %v5864 = vpack.c.bf16 %v5812, %v5811
      %v5865 = vpack.c.bf16 %v5814, %v5813
      %v5866 = vpack.c.bf16 %v5816, %v5815
      %v5867 = vpack.c.bf16 %v5818, %v5817
      %v5868 = vpack.c.bf16 %v5820, %v5819
      %v5869 = vpack.c.bf16 %v5822, %v5821
      %v5870 = vpack.c.bf16 %v5824, %v5823
      %v5871 = vpack.c.bf16 %v5826, %v5825
      %v5872 = vpack.c.bf16 %v5828, %v5827
      %v5873 = vpack.c.bf16 %v5830, %v5829
      %v5874 = vpack.c.bf16 %v5832, %v5831
      %v5875 = vpack.c.bf16 %v5834, %v5833
      %v5876 = vpack.c.bf16 %v5836, %v5835
      %v5877 = vpack.c.bf16 %v5838, %v5837
      %v5878 = vpack.c.bf16 %v5840, %v5839
      %v5879 = vpack.c.bf16 %v5842, %v5841
      %v5880 = vpack.c.bf16 %v5844, %v5843
      %v5881 = vpack.c.bf16 %v5846, %v5845
      %v5882 = vpack.c.bf16 %v5848, %v5847
      %v5883 = vpack.c.bf16 %v5850, %v5849
      %v5884 = vpack.c.bf16 %v5852, %v5851
      %v5885 = vld [vmem:[%s15] sm:$0xff]
      %v5886 = vld [vmem:[%s15 + $0x8] sm:$0xff]
      %v5887 = vld [vmem:[%s15 + $0x10] sm:$0xff]
      %v5888 = vld [vmem:[%s15 + $0x18] sm:$0xf]
      %v5889 = vld [vmem:[%s15 + $0x1c] sm:$0xff]
      %v5890 = vld [vmem:[%s15 + $0x24] sm:$0xff]
      %v5891 = vld [vmem:[%s15 + $0x2c] sm:$0xff]
      %v5892 = vld [vmem:[%s15 + $0x34] sm:$0xf]
      %v5893 = vld [vmem:[%s15 + $0x38] sm:$0xff]
      %v5894 = vld [vmem:[%s15 + $0x40] sm:$0xff]
      %v5895 = vld [vmem:[%s15 + $0x48] sm:$0xff]
      %v5896 = vld [vmem:[%s15 + $0x50] sm:$0xf]
      %v5897 = vld [vmem:[%s15 + $0x54] sm:$0xff]
      %v5898 = vld [vmem:[%s15 + $0x5c] sm:$0xff]
      %v5899 = vld [vmem:[%s15 + $0x64] sm:$0xff]
      %v5900 = vld [vmem:[%s15 + $0x6c] sm:$0xf]
      %v5901 = vld [vmem:[%s15 + $0x70] sm:$0xff]
      %v5902 = vld [vmem:[%s15 + $0x78] sm:$0xff]
      %v5903 = vld [vmem:[%s15 + $0x80] sm:$0xff]
      %v5904 = vld [vmem:[%s15 + $0x88] sm:$0xf]
      %v5905 = vld [vmem:[%s15 + $0x8c] sm:$0xff]
      %v5906 = vld [vmem:[%s15 + $0x94] sm:$0xff]
      %v5907 = vld [vmem:[%s15 + $0x9c] sm:$0xff]
      %v5908 = vld [vmem:[%s15 + $0xa4] sm:$0xf]
      %v5909 = vld [vmem:[%s15 + $0xa8] sm:$0xff]
      %v5910 = vld [vmem:[%s15 + $0xb0] sm:$0xff]
      %v5911 = vld [vmem:[%s15 + $0xb8] sm:$0xff]
      %v5912 = vld [vmem:[%s15 + $0xc0] sm:$0xf]
      %v5913 = vld [vmem:[%s15 + $0xc4] sm:$0xff]
      %v5914 = vld [vmem:[%s15 + $0xcc] sm:$0xff]
      %v5915 = vld [vmem:[%s15 + $0xd4] sm:$0xff]
      %v5916 = vld [vmem:[%s15 + $0xdc] sm:$0xf]
      %v5917 = vld [vmem:[%s15 + $0xe0] sm:$0xff]
      %v5918 = vld [vmem:[%s15 + $0xe8] sm:$0xff]
      %v5919 = vld [vmem:[%s15 + $0xf0] sm:$0xff]
      %v5920 = vld [vmem:[%s15 + $0xf8] sm:$0xf]
      %v5921 = vld [vmem:[%s15 + $0xfc] sm:$0xff]
      %v5922 = vld [vmem:[%s15 + $0x104] sm:$0xff]
      %v5923 = vld [vmem:[%s15 + $0x10c] sm:$0xff]
      %v5924 = vld [vmem:[%s15 + $0x114] sm:$0xf]
      %v5925 = vld [vmem:[%s15 + $0x118] sm:$0xff]
      %v5926 = vld [vmem:[%s15 + $0x120] sm:$0xff]
      %v5927 = vld [vmem:[%s15 + $0x128] sm:$0xff]
      %v5928 = vld [vmem:[%s15 + $0x130] sm:$0xf]
      %v5929 = vld [vmem:[%s15 + $0x134] sm:$0xff]
      %v5930 = vld [vmem:[%s15 + $0x13c] sm:$0xff]
      %v5931 = vld [vmem:[%s15 + $0x144] sm:$0xff]
      %v5932 = vld [vmem:[%s15 + $0x14c] sm:$0xf]
      %v5933 = vld [vmem:[%s15 + $0x150] sm:$0xff]
      %v5934 = vld [vmem:[%s15 + $0x158] sm:$0xff]
      %v5935 = vld [vmem:[%s15 + $0x160] sm:$0xff]
      %v5936 = vld [vmem:[%s15 + $0x168] sm:$0xf]
      %v5937 = vld [vmem:[%s15 + $0x16c] sm:$0xff]
      %v5938 = vld [vmem:[%s15 + $0x174] sm:$0xff]
      %v5939 = vld [vmem:[%s15 + $0x17c] sm:$0xff]
      %v5940 = vld [vmem:[%s15 + $0x184] sm:$0xf]
      %v5941 = vld [vmem:[%s15 + $0x188] sm:$0xff]
      %v5942 = vld [vmem:[%s15 + $0x190] sm:$0xff]
      %v5943 = vld [vmem:[%s15 + $0x198] sm:$0xff]
      %v5944 = vld [vmem:[%s15 + $0x1a0] sm:$0xf]
      %v5945 = vld [vmem:[%s15 + $0x1a4] sm:$0xff]
      %v5946 = vld [vmem:[%s15 + $0x1ac] sm:$0xff]
      %v5947 = vld [vmem:[%s15 + $0x1b4] sm:$0xff]
      %v5948 = vld [vmem:[%s15 + $0x1bc] sm:$0xf]
      %v5949 = vld [vmem:[%s16] sm:$0x7f]
      %v5951 = vlaneseq
      %v5952 = vshrl.u32 %v5951, 7
      %v5953 = vsub.s32 0, %v5952
      %v5954 = vrot.slane %v5949, %v5953
      %v5955 = vlaneseq
      %v5956 = vshrl.u32 %v5955, 7
      %v5957 = vsub.s32 1, %v5956
      %v5958 = vrot.slane %v5949, %v5957
      %v5959 = vlaneseq
      %v5960 = vshrl.u32 %v5959, 7
      %v5961 = vsub.s32 2, %v5960
      %v5962 = vrot.slane %v5949, %v5961
      %v5963 = vlaneseq
      %v5964 = vshrl.u32 %v5963, 7
      %v5965 = vsub.s32 3, %v5964
      %v5966 = vrot.slane %v5949, %v5965
      %v5967 = vlaneseq
      %v5968 = vshrl.u32 %v5967, 7
      %v5969 = vsub.s32 4, %v5968
      %v5970 = vrot.slane %v5949, %v5969
      %v5971 = vlaneseq
      %v5972 = vshrl.u32 %v5971, 7
      %v5973 = vsub.s32 5, %v5972
      %v5974 = vrot.slane %v5949, %v5973
      %v5975 = vlaneseq
      %v5976 = vshrl.u32 %v5975, 7
      %v5977 = vsub.s32 6, %v5976
      %v5978 = vrot.slane %v5949, %v5977
      %v6050 = vunpack.c.l.b16 %v5885
      %v6051 = vunpack.c.h.b16 %v5885
      %v6052 = vunpack.c.l.b16 %v5886
      %v6053 = vunpack.c.h.b16 %v5886
      %v6054 = vunpack.c.l.b16 %v5887
      %v6055 = vunpack.c.h.b16 %v5887
      %v6056 = vunpack.c.l.b16 %v5888
      %v6057 = vunpack.c.l.b16 %v5889
      %v6058 = vunpack.c.h.b16 %v5889
      %v6059 = vunpack.c.l.b16 %v5890
      %v6060 = vunpack.c.h.b16 %v5890
      %v6061 = vunpack.c.l.b16 %v5891
      %v6062 = vunpack.c.h.b16 %v5891
      %v6063 = vunpack.c.l.b16 %v5892
      %v6064 = vunpack.c.l.b16 %v5893
      %v6065 = vunpack.c.h.b16 %v5893
      %v6066 = vunpack.c.l.b16 %v5894
      %v6067 = vunpack.c.h.b16 %v5894
      %v6068 = vunpack.c.l.b16 %v5895
      %v6069 = vunpack.c.h.b16 %v5895
      %v6070 = vunpack.c.l.b16 %v5896
      %v6071 = vunpack.c.l.b16 %v5897
      %v6072 = vunpack.c.h.b16 %v5897
      %v6073 = vunpack.c.l.b16 %v5898
      %v6074 = vunpack.c.h.b16 %v5898
      %v6075 = vunpack.c.l.b16 %v5899
      %v6076 = vunpack.c.h.b16 %v5899
      %v6077 = vunpack.c.l.b16 %v5900
      %v6078 = vunpack.c.l.b16 %v5901
      %v6079 = vunpack.c.h.b16 %v5901
      %v6080 = vunpack.c.l.b16 %v5902
      %v6081 = vunpack.c.h.b16 %v5902
      %v6082 = vunpack.c.l.b16 %v5903
      %v6083 = vunpack.c.h.b16 %v5903
      %v6084 = vunpack.c.l.b16 %v5904
      %v6085 = vunpack.c.l.b16 %v5905
      %v6086 = vunpack.c.h.b16 %v5905
      %v6087 = vunpack.c.l.b16 %v5906
      %v6088 = vunpack.c.h.b16 %v5906
      %v6089 = vunpack.c.l.b16 %v5907
      %v6090 = vunpack.c.h.b16 %v5907
      %v6091 = vunpack.c.l.b16 %v5908
      %v6092 = vunpack.c.l.b16 %v5909
      %v6093 = vunpack.c.h.b16 %v5909
      %v6094 = vunpack.c.l.b16 %v5910
      %v6095 = vunpack.c.h.b16 %v5910
      %v6096 = vunpack.c.l.b16 %v5911
      %v6097 = vunpack.c.h.b16 %v5911
      %v6098 = vunpack.c.l.b16 %v5912
      %v6099 = vunpack.c.l.b16 %v5913
      %v6100 = vunpack.c.h.b16 %v5913
      %v6101 = vunpack.c.l.b16 %v5914
      %v6102 = vunpack.c.h.b16 %v5914
      %v6103 = vunpack.c.l.b16 %v5915
      %v6104 = vunpack.c.h.b16 %v5915
      %v6105 = vunpack.c.l.b16 %v5916
      %v6106 = vunpack.c.l.b16 %v5917
      %v6107 = vunpack.c.h.b16 %v5917
      %v6108 = vunpack.c.l.b16 %v5918
      %v6109 = vunpack.c.h.b16 %v5918
      %v6110 = vunpack.c.l.b16 %v5919
      %v6111 = vunpack.c.h.b16 %v5919
      %v6112 = vunpack.c.l.b16 %v5920
      %v6113 = vunpack.c.l.b16 %v5921
      %v6114 = vunpack.c.h.b16 %v5921
      %v6115 = vunpack.c.l.b16 %v5922
      %v6116 = vunpack.c.h.b16 %v5922
      %v6117 = vunpack.c.l.b16 %v5923
      %v6118 = vunpack.c.h.b16 %v5923
      %v6119 = vunpack.c.l.b16 %v5924
      %v6120 = vunpack.c.l.b16 %v5925
      %v6121 = vunpack.c.h.b16 %v5925
      %v6122 = vunpack.c.l.b16 %v5926
      %v6123 = vunpack.c.h.b16 %v5926
      %v6124 = vunpack.c.l.b16 %v5927
      %v6125 = vunpack.c.h.b16 %v5927
      %v6126 = vunpack.c.l.b16 %v5928
      %v6127 = vunpack.c.l.b16 %v5929
      %v6128 = vunpack.c.h.b16 %v5929
      %v6129 = vunpack.c.l.b16 %v5930
      %v6130 = vunpack.c.h.b16 %v5930
      %v6131 = vunpack.c.l.b16 %v5931
      %v6132 = vunpack.c.h.b16 %v5931
      %v6133 = vunpack.c.l.b16 %v5932
      %v6134 = vunpack.c.l.b16 %v5933
      %v6135 = vunpack.c.h.b16 %v5933
      %v6136 = vunpack.c.l.b16 %v5934
      %v6137 = vunpack.c.h.b16 %v5934
      %v6138 = vunpack.c.l.b16 %v5935
      %v6139 = vunpack.c.h.b16 %v5935
      %v6140 = vunpack.c.l.b16 %v5936
      %v6141 = vunpack.c.l.b16 %v5937
      %v6142 = vunpack.c.h.b16 %v5937
      %v6143 = vunpack.c.l.b16 %v5938
      %v6144 = vunpack.c.h.b16 %v5938
      %v6145 = vunpack.c.l.b16 %v5939
      %v6146 = vunpack.c.h.b16 %v5939
      %v6147 = vunpack.c.l.b16 %v5940
      %v6148 = vunpack.c.l.b16 %v5941
      %v6149 = vunpack.c.h.b16 %v5941
      %v6150 = vunpack.c.l.b16 %v5942
      %v6151 = vunpack.c.h.b16 %v5942
      %v6152 = vunpack.c.l.b16 %v5943
      %v6153 = vunpack.c.h.b16 %v5943
      %v6154 = vunpack.c.l.b16 %v5944
      %v6155 = vunpack.c.l.b16 %v5945
      %v6156 = vunpack.c.h.b16 %v5945
      %v6157 = vunpack.c.l.b16 %v5946
      %v6158 = vunpack.c.h.b16 %v5946
      %v6159 = vunpack.c.l.b16 %v5947
      %v6160 = vunpack.c.h.b16 %v5947
      %v6161 = vunpack.c.l.b16 %v5948
      %v6162 = vpack.c.b16 %v6057, %v6050
      %v6163 = vpack.c.b16 %v6058, %v6051
      %v6164 = vpack.c.b16 %v6059, %v6052
      %v6165 = vpack.c.b16 %v6060, %v6053
      %v6166 = vpack.c.b16 %v6061, %v6054
      %v6167 = vpack.c.b16 %v6062, %v6055
      %v6168 = vpack.c.b16 %v6063, %v6056
      %v6169 = vpack.c.b16 %v6071, %v6064
      %v6170 = vpack.c.b16 %v6072, %v6065
      %v6171 = vpack.c.b16 %v6073, %v6066
      %v6172 = vpack.c.b16 %v6074, %v6067
      %v6173 = vpack.c.b16 %v6075, %v6068
      %v6174 = vpack.c.b16 %v6076, %v6069
      %v6175 = vpack.c.b16 %v6077, %v6070
      %v6176 = vpack.c.b16 %v6085, %v6078
      %v6177 = vpack.c.b16 %v6086, %v6079
      %v6178 = vpack.c.b16 %v6087, %v6080
      %v6179 = vpack.c.b16 %v6088, %v6081
      %v6180 = vpack.c.b16 %v6089, %v6082
      %v6181 = vpack.c.b16 %v6090, %v6083
      %v6182 = vpack.c.b16 %v6091, %v6084
      %v6183 = vpack.c.b16 %v6099, %v6092
      %v6184 = vpack.c.b16 %v6100, %v6093
      %v6185 = vpack.c.b16 %v6101, %v6094
      %v6186 = vpack.c.b16 %v6102, %v6095
      %v6187 = vpack.c.b16 %v6103, %v6096
      %v6188 = vpack.c.b16 %v6104, %v6097
      %v6189 = vpack.c.b16 %v6105, %v6098
      %v6190 = vpack.c.b16 %v6113, %v6106
      %v6191 = vpack.c.b16 %v6114, %v6107
      %v6192 = vpack.c.b16 %v6115, %v6108
      %v6193 = vpack.c.b16 %v6116, %v6109
      %v6194 = vpack.c.b16 %v6117, %v6110
      %v6195 = vpack.c.b16 %v6118, %v6111
      %v6196 = vpack.c.b16 %v6119, %v6112
      %v6197 = vpack.c.b16 %v6127, %v6120
      %v6198 = vpack.c.b16 %v6128, %v6121
      %v6199 = vpack.c.b16 %v6129, %v6122
      %v6200 = vpack.c.b16 %v6130, %v6123
      %v6201 = vpack.c.b16 %v6131, %v6124
      %v6202 = vpack.c.b16 %v6132, %v6125
      %v6203 = vpack.c.b16 %v6133, %v6126
      %v6204 = vpack.c.b16 %v6141, %v6134
      %v6205 = vpack.c.b16 %v6142, %v6135
      %v6206 = vpack.c.b16 %v6143, %v6136
      %v6207 = vpack.c.b16 %v6144, %v6137
      %v6208 = vpack.c.b16 %v6145, %v6138
      %v6209 = vpack.c.b16 %v6146, %v6139
      %v6210 = vpack.c.b16 %v6147, %v6140
      %v6211 = vpack.c.b16 %v6155, %v6148
      %v6212 = vpack.c.b16 %v6156, %v6149
      %v6213 = vpack.c.b16 %v6157, %v6150
      %v6214 = vpack.c.b16 %v6158, %v6151
      %v6215 = vpack.c.b16 %v6159, %v6152
      %v6216 = vpack.c.b16 %v6160, %v6153
      %v6217 = vpack.c.b16 %v6161, %v6154
      %6274 = vmatprep.subr.bf16.mxu0 %v6163
      %6275 = vmatpush1.bf16.msra.mxu0 %v6162
      %6276 = vmatprep.subr.bf16.mxu0 %v6170
      %6277 = vmatpush1.bf16.msra.mxu0 %v6169
      %6278 = vmatprep.subr.bf16.mxu0 %v6177
      %6279 = vmatpush1.bf16.msra.mxu0 %v6176
      %6280 = vmatprep.subr.bf16.mxu0 %v6184
      %6281 = vmatpush1.bf16.msra.mxu0 %v6183
      %6282 = vmatprep.subr.bf16.mxu0 %v6191
      %6283 = vmatpush1.bf16.msra.mxu0 %v6190
      %6284 = vmatprep.subr.bf16.mxu0 %v6198
      %6285 = vmatpush1.bf16.msra.mxu0 %v6197
      %6286 = vmatprep.subr.bf16.mxu0 %v6205
      %6287 = vmatpush1.bf16.msra.mxu0 %v6204
      %6288 = vmatprep.subr.bf16.mxu0 %v6212
      %6289 = vmatpush1.bf16.msra.mxu0 %v6211
      %6290 = vmatprep.subr.bf16.mxu0 0
      %6291 = vmatpush1.bf16.msra.mxu0 0
      %6292 = vmatprep.subr.bf16.mxu0 0
      %6293 = vmatpush1.bf16.msra.mxu0 0
      %6294 = vmatprep.subr.bf16.mxu0 0
      %6295 = vmatpush1.bf16.msra.mxu0 0
      %6296 = vmatprep.subr.bf16.mxu0 0
      %6297 = vmatpush1.bf16.msra.mxu0 0
      %6298 = vmatprep.subr.bf16.mxu0 0
      %6299 = vmatpush1.bf16.msra.mxu0 0
      %6300 = vmatprep.subr.bf16.mxu0 0
      %6301 = vmatpush1.bf16.msra.mxu0 0
      %6302 = vmatprep.subr.bf16.mxu0 0
      %6303 = vmatpush1.bf16.msra.mxu0 0
      %6304 = vmatprep.subr.bf16.mxu0 0
      %6305 = vmatpush1.bf16.msra.mxu0 0
      %6306 = vmatprep.mubr.bf16.mxu0 0
      %6307 = vmatmul.mubr.bf16.gmra.mrb[0].mxu0 %v5853
      %v6308 = vpop.f32.mrb[0].mxu0
      %v6309 = vadd.f32 %v5954, %v6308
      %v6310 = vpop.f32.mrb[0].mxu0
      %v6311 = vadd.f32 %v5958, %v6310
      %v6312 = vpop.f32.mrb[0].mxu0
      %v6313 = vadd.f32 %v5954, %v6312
      %v6314 = vpop.f32.mrb[0].mxu0
      %v6315 = vadd.f32 %v5958, %v6314
      %6316 = vmatprep.mubr.bf16.mxu0 0
      %6317 = vmatmul.mubr.bf16.gmra.mrb[0].mxu0 %v5854
      %v6318 = vpop.f32.mrb[0].mxu0
      %v6319 = vadd.f32 %v5954, %v6318
      %v6320 = vpop.f32.mrb[0].mxu0
      %v6321 = vadd.f32 %v5958, %v6320
      %v6322 = vpop.f32.mrb[0].mxu0
      %v6323 = vadd.f32 %v5954, %v6322
      %v6324 = vpop.f32.mrb[0].mxu0
      %v6325 = vadd.f32 %v5958, %v6324
      %6326 = vmatprep.mubr.bf16.mxu0 0
      %6327 = vmatmul.mubr.bf16.gmra.mrb[0].mxu0 %v5855
      %v6328 = vpop.f32.mrb[0].mxu0
      %v6329 = vadd.f32 %v5954, %v6328
      %v6330 = vpop.f32.mrb[0].mxu0
      %v6331 = vadd.f32 %v5958, %v6330
      %v6332 = vpop.f32.mrb[0].mxu0
      %v6333 = vadd.f32 %v5954, %v6332
      %v6334 = vpop.f32.mrb[0].mxu0
      %v6335 = vadd.f32 %v5958, %v6334
      %6336 = vmatprep.mubr.bf16.mxu0 0
      %6337 = vmatmul.mubr.bf16.gmra.mrb[0].mxu0 %v5856
      %v6338 = vpop.f32.mrb[0].mxu0
      %v6339 = vadd.f32 %v5954, %v6338
      %v6340 = vpop.f32.mrb[0].mxu0
      %v6341 = vadd.f32 %v5958, %v6340
      %v6342 = vpop.f32.mrb[0].mxu0
      %v6343 = vadd.f32 %v5954, %v6342
      %v6344 = vpop.f32.mrb[0].mxu0
      %v6345 = vadd.f32 %v5958, %v6344
      %6346 = vmatprep.mubr.bf16.mxu0 0
      %6347 = vmatmul.mubr.bf16.gmra.mrb[0].mxu0 %v5857
      %v6348 = vpop.f32.mrb[0].mxu0
      %v6349 = vadd.f32 %v5954, %v6348
      %v6350 = vpop.f32.mrb[0].mxu0
      %v6351 = vadd.f32 %v5958, %v6350
      %v6352 = vpop.f32.mrb[0].mxu0
      %v6353 = vadd.f32 %v5954, %v6352
      %v6354 = vpop.f32.mrb[0].mxu0
      %v6355 = vadd.f32 %v5958, %v6354
      %6356 = vmatprep.mubr.bf16.mxu0 0
      %6357 = vmatmul.mubr.bf16.gmra.mrb[0].mxu0 %v5858
      %v6358 = vpop.f32.mrb[0].mxu0
      %v6359 = vadd.f32 %v5954, %v6358
      %v6360 = vpop.f32.mrb[0].mxu0
      %v6361 = vadd.f32 %v5958, %v6360
      %v6362 = vpop.f32.mrb[0].mxu0
      %v6363 = vadd.f32 %v5954, %v6362
      %v6364 = vpop.f32.mrb[0].mxu0
      %v6365 = vadd.f32 %v5958, %v6364
      %6366 = vmatprep.mubr.bf16.mxu0 0
      %6367 = vmatmul.mubr.bf16.gmra.mrb[0].mxu0 %v5859
      %v6368 = vpop.f32.mrb[0].mxu0
      %v6369 = vadd.f32 %v5954, %v6368
      %v6370 = vpop.f32.mrb[0].mxu0
      %v6371 = vadd.f32 %v5958, %v6370
      %v6372 = vpop.f32.mrb[0].mxu0
      %v6373 = vadd.f32 %v5954, %v6372
      %v6374 = vpop.f32.mrb[0].mxu0
      %v6375 = vadd.f32 %v5958, %v6374
      %6376 = vmatprep.mubr.bf16.mxu0 0
      %6377 = vmatmul.mubr.bf16.gmra.mrb[0].mxu0 %v5860
      %v6378 = vpop.f32.mrb[0].mxu0
      %v6379 = vadd.f32 %v5954, %v6378
      %v6380 = vpop.f32.mrb[0].mxu0
      %v6381 = vadd.f32 %v5958, %v6380
      %v6382 = vpop.f32.mrb[0].mxu0
      %v6383 = vadd.f32 %v5954, %v6382
      %v6384 = vpop.f32.mrb[0].mxu0
      %v6385 = vadd.f32 %v5958, %v6384
      %6386 = vmatprep.mubr.bf16.mxu0 0
      %6387 = vmatmul.mubr.bf16.gmra.mrb[0].mxu0 %v5861
      %v6388 = vpop.f32.mrb[0].mxu0
      %v6389 = vadd.f32 %v5954, %v6388
      %v6390 = vpop.f32.mrb[0].mxu0
      %v6391 = vadd.f32 %v5958, %v6390
      %v6392 = vpop.f32.mrb[0].mxu0
      %v6393 = vadd.f32 %v5954, %v6392
      %v6394 = vpop.f32.mrb[0].mxu0
      %v6395 = vadd.f32 %v5958, %v6394
      %6396 = vmatprep.mubr.bf16.mxu0 0
      %6397 = vmatmul.mubr.bf16.gmra.mrb[0].mxu0 %v5862
      %v6398 = vpop.f32.mrb[0].mxu0
      %v6399 = vadd.f32 %v5954, %v6398
      %v6400 = vpop.f32.mrb[0].mxu0
      %v6401 = vadd.f32 %v5958, %v6400
      %v6402 = vpop.f32.mrb[0].mxu0
      %v6403 = vadd.f32 %v5954, %v6402
      %v6404 = vpop.f32.mrb[0].mxu0
      %v6405 = vadd.f32 %v5958, %v6404
      %6406 = vmatprep.mubr.bf16.mxu0 0
      %6407 = vmatmul.mubr.bf16.gmra.mrb[0].mxu0 %v5863
      %v6408 = vpop.f32.mrb[0].mxu0
      %v6409 = vadd.f32 %v5954, %v6408
      %v6410 = vpop.f32.mrb[0].mxu0
      %v6411 = vadd.f32 %v5958, %v6410
      %v6412 = vpop.f32.mrb[0].mxu0
      %v6413 = vadd.f32 %v5954, %v6412
      %v6414 = vpop.f32.mrb[0].mxu0
      %v6415 = vadd.f32 %v5958, %v6414
      %6416 = vmatprep.mubr.bf16.mxu0 0
      %6417 = vmatmul.mubr.bf16.gmra.mrb[0].mxu0 %v5864
      %v6418 = vpop.f32.mrb[0].mxu0
      %v6419 = vadd.f32 %v5954, %v6418
      %v6420 = vpop.f32.mrb[0].mxu0
      %v6421 = vadd.f32 %v5958, %v6420
      %v6422 = vpop.f32.mrb[0].mxu0
      %v6423 = vadd.f32 %v5954, %v6422
      %v6424 = vpop.f32.mrb[0].mxu0
      %v6425 = vadd.f32 %v5958, %v6424
      %6426 = vmatprep.mubr.bf16.mxu0 0
      %6427 = vmatmul.mubr.bf16.gmra.mrb[0].mxu0 %v5865
      %v6428 = vpop.f32.mrb[0].mxu0
      %v6429 = vadd.f32 %v5954, %v6428
      %v6430 = vpop.f32.mrb[0].mxu0
      %v6431 = vadd.f32 %v5958, %v6430
      %v6432 = vpop.f32.mrb[0].mxu0
      %v6433 = vadd.f32 %v5954, %v6432
      %v6434 = vpop.f32.mrb[0].mxu0
      %v6435 = vadd.f32 %v5958, %v6434
      %6436 = vmatprep.mubr.bf16.mxu0 0
      %6437 = vmatmul.mubr.bf16.gmra.mrb[0].mxu0 %v5866
      %v6438 = vpop.f32.mrb[0].mxu0
      %v6439 = vadd.f32 %v5954, %v6438
      %v6440 = vpop.f32.mrb[0].mxu0
      %v6441 = vadd.f32 %v5958, %v6440
      %v6442 = vpop.f32.mrb[0].mxu0
      %v6443 = vadd.f32 %v5954, %v6442
      %v6444 = vpop.f32.mrb[0].mxu0
      %v6445 = vadd.f32 %v5958, %v6444
      %6446 = vmatprep.mubr.bf16.mxu0 0
      %6447 = vmatmul.mubr.bf16.gmra.mrb[0].mxu0 %v5867
      %v6448 = vpop.f32.mrb[0].mxu0
      %v6449 = vadd.f32 %v5954, %v6448
      %v6450 = vpop.f32.mrb[0].mxu0
      %v6451 = vadd.f32 %v5958, %v6450
      %v6452 = vpop.f32.mrb[0].mxu0
      %v6453 = vadd.f32 %v5954, %v6452
      %v6454 = vpop.f32.mrb[0].mxu0
      %v6455 = vadd.f32 %v5958, %v6454
      %6456 = vmatprep.mubr.bf16.mxu0 0
      %6457 = vmatmul.mubr.bf16.gmra.mrb[0].mxu0 %v5868
      %v6458 = vpop.f32.mrb[0].mxu0
      %v6459 = vadd.f32 %v5954, %v6458
      %v6460 = vpop.f32.mrb[0].mxu0
      %v6461 = vadd.f32 %v5958, %v6460
      %v6462 = vpop.f32.mrb[0].mxu0
      %v6463 = vadd.f32 %v5954, %v6462
      %v6464 = vpop.f32.mrb[0].mxu0
      %v6465 = vadd.f32 %v5958, %v6464
      %6466 = vmatprep.mubr.bf16.mxu0 0
      %6467 = vmatmul.mubr.bf16.gmra.mrb[0].mxu0 %v5869
      %v6468 = vpop.f32.mrb[0].mxu0
      %v6469 = vadd.f32 %v5954, %v6468
      %v6470 = vpop.f32.mrb[0].mxu0
      %v6471 = vadd.f32 %v5958, %v6470
      %v6472 = vpop.f32.mrb[0].mxu0
      %v6473 = vadd.f32 %v5954, %v6472
      %v6474 = vpop.f32.mrb[0].mxu0
      %v6475 = vadd.f32 %v5958, %v6474
      %6476 = vmatprep.mubr.bf16.mxu0 0
      %6477 = vmatmul.mubr.bf16.gmra.mrb[0].mxu0 %v5870
      %v6478 = vpop.f32.mrb[0].mxu0
      %v6479 = vadd.f32 %v5954, %v6478
      %v6480 = vpop.f32.mrb[0].mxu0
      %v6481 = vadd.f32 %v5958, %v6480
      %v6482 = vpop.f32.mrb[0].mxu0
      %v6483 = vadd.f32 %v5954, %v6482
      %v6484 = vpop.f32.mrb[0].mxu0
      %v6485 = vadd.f32 %v5958, %v6484
      %6486 = vmatprep.mubr.bf16.mxu0 0
      %6487 = vmatmul.mubr.bf16.gmra.mrb[0].mxu0 %v5871
      %v6488 = vpop.f32.mrb[0].mxu0
      %v6489 = vadd.f32 %v5954, %v6488
      %v6490 = vpop.f32.mrb[0].mxu0
      %v6491 = vadd.f32 %v5958, %v6490
      %v6492 = vpop.f32.mrb[0].mxu0
      %v6493 = vadd.f32 %v5954, %v6492
      %v6494 = vpop.f32.mrb[0].mxu0
      %v6495 = vadd.f32 %v5958, %v6494
      %6496 = vmatprep.mubr.bf16.mxu0 0
      %6497 = vmatmul.mubr.bf16.gmra.mrb[0].mxu0 %v5872
      %v6498 = vpop.f32.mrb[0].mxu0
      %v6499 = vadd.f32 %v5954, %v6498
      %v6500 = vpop.f32.mrb[0].mxu0
      %v6501 = vadd.f32 %v5958, %v6500
      %v6502 = vpop.f32.mrb[0].mxu0
      %v6503 = vadd.f32 %v5954, %v6502
      %v6504 = vpop.f32.mrb[0].mxu0
      %v6505 = vadd.f32 %v5958, %v6504
      %6506 = vmatprep.mubr.bf16.mxu0 0
      %6507 = vmatmul.mubr.bf16.gmra.mrb[0].mxu0 %v5873
      %v6508 = vpop.f32.mrb[0].mxu0
      %v6509 = vadd.f32 %v5954, %v6508
      %v6510 = vpop.f32.mrb[0].mxu0
      %v6511 = vadd.f32 %v5958, %v6510
      %v6512 = vpop.f32.mrb[0].mxu0
      %v6513 = vadd.f32 %v5954, %v6512
      %v6514 = vpop.f32.mrb[0].mxu0
      %v6515 = vadd.f32 %v5958, %v6514
      %6516 = vmatprep.mubr.bf16.mxu0 0
      %6517 = vmatmul.mubr.bf16.gmra.mrb[0].mxu0 %v5874
      %v6518 = vpop.f32.mrb[0].mxu0
      %v6519 = vadd.f32 %v5954, %v6518
      %v6520 = vpop.f32.mrb[0].mxu0
      %v6521 = vadd.f32 %v5958, %v6520
      %v6522 = vpop.f32.mrb[0].mxu0
      %v6523 = vadd.f32 %v5954, %v6522
      %v6524 = vpop.f32.mrb[0].mxu0
      %v6525 = vadd.f32 %v5958, %v6524
      %6526 = vmatprep.mubr.bf16.mxu0 0
      %6527 = vmatmul.mubr.bf16.gmra.mrb[0].mxu0 %v5875
      %v6528 = vpop.f32.mrb[0].mxu0
      %v6529 = vadd.f32 %v5954, %v6528
      %v6530 = vpop.f32.mrb[0].mxu0
      %v6531 = vadd.f32 %v5958, %v6530
      %v6532 = vpop.f32.mrb[0].mxu0
      %v6533 = vadd.f32 %v5954, %v6532
      %v6534 = vpop.f32.mrb[0].mxu0
      %v6535 = vadd.f32 %v5958, %v6534
      %6536 = vmatprep.mubr.bf16.mxu0 0
      %6537 = vmatmul.mubr.bf16.gmra.mrb[0].mxu0 %v5876
      %v6538 = vpop.f32.mrb[0].mxu0
      %v6539 = vadd.f32 %v5954, %v6538
      %v6540 = vpop.f32.mrb[0].mxu0
      %v6541 = vadd.f32 %v5958, %v6540
      %v6542 = vpop.f32.mrb[0].mxu0
      %v6543 = vadd.f32 %v5954, %v6542
      %v6544 = vpop.f32.mrb[0].mxu0
      %v6545 = vadd.f32 %v5958, %v6544
      %6546 = vmatprep.mubr.bf16.mxu0 0
      %6547 = vmatmul.mubr.bf16.gmra.mrb[0].mxu0 %v5877
      %v6548 = vpop.f32.mrb[0].mxu0
      %v6549 = vadd.f32 %v5954, %v6548
      %v6550 = vpop.f32.mrb[0].mxu0
      %v6551 = vadd.f32 %v5958, %v6550
      %v6552 = vpop.f32.mrb[0].mxu0
      %v6553 = vadd.f32 %v5954, %v6552
      %v6554 = vpop.f32.mrb[0].mxu0
      %v6555 = vadd.f32 %v5958, %v6554
      %6556 = vmatprep.mubr.bf16.mxu0 0
      %6557 = vmatmul.mubr.bf16.gmra.mrb[0].mxu0 %v5878
      %v6558 = vpop.f32.mrb[0].mxu0
      %v6559 = vadd.f32 %v5954, %v6558
      %v6560 = vpop.f32.mrb[0].mxu0
      %v6561 = vadd.f32 %v5958, %v6560
      %v6562 = vpop.f32.mrb[0].mxu0
      %v6563 = vadd.f32 %v5954, %v6562
      %v6564 = vpop.f32.mrb[0].mxu0
      %v6565 = vadd.f32 %v5958, %v6564
      %6566 = vmatprep.mubr.bf16.mxu0 0
      %6567 = vmatmul.mubr.bf16.gmra.mrb[0].mxu0 %v5879
      %v6568 = vpop.f32.mrb[0].mxu0
      %v6569 = vadd.f32 %v5954, %v6568
      %v6570 = vpop.f32.mrb[0].mxu0
      %v6571 = vadd.f32 %v5958, %v6570
      %v6572 = vpop.f32.mrb[0].mxu0
      %v6573 = vadd.f32 %v5954, %v6572
      %v6574 = vpop.f32.mrb[0].mxu0
      %v6575 = vadd.f32 %v5958, %v6574
      %6576 = vmatprep.mubr.bf16.mxu0 0
      %6577 = vmatmul.mubr.bf16.gmra.mrb[0].mxu0 %v5880
      %v6578 = vpop.f32.mrb[0].mxu0
      %v6579 = vadd.f32 %v5954, %v6578
      %v6580 = vpop.f32.mrb[0].mxu0
      %v6581 = vadd.f32 %v5958, %v6580
      %v6582 = vpop.f32.mrb[0].mxu0
      %v6583 = vadd.f32 %v5954, %v6582
      %v6584 = vpop.f32.mrb[0].mxu0
      %v6585 = vadd.f32 %v5958, %v6584
      %6586 = vmatprep.mubr.bf16.mxu0 0
      %6587 = vmatmul.mubr.bf16.gmra.mrb[0].mxu0 %v5881
      %v6588 = vpop.f32.mrb[0].mxu0
      %v6589 = vadd.f32 %v5954, %v6588
      %v6590 = vpop.f32.mrb[0].mxu0
      %v6591 = vadd.f32 %v5958, %v6590
      %v6592 = vpop.f32.mrb[0].mxu0
      %v6593 = vadd.f32 %v5954, %v6592
      %v6594 = vpop.f32.mrb[0].mxu0
      %v6595 = vadd.f32 %v5958, %v6594
      %6596 = vmatprep.mubr.bf16.mxu0 0
      %6597 = vmatmul.mubr.bf16.gmra.mrb[0].mxu0 %v5882
      %v6598 = vpop.f32.mrb[0].mxu0
      %v6599 = vadd.f32 %v5954, %v6598
      %v6600 = vpop.f32.mrb[0].mxu0
      %v6601 = vadd.f32 %v5958, %v6600
      %v6602 = vpop.f32.mrb[0].mxu0
      %v6603 = vadd.f32 %v5954, %v6602
      %v6604 = vpop.f32.mrb[0].mxu0
      %v6605 = vadd.f32 %v5958, %v6604
      %6606 = vmatprep.mubr.bf16.mxu0 0
      %6607 = vmatmul.mubr.bf16.gmra.mrb[0].mxu0 %v5883
      %v6608 = vpop.f32.mrb[0].mxu0
      %v6609 = vadd.f32 %v5954, %v6608
      %v6610 = vpop.f32.mrb[0].mxu0
      %v6611 = vadd.f32 %v5958, %v6610
      %v6612 = vpop.f32.mrb[0].mxu0
      %v6613 = vadd.f32 %v5954, %v6612
      %v6614 = vpop.f32.mrb[0].mxu0
      %v6615 = vadd.f32 %v5958, %v6614
      %6616 = vmatprep.mubr.bf16.mxu0 0
      %6617 = vmatmul.mubr.bf16.gmra.mrb[0].mxu0 %v5884
      %v6618 = vpop.f32.mrb[0].mxu0
      %v6619 = vadd.f32 %v5954, %v6618
      %v6620 = vpop.f32.mrb[0].mxu0
      %v6621 = vadd.f32 %v5958, %v6620
      %v6622 = vpop.f32.mrb[0].mxu0
      %v6623 = vadd.f32 %v5954, %v6622
      %v6624 = vpop.f32.mrb[0].mxu0
      %v6625 = vadd.f32 %v5958, %v6624
      %6626 = vdwg.mxu0
      %6627 = vmatprep.subr.bf16.mxu0 %v6165
      %6628 = vmatpush1.bf16.msra.mxu0 %v6164
      %6629 = vmatprep.subr.bf16.mxu0 %v6172
      %6630 = vmatpush1.bf16.msra.mxu0 %v6171
      %6631 = vmatprep.subr.bf16.mxu0 %v6179
      %6632 = vmatpush1.bf16.msra.mxu0 %v6178
      %6633 = vmatprep.subr.bf16.mxu0 %v6186
      %6634 = vmatpush1.bf16.msra.mxu0 %v6185
      %6635 = vmatprep.subr.bf16.mxu0 %v6193
      %6636 = vmatpush1.bf16.msra.mxu0 %v6192
      %6637 = vmatprep.subr.bf16.mxu0 %v6200
      %6638 = vmatpush1.bf16.msra.mxu0 %v6199
      %6639 = vmatprep.subr.bf16.mxu0 %v6207
      %6640 = vmatpush1.bf16.msra.mxu0 %v6206
      %6641 = vmatprep.subr.bf16.mxu0 %v6214
      %6642 = vmatpush1.bf16.msra.mxu0 %v6213
      %6643 = vmatprep.subr.bf16.mxu0 0
      %6644 = vmatpush1.bf16.msra.mxu0 0
      %6645 = vmatprep.subr.bf16.mxu0 0
      %6646 = vmatpush1.bf16.msra.mxu0 0
      %6647 = vmatprep.subr.bf16.mxu0 0
      %6648 = vmatpush1.bf16.msra.mxu0 0
      %6649 = vmatprep.subr.bf16.mxu0 0
      %6650 = vmatpush1.bf16.msra.mxu0 0
      %6651 = vmatprep.subr.bf16.mxu0 0
      %6652 = vmatpush1.bf16.msra.mxu0 0
      %6653 = vmatprep.subr.bf16.mxu0 0
      %6654 = vmatpush1.bf16.msra.mxu0 0
      %6655 = vmatprep.subr.bf16.mxu0 0
      %6656 = vmatpush1.bf16.msra.mxu0 0
      %6657 = vmatprep.subr.bf16.mxu0 0
      %6658 = vmatpush1.bf16.msra.mxu0 0
      %6659 = vmatprep.mubr.bf16.mxu0 0
      %6660 = vmatmul.mubr.bf16.gmra.mrb[0].mxu0 %v5853
      %v6661 = vpop.f32.mrb[0].mxu0
      %v6662 = vadd.f32 %v5962, %v6661
      %v6663 = vpop.f32.mrb[0].mxu0
      %v6664 = vadd.f32 %v5966, %v6663
      %v6665 = vpop.f32.mrb[0].mxu0
      %v6666 = vadd.f32 %v5962, %v6665
      %v6667 = vpop.f32.mrb[0].mxu0
      %v6668 = vadd.f32 %v5966, %v6667
      %6669 = vmatprep.mubr.bf16.mxu0 0
      %6670 = vmatmul.mubr.bf16.gmra.mrb[0].mxu0 %v5854
      %v6671 = vpop.f32.mrb[0].mxu0
      %v6672 = vadd.f32 %v5962, %v6671
      %v6673 = vpop.f32.mrb[0].mxu0
      %v6674 = vadd.f32 %v5966, %v6673
      %v6675 = vpop.f32.mrb[0].mxu0
      %v6676 = vadd.f32 %v5962, %v6675
      %v6677 = vpop.f32.mrb[0].mxu0
      %v6678 = vadd.f32 %v5966, %v6677
      %6679 = vmatprep.mubr.bf16.mxu0 0
      %6680 = vmatmul.mubr.bf16.gmra.mrb[0].mxu0 %v5855
      %v6681 = vpop.f32.mrb[0].mxu0
      %v6682 = vadd.f32 %v5962, %v6681
      %v6683 = vpop.f32.mrb[0].mxu0
      %v6684 = vadd.f32 %v5966, %v6683
      %v6685 = vpop.f32.mrb[0].mxu0
      %v6686 = vadd.f32 %v5962, %v6685
      %v6687 = vpop.f32.mrb[0].mxu0
      %v6688 = vadd.f32 %v5966, %v6687
      %6689 = vmatprep.mubr.bf16.mxu0 0
      %6690 = vmatmul.mubr.bf16.gmra.mrb[0].mxu0 %v5856
      %v6691 = vpop.f32.mrb[0].mxu0
      %v6692 = vadd.f32 %v5962, %v6691
      %v6693 = vpop.f32.mrb[0].mxu0
      %v6694 = vadd.f32 %v5966, %v6693
      %v6695 = vpop.f32.mrb[0].mxu0
      %v6696 = vadd.f32 %v5962, %v6695
      %v6697 = vpop.f32.mrb[0].mxu0
      %v6698 = vadd.f32 %v5966, %v6697
      %6699 = vmatprep.mubr.bf16.mxu0 0
      %6700 = vmatmul.mubr.bf16.gmra.mrb[0].mxu0 %v5857
      %v6701 = vpop.f32.mrb[0].mxu0
      %v6702 = vadd.f32 %v5962, %v6701
      %v6703 = vpop.f32.mrb[0].mxu0
      %v6704 = vadd.f32 %v5966, %v6703
      %v6705 = vpop.f32.mrb[0].mxu0
      %v6706 = vadd.f32 %v5962, %v6705
      %v6707 = vpop.f32.mrb[0].mxu0
      %v6708 = vadd.f32 %v5966, %v6707
      %6709 = vmatprep.mubr.bf16.mxu0 0
      %6710 = vmatmul.mubr.bf16.gmra.mrb[0].mxu0 %v5858
      %v6711 = vpop.f32.mrb[0].mxu0
      %v6712 = vadd.f32 %v5962, %v6711
      %v6713 = vpop.f32.mrb[0].mxu0
      %v6714 = vadd.f32 %v5966, %v6713
      %v6715 = vpop.f32.mrb[0].mxu0
      %v6716 = vadd.f32 %v5962, %v6715
      %v6717 = vpop.f32.mrb[0].mxu0
      %v6718 = vadd.f32 %v5966, %v6717
      %6719 = vmatprep.mubr.bf16.mxu0 0
      %6720 = vmatmul.mubr.bf16.gmra.mrb[0].mxu0 %v5859
      %v6721 = vpop.f32.mrb[0].mxu0
      %v6722 = vadd.f32 %v5962, %v6721
      %v6723 = vpop.f32.mrb[0].mxu0
      %v6724 = vadd.f32 %v5966, %v6723
      %v6725 = vpop.f32.mrb[0].mxu0
      %v6726 = vadd.f32 %v5962, %v6725
      %v6727 = vpop.f32.mrb[0].mxu0
      %v6728 = vadd.f32 %v5966, %v6727
      %6729 = vmatprep.mubr.bf16.mxu0 0
      %6730 = vmatmul.mubr.bf16.gmra.mrb[0].mxu0 %v5860
      %v6731 = vpop.f32.mrb[0].mxu0
      %v6732 = vadd.f32 %v5962, %v6731
      %v6733 = vpop.f32.mrb[0].mxu0
      %v6734 = vadd.f32 %v5966, %v6733
      %v6735 = vpop.f32.mrb[0].mxu0
      %v6736 = vadd.f32 %v5962, %v6735
      %v6737 = vpop.f32.mrb[0].mxu0
      %v6738 = vadd.f32 %v5966, %v6737
      %6739 = vmatprep.mubr.bf16.mxu0 0
      %6740 = vmatmul.mubr.bf16.gmra.mrb[0].mxu0 %v5861
      %v6741 = vpop.f32.mrb[0].mxu0
      %v6742 = vadd.f32 %v5962, %v6741
      %v6743 = vpop.f32.mrb[0].mxu0
      %v6744 = vadd.f32 %v5966, %v6743
      %v6745 = vpop.f32.mrb[0].mxu0
      %v6746 = vadd.f32 %v5962, %v6745
      %v6747 = vpop.f32.mrb[0].mxu0
      %v6748 = vadd.f32 %v5966, %v6747
      %6749 = vmatprep.mubr.bf16.mxu0 0
      %6750 = vmatmul.mubr.bf16.gmra.mrb[0].mxu0 %v5862
      %v6751 = vpop.f32.mrb[0].mxu0
      %v6752 = vadd.f32 %v5962, %v6751
      %v6753 = vpop.f32.mrb[0].mxu0
      %v6754 = vadd.f32 %v5966, %v6753
      %v6755 = vpop.f32.mrb[0].mxu0
      %v6756 = vadd.f32 %v5962, %v6755
      %v6757 = vpop.f32.mrb[0].mxu0
      %v6758 = vadd.f32 %v5966, %v6757
      %6759 = vmatprep.mubr.bf16.mxu0 0
      %6760 = vmatmul.mubr.bf16.gmra.mrb[0].mxu0 %v5863
      %v6761 = vpop.f32.mrb[0].mxu0
      %v6762 = vadd.f32 %v5962, %v6761
      %v6763 = vpop.f32.mrb[0].mxu0
      %v6764 = vadd.f32 %v5966, %v6763
      %v6765 = vpop.f32.mrb[0].mxu0
      %v6766 = vadd.f32 %v5962, %v6765
      %v6767 = vpop.f32.mrb[0].mxu0
      %v6768 = vadd.f32 %v5966, %v6767
      %6769 = vmatprep.mubr.bf16.mxu0 0
      %6770 = vmatmul.mubr.bf16.gmra.mrb[0].mxu0 %v5864
      %v6771 = vpop.f32.mrb[0].mxu0
      %v6772 = vadd.f32 %v5962, %v6771
      %v6773 = vpop.f32.mrb[0].mxu0
      %v6774 = vadd.f32 %v5966, %v6773
      %v6775 = vpop.f32.mrb[0].mxu0
      %v6776 = vadd.f32 %v5962, %v6775
      %v6777 = vpop.f32.mrb[0].mxu0
      %v6778 = vadd.f32 %v5966, %v6777
      %6779 = vmatprep.mubr.bf16.mxu0 0
      %6780 = vmatmul.mubr.bf16.gmra.mrb[0].mxu0 %v5865
      %v6781 = vpop.f32.mrb[0].mxu0
      %v6782 = vadd.f32 %v5962, %v6781
      %v6783 = vpop.f32.mrb[0].mxu0
      %v6784 = vadd.f32 %v5966, %v6783
      %v6785 = vpop.f32.mrb[0].mxu0
      %v6786 = vadd.f32 %v5962, %v6785
      %v6787 = vpop.f32.mrb[0].mxu0
      %v6788 = vadd.f32 %v5966, %v6787
      %6789 = vmatprep.mubr.bf16.mxu0 0
      %6790 = vmatmul.mubr.bf16.gmra.mrb[0].mxu0 %v5866
      %v6791 = vpop.f32.mrb[0].mxu0
      %v6792 = vadd.f32 %v5962, %v6791
      %v6793 = vpop.f32.mrb[0].mxu0
      %v6794 = vadd.f32 %v5966, %v6793
      %v6795 = vpop.f32.mrb[0].mxu0
      %v6796 = vadd.f32 %v5962, %v6795
      %v6797 = vpop.f32.mrb[0].mxu0
      %v6798 = vadd.f32 %v5966, %v6797
      %6799 = vmatprep.mubr.bf16.mxu0 0
      %6800 = vmatmul.mubr.bf16.gmra.mrb[0].mxu0 %v5867
      %v6801 = vpop.f32.mrb[0].mxu0
      %v6802 = vadd.f32 %v5962, %v6801
      %v6803 = vpop.f32.mrb[0].mxu0
      %v6804 = vadd.f32 %v5966, %v6803
      %v6805 = vpop.f32.mrb[0].mxu0
      %v6806 = vadd.f32 %v5962, %v6805
      %v6807 = vpop.f32.mrb[0].mxu0
      %v6808 = vadd.f32 %v5966, %v6807
      %6809 = vmatprep.mubr.bf16.mxu0 0
      %6810 = vmatmul.mubr.bf16.gmra.mrb[0].mxu0 %v5868
      %v6811 = vpop.f32.mrb[0].mxu0
      %v6812 = vadd.f32 %v5962, %v6811
      %v6813 = vpop.f32.mrb[0].mxu0
      %v6814 = vadd.f32 %v5966, %v6813
      %v6815 = vpop.f32.mrb[0].mxu0
      %v6816 = vadd.f32 %v5962, %v6815
      %v6817 = vpop.f32.mrb[0].mxu0
      %v6818 = vadd.f32 %v5966, %v6817
      %6819 = vmatprep.mubr.bf16.mxu0 0
      %6820 = vmatmul.mubr.bf16.gmra.mrb[0].mxu0 %v5869
      %v6821 = vpop.f32.mrb[0].mxu0
      %v6822 = vadd.f32 %v5962, %v6821
      %v6823 = vpop.f32.mrb[0].mxu0
      %v6824 = vadd.f32 %v5966, %v6823
      %v6825 = vpop.f32.mrb[0].mxu0
      %v6826 = vadd.f32 %v5962, %v6825
      %v6827 = vpop.f32.mrb[0].mxu0
      %v6828 = vadd.f32 %v5966, %v6827
      %6829 = vmatprep.mubr.bf16.mxu0 0
      %6830 = vmatmul.mubr.bf16.gmra.mrb[0].mxu0 %v5870
      %v6831 = vpop.f32.mrb[0].mxu0
      %v6832 = vadd.f32 %v5962, %v6831
      %v6833 = vpop.f32.mrb[0].mxu0
      %v6834 = vadd.f32 %v5966, %v6833
      %v6835 = vpop.f32.mrb[0].mxu0
      %v6836 = vadd.f32 %v5962, %v6835
      %v6837 = vpop.f32.mrb[0].mxu0
      %v6838 = vadd.f32 %v5966, %v6837
      %6839 = vmatprep.mubr.bf16.mxu0 0
      %6840 = vmatmul.mubr.bf16.gmra.mrb[0].mxu0 %v5871
      %v6841 = vpop.f32.mrb[0].mxu0
      %v6842 = vadd.f32 %v5962, %v6841
      %v6843 = vpop.f32.mrb[0].mxu0
      %v6844 = vadd.f32 %v5966, %v6843
      %v6845 = vpop.f32.mrb[0].mxu0
      %v6846 = vadd.f32 %v5962, %v6845
      %v6847 = vpop.f32.mrb[0].mxu0
      %v6848 = vadd.f32 %v5966, %v6847
      %6849 = vmatprep.mubr.bf16.mxu0 0
      %6850 = vmatmul.mubr.bf16.gmra.mrb[0].mxu0 %v5872
      %v6851 = vpop.f32.mrb[0].mxu0
      %v6852 = vadd.f32 %v5962, %v6851
      %v6853 = vpop.f32.mrb[0].mxu0
      %v6854 = vadd.f32 %v5966, %v6853
      %v6855 = vpop.f32.mrb[0].mxu0
      %v6856 = vadd.f32 %v5962, %v6855
      %v6857 = vpop.f32.mrb[0].mxu0
      %v6858 = vadd.f32 %v5966, %v6857
      %6859 = vmatprep.mubr.bf16.mxu0 0
      %6860 = vmatmul.mubr.bf16.gmra.mrb[0].mxu0 %v5873
      %v6861 = vpop.f32.mrb[0].mxu0
      %v6862 = vadd.f32 %v5962, %v6861
      %v6863 = vpop.f32.mrb[0].mxu0
      %v6864 = vadd.f32 %v5966, %v6863
      %v6865 = vpop.f32.mrb[0].mxu0
      %v6866 = vadd.f32 %v5962, %v6865
      %v6867 = vpop.f32.mrb[0].mxu0
      %v6868 = vadd.f32 %v5966, %v6867
      %6869 = vmatprep.mubr.bf16.mxu0 0
      %6870 = vmatmul.mubr.bf16.gmra.mrb[0].mxu0 %v5874
      %v6871 = vpop.f32.mrb[0].mxu0
      %v6872 = vadd.f32 %v5962, %v6871
      %v6873 = vpop.f32.mrb[0].mxu0
      %v6874 = vadd.f32 %v5966, %v6873
      %v6875 = vpop.f32.mrb[0].mxu0
      %v6876 = vadd.f32 %v5962, %v6875
      %v6877 = vpop.f32.mrb[0].mxu0
      %v6878 = vadd.f32 %v5966, %v6877
      %6879 = vmatprep.mubr.bf16.mxu0 0
      %6880 = vmatmul.mubr.bf16.gmra.mrb[0].mxu0 %v5875
      %v6881 = vpop.f32.mrb[0].mxu0
      %v6882 = vadd.f32 %v5962, %v6881
      %v6883 = vpop.f32.mrb[0].mxu0
      %v6884 = vadd.f32 %v5966, %v6883
      %v6885 = vpop.f32.mrb[0].mxu0
      %v6886 = vadd.f32 %v5962, %v6885
      %v6887 = vpop.f32.mrb[0].mxu0
      %v6888 = vadd.f32 %v5966, %v6887
      %6889 = vmatprep.mubr.bf16.mxu0 0
      %6890 = vmatmul.mubr.bf16.gmra.mrb[0].mxu0 %v5876
      %v6891 = vpop.f32.mrb[0].mxu0
      %v6892 = vadd.f32 %v5962, %v6891
      %v6893 = vpop.f32.mrb[0].mxu0
      %v6894 = vadd.f32 %v5966, %v6893
      %v6895 = vpop.f32.mrb[0].mxu0
      %v6896 = vadd.f32 %v5962, %v6895
      %v6897 = vpop.f32.mrb[0].mxu0
      %v6898 = vadd.f32 %v5966, %v6897
      %6899 = vmatprep.mubr.bf16.mxu0 0
      %6900 = vmatmul.mubr.bf16.gmra.mrb[0].mxu0 %v5877
      %v6901 = vpop.f32.mrb[0].mxu0
      %v6902 = vadd.f32 %v5962, %v6901
      %v6903 = vpop.f32.mrb[0].mxu0
      %v6904 = vadd.f32 %v5966, %v6903
      %v6905 = vpop.f32.mrb[0].mxu0
      %v6906 = vadd.f32 %v5962, %v6905
      %v6907 = vpop.f32.mrb[0].mxu0
      %v6908 = vadd.f32 %v5966, %v6907
      %6909 = vmatprep.mubr.bf16.mxu0 0
      %6910 = vmatmul.mubr.bf16.gmra.mrb[0].mxu0 %v5878
      %v6911 = vpop.f32.mrb[0].mxu0
      %v6912 = vadd.f32 %v5962, %v6911
      %v6913 = vpop.f32.mrb[0].mxu0
      %v6914 = vadd.f32 %v5966, %v6913
      %v6915 = vpop.f32.mrb[0].mxu0
      %v6916 = vadd.f32 %v5962, %v6915
      %v6917 = vpop.f32.mrb[0].mxu0
      %v6918 = vadd.f32 %v5966, %v6917
      %6919 = vmatprep.mubr.bf16.mxu0 0
      %6920 = vmatmul.mubr.bf16.gmra.mrb[0].mxu0 %v5879
      %v6921 = vpop.f32.mrb[0].mxu0
      %v6922 = vadd.f32 %v5962, %v6921
      %v6923 = vpop.f32.mrb[0].mxu0
      %v6924 = vadd.f32 %v5966, %v6923
      %v6925 = vpop.f32.mrb[0].mxu0
      %v6926 = vadd.f32 %v5962, %v6925
      %v6927 = vpop.f32.mrb[0].mxu0
      %v6928 = vadd.f32 %v5966, %v6927
      %6929 = vmatprep.mubr.bf16.mxu0 0
      %6930 = vmatmul.mubr.bf16.gmra.mrb[0].mxu0 %v5880
      %v6931 = vpop.f32.mrb[0].mxu0
      %v6932 = vadd.f32 %v5962, %v6931
      %v6933 = vpop.f32.mrb[0].mxu0
      %v6934 = vadd.f32 %v5966, %v6933
      %v6935 = vpop.f32.mrb[0].mxu0
      %v6936 = vadd.f32 %v5962, %v6935
      %v6937 = vpop.f32.mrb[0].mxu0
      %v6938 = vadd.f32 %v5966, %v6937
      %6939 = vmatprep.mubr.bf16.mxu0 0
      %6940 = vmatmul.mubr.bf16.gmra.mrb[0].mxu0 %v5881
      %v6941 = vpop.f32.mrb[0].mxu0
      %v6942 = vadd.f32 %v5962, %v6941
      %v6943 = vpop.f32.mrb[0].mxu0
      %v6944 = vadd.f32 %v5966, %v6943
      %v6945 = vpop.f32.mrb[0].mxu0
      %v6946 = vadd.f32 %v5962, %v6945
      %v6947 = vpop.f32.mrb[0].mxu0
      %v6948 = vadd.f32 %v5966, %v6947
      %6949 = vmatprep.mubr.bf16.mxu0 0
      %6950 = vmatmul.mubr.bf16.gmra.mrb[0].mxu0 %v5882
      %v6951 = vpop.f32.mrb[0].mxu0
      %v6952 = vadd.f32 %v5962, %v6951
      %v6953 = vpop.f32.mrb[0].mxu0
      %v6954 = vadd.f32 %v5966, %v6953
      %v6955 = vpop.f32.mrb[0].mxu0
      %v6956 = vadd.f32 %v5962, %v6955
      %v6957 = vpop.f32.mrb[0].mxu0
      %v6958 = vadd.f32 %v5966, %v6957
      %6959 = vmatprep.mubr.bf16.mxu0 0
      %6960 = vmatmul.mubr.bf16.gmra.mrb[0].mxu0 %v5883
      %v6961 = vpop.f32.mrb[0].mxu0
      %v6962 = vadd.f32 %v5962, %v6961
      %v6963 = vpop.f32.mrb[0].mxu0
      %v6964 = vadd.f32 %v5966, %v6963
      %v6965 = vpop.f32.mrb[0].mxu0
      %v6966 = vadd.f32 %v5962, %v6965
      %v6967 = vpop.f32.mrb[0].mxu0
      %v6968 = vadd.f32 %v5966, %v6967
      %6969 = vmatprep.mubr.bf16.mxu0 0
      %6970 = vmatmul.mubr.bf16.gmra.mrb[0].mxu0 %v5884
      %v6971 = vpop.f32.mrb[0].mxu0
      %v6972 = vadd.f32 %v5962, %v6971
      %v6973 = vpop.f32.mrb[0].mxu0
      %v6974 = vadd.f32 %v5966, %v6973
      %v6975 = vpop.f32.mrb[0].mxu0
      %v6976 = vadd.f32 %v5962, %v6975
      %v6977 = vpop.f32.mrb[0].mxu0
      %v6978 = vadd.f32 %v5966, %v6977
      %6979 = vdwg.mxu0
      %6980 = vmatprep.subr.bf16.mxu0 %v6167
      %6981 = vmatpush1.bf16.msra.mxu0 %v6166
      %6982 = vmatprep.subr.bf16.mxu0 %v6174
      %6983 = vmatpush1.bf16.msra.mxu0 %v6173
      %6984 = vmatprep.subr.bf16.mxu0 %v6181
      %6985 = vmatpush1.bf16.msra.mxu0 %v6180
      %6986 = vmatprep.subr.bf16.mxu0 %v6188
      %6987 = vmatpush1.bf16.msra.mxu0 %v6187
      %6988 = vmatprep.subr.bf16.mxu0 %v6195
      %6989 = vmatpush1.bf16.msra.mxu0 %v6194
      %6990 = vmatprep.subr.bf16.mxu0 %v6202
      %6991 = vmatpush1.bf16.msra.mxu0 %v6201
      %6992 = vmatprep.subr.bf16.mxu0 %v6209
      %6993 = vmatpush1.bf16.msra.mxu0 %v6208
      %6994 = vmatprep.subr.bf16.mxu0 %v6216
      %6995 = vmatpush1.bf16.msra.mxu0 %v6215
      %6996 = vmatprep.subr.bf16.mxu0 0
      %6997 = vmatpush1.bf16.msra.mxu0 0
      %6998 = vmatprep.subr.bf16.mxu0 0
      %6999 = vmatpush1.bf16.msra.mxu0 0
      %7000 = vmatprep.subr.bf16.mxu0 0
      %7001 = vmatpush1.bf16.msra.mxu0 0
      %7002 = vmatprep.subr.bf16.mxu0 0
      %7003 = vmatpush1.bf16.msra.mxu0 0
      %7004 = vmatprep.subr.bf16.mxu0 0
      %7005 = vmatpush1.bf16.msra.mxu0 0
      %7006 = vmatprep.subr.bf16.mxu0 0
      %7007 = vmatpush1.bf16.msra.mxu0 0
      %7008 = vmatprep.subr.bf16.mxu0 0
      %7009 = vmatpush1.bf16.msra.mxu0 0
      %7010 = vmatprep.subr.bf16.mxu0 0
      %7011 = vmatpush1.bf16.msra.mxu0 0
      %7012 = vmatprep.mubr.bf16.mxu0 0
      %7013 = vmatmul.mubr.bf16.gmra.mrb[0].mxu0 %v5853
      %v7014 = vpop.f32.mrb[0].mxu0
      %v7015 = vadd.f32 %v5970, %v7014
      %v7016 = vpop.f32.mrb[0].mxu0
      %v7017 = vadd.f32 %v5974, %v7016
      %v7018 = vpop.f32.mrb[0].mxu0
      %v7019 = vadd.f32 %v5970, %v7018
      %v7020 = vpop.f32.mrb[0].mxu0
      %v7021 = vadd.f32 %v5974, %v7020
      %7022 = vmatprep.mubr.bf16.mxu0 0
      %7023 = vmatmul.mubr.bf16.gmra.mrb[0].mxu0 %v5854
      %v7024 = vpop.f32.mrb[0].mxu0
      %v7025 = vadd.f32 %v5970, %v7024
      %v7026 = vpop.f32.mrb[0].mxu0
      %v7027 = vadd.f32 %v5974, %v7026
      %v7028 = vpop.f32.mrb[0].mxu0
      %v7029 = vadd.f32 %v5970, %v7028
      %v7030 = vpop.f32.mrb[0].mxu0
      %v7031 = vadd.f32 %v5974, %v7030
      %7032 = vmatprep.mubr.bf16.mxu0 0
      %7033 = vmatmul.mubr.bf16.gmra.mrb[0].mxu0 %v5855
      %v7034 = vpop.f32.mrb[0].mxu0
      %v7035 = vadd.f32 %v5970, %v7034
      %v7036 = vpop.f32.mrb[0].mxu0
      %v7037 = vadd.f32 %v5974, %v7036
      %v7038 = vpop.f32.mrb[0].mxu0
      %v7039 = vadd.f32 %v5970, %v7038
      %v7040 = vpop.f32.mrb[0].mxu0
      %v7041 = vadd.f32 %v5974, %v7040
      %7042 = vmatprep.mubr.bf16.mxu0 0
      %7043 = vmatmul.mubr.bf16.gmra.mrb[0].mxu0 %v5856
      %v7044 = vpop.f32.mrb[0].mxu0
      %v7045 = vadd.f32 %v5970, %v7044
      %v7046 = vpop.f32.mrb[0].mxu0
      %v7047 = vadd.f32 %v5974, %v7046
      %v7048 = vpop.f32.mrb[0].mxu0
      %v7049 = vadd.f32 %v5970, %v7048
      %v7050 = vpop.f32.mrb[0].mxu0
      %v7051 = vadd.f32 %v5974, %v7050
      %7052 = vmatprep.mubr.bf16.mxu0 0
      %7053 = vmatmul.mubr.bf16.gmra.mrb[0].mxu0 %v5857
      %v7054 = vpop.f32.mrb[0].mxu0
      %v7055 = vadd.f32 %v5970, %v7054
      %v7056 = vpop.f32.mrb[0].mxu0
      %v7057 = vadd.f32 %v5974, %v7056
      %v7058 = vpop.f32.mrb[0].mxu0
      %v7059 = vadd.f32 %v5970, %v7058
      %v7060 = vpop.f32.mrb[0].mxu0
      %v7061 = vadd.f32 %v5974, %v7060
      %7062 = vmatprep.mubr.bf16.mxu0 0
      %7063 = vmatmul.mubr.bf16.gmra.mrb[0].mxu0 %v5858
      %v7064 = vpop.f32.mrb[0].mxu0
      %v7065 = vadd.f32 %v5970, %v7064
      %v7066 = vpop.f32.mrb[0].mxu0
      %v7067 = vadd.f32 %v5974, %v7066
      %v7068 = vpop.f32.mrb[0].mxu0
      %v7069 = vadd.f32 %v5970, %v7068
      %v7070 = vpop.f32.mrb[0].mxu0
      %v7071 = vadd.f32 %v5974, %v7070
      %7072 = vmatprep.mubr.bf16.mxu0 0
      %7073 = vmatmul.mubr.bf16.gmra.mrb[0].mxu0 %v5859
      %v7074 = vpop.f32.mrb[0].mxu0
      %v7075 = vadd.f32 %v5970, %v7074
      %v7076 = vpop.f32.mrb[0].mxu0
      %v7077 = vadd.f32 %v5974, %v7076
      %v7078 = vpop.f32.mrb[0].mxu0
      %v7079 = vadd.f32 %v5970, %v7078
      %v7080 = vpop.f32.mrb[0].mxu0
      %v7081 = vadd.f32 %v5974, %v7080
      %7082 = vmatprep.mubr.bf16.mxu0 0
      %7083 = vmatmul.mubr.bf16.gmra.mrb[0].mxu0 %v5860
      %v7084 = vpop.f32.mrb[0].mxu0
      %v7085 = vadd.f32 %v5970, %v7084
      %v7086 = vpop.f32.mrb[0].mxu0
      %v7087 = vadd.f32 %v5974, %v7086
      %v7088 = vpop.f32.mrb[0].mxu0
      %v7089 = vadd.f32 %v5970, %v7088
      %v7090 = vpop.f32.mrb[0].mxu0
      %v7091 = vadd.f32 %v5974, %v7090
      %7092 = vmatprep.mubr.bf16.mxu0 0
      %7093 = vmatmul.mubr.bf16.gmra.mrb[0].mxu0 %v5861
      %v7094 = vpop.f32.mrb[0].mxu0
      %v7095 = vadd.f32 %v5970, %v7094
      %v7096 = vpop.f32.mrb[0].mxu0
      %v7097 = vadd.f32 %v5974, %v7096
      %v7098 = vpop.f32.mrb[0].mxu0
      %v7099 = vadd.f32 %v5970, %v7098
      %v7100 = vpop.f32.mrb[0].mxu0
      %v7101 = vadd.f32 %v5974, %v7100
      %7102 = vmatprep.mubr.bf16.mxu0 0
      %7103 = vmatmul.mubr.bf16.gmra.mrb[0].mxu0 %v5862
      %v7104 = vpop.f32.mrb[0].mxu0
      %v7105 = vadd.f32 %v5970, %v7104
      %v7106 = vpop.f32.mrb[0].mxu0
      %v7107 = vadd.f32 %v5974, %v7106
      %v7108 = vpop.f32.mrb[0].mxu0
      %v7109 = vadd.f32 %v5970, %v7108
      %v7110 = vpop.f32.mrb[0].mxu0
      %v7111 = vadd.f32 %v5974, %v7110
      %7112 = vmatprep.mubr.bf16.mxu0 0
      %7113 = vmatmul.mubr.bf16.gmra.mrb[0].mxu0 %v5863
      %v7114 = vpop.f32.mrb[0].mxu0
      %v7115 = vadd.f32 %v5970, %v7114
      %v7116 = vpop.f32.mrb[0].mxu0
      %v7117 = vadd.f32 %v5974, %v7116
      %v7118 = vpop.f32.mrb[0].mxu0
      %v7119 = vadd.f32 %v5970, %v7118
      %v7120 = vpop.f32.mrb[0].mxu0
      %v7121 = vadd.f32 %v5974, %v7120
      %7122 = vmatprep.mubr.bf16.mxu0 0
      %7123 = vmatmul.mubr.bf16.gmra.mrb[0].mxu0 %v5864
      %v7124 = vpop.f32.mrb[0].mxu0
      %v7125 = vadd.f32 %v5970, %v7124
      %v7126 = vpop.f32.mrb[0].mxu0
      %v7127 = vadd.f32 %v5974, %v7126
      %v7128 = vpop.f32.mrb[0].mxu0
      %v7129 = vadd.f32 %v5970, %v7128
      %v7130 = vpop.f32.mrb[0].mxu0
      %v7131 = vadd.f32 %v5974, %v7130
      %7132 = vmatprep.mubr.bf16.mxu0 0
      %7133 = vmatmul.mubr.bf16.gmra.mrb[0].mxu0 %v5865
      %v7134 = vpop.f32.mrb[0].mxu0
      %v7135 = vadd.f32 %v5970, %v7134
      %v7136 = vpop.f32.mrb[0].mxu0
      %v7137 = vadd.f32 %v5974, %v7136
      %v7138 = vpop.f32.mrb[0].mxu0
      %v7139 = vadd.f32 %v5970, %v7138
      %v7140 = vpop.f32.mrb[0].mxu0
      %v7141 = vadd.f32 %v5974, %v7140
      %7142 = vmatprep.mubr.bf16.mxu0 0
      %7143 = vmatmul.mubr.bf16.gmra.mrb[0].mxu0 %v5866
      %v7144 = vpop.f32.mrb[0].mxu0
      %v7145 = vadd.f32 %v5970, %v7144
      %v7146 = vpop.f32.mrb[0].mxu0
      %v7147 = vadd.f32 %v5974, %v7146
      %v7148 = vpop.f32.mrb[0].mxu0
      %v7149 = vadd.f32 %v5970, %v7148
      %v7150 = vpop.f32.mrb[0].mxu0
      %v7151 = vadd.f32 %v5974, %v7150
      %7152 = vmatprep.mubr.bf16.mxu0 0
      %7153 = vmatmul.mubr.bf16.gmra.mrb[0].mxu0 %v5867
      %v7154 = vpop.f32.mrb[0].mxu0
      %v7155 = vadd.f32 %v5970, %v7154
      %v7156 = vpop.f32.mrb[0].mxu0
      %v7157 = vadd.f32 %v5974, %v7156
      %v7158 = vpop.f32.mrb[0].mxu0
      %v7159 = vadd.f32 %v5970, %v7158
      %v7160 = vpop.f32.mrb[0].mxu0
      %v7161 = vadd.f32 %v5974, %v7160
      %7162 = vmatprep.mubr.bf16.mxu0 0
      %7163 = vmatmul.mubr.bf16.gmra.mrb[0].mxu0 %v5868
      %v7164 = vpop.f32.mrb[0].mxu0
      %v7165 = vadd.f32 %v5970, %v7164
      %v7166 = vpop.f32.mrb[0].mxu0
      %v7167 = vadd.f32 %v5974, %v7166
      %v7168 = vpop.f32.mrb[0].mxu0
      %v7169 = vadd.f32 %v5970, %v7168
      %v7170 = vpop.f32.mrb[0].mxu0
      %v7171 = vadd.f32 %v5974, %v7170
      %7172 = vmatprep.mubr.bf16.mxu0 0
      %7173 = vmatmul.mubr.bf16.gmra.mrb[0].mxu0 %v5869
      %v7174 = vpop.f32.mrb[0].mxu0
      %v7175 = vadd.f32 %v5970, %v7174
      %v7176 = vpop.f32.mrb[0].mxu0
      %v7177 = vadd.f32 %v5974, %v7176
      %v7178 = vpop.f32.mrb[0].mxu0
      %v7179 = vadd.f32 %v5970, %v7178
      %v7180 = vpop.f32.mrb[0].mxu0
      %v7181 = vadd.f32 %v5974, %v7180
      %7182 = vmatprep.mubr.bf16.mxu0 0
      %7183 = vmatmul.mubr.bf16.gmra.mrb[0].mxu0 %v5870
      %v7184 = vpop.f32.mrb[0].mxu0
      %v7185 = vadd.f32 %v5970, %v7184
      %v7186 = vpop.f32.mrb[0].mxu0
      %v7187 = vadd.f32 %v5974, %v7186
      %v7188 = vpop.f32.mrb[0].mxu0
      %v7189 = vadd.f32 %v5970, %v7188
      %v7190 = vpop.f32.mrb[0].mxu0
      %v7191 = vadd.f32 %v5974, %v7190
      %7192 = vmatprep.mubr.bf16.mxu0 0
      %7193 = vmatmul.mubr.bf16.gmra.mrb[0].mxu0 %v5871
      %v7194 = vpop.f32.mrb[0].mxu0
      %v7195 = vadd.f32 %v5970, %v7194
      %v7196 = vpop.f32.mrb[0].mxu0
      %v7197 = vadd.f32 %v5974, %v7196
      %v7198 = vpop.f32.mrb[0].mxu0
      %v7199 = vadd.f32 %v5970, %v7198
      %v7200 = vpop.f32.mrb[0].mxu0
      %v7201 = vadd.f32 %v5974, %v7200
      %7202 = vmatprep.mubr.bf16.mxu0 0
      %7203 = vmatmul.mubr.bf16.gmra.mrb[0].mxu0 %v5872
      %v7204 = vpop.f32.mrb[0].mxu0
      %v7205 = vadd.f32 %v5970, %v7204
      %v7206 = vpop.f32.mrb[0].mxu0
      %v7207 = vadd.f32 %v5974, %v7206
      %v7208 = vpop.f32.mrb[0].mxu0
      %v7209 = vadd.f32 %v5970, %v7208
      %v7210 = vpop.f32.mrb[0].mxu0
      %v7211 = vadd.f32 %v5974, %v7210
      %7212 = vmatprep.mubr.bf16.mxu0 0
      %7213 = vmatmul.mubr.bf16.gmra.mrb[0].mxu0 %v5873
      %v7214 = vpop.f32.mrb[0].mxu0
      %v7215 = vadd.f32 %v5970, %v7214
      %v7216 = vpop.f32.mrb[0].mxu0
      %v7217 = vadd.f32 %v5974, %v7216
      %v7218 = vpop.f32.mrb[0].mxu0
      %v7219 = vadd.f32 %v5970, %v7218
      %v7220 = vpop.f32.mrb[0].mxu0
      %v7221 = vadd.f32 %v5974, %v7220
      %7222 = vmatprep.mubr.bf16.mxu0 0
      %7223 = vmatmul.mubr.bf16.gmra.mrb[0].mxu0 %v5874
      %v7224 = vpop.f32.mrb[0].mxu0
      %v7225 = vadd.f32 %v5970, %v7224
      %v7226 = vpop.f32.mrb[0].mxu0
      %v7227 = vadd.f32 %v5974, %v7226
      %v7228 = vpop.f32.mrb[0].mxu0
      %v7229 = vadd.f32 %v5970, %v7228
      %v7230 = vpop.f32.mrb[0].mxu0
      %v7231 = vadd.f32 %v5974, %v7230
      %7232 = vmatprep.mubr.bf16.mxu0 0
      %7233 = vmatmul.mubr.bf16.gmra.mrb[0].mxu0 %v5875
      %v7234 = vpop.f32.mrb[0].mxu0
      %v7235 = vadd.f32 %v5970, %v7234
      %v7236 = vpop.f32.mrb[0].mxu0
      %v7237 = vadd.f32 %v5974, %v7236
      %v7238 = vpop.f32.mrb[0].mxu0
      %v7239 = vadd.f32 %v5970, %v7238
      %v7240 = vpop.f32.mrb[0].mxu0
      %v7241 = vadd.f32 %v5974, %v7240
      %7242 = vmatprep.mubr.bf16.mxu0 0
      %7243 = vmatmul.mubr.bf16.gmra.mrb[0].mxu0 %v5876
      %v7244 = vpop.f32.mrb[0].mxu0
      %v7245 = vadd.f32 %v5970, %v7244
      %v7246 = vpop.f32.mrb[0].mxu0
      %v7247 = vadd.f32 %v5974, %v7246
      %v7248 = vpop.f32.mrb[0].mxu0
      %v7249 = vadd.f32 %v5970, %v7248
      %v7250 = vpop.f32.mrb[0].mxu0
      %v7251 = vadd.f32 %v5974, %v7250
      %7252 = vmatprep.mubr.bf16.mxu0 0
      %7253 = vmatmul.mubr.bf16.gmra.mrb[0].mxu0 %v5877
      %v7254 = vpop.f32.mrb[0].mxu0
      %v7255 = vadd.f32 %v5970, %v7254
      %v7256 = vpop.f32.mrb[0].mxu0
      %v7257 = vadd.f32 %v5974, %v7256
      %v7258 = vpop.f32.mrb[0].mxu0
      %v7259 = vadd.f32 %v5970, %v7258
      %v7260 = vpop.f32.mrb[0].mxu0
      %v7261 = vadd.f32 %v5974, %v7260
      %7262 = vmatprep.mubr.bf16.mxu0 0
      %7263 = vmatmul.mubr.bf16.gmra.mrb[0].mxu0 %v5878
      %v7264 = vpop.f32.mrb[0].mxu0
      %v7265 = vadd.f32 %v5970, %v7264
      %v7266 = vpop.f32.mrb[0].mxu0
      %v7267 = vadd.f32 %v5974, %v7266
      %v7268 = vpop.f32.mrb[0].mxu0
      %v7269 = vadd.f32 %v5970, %v7268
      %v7270 = vpop.f32.mrb[0].mxu0
      %v7271 = vadd.f32 %v5974, %v7270
      %7272 = vmatprep.mubr.bf16.mxu0 0
      %7273 = vmatmul.mubr.bf16.gmra.mrb[0].mxu0 %v5879
      %v7274 = vpop.f32.mrb[0].mxu0
      %v7275 = vadd.f32 %v5970, %v7274
      %v7276 = vpop.f32.mrb[0].mxu0
      %v7277 = vadd.f32 %v5974, %v7276
      %v7278 = vpop.f32.mrb[0].mxu0
      %v7279 = vadd.f32 %v5970, %v7278
      %v7280 = vpop.f32.mrb[0].mxu0
      %v7281 = vadd.f32 %v5974, %v7280
      %7282 = vmatprep.mubr.bf16.mxu0 0
      %7283 = vmatmul.mubr.bf16.gmra.mrb[0].mxu0 %v5880
      %v7284 = vpop.f32.mrb[0].mxu0
      %v7285 = vadd.f32 %v5970, %v7284
      %v7286 = vpop.f32.mrb[0].mxu0
      %v7287 = vadd.f32 %v5974, %v7286
      %v7288 = vpop.f32.mrb[0].mxu0
      %v7289 = vadd.f32 %v5970, %v7288
      %v7290 = vpop.f32.mrb[0].mxu0
      %v7291 = vadd.f32 %v5974, %v7290
      %7292 = vmatprep.mubr.bf16.mxu0 0
      %7293 = vmatmul.mubr.bf16.gmra.mrb[0].mxu0 %v5881
      %v7294 = vpop.f32.mrb[0].mxu0
      %v7295 = vadd.f32 %v5970, %v7294
      %v7296 = vpop.f32.mrb[0].mxu0
      %v7297 = vadd.f32 %v5974, %v7296
      %v7298 = vpop.f32.mrb[0].mxu0
      %v7299 = vadd.f32 %v5970, %v7298
      %v7300 = vpop.f32.mrb[0].mxu0
      %v7301 = vadd.f32 %v5974, %v7300
      %7302 = vmatprep.mubr.bf16.mxu0 0
      %7303 = vmatmul.mubr.bf16.gmra.mrb[0].mxu0 %v5882
      %v7304 = vpop.f32.mrb[0].mxu0
      %v7305 = vadd.f32 %v5970, %v7304
      %v7306 = vpop.f32.mrb[0].mxu0
      %v7307 = vadd.f32 %v5974, %v7306
      %v7308 = vpop.f32.mrb[0].mxu0
      %v7309 = vadd.f32 %v5970, %v7308
      %v7310 = vpop.f32.mrb[0].mxu0
      %v7311 = vadd.f32 %v5974, %v7310
      %7312 = vmatprep.mubr.bf16.mxu0 0
      %7313 = vmatmul.mubr.bf16.gmra.mrb[0].mxu0 %v5883
      %v7314 = vpop.f32.mrb[0].mxu0
      %v7315 = vadd.f32 %v5970, %v7314
      %v7316 = vpop.f32.mrb[0].mxu0
      %v7317 = vadd.f32 %v5974, %v7316
      %v7318 = vpop.f32.mrb[0].mxu0
      %v7319 = vadd.f32 %v5970, %v7318
      %v7320 = vpop.f32.mrb[0].mxu0
      %v7321 = vadd.f32 %v5974, %v7320
      %7322 = vmatprep.mubr.bf16.mxu0 0
      %7323 = vmatmul.mubr.bf16.gmra.mrb[0].mxu0 %v5884
      %v7324 = vpop.f32.mrb[0].mxu0
      %v7325 = vadd.f32 %v5970, %v7324
      %v7326 = vpop.f32.mrb[0].mxu0
      %v7327 = vadd.f32 %v5974, %v7326
      %v7328 = vpop.f32.mrb[0].mxu0
      %v7329 = vadd.f32 %v5970, %v7328
      %v7330 = vpop.f32.mrb[0].mxu0
      %v7331 = vadd.f32 %v5974, %v7330
      %7332 = vdwg.mxu0
      %7333 = vmatprep.subr.bf16.mxu0 0
      %7334 = vmatpush1.bf16.msra.mxu0 %v6168
      %7335 = vmatprep.subr.bf16.mxu0 0
      %7336 = vmatpush1.bf16.msra.mxu0 %v6175
      %7337 = vmatprep.subr.bf16.mxu0 0
      %7338 = vmatpush1.bf16.msra.mxu0 %v6182
      %7339 = vmatprep.subr.bf16.mxu0 0
      %7340 = vmatpush1.bf16.msra.mxu0 %v6189
      %7341 = vmatprep.subr.bf16.mxu0 0
      %7342 = vmatpush1.bf16.msra.mxu0 %v6196
      %7343 = vmatprep.subr.bf16.mxu0 0
      %7344 = vmatpush1.bf16.msra.mxu0 %v6203
      %7345 = vmatprep.subr.bf16.mxu0 0
      %7346 = vmatpush1.bf16.msra.mxu0 %v6210
      %7347 = vmatprep.subr.bf16.mxu0 0
      %7348 = vmatpush1.bf16.msra.mxu0 %v6217
      %7349 = vmatprep.subr.bf16.mxu0 0
      %7350 = vmatpush1.bf16.msra.mxu0 0
      %7351 = vmatprep.subr.bf16.mxu0 0
      %7352 = vmatpush1.bf16.msra.mxu0 0
      %7353 = vmatprep.subr.bf16.mxu0 0
      %7354 = vmatpush1.bf16.msra.mxu0 0
      %7355 = vmatprep.subr.bf16.mxu0 0
      %7356 = vmatpush1.bf16.msra.mxu0 0
      %7357 = vmatprep.subr.bf16.mxu0 0
      %7358 = vmatpush1.bf16.msra.mxu0 0
      %7359 = vmatprep.subr.bf16.mxu0 0
      %7360 = vmatpush1.bf16.msra.mxu0 0
      %7361 = vmatprep.subr.bf16.mxu0 0
      %7362 = vmatpush1.bf16.msra.mxu0 0
      %7363 = vmatprep.subr.bf16.mxu0 0
      %7364 = vmatpush1.bf16.msra.mxu0 0
      %7365 = vmatprep.mubr.bf16.mxu0 0
      %7366 = vmatmul.mubr.bf16.gmra.mrb[0].mxu0 %v5853
      %v7367 = vpop.f32.mrb[0].mxu0
      %v7368 = vadd.f32 %v5978, %v7367
      %v7369 = vpop.f32.mrb[0].mxu0
      %v7370 = vpop.f32.mrb[0].mxu0
      %v7371 = vadd.f32 %v5978, %v7370
      %v7372 = vpop.f32.mrb[0].mxu0
      %7373 = vmatprep.mubr.bf16.mxu0 0
      %7374 = vmatmul.mubr.bf16.gmra.mrb[0].mxu0 %v5854
      %v7375 = vpop.f32.mrb[0].mxu0
      %v7376 = vadd.f32 %v5978, %v7375
      %v7377 = vpop.f32.mrb[0].mxu0
      %v7378 = vpop.f32.mrb[0].mxu0
      %v7379 = vadd.f32 %v5978, %v7378
      %v7380 = vpop.f32.mrb[0].mxu0
      %7381 = vmatprep.mubr.bf16.mxu0 0
      %7382 = vmatmul.mubr.bf16.gmra.mrb[0].mxu0 %v5855
      %v7383 = vpop.f32.mrb[0].mxu0
      %v7384 = vadd.f32 %v5978, %v7383
      %v7385 = vpop.f32.mrb[0].mxu0
      %v7386 = vpop.f32.mrb[0].mxu0
      %v7387 = vadd.f32 %v5978, %v7386
      %v7388 = vpop.f32.mrb[0].mxu0
      %7389 = vmatprep.mubr.bf16.mxu0 0
      %7390 = vmatmul.mubr.bf16.gmra.mrb[0].mxu0 %v5856
      %v7391 = vpop.f32.mrb[0].mxu0
      %v7392 = vadd.f32 %v5978, %v7391
      %v7393 = vpop.f32.mrb[0].mxu0
      %v7394 = vpop.f32.mrb[0].mxu0
      %v7395 = vadd.f32 %v5978, %v7394
      %v7396 = vpop.f32.mrb[0].mxu0
      %7397 = vmatprep.mubr.bf16.mxu0 0
      %7398 = vmatmul.mubr.bf16.gmra.mrb[0].mxu0 %v5857
      %v7399 = vpop.f32.mrb[0].mxu0
      %v7400 = vadd.f32 %v5978, %v7399
      %v7401 = vpop.f32.mrb[0].mxu0
      %v7402 = vpop.f32.mrb[0].mxu0
      %v7403 = vadd.f32 %v5978, %v7402
      %v7404 = vpop.f32.mrb[0].mxu0
      %7405 = vmatprep.mubr.bf16.mxu0 0
      %7406 = vmatmul.mubr.bf16.gmra.mrb[0].mxu0 %v5858
      %v7407 = vpop.f32.mrb[0].mxu0
      %v7408 = vadd.f32 %v5978, %v7407
      %v7409 = vpop.f32.mrb[0].mxu0
      %v7410 = vpop.f32.mrb[0].mxu0
      %v7411 = vadd.f32 %v5978, %v7410
      %v7412 = vpop.f32.mrb[0].mxu0
      %7413 = vmatprep.mubr.bf16.mxu0 0
      %7414 = vmatmul.mubr.bf16.gmra.mrb[0].mxu0 %v5859
      %v7415 = vpop.f32.mrb[0].mxu0
      %v7416 = vadd.f32 %v5978, %v7415
      %v7417 = vpop.f32.mrb[0].mxu0
      %v7418 = vpop.f32.mrb[0].mxu0
      %v7419 = vadd.f32 %v5978, %v7418
      %v7420 = vpop.f32.mrb[0].mxu0
      %7421 = vmatprep.mubr.bf16.mxu0 0
      %7422 = vmatmul.mubr.bf16.gmra.mrb[0].mxu0 %v5860
      %v7423 = vpop.f32.mrb[0].mxu0
      %v7424 = vadd.f32 %v5978, %v7423
      %v7425 = vpop.f32.mrb[0].mxu0
      %v7426 = vpop.f32.mrb[0].mxu0
      %v7427 = vadd.f32 %v5978, %v7426
      %v7428 = vpop.f32.mrb[0].mxu0
      %7429 = vmatprep.mubr.bf16.mxu0 0
      %7430 = vmatmul.mubr.bf16.gmra.mrb[0].mxu0 %v5861
      %v7431 = vpop.f32.mrb[0].mxu0
      %v7432 = vadd.f32 %v5978, %v7431
      %v7433 = vpop.f32.mrb[0].mxu0
      %v7434 = vpop.f32.mrb[0].mxu0
      %v7435 = vadd.f32 %v5978, %v7434
      %v7436 = vpop.f32.mrb[0].mxu0
      %7437 = vmatprep.mubr.bf16.mxu0 0
      %7438 = vmatmul.mubr.bf16.gmra.mrb[0].mxu0 %v5862
      %v7439 = vpop.f32.mrb[0].mxu0
      %v7440 = vadd.f32 %v5978, %v7439
      %v7441 = vpop.f32.mrb[0].mxu0
      %v7442 = vpop.f32.mrb[0].mxu0
      %v7443 = vadd.f32 %v5978, %v7442
      %v7444 = vpop.f32.mrb[0].mxu0
      %7445 = vmatprep.mubr.bf16.mxu0 0
      %7446 = vmatmul.mubr.bf16.gmra.mrb[0].mxu0 %v5863
      %v7447 = vpop.f32.mrb[0].mxu0
      %v7448 = vadd.f32 %v5978, %v7447
      %v7449 = vpop.f32.mrb[0].mxu0
      %v7450 = vpop.f32.mrb[0].mxu0
      %v7451 = vadd.f32 %v5978, %v7450
      %v7452 = vpop.f32.mrb[0].mxu0
      %7453 = vmatprep.mubr.bf16.mxu0 0
      %7454 = vmatmul.mubr.bf16.gmra.mrb[0].mxu0 %v5864
      %v7455 = vpop.f32.mrb[0].mxu0
      %v7456 = vadd.f32 %v5978, %v7455
      %v7457 = vpop.f32.mrb[0].mxu0
      %v7458 = vpop.f32.mrb[0].mxu0
      %v7459 = vadd.f32 %v5978, %v7458
      %v7460 = vpop.f32.mrb[0].mxu0
      %7461 = vmatprep.mubr.bf16.mxu0 0
      %7462 = vmatmul.mubr.bf16.gmra.mrb[0].mxu0 %v5865
      %v7463 = vpop.f32.mrb[0].mxu0
      %v7464 = vadd.f32 %v5978, %v7463
      %v7465 = vpop.f32.mrb[0].mxu0
      %v7466 = vpop.f32.mrb[0].mxu0
      %v7467 = vadd.f32 %v5978, %v7466
      %v7468 = vpop.f32.mrb[0].mxu0
      %7469 = vmatprep.mubr.bf16.mxu0 0
      %7470 = vmatmul.mubr.bf16.gmra.mrb[0].mxu0 %v5866
      %v7471 = vpop.f32.mrb[0].mxu0
      %v7472 = vadd.f32 %v5978, %v7471
      %v7473 = vpop.f32.mrb[0].mxu0
      %v7474 = vpop.f32.mrb[0].mxu0
      %v7475 = vadd.f32 %v5978, %v7474
      %v7476 = vpop.f32.mrb[0].mxu0
      %7477 = vmatprep.mubr.bf16.mxu0 0
      %7478 = vmatmul.mubr.bf16.gmra.mrb[0].mxu0 %v5867
      %v7479 = vpop.f32.mrb[0].mxu0
      %v7480 = vadd.f32 %v5978, %v7479
      %v7481 = vpop.f32.mrb[0].mxu0
      %v7482 = vpop.f32.mrb[0].mxu0
      %v7483 = vadd.f32 %v5978, %v7482
      %v7484 = vpop.f32.mrb[0].mxu0
      %7485 = vmatprep.mubr.bf16.mxu0 0
      %7486 = vmatmul.mubr.bf16.gmra.mrb[0].mxu0 %v5868
      %v7487 = vpop.f32.mrb[0].mxu0
      %v7488 = vadd.f32 %v5978, %v7487
      %v7489 = vpop.f32.mrb[0].mxu0
      %v7490 = vpop.f32.mrb[0].mxu0
      %v7491 = vadd.f32 %v5978, %v7490
      %v7492 = vpop.f32.mrb[0].mxu0
      %7493 = vmatprep.mubr.bf16.mxu0 0
      %7494 = vmatmul.mubr.bf16.gmra.mrb[0].mxu0 %v5869
      %v7495 = vpop.f32.mrb[0].mxu0
      %v7496 = vadd.f32 %v5978, %v7495
      %v7497 = vpop.f32.mrb[0].mxu0
      %v7498 = vpop.f32.mrb[0].mxu0
      %v7499 = vadd.f32 %v5978, %v7498
      %v7500 = vpop.f32.mrb[0].mxu0
      %7501 = vmatprep.mubr.bf16.mxu0 0
      %7502 = vmatmul.mubr.bf16.gmra.mrb[0].mxu0 %v5870
      %v7503 = vpop.f32.mrb[0].mxu0
      %v7504 = vadd.f32 %v5978, %v7503
      %v7505 = vpop.f32.mrb[0].mxu0
      %v7506 = vpop.f32.mrb[0].mxu0
      %v7507 = vadd.f32 %v5978, %v7506
      %v7508 = vpop.f32.mrb[0].mxu0
      %7509 = vmatprep.mubr.bf16.mxu0 0
      %7510 = vmatmul.mubr.bf16.gmra.mrb[0].mxu0 %v5871
      %v7511 = vpop.f32.mrb[0].mxu0
      %v7512 = vadd.f32 %v5978, %v7511
      %v7513 = vpop.f32.mrb[0].mxu0
      %v7514 = vpop.f32.mrb[0].mxu0
      %v7515 = vadd.f32 %v5978, %v7514
      %v7516 = vpop.f32.mrb[0].mxu0
      %7517 = vmatprep.mubr.bf16.mxu0 0
      %7518 = vmatmul.mubr.bf16.gmra.mrb[0].mxu0 %v5872
      %v7519 = vpop.f32.mrb[0].mxu0
      %v7520 = vadd.f32 %v5978, %v7519
      %v7521 = vpop.f32.mrb[0].mxu0
      %v7522 = vpop.f32.mrb[0].mxu0
      %v7523 = vadd.f32 %v5978, %v7522
      %v7524 = vpop.f32.mrb[0].mxu0
      %7525 = vmatprep.mubr.bf16.mxu0 0
      %7526 = vmatmul.mubr.bf16.gmra.mrb[0].mxu0 %v5873
      %v7527 = vpop.f32.mrb[0].mxu0
      %v7528 = vadd.f32 %v5978, %v7527
      %v7529 = vpop.f32.mrb[0].mxu0
      %v7530 = vpop.f32.mrb[0].mxu0
      %v7531 = vadd.f32 %v5978, %v7530
      %v7532 = vpop.f32.mrb[0].mxu0
      %7533 = vmatprep.mubr.bf16.mxu0 0
      %7534 = vmatmul.mubr.bf16.gmra.mrb[0].mxu0 %v5874
      %v7535 = vpop.f32.mrb[0].mxu0
      %v7536 = vadd.f32 %v5978, %v7535
      %v7537 = vpop.f32.mrb[0].mxu0
      %v7538 = vpop.f32.mrb[0].mxu0
      %v7539 = vadd.f32 %v5978, %v7538
      %v7540 = vpop.f32.mrb[0].mxu0
      %7541 = vmatprep.mubr.bf16.mxu0 0
      %7542 = vmatmul.mubr.bf16.gmra.mrb[0].mxu0 %v5875
      %v7543 = vpop.f32.mrb[0].mxu0
      %v7544 = vadd.f32 %v5978, %v7543
      %v7545 = vpop.f32.mrb[0].mxu0
      %v7546 = vpop.f32.mrb[0].mxu0
      %v7547 = vadd.f32 %v5978, %v7546
      %v7548 = vpop.f32.mrb[0].mxu0
      %7549 = vmatprep.mubr.bf16.mxu0 0
      %7550 = vmatmul.mubr.bf16.gmra.mrb[0].mxu0 %v5876
      %v7551 = vpop.f32.mrb[0].mxu0
      %v7552 = vadd.f32 %v5978, %v7551
      %v7553 = vpop.f32.mrb[0].mxu0
      %v7554 = vpop.f32.mrb[0].mxu0
      %v7555 = vadd.f32 %v5978, %v7554
      %v7556 = vpop.f32.mrb[0].mxu0
      %7557 = vmatprep.mubr.bf16.mxu0 0
      %7558 = vmatmul.mubr.bf16.gmra.mrb[0].mxu0 %v5877
      %v7559 = vpop.f32.mrb[0].mxu0
      %v7560 = vadd.f32 %v5978, %v7559
      %v7561 = vpop.f32.mrb[0].mxu0
      %v7562 = vpop.f32.mrb[0].mxu0
      %v7563 = vadd.f32 %v5978, %v7562
      %v7564 = vpop.f32.mrb[0].mxu0
      %7565 = vmatprep.mubr.bf16.mxu0 0
      %7566 = vmatmul.mubr.bf16.gmra.mrb[0].mxu0 %v5878
      %v7567 = vpop.f32.mrb[0].mxu0
      %v7568 = vadd.f32 %v5978, %v7567
      %v7569 = vpop.f32.mrb[0].mxu0
      %v7570 = vpop.f32.mrb[0].mxu0
      %v7571 = vadd.f32 %v5978, %v7570
      %v7572 = vpop.f32.mrb[0].mxu0
      %7573 = vmatprep.mubr.bf16.mxu0 0
      %7574 = vmatmul.mubr.bf16.gmra.mrb[0].mxu0 %v5879
      %v7575 = vpop.f32.mrb[0].mxu0
      %v7576 = vadd.f32 %v5978, %v7575
      %v7577 = vpop.f32.mrb[0].mxu0
      %v7578 = vpop.f32.mrb[0].mxu0
      %v7579 = vadd.f32 %v5978, %v7578
      %v7580 = vpop.f32.mrb[0].mxu0
      %7581 = vmatprep.mubr.bf16.mxu0 0
      %7582 = vmatmul.mubr.bf16.gmra.mrb[0].mxu0 %v5880
      %v7583 = vpop.f32.mrb[0].mxu0
      %v7584 = vadd.f32 %v5978, %v7583
      %v7585 = vpop.f32.mrb[0].mxu0
      %v7586 = vpop.f32.mrb[0].mxu0
      %v7587 = vadd.f32 %v5978, %v7586
      %v7588 = vpop.f32.mrb[0].mxu0
      %7589 = vmatprep.mubr.bf16.mxu0 0
      %7590 = vmatmul.mubr.bf16.gmra.mrb[0].mxu0 %v5881
      %v7591 = vpop.f32.mrb[0].mxu0
      %v7592 = vadd.f32 %v5978, %v7591
      %v7593 = vpop.f32.mrb[0].mxu0
      %v7594 = vpop.f32.mrb[0].mxu0
      %v7595 = vadd.f32 %v5978, %v7594
      %v7596 = vpop.f32.mrb[0].mxu0
      %7597 = vmatprep.mubr.bf16.mxu0 0
      %7598 = vmatmul.mubr.bf16.gmra.mrb[0].mxu0 %v5882
      %v7599 = vpop.f32.mrb[0].mxu0
      %v7600 = vadd.f32 %v5978, %v7599
      %v7601 = vpop.f32.mrb[0].mxu0
      %v7602 = vpop.f32.mrb[0].mxu0
      %v7603 = vadd.f32 %v5978, %v7602
      %v7604 = vpop.f32.mrb[0].mxu0
      %7605 = vmatprep.mubr.bf16.mxu0 0
      %7606 = vmatmul.mubr.bf16.gmra.mrb[0].mxu0 %v5883
      %v7607 = vpop.f32.mrb[0].mxu0
      %v7608 = vadd.f32 %v5978, %v7607
      %v7609 = vpop.f32.mrb[0].mxu0
      %v7610 = vpop.f32.mrb[0].mxu0
      %v7611 = vadd.f32 %v5978, %v7610
      %v7612 = vpop.f32.mrb[0].mxu0
      %7613 = vmatprep.mubr.bf16.mxu0 0
      %7614 = vmatmul.mubr.bf16.gmra.mrb[0].mxu0 %v5884
      %v7615 = vpop.f32.mrb[0].mxu0
      %v7616 = vadd.f32 %v5978, %v7615
      %v7617 = vpop.f32.mrb[0].mxu0
      %v7618 = vpop.f32.mrb[0].mxu0
      %v7619 = vadd.f32 %v5978, %v7618
      %v7620 = vpop.f32.mrb[0].mxu0
      %7621 = vdwg.mxu0
      %v7622 = vxor.u32 %v6309, 2147483648
      %v7623 = vxor.u32 %v6311, 2147483648
      %v7624 = vxor.u32 %v6662, 2147483648
      %v7625 = vxor.u32 %v6664, 2147483648
      %v7626 = vxor.u32 %v7015, 2147483648
      %v7627 = vxor.u32 %v7017, 2147483648
      %v7628 = vxor.u32 %v7368, 2147483648
      %v7629 = vxor.u32 %v6313, 2147483648
      %v7630 = vxor.u32 %v6315, 2147483648
      %v7631 = vxor.u32 %v6666, 2147483648
      %v7632 = vxor.u32 %v6668, 2147483648
      %v7633 = vxor.u32 %v7019, 2147483648
      %v7634 = vxor.u32 %v7021, 2147483648
      %v7635 = vxor.u32 %v7371, 2147483648
      %v7636 = vxor.u32 %v6319, 2147483648
      %v7637 = vxor.u32 %v6321, 2147483648
      %v7638 = vxor.u32 %v6672, 2147483648
      %v7639 = vxor.u32 %v6674, 2147483648
      %v7640 = vxor.u32 %v7025, 2147483648
      %v7641 = vxor.u32 %v7027, 2147483648
      %v7642 = vxor.u32 %v7376, 2147483648
      %v7643 = vxor.u32 %v6323, 2147483648
      %v7644 = vxor.u32 %v6325, 2147483648
      %v7645 = vxor.u32 %v6676, 2147483648
      %v7646 = vxor.u32 %v6678, 2147483648
      %v7647 = vxor.u32 %v7029, 2147483648
      %v7648 = vxor.u32 %v7031, 2147483648
      %v7649 = vxor.u32 %v7379, 2147483648
      %v7650 = vxor.u32 %v6329, 2147483648
      %v7651 = vxor.u32 %v6331, 2147483648
      %v7652 = vxor.u32 %v6682, 2147483648
      %v7653 = vxor.u32 %v6684, 2147483648
      %v7654 = vxor.u32 %v7035, 2147483648
      %v7655 = vxor.u32 %v7037, 2147483648
      %v7656 = vxor.u32 %v7384, 2147483648
      %v7657 = vxor.u32 %v6333, 2147483648
      %v7658 = vxor.u32 %v6335, 2147483648
      %v7659 = vxor.u32 %v6686, 2147483648
      %v7660 = vxor.u32 %v6688, 2147483648
      %v7661 = vxor.u32 %v7039, 2147483648
      %v7662 = vxor.u32 %v7041, 2147483648
      %v7663 = vxor.u32 %v7387, 2147483648
      %v7664 = vxor.u32 %v6339, 2147483648
      %v7665 = vxor.u32 %v6341, 2147483648
      %v7666 = vxor.u32 %v6692, 2147483648
      %v7667 = vxor.u32 %v6694, 2147483648
      %v7668 = vxor.u32 %v7045, 2147483648
      %v7669 = vxor.u32 %v7047, 2147483648
      %v7670 = vxor.u32 %v7392, 2147483648
      %v7671 = vxor.u32 %v6343, 2147483648
      %v7672 = vxor.u32 %v6345, 2147483648
      %v7673 = vxor.u32 %v6696, 2147483648
      %v7674 = vxor.u32 %v6698, 2147483648
      %v7675 = vxor.u32 %v7049, 2147483648
      %v7676 = vxor.u32 %v7051, 2147483648
      %v7677 = vxor.u32 %v7395, 2147483648
      %v7678 = vxor.u32 %v6349, 2147483648
      %v7679 = vxor.u32 %v6351, 2147483648
      %v7680 = vxor.u32 %v6702, 2147483648
      %v7681 = vxor.u32 %v6704, 2147483648
      %v7682 = vxor.u32 %v7055, 2147483648
      %v7683 = vxor.u32 %v7057, 2147483648
      %v7684 = vxor.u32 %v7400, 2147483648
      %v7685 = vxor.u32 %v6353, 2147483648
      %v7686 = vxor.u32 %v6355, 2147483648
      %v7687 = vxor.u32 %v6706, 2147483648
      %v7688 = vxor.u32 %v6708, 2147483648
      %v7689 = vxor.u32 %v7059, 2147483648
      %v7690 = vxor.u32 %v7061, 2147483648
      %v7691 = vxor.u32 %v7403, 2147483648
      %v7692 = vxor.u32 %v6359, 2147483648
      %v7693 = vxor.u32 %v6361, 2147483648
      %v7694 = vxor.u32 %v6712, 2147483648
      %v7695 = vxor.u32 %v6714, 2147483648
      %v7696 = vxor.u32 %v7065, 2147483648
      %v7697 = vxor.u32 %v7067, 2147483648
      %v7698 = vxor.u32 %v7408, 2147483648
      %v7699 = vxor.u32 %v6363, 2147483648
      %v7700 = vxor.u32 %v6365, 2147483648
      %v7701 = vxor.u32 %v6716, 2147483648
      %v7702 = vxor.u32 %v6718, 2147483648
      %v7703 = vxor.u32 %v7069, 2147483648
      %v7704 = vxor.u32 %v7071, 2147483648
      %v7705 = vxor.u32 %v7411, 2147483648
      %v7706 = vxor.u32 %v6369, 2147483648
      %v7707 = vxor.u32 %v6371, 2147483648
      %v7708 = vxor.u32 %v6722, 2147483648
      %v7709 = vxor.u32 %v6724, 2147483648
      %v7710 = vxor.u32 %v7075, 2147483648
      %v7711 = vxor.u32 %v7077, 2147483648
      %v7712 = vxor.u32 %v7416, 2147483648
      %v7713 = vxor.u32 %v6373, 2147483648
      %v7714 = vxor.u32 %v6375, 2147483648
      %v7715 = vxor.u32 %v6726, 2147483648
      %v7716 = vxor.u32 %v6728, 2147483648
      %v7717 = vxor.u32 %v7079, 2147483648
      %v7718 = vxor.u32 %v7081, 2147483648
      %v7719 = vxor.u32 %v7419, 2147483648
      %v7720 = vxor.u32 %v6379, 2147483648
      %v7721 = vxor.u32 %v6381, 2147483648
      %v7722 = vxor.u32 %v6732, 2147483648
      %v7723 = vxor.u32 %v6734, 2147483648
      %v7724 = vxor.u32 %v7085, 2147483648
      %v7725 = vxor.u32 %v7087, 2147483648
      %v7726 = vxor.u32 %v7424, 2147483648
      %v7727 = vxor.u32 %v6383, 2147483648
      %v7728 = vxor.u32 %v6385, 2147483648
      %v7729 = vxor.u32 %v6736, 2147483648
      %v7730 = vxor.u32 %v6738, 2147483648
      %v7731 = vxor.u32 %v7089, 2147483648
      %v7732 = vxor.u32 %v7091, 2147483648
      %v7733 = vxor.u32 %v7427, 2147483648
      %v7734 = vxor.u32 %v6389, 2147483648
      %v7735 = vxor.u32 %v6391, 2147483648
      %v7736 = vxor.u32 %v6742, 2147483648
      %v7737 = vxor.u32 %v6744, 2147483648
      %v7738 = vxor.u32 %v7095, 2147483648
      %v7739 = vxor.u32 %v7097, 2147483648
      %v7740 = vxor.u32 %v7432, 2147483648
      %v7741 = vxor.u32 %v6393, 2147483648
      %v7742 = vxor.u32 %v6395, 2147483648
      %v7743 = vxor.u32 %v6746, 2147483648
      %v7744 = vxor.u32 %v6748, 2147483648
      %v7745 = vxor.u32 %v7099, 2147483648
      %v7746 = vxor.u32 %v7101, 2147483648
      %v7747 = vxor.u32 %v7435, 2147483648
      %v7748 = vxor.u32 %v6399, 2147483648
      %v7749 = vxor.u32 %v6401, 2147483648
      %v7750 = vxor.u32 %v6752, 2147483648
      %v7751 = vxor.u32 %v6754, 2147483648
      %v7752 = vxor.u32 %v7105, 2147483648
      %v7753 = vxor.u32 %v7107, 2147483648
      %v7754 = vxor.u32 %v7440, 2147483648
      %v7755 = vxor.u32 %v6403, 2147483648
      %v7756 = vxor.u32 %v6405, 2147483648
      %v7757 = vxor.u32 %v6756, 2147483648
      %v7758 = vxor.u32 %v6758, 2147483648
      %v7759 = vxor.u32 %v7109, 2147483648
      %v7760 = vxor.u32 %v7111, 2147483648
      %v7761 = vxor.u32 %v7443, 2147483648
      %v7762 = vxor.u32 %v6409, 2147483648
      %v7763 = vxor.u32 %v6411, 2147483648
      %v7764 = vxor.u32 %v6762, 2147483648
      %v7765 = vxor.u32 %v6764, 2147483648
      %v7766 = vxor.u32 %v7115, 2147483648
      %v7767 = vxor.u32 %v7117, 2147483648
      %v7768 = vxor.u32 %v7448, 2147483648
      %v7769 = vxor.u32 %v6413, 2147483648
      %v7770 = vxor.u32 %v6415, 2147483648
      %v7771 = vxor.u32 %v6766, 2147483648
      %v7772 = vxor.u32 %v6768, 2147483648
      %v7773 = vxor.u32 %v7119, 2147483648
      %v7774 = vxor.u32 %v7121, 2147483648
      %v7775 = vxor.u32 %v7451, 2147483648
      %v7776 = vxor.u32 %v6419, 2147483648
      %v7777 = vxor.u32 %v6421, 2147483648
      %v7778 = vxor.u32 %v6772, 2147483648
      %v7779 = vxor.u32 %v6774, 2147483648
      %v7780 = vxor.u32 %v7125, 2147483648
      %v7781 = vxor.u32 %v7127, 2147483648
      %v7782 = vxor.u32 %v7456, 2147483648
      %v7783 = vxor.u32 %v6423, 2147483648
      %v7784 = vxor.u32 %v6425, 2147483648
      %v7785 = vxor.u32 %v6776, 2147483648
      %v7786 = vxor.u32 %v6778, 2147483648
      %v7787 = vxor.u32 %v7129, 2147483648
      %v7788 = vxor.u32 %v7131, 2147483648
      %v7789 = vxor.u32 %v7459, 2147483648
      %v7790 = vxor.u32 %v6429, 2147483648
      %v7791 = vxor.u32 %v6431, 2147483648
      %v7792 = vxor.u32 %v6782, 2147483648
      %v7793 = vxor.u32 %v6784, 2147483648
      %v7794 = vxor.u32 %v7135, 2147483648
      %v7795 = vxor.u32 %v7137, 2147483648
      %v7796 = vxor.u32 %v7464, 2147483648
      %v7797 = vxor.u32 %v6433, 2147483648
      %v7798 = vxor.u32 %v6435, 2147483648
      %v7799 = vxor.u32 %v6786, 2147483648
      %v7800 = vxor.u32 %v6788, 2147483648
      %v7801 = vxor.u32 %v7139, 2147483648
      %v7802 = vxor.u32 %v7141, 2147483648
      %v7803 = vxor.u32 %v7467, 2147483648
      %v7804 = vxor.u32 %v6439, 2147483648
      %v7805 = vxor.u32 %v6441, 2147483648
      %v7806 = vxor.u32 %v6792, 2147483648
      %v7807 = vxor.u32 %v6794, 2147483648
      %v7808 = vxor.u32 %v7145, 2147483648
      %v7809 = vxor.u32 %v7147, 2147483648
      %v7810 = vxor.u32 %v7472, 2147483648
      %v7811 = vxor.u32 %v6443, 2147483648
      %v7812 = vxor.u32 %v6445, 2147483648
      %v7813 = vxor.u32 %v6796, 2147483648
      %v7814 = vxor.u32 %v6798, 2147483648
      %v7815 = vxor.u32 %v7149, 2147483648
      %v7816 = vxor.u32 %v7151, 2147483648
      %v7817 = vxor.u32 %v7475, 2147483648
      %v7818 = vxor.u32 %v6449, 2147483648
      %v7819 = vxor.u32 %v6451, 2147483648
      %v7820 = vxor.u32 %v6802, 2147483648
      %v7821 = vxor.u32 %v6804, 2147483648
      %v7822 = vxor.u32 %v7155, 2147483648
      %v7823 = vxor.u32 %v7157, 2147483648
      %v7824 = vxor.u32 %v7480, 2147483648
      %v7825 = vxor.u32 %v6453, 2147483648
      %v7826 = vxor.u32 %v6455, 2147483648
      %v7827 = vxor.u32 %v6806, 2147483648
      %v7828 = vxor.u32 %v6808, 2147483648
      %v7829 = vxor.u32 %v7159, 2147483648
      %v7830 = vxor.u32 %v7161, 2147483648
      %v7831 = vxor.u32 %v7483, 2147483648
      %v7832 = vxor.u32 %v6459, 2147483648
      %v7833 = vxor.u32 %v6461, 2147483648
      %v7834 = vxor.u32 %v6812, 2147483648
      %v7835 = vxor.u32 %v6814, 2147483648
      %v7836 = vxor.u32 %v7165, 2147483648
      %v7837 = vxor.u32 %v7167, 2147483648
      %v7838 = vxor.u32 %v7488, 2147483648
      %v7839 = vxor.u32 %v6463, 2147483648
      %v7840 = vxor.u32 %v6465, 2147483648
      %v7841 = vxor.u32 %v6816, 2147483648
      %v7842 = vxor.u32 %v6818, 2147483648
      %v7843 = vxor.u32 %v7169, 2147483648
      %v7844 = vxor.u32 %v7171, 2147483648
      %v7845 = vxor.u32 %v7491, 2147483648
      %v7846 = vxor.u32 %v6469, 2147483648
      %v7847 = vxor.u32 %v6471, 2147483648
      %v7848 = vxor.u32 %v6822, 2147483648
      %v7849 = vxor.u32 %v6824, 2147483648
      %v7850 = vxor.u32 %v7175, 2147483648
      %v7851 = vxor.u32 %v7177, 2147483648
      %v7852 = vxor.u32 %v7496, 2147483648
      %v7853 = vxor.u32 %v6473, 2147483648
      %v7854 = vxor.u32 %v6475, 2147483648
      %v7855 = vxor.u32 %v6826, 2147483648
      %v7856 = vxor.u32 %v6828, 2147483648
      %v7857 = vxor.u32 %v7179, 2147483648
      %v7858 = vxor.u32 %v7181, 2147483648
      %v7859 = vxor.u32 %v7499, 2147483648
      %v7860 = vxor.u32 %v6479, 2147483648
      %v7861 = vxor.u32 %v6481, 2147483648
      %v7862 = vxor.u32 %v6832, 2147483648
      %v7863 = vxor.u32 %v6834, 2147483648
      %v7864 = vxor.u32 %v7185, 2147483648
      %v7865 = vxor.u32 %v7187, 2147483648
      %v7866 = vxor.u32 %v7504, 2147483648
      %v7867 = vxor.u32 %v6483, 2147483648
      %v7868 = vxor.u32 %v6485, 2147483648
      %v7869 = vxor.u32 %v6836, 2147483648
      %v7870 = vxor.u32 %v6838, 2147483648
      %v7871 = vxor.u32 %v7189, 2147483648
      %v7872 = vxor.u32 %v7191, 2147483648
      %v7873 = vxor.u32 %v7507, 2147483648
      %v7874 = vxor.u32 %v6489, 2147483648
      %v7875 = vxor.u32 %v6491, 2147483648
      %v7876 = vxor.u32 %v6842, 2147483648
      %v7877 = vxor.u32 %v6844, 2147483648
      %v7878 = vxor.u32 %v7195, 2147483648
      %v7879 = vxor.u32 %v7197, 2147483648
      %v7880 = vxor.u32 %v7512, 2147483648
      %v7881 = vxor.u32 %v6493, 2147483648
      %v7882 = vxor.u32 %v6495, 2147483648
      %v7883 = vxor.u32 %v6846, 2147483648
      %v7884 = vxor.u32 %v6848, 2147483648
      %v7885 = vxor.u32 %v7199, 2147483648
      %v7886 = vxor.u32 %v7201, 2147483648
      %v7887 = vxor.u32 %v7515, 2147483648
      %v7888 = vxor.u32 %v6499, 2147483648
      %v7889 = vxor.u32 %v6501, 2147483648
      %v7890 = vxor.u32 %v6852, 2147483648
      %v7891 = vxor.u32 %v6854, 2147483648
      %v7892 = vxor.u32 %v7205, 2147483648
      %v7893 = vxor.u32 %v7207, 2147483648
      %v7894 = vxor.u32 %v7520, 2147483648
      %v7895 = vxor.u32 %v6503, 2147483648
      %v7896 = vxor.u32 %v6505, 2147483648
      %v7897 = vxor.u32 %v6856, 2147483648
      %v7898 = vxor.u32 %v6858, 2147483648
      %v7899 = vxor.u32 %v7209, 2147483648
      %v7900 = vxor.u32 %v7211, 2147483648
      %v7901 = vxor.u32 %v7523, 2147483648
      %v7902 = vxor.u32 %v6509, 2147483648
      %v7903 = vxor.u32 %v6511, 2147483648
      %v7904 = vxor.u32 %v6862, 2147483648
      %v7905 = vxor.u32 %v6864, 2147483648
      %v7906 = vxor.u32 %v7215, 2147483648
      %v7907 = vxor.u32 %v7217, 2147483648
      %v7908 = vxor.u32 %v7528, 2147483648
      %v7909 = vxor.u32 %v6513, 2147483648
      %v7910 = vxor.u32 %v6515, 2147483648
      %v7911 = vxor.u32 %v6866, 2147483648
      %v7912 = vxor.u32 %v6868, 2147483648
      %v7913 = vxor.u32 %v7219, 2147483648
      %v7914 = vxor.u32 %v7221, 2147483648
      %v7915 = vxor.u32 %v7531, 2147483648
      %v7916 = vxor.u32 %v6519, 2147483648
      %v7917 = vxor.u32 %v6521, 2147483648
      %v7918 = vxor.u32 %v6872, 2147483648
      %v7919 = vxor.u32 %v6874, 2147483648
      %v7920 = vxor.u32 %v7225, 2147483648
      %v7921 = vxor.u32 %v7227, 2147483648
      %v7922 = vxor.u32 %v7536, 2147483648
      %v7923 = vxor.u32 %v6523, 2147483648
      %v7924 = vxor.u32 %v6525, 2147483648
      %v7925 = vxor.u32 %v6876, 2147483648
      %v7926 = vxor.u32 %v6878, 2147483648
      %v7927 = vxor.u32 %v7229, 2147483648
      %v7928 = vxor.u32 %v7231, 2147483648
      %v7929 = vxor.u32 %v7539, 2147483648
      %v7930 = vxor.u32 %v6529, 2147483648
      %v7931 = vxor.u32 %v6531, 2147483648
      %v7932 = vxor.u32 %v6882, 2147483648
      %v7933 = vxor.u32 %v6884, 2147483648
      %v7934 = vxor.u32 %v7235, 2147483648
      %v7935 = vxor.u32 %v7237, 2147483648
      %v7936 = vxor.u32 %v7544, 2147483648
      %v7937 = vxor.u32 %v6533, 2147483648
      %v7938 = vxor.u32 %v6535, 2147483648
      %v7939 = vxor.u32 %v6886, 2147483648
      %v7940 = vxor.u32 %v6888, 2147483648
      %v7941 = vxor.u32 %v7239, 2147483648
      %v7942 = vxor.u32 %v7241, 2147483648
      %v7943 = vxor.u32 %v7547, 2147483648
      %v7944 = vxor.u32 %v6539, 2147483648
      %v7945 = vxor.u32 %v6541, 2147483648
      %v7946 = vxor.u32 %v6892, 2147483648
      %v7947 = vxor.u32 %v6894, 2147483648
      %v7948 = vxor.u32 %v7245, 2147483648
      %v7949 = vxor.u32 %v7247, 2147483648
      %v7950 = vxor.u32 %v7552, 2147483648
      %v7951 = vxor.u32 %v6543, 2147483648
      %v7952 = vxor.u32 %v6545, 2147483648
      %v7953 = vxor.u32 %v6896, 2147483648
      %v7954 = vxor.u32 %v6898, 2147483648
      %v7955 = vxor.u32 %v7249, 2147483648
      %v7956 = vxor.u32 %v7251, 2147483648
      %v7957 = vxor.u32 %v7555, 2147483648
      %v7958 = vxor.u32 %v6549, 2147483648
      %v7959 = vxor.u32 %v6551, 2147483648
      %v7960 = vxor.u32 %v6902, 2147483648
      %v7961 = vxor.u32 %v6904, 2147483648
      %v7962 = vxor.u32 %v7255, 2147483648
      %v7963 = vxor.u32 %v7257, 2147483648
      %v7964 = vxor.u32 %v7560, 2147483648
      %v7965 = vxor.u32 %v6553, 2147483648
      %v7966 = vxor.u32 %v6555, 2147483648
      %v7967 = vxor.u32 %v6906, 2147483648
      %v7968 = vxor.u32 %v6908, 2147483648
      %v7969 = vxor.u32 %v7259, 2147483648
      %v7970 = vxor.u32 %v7261, 2147483648
      %v7971 = vxor.u32 %v7563, 2147483648
      %v7972 = vxor.u32 %v6559, 2147483648
      %v7973 = vxor.u32 %v6561, 2147483648
      %v7974 = vxor.u32 %v6912, 2147483648
      %v7975 = vxor.u32 %v6914, 2147483648
      %v7976 = vxor.u32 %v7265, 2147483648
      %v7977 = vxor.u32 %v7267, 2147483648
      %v7978 = vxor.u32 %v7568, 2147483648
      %v7979 = vxor.u32 %v6563, 2147483648
      %v7980 = vxor.u32 %v6565, 2147483648
      %v7981 = vxor.u32 %v6916, 2147483648
      %v7982 = vxor.u32 %v6918, 2147483648
      %v7983 = vxor.u32 %v7269, 2147483648
      %v7984 = vxor.u32 %v7271, 2147483648
      %v7985 = vxor.u32 %v7571, 2147483648
      %v7986 = vxor.u32 %v6569, 2147483648
      %v7987 = vxor.u32 %v6571, 2147483648
      %v7988 = vxor.u32 %v6922, 2147483648
      %v7989 = vxor.u32 %v6924, 2147483648
      %v7990 = vxor.u32 %v7275, 2147483648
      %v7991 = vxor.u32 %v7277, 2147483648
      %v7992 = vxor.u32 %v7576, 2147483648
      %v7993 = vxor.u32 %v6573, 2147483648
      %v7994 = vxor.u32 %v6575, 2147483648
      %v7995 = vxor.u32 %v6926, 2147483648
      %v7996 = vxor.u32 %v6928, 2147483648
      %v7997 = vxor.u32 %v7279, 2147483648
      %v7998 = vxor.u32 %v7281, 2147483648
      %v7999 = vxor.u32 %v7579, 2147483648
      %v8000 = vxor.u32 %v6579, 2147483648
      %v8001 = vxor.u32 %v6581, 2147483648
      %v8002 = vxor.u32 %v6932, 2147483648
      %v8003 = vxor.u32 %v6934, 2147483648
      %v8004 = vxor.u32 %v7285, 2147483648
      %v8005 = vxor.u32 %v7287, 2147483648
      %v8006 = vxor.u32 %v7584, 2147483648
      %v8007 = vxor.u32 %v6583, 2147483648
      %v8008 = vxor.u32 %v6585, 2147483648
      %v8009 = vxor.u32 %v6936, 2147483648
      %v8010 = vxor.u32 %v6938, 2147483648
      %v8011 = vxor.u32 %v7289, 2147483648
      %v8012 = vxor.u32 %v7291, 2147483648
      %v8013 = vxor.u32 %v7587, 2147483648
      %v8014 = vxor.u32 %v6589, 2147483648
      %v8015 = vxor.u32 %v6591, 2147483648
      %v8016 = vxor.u32 %v6942, 2147483648
      %v8017 = vxor.u32 %v6944, 2147483648
      %v8018 = vxor.u32 %v7295, 2147483648
      %v8019 = vxor.u32 %v7297, 2147483648
      %v8020 = vxor.u32 %v7592, 2147483648
      %v8021 = vxor.u32 %v6593, 2147483648
      %v8022 = vxor.u32 %v6595, 2147483648
      %v8023 = vxor.u32 %v6946, 2147483648
      %v8024 = vxor.u32 %v6948, 2147483648
      %v8025 = vxor.u32 %v7299, 2147483648
      %v8026 = vxor.u32 %v7301, 2147483648
      %v8027 = vxor.u32 %v7595, 2147483648
      %v8028 = vxor.u32 %v6599, 2147483648
      %v8029 = vxor.u32 %v6601, 2147483648
      %v8030 = vxor.u32 %v6952, 2147483648
      %v8031 = vxor.u32 %v6954, 2147483648
      %v8032 = vxor.u32 %v7305, 2147483648
      %v8033 = vxor.u32 %v7307, 2147483648
      %v8034 = vxor.u32 %v7600, 2147483648
      %v8035 = vxor.u32 %v6603, 2147483648
      %v8036 = vxor.u32 %v6605, 2147483648
      %v8037 = vxor.u32 %v6956, 2147483648
      %v8038 = vxor.u32 %v6958, 2147483648
      %v8039 = vxor.u32 %v7309, 2147483648
      %v8040 = vxor.u32 %v7311, 2147483648
      %v8041 = vxor.u32 %v7603, 2147483648
      %v8042 = vxor.u32 %v6609, 2147483648
      %v8043 = vxor.u32 %v6611, 2147483648
      %v8044 = vxor.u32 %v6962, 2147483648
      %v8045 = vxor.u32 %v6964, 2147483648
      %v8046 = vxor.u32 %v7315, 2147483648
      %v8047 = vxor.u32 %v7317, 2147483648
      %v8048 = vxor.u32 %v7608, 2147483648
      %v8049 = vxor.u32 %v6613, 2147483648
      %v8050 = vxor.u32 %v6615, 2147483648
      %v8051 = vxor.u32 %v6966, 2147483648
      %v8052 = vxor.u32 %v6968, 2147483648
      %v8053 = vxor.u32 %v7319, 2147483648
      %v8054 = vxor.u32 %v7321, 2147483648
      %v8055 = vxor.u32 %v7611, 2147483648
      %v8056 = vxor.u32 %v6619, 2147483648
      %v8057 = vxor.u32 %v6621, 2147483648
      %v8058 = vxor.u32 %v6972, 2147483648
      %v8059 = vxor.u32 %v6974, 2147483648
      %v8060 = vxor.u32 %v7325, 2147483648
      %v8061 = vxor.u32 %v7327, 2147483648
      %v8062 = vxor.u32 %v7616, 2147483648
      %v8063 = vxor.u32 %v6623, 2147483648
      %v8064 = vxor.u32 %v6625, 2147483648
      %v8065 = vxor.u32 %v6976, 2147483648
      %v8066 = vxor.u32 %v6978, 2147483648
      %v8067 = vxor.u32 %v7329, 2147483648
      %v8068 = vxor.u32 %v7331, 2147483648
      %v8069 = vxor.u32 %v7619, 2147483648
      %v8070 = vmul.f32 %v7622, 1.442695
      %v8071 = vpow.pop %v8070
      %v8072 = vmul.f32 %v7623, 1.442695
      %v8073 = vpow.pop %v8072
      %v8074 = vmul.f32 %v7624, 1.442695
      %v8075 = vpow.pop %v8074
      %v8076 = vmul.f32 %v7625, 1.442695
      %v8077 = vpow.pop %v8076
      %v8078 = vmul.f32 %v7626, 1.442695
      %v8079 = vpow.pop %v8078
      %v8080 = vmul.f32 %v7627, 1.442695
      %v8081 = vpow.pop %v8080
      %v8082 = vmul.f32 %v7628, 1.442695
      %v8083 = vpow.pop %v8082
      %v8084 = vmul.f32 %v7629, 1.442695
      %v8085 = vpow.pop %v8084
      %v8086 = vmul.f32 %v7630, 1.442695
      %v8087 = vpow.pop %v8086
      %v8088 = vmul.f32 %v7631, 1.442695
      %v8089 = vpow.pop %v8088
      %v8090 = vmul.f32 %v7632, 1.442695
      %v8091 = vpow.pop %v8090
      %v8092 = vmul.f32 %v7633, 1.442695
      %v8093 = vpow.pop %v8092
      %v8094 = vmul.f32 %v7634, 1.442695
      %v8095 = vpow.pop %v8094
      %v8096 = vmul.f32 %v7635, 1.442695
      %v8097 = vpow.pop %v8096
      %v8098 = vmul.f32 %v7636, 1.442695
      %v8099 = vpow.pop %v8098
      %v8100 = vmul.f32 %v7637, 1.442695
      %v8101 = vpow.pop %v8100
      %v8102 = vmul.f32 %v7638, 1.442695
      %v8103 = vpow.pop %v8102
      %v8104 = vmul.f32 %v7639, 1.442695
      %v8105 = vpow.pop %v8104
      %v8106 = vmul.f32 %v7640, 1.442695
      %v8107 = vpow.pop %v8106
      %v8108 = vmul.f32 %v7641, 1.442695
      %v8109 = vpow.pop %v8108
      %v8110 = vmul.f32 %v7642, 1.442695
      %v8111 = vpow.pop %v8110
      %v8112 = vmul.f32 %v7643, 1.442695
      %v8113 = vpow.pop %v8112
      %v8114 = vmul.f32 %v7644, 1.442695
      %v8115 = vpow.pop %v8114
      %v8116 = vmul.f32 %v7645, 1.442695
      %v8117 = vpow.pop %v8116
      %v8118 = vmul.f32 %v7646, 1.442695
      %v8119 = vpow.pop %v8118
      %v8120 = vmul.f32 %v7647, 1.442695
      %v8121 = vpow.pop %v8120
      %v8122 = vmul.f32 %v7648, 1.442695
      %v8123 = vpow.pop %v8122
      %v8124 = vmul.f32 %v7649, 1.442695
      %v8125 = vpow.pop %v8124
      %v8126 = vmul.f32 %v7650, 1.442695
      %v8127 = vpow.pop %v8126
      %v8128 = vmul.f32 %v7651, 1.442695
      %v8129 = vpow.pop %v8128
      %v8130 = vmul.f32 %v7652, 1.442695
      %v8131 = vpow.pop %v8130
      %v8132 = vmul.f32 %v7653, 1.442695
      %v8133 = vpow.pop %v8132
      %v8134 = vmul.f32 %v7654, 1.442695
      %v8135 = vpow.pop %v8134
      %v8136 = vmul.f32 %v7655, 1.442695
      %v8137 = vpow.pop %v8136
      %v8138 = vmul.f32 %v7656, 1.442695
      %v8139 = vpow.pop %v8138
      %v8140 = vmul.f32 %v7657, 1.442695
      %v8141 = vpow.pop %v8140
      %v8142 = vmul.f32 %v7658, 1.442695
      %v8143 = vpow.pop %v8142
      %v8144 = vmul.f32 %v7659, 1.442695
      %v8145 = vpow.pop %v8144
      %v8146 = vmul.f32 %v7660, 1.442695
      %v8147 = vpow.pop %v8146
      %v8148 = vmul.f32 %v7661, 1.442695
      %v8149 = vpow.pop %v8148
      %v8150 = vmul.f32 %v7662, 1.442695
      %v8151 = vpow.pop %v8150
      %v8152 = vmul.f32 %v7663, 1.442695
      %v8153 = vpow.pop %v8152
      %v8154 = vmul.f32 %v7664, 1.442695
      %v8155 = vpow.pop %v8154
      %v8156 = vmul.f32 %v7665, 1.442695
      %v8157 = vpow.pop %v8156
      %v8158 = vmul.f32 %v7666, 1.442695
      %v8159 = vpow.pop %v8158
      %v8160 = vmul.f32 %v7667, 1.442695
      %v8161 = vpow.pop %v8160
      %v8162 = vmul.f32 %v7668, 1.442695
      %v8163 = vpow.pop %v8162
      %v8164 = vmul.f32 %v7669, 1.442695
      %v8165 = vpow.pop %v8164
      %v8166 = vmul.f32 %v7670, 1.442695
      %v8167 = vpow.pop %v8166
      %v8168 = vmul.f32 %v7671, 1.442695
      %v8169 = vpow.pop %v8168
      %v8170 = vmul.f32 %v7672, 1.442695
      %v8171 = vpow.pop %v8170
      %v8172 = vmul.f32 %v7673, 1.442695
      %v8173 = vpow.pop %v8172
      %v8174 = vmul.f32 %v7674, 1.442695
      %v8175 = vpow.pop %v8174
      %v8176 = vmul.f32 %v7675, 1.442695
      %v8177 = vpow.pop %v8176
      %v8178 = vmul.f32 %v7676, 1.442695
      %v8179 = vpow.pop %v8178
      %v8180 = vmul.f32 %v7677, 1.442695
      %v8181 = vpow.pop %v8180
      %v8182 = vmul.f32 %v7678, 1.442695
      %v8183 = vpow.pop %v8182
      %v8184 = vmul.f32 %v7679, 1.442695
      %v8185 = vpow.pop %v8184
      %v8186 = vmul.f32 %v7680, 1.442695
      %v8187 = vpow.pop %v8186
      %v8188 = vmul.f32 %v7681, 1.442695
      %v8189 = vpow.pop %v8188
      %v8190 = vmul.f32 %v7682, 1.442695
      %v8191 = vpow.pop %v8190
      %v8192 = vmul.f32 %v7683, 1.442695
      %v8193 = vpow.pop %v8192
      %v8194 = vmul.f32 %v7684, 1.442695
      %v8195 = vpow.pop %v8194
      %v8196 = vmul.f32 %v7685, 1.442695
      %v8197 = vpow.pop %v8196
      %v8198 = vmul.f32 %v7686, 1.442695
      %v8199 = vpow.pop %v8198
      %v8200 = vmul.f32 %v7687, 1.442695
      %v8201 = vpow.pop %v8200
      %v8202 = vmul.f32 %v7688, 1.442695
      %v8203 = vpow.pop %v8202
      %v8204 = vmul.f32 %v7689, 1.442695
      %v8205 = vpow.pop %v8204
      %v8206 = vmul.f32 %v7690, 1.442695
      %v8207 = vpow.pop %v8206
      %v8208 = vmul.f32 %v7691, 1.442695
      %v8209 = vpow.pop %v8208
      %v8210 = vmul.f32 %v7692, 1.442695
      %v8211 = vpow.pop %v8210
      %v8212 = vmul.f32 %v7693, 1.442695
      %v8213 = vpow.pop %v8212
      %v8214 = vmul.f32 %v7694, 1.442695
      %v8215 = vpow.pop %v8214
      %v8216 = vmul.f32 %v7695, 1.442695
      %v8217 = vpow.pop %v8216
      %v8218 = vmul.f32 %v7696, 1.442695
      %v8219 = vpow.pop %v8218
      %v8220 = vmul.f32 %v7697, 1.442695
      %v8221 = vpow.pop %v8220
      %v8222 = vmul.f32 %v7698, 1.442695
      %v8223 = vpow.pop %v8222
      %v8224 = vmul.f32 %v7699, 1.442695
      %v8225 = vpow.pop %v8224
      %v8226 = vmul.f32 %v7700, 1.442695
      %v8227 = vpow.pop %v8226
      %v8228 = vmul.f32 %v7701, 1.442695
      %v8229 = vpow.pop %v8228
      %v8230 = vmul.f32 %v7702, 1.442695
      %v8231 = vpow.pop %v8230
      %v8232 = vmul.f32 %v7703, 1.442695
      %v8233 = vpow.pop %v8232
      %v8234 = vmul.f32 %v7704, 1.442695
      %v8235 = vpow.pop %v8234
      %v8236 = vmul.f32 %v7705, 1.442695
      %v8237 = vpow.pop %v8236
      %v8238 = vmul.f32 %v7706, 1.442695
      %v8239 = vpow.pop %v8238
      %v8240 = vmul.f32 %v7707, 1.442695
      %v8241 = vpow.pop %v8240
      %v8242 = vmul.f32 %v7708, 1.442695
      %v8243 = vpow.pop %v8242
      %v8244 = vmul.f32 %v7709, 1.442695
      %v8245 = vpow.pop %v8244
      %v8246 = vmul.f32 %v7710, 1.442695
      %v8247 = vpow.pop %v8246
      %v8248 = vmul.f32 %v7711, 1.442695
      %v8249 = vpow.pop %v8248
      %v8250 = vmul.f32 %v7712, 1.442695
      %v8251 = vpow.pop %v8250
      %v8252 = vmul.f32 %v7713, 1.442695
      %v8253 = vpow.pop %v8252
      %v8254 = vmul.f32 %v7714, 1.442695
      %v8255 = vpow.pop %v8254
      %v8256 = vmul.f32 %v7715, 1.442695
      %v8257 = vpow.pop %v8256
      %v8258 = vmul.f32 %v7716, 1.442695
      %v8259 = vpow.pop %v8258
      %v8260 = vmul.f32 %v7717, 1.442695
      %v8261 = vpow.pop %v8260
      %v8262 = vmul.f32 %v7718, 1.442695
      %v8263 = vpow.pop %v8262
      %v8264 = vmul.f32 %v7719, 1.442695
      %v8265 = vpow.pop %v8264
      %v8266 = vmul.f32 %v7720, 1.442695
      %v8267 = vpow.pop %v8266
      %v8268 = vmul.f32 %v7721, 1.442695
      %v8269 = vpow.pop %v8268
      %v8270 = vmul.f32 %v7722, 1.442695
      %v8271 = vpow.pop %v8270
      %v8272 = vmul.f32 %v7723, 1.442695
      %v8273 = vpow.pop %v8272
      %v8274 = vmul.f32 %v7724, 1.442695
      %v8275 = vpow.pop %v8274
      %v8276 = vmul.f32 %v7725, 1.442695
      %v8277 = vpow.pop %v8276
      %v8278 = vmul.f32 %v7726, 1.442695
      %v8279 = vpow.pop %v8278
      %v8280 = vmul.f32 %v7727, 1.442695
      %v8281 = vpow.pop %v8280
      %v8282 = vmul.f32 %v7728, 1.442695
      %v8283 = vpow.pop %v8282
      %v8284 = vmul.f32 %v7729, 1.442695
      %v8285 = vpow.pop %v8284
      %v8286 = vmul.f32 %v7730, 1.442695
      %v8287 = vpow.pop %v8286
      %v8288 = vmul.f32 %v7731, 1.442695
      %v8289 = vpow.pop %v8288
      %v8290 = vmul.f32 %v7732, 1.442695
      %v8291 = vpow.pop %v8290
      %v8292 = vmul.f32 %v7733, 1.442695
      %v8293 = vpow.pop %v8292
      %v8294 = vmul.f32 %v7734, 1.442695
      %v8295 = vpow.pop %v8294
      %v8296 = vmul.f32 %v7735, 1.442695
      %v8297 = vpow.pop %v8296
      %v8298 = vmul.f32 %v7736, 1.442695
      %v8299 = vpow.pop %v8298
      %v8300 = vmul.f32 %v7737, 1.442695
      %v8301 = vpow.pop %v8300
      %v8302 = vmul.f32 %v7738, 1.442695
      %v8303 = vpow.pop %v8302
      %v8304 = vmul.f32 %v7739, 1.442695
      %v8305 = vpow.pop %v8304
      %v8306 = vmul.f32 %v7740, 1.442695
      %v8307 = vpow.pop %v8306
      %v8308 = vmul.f32 %v7741, 1.442695
      %v8309 = vpow.pop %v8308
      %v8310 = vmul.f32 %v7742, 1.442695
      %v8311 = vpow.pop %v8310
      %v8312 = vmul.f32 %v7743, 1.442695
      %v8313 = vpow.pop %v8312
      %v8314 = vmul.f32 %v7744, 1.442695
      %v8315 = vpow.pop %v8314
      %v8316 = vmul.f32 %v7745, 1.442695
      %v8317 = vpow.pop %v8316
      %v8318 = vmul.f32 %v7746, 1.442695
      %v8319 = vpow.pop %v8318
      %v8320 = vmul.f32 %v7747, 1.442695
      %v8321 = vpow.pop %v8320
      %v8322 = vmul.f32 %v7748, 1.442695
      %v8323 = vpow.pop %v8322
      %v8324 = vmul.f32 %v7749, 1.442695
      %v8325 = vpow.pop %v8324
      %v8326 = vmul.f32 %v7750, 1.442695
      %v8327 = vpow.pop %v8326
      %v8328 = vmul.f32 %v7751, 1.442695
      %v8329 = vpow.pop %v8328
      %v8330 = vmul.f32 %v7752, 1.442695
      %v8331 = vpow.pop %v8330
      %v8332 = vmul.f32 %v7753, 1.442695
      %v8333 = vpow.pop %v8332
      %v8334 = vmul.f32 %v7754, 1.442695
      %v8335 = vpow.pop %v8334
      %v8336 = vmul.f32 %v7755, 1.442695
      %v8337 = vpow.pop %v8336
      %v8338 = vmul.f32 %v7756, 1.442695
      %v8339 = vpow.pop %v8338
      %v8340 = vmul.f32 %v7757, 1.442695
      %v8341 = vpow.pop %v8340
      %v8342 = vmul.f32 %v7758, 1.442695
      %v8343 = vpow.pop %v8342
      %v8344 = vmul.f32 %v7759, 1.442695
      %v8345 = vpow.pop %v8344
      %v8346 = vmul.f32 %v7760, 1.442695
      %v8347 = vpow.pop %v8346
      %v8348 = vmul.f32 %v7761, 1.442695
      %v8349 = vpow.pop %v8348
      %v8350 = vmul.f32 %v7762, 1.442695
      %v8351 = vpow.pop %v8350
      %v8352 = vmul.f32 %v7763, 1.442695
      %v8353 = vpow.pop %v8352
      %v8354 = vmul.f32 %v7764, 1.442695
      %v8355 = vpow.pop %v8354
      %v8356 = vmul.f32 %v7765, 1.442695
      %v8357 = vpow.pop %v8356
      %v8358 = vmul.f32 %v7766, 1.442695
      %v8359 = vpow.pop %v8358
      %v8360 = vmul.f32 %v7767, 1.442695
      %v8361 = vpow.pop %v8360
      %v8362 = vmul.f32 %v7768, 1.442695
      %v8363 = vpow.pop %v8362
      %v8364 = vmul.f32 %v7769, 1.442695
      %v8365 = vpow.pop %v8364
      %v8366 = vmul.f32 %v7770, 1.442695
      %v8367 = vpow.pop %v8366
      %v8368 = vmul.f32 %v7771, 1.442695
      %v8369 = vpow.pop %v8368
      %v8370 = vmul.f32 %v7772, 1.442695
      %v8371 = vpow.pop %v8370
      %v8372 = vmul.f32 %v7773, 1.442695
      %v8373 = vpow.pop %v8372
      %v8374 = vmul.f32 %v7774, 1.442695
      %v8375 = vpow.pop %v8374
      %v8376 = vmul.f32 %v7775, 1.442695
      %v8377 = vpow.pop %v8376
      %v8378 = vmul.f32 %v7776, 1.442695
      %v8379 = vpow.pop %v8378
      %v8380 = vmul.f32 %v7777, 1.442695
      %v8381 = vpow.pop %v8380
      %v8382 = vmul.f32 %v7778, 1.442695
      %v8383 = vpow.pop %v8382
      %v8384 = vmul.f32 %v7779, 1.442695
      %v8385 = vpow.pop %v8384
      %v8386 = vmul.f32 %v7780, 1.442695
      %v8387 = vpow.pop %v8386
      %v8388 = vmul.f32 %v7781, 1.442695
      %v8389 = vpow.pop %v8388
      %v8390 = vmul.f32 %v7782, 1.442695
      %v8391 = vpow.pop %v8390
      %v8392 = vmul.f32 %v7783, 1.442695
      %v8393 = vpow.pop %v8392
      %v8394 = vmul.f32 %v7784, 1.442695
      %v8395 = vpow.pop %v8394
      %v8396 = vmul.f32 %v7785, 1.442695
      %v8397 = vpow.pop %v8396
      %v8398 = vmul.f32 %v7786, 1.442695
      %v8399 = vpow.pop %v8398
      %v8400 = vmul.f32 %v7787, 1.442695
      %v8401 = vpow.pop %v8400
      %v8402 = vmul.f32 %v7788, 1.442695
      %v8403 = vpow.pop %v8402
      %v8404 = vmul.f32 %v7789, 1.442695
      %v8405 = vpow.pop %v8404
      %v8406 = vmul.f32 %v7790, 1.442695
      %v8407 = vpow.pop %v8406
      %v8408 = vmul.f32 %v7791, 1.442695
      %v8409 = vpow.pop %v8408
      %v8410 = vmul.f32 %v7792, 1.442695
      %v8411 = vpow.pop %v8410
      %v8412 = vmul.f32 %v7793, 1.442695
      %v8413 = vpow.pop %v8412
      %v8414 = vmul.f32 %v7794, 1.442695
      %v8415 = vpow.pop %v8414
      %v8416 = vmul.f32 %v7795, 1.442695
      %v8417 = vpow.pop %v8416
      %v8418 = vmul.f32 %v7796, 1.442695
      %v8419 = vpow.pop %v8418
      %v8420 = vmul.f32 %v7797, 1.442695
      %v8421 = vpow.pop %v8420
      %v8422 = vmul.f32 %v7798, 1.442695
      %v8423 = vpow.pop %v8422
      %v8424 = vmul.f32 %v7799, 1.442695
      %v8425 = vpow.pop %v8424
      %v8426 = vmul.f32 %v7800, 1.442695
      %v8427 = vpow.pop %v8426
      %v8428 = vmul.f32 %v7801, 1.442695
      %v8429 = vpow.pop %v8428
      %v8430 = vmul.f32 %v7802, 1.442695
      %v8431 = vpow.pop %v8430
      %v8432 = vmul.f32 %v7803, 1.442695
      %v8433 = vpow.pop %v8432
      %v8434 = vmul.f32 %v7804, 1.442695
      %v8435 = vpow.pop %v8434
      %v8436 = vmul.f32 %v7805, 1.442695
      %v8437 = vpow.pop %v8436
      %v8438 = vmul.f32 %v7806, 1.442695
      %v8439 = vpow.pop %v8438
      %v8440 = vmul.f32 %v7807, 1.442695
      %v8441 = vpow.pop %v8440
      %v8442 = vmul.f32 %v7808, 1.442695
      %v8443 = vpow.pop %v8442
      %v8444 = vmul.f32 %v7809, 1.442695
      %v8445 = vpow.pop %v8444
      %v8446 = vmul.f32 %v7810, 1.442695
      %v8447 = vpow.pop %v8446
      %v8448 = vmul.f32 %v7811, 1.442695
      %v8449 = vpow.pop %v8448
      %v8450 = vmul.f32 %v7812, 1.442695
      %v8451 = vpow.pop %v8450
      %v8452 = vmul.f32 %v7813, 1.442695
      %v8453 = vpow.pop %v8452
      %v8454 = vmul.f32 %v7814, 1.442695
      %v8455 = vpow.pop %v8454
      %v8456 = vmul.f32 %v7815, 1.442695
      %v8457 = vpow.pop %v8456
      %v8458 = vmul.f32 %v7816, 1.442695
      %v8459 = vpow.pop %v8458
      %v8460 = vmul.f32 %v7817, 1.442695
      %v8461 = vpow.pop %v8460
      %v8462 = vmul.f32 %v7818, 1.442695
      %v8463 = vpow.pop %v8462
      %v8464 = vmul.f32 %v7819, 1.442695
      %v8465 = vpow.pop %v8464
      %v8466 = vmul.f32 %v7820, 1.442695
      %v8467 = vpow.pop %v8466
      %v8468 = vmul.f32 %v7821, 1.442695
      %v8469 = vpow.pop %v8468
      %v8470 = vmul.f32 %v7822, 1.442695
      %v8471 = vpow.pop %v8470
      %v8472 = vmul.f32 %v7823, 1.442695
      %v8473 = vpow.pop %v8472
      %v8474 = vmul.f32 %v7824, 1.442695
      %v8475 = vpow.pop %v8474
      %v8476 = vmul.f32 %v7825, 1.442695
      %v8477 = vpow.pop %v8476
      %v8478 = vmul.f32 %v7826, 1.442695
      %v8479 = vpow.pop %v8478
      %v8480 = vmul.f32 %v7827, 1.442695
      %v8481 = vpow.pop %v8480
      %v8482 = vmul.f32 %v7828, 1.442695
      %v8483 = vpow.pop %v8482
      %v8484 = vmul.f32 %v7829, 1.442695
      %v8485 = vpow.pop %v8484
      %v8486 = vmul.f32 %v7830, 1.442695
      %v8487 = vpow.pop %v8486
      %v8488 = vmul.f32 %v7831, 1.442695
      %v8489 = vpow.pop %v8488
      %v8490 = vmul.f32 %v7832, 1.442695
      %v8491 = vpow.pop %v8490
      %v8492 = vmul.f32 %v7833, 1.442695
      %v8493 = vpow.pop %v8492
      %v8494 = vmul.f32 %v7834, 1.442695
      %v8495 = vpow.pop %v8494
      %v8496 = vmul.f32 %v7835, 1.442695
      %v8497 = vpow.pop %v8496
      %v8498 = vmul.f32 %v7836, 1.442695
      %v8499 = vpow.pop %v8498
      %v8500 = vmul.f32 %v7837, 1.442695
      %v8501 = vpow.pop %v8500
      %v8502 = vmul.f32 %v7838, 1.442695
      %v8503 = vpow.pop %v8502
      %v8504 = vmul.f32 %v7839, 1.442695
      %v8505 = vpow.pop %v8504
      %v8506 = vmul.f32 %v7840, 1.442695
      %v8507 = vpow.pop %v8506
      %v8508 = vmul.f32 %v7841, 1.442695
      %v8509 = vpow.pop %v8508
      %v8510 = vmul.f32 %v7842, 1.442695
      %v8511 = vpow.pop %v8510
      %v8512 = vmul.f32 %v7843, 1.442695
      %v8513 = vpow.pop %v8512
      %v8514 = vmul.f32 %v7844, 1.442695
      %v8515 = vpow.pop %v8514
      %v8516 = vmul.f32 %v7845, 1.442695
      %v8517 = vpow.pop %v8516
      %v8518 = vmul.f32 %v7846, 1.442695
      %v8519 = vpow.pop %v8518
      %v8520 = vmul.f32 %v7847, 1.442695
      %v8521 = vpow.pop %v8520
      %v8522 = vmul.f32 %v7848, 1.442695
      %v8523 = vpow.pop %v8522
      %v8524 = vmul.f32 %v7849, 1.442695
      %v8525 = vpow.pop %v8524
      %v8526 = vmul.f32 %v7850, 1.442695
      %v8527 = vpow.pop %v8526
      %v8528 = vmul.f32 %v7851, 1.442695
      %v8529 = vpow.pop %v8528
      %v8530 = vmul.f32 %v7852, 1.442695
      %v8531 = vpow.pop %v8530
      %v8532 = vmul.f32 %v7853, 1.442695
      %v8533 = vpow.pop %v8532
      %v8534 = vmul.f32 %v7854, 1.442695
      %v8535 = vpow.pop %v8534
      %v8536 = vmul.f32 %v7855, 1.442695
      %v8537 = vpow.pop %v8536
      %v8538 = vmul.f32 %v7856, 1.442695
      %v8539 = vpow.pop %v8538
      %v8540 = vmul.f32 %v7857, 1.442695
      %v8541 = vpow.pop %v8540
      %v8542 = vmul.f32 %v7858, 1.442695
      %v8543 = vpow.pop %v8542
      %v8544 = vmul.f32 %v7859, 1.442695
      %v8545 = vpow.pop %v8544
      %v8546 = vmul.f32 %v7860, 1.442695
      %v8547 = vpow.pop %v8546
      %v8548 = vmul.f32 %v7861, 1.442695
      %v8549 = vpow.pop %v8548
      %v8550 = vmul.f32 %v7862, 1.442695
      %v8551 = vpow.pop %v8550
      %v8552 = vmul.f32 %v7863, 1.442695
      %v8553 = vpow.pop %v8552
      %v8554 = vmul.f32 %v7864, 1.442695
      %v8555 = vpow.pop %v8554
      %v8556 = vmul.f32 %v7865, 1.442695
      %v8557 = vpow.pop %v8556
      %v8558 = vmul.f32 %v7866, 1.442695
      %v8559 = vpow.pop %v8558
      %v8560 = vmul.f32 %v7867, 1.442695
      %v8561 = vpow.pop %v8560
      %v8562 = vmul.f32 %v7868, 1.442695
      %v8563 = vpow.pop %v8562
      %v8564 = vmul.f32 %v7869, 1.442695
      %v8565 = vpow.pop %v8564
      %v8566 = vmul.f32 %v7870, 1.442695
      %v8567 = vpow.pop %v8566
      %v8568 = vmul.f32 %v7871, 1.442695
      %v8569 = vpow.pop %v8568
      %v8570 = vmul.f32 %v7872, 1.442695
      %v8571 = vpow.pop %v8570
      %v8572 = vmul.f32 %v7873, 1.442695
      %v8573 = vpow.pop %v8572
      %v8574 = vmul.f32 %v7874, 1.442695
      %v8575 = vpow.pop %v8574
      %v8576 = vmul.f32 %v7875, 1.442695
      %v8577 = vpow.pop %v8576
      %v8578 = vmul.f32 %v7876, 1.442695
      %v8579 = vpow.pop %v8578
      %v8580 = vmul.f32 %v7877, 1.442695
      %v8581 = vpow.pop %v8580
      %v8582 = vmul.f32 %v7878, 1.442695
      %v8583 = vpow.pop %v8582
      %v8584 = vmul.f32 %v7879, 1.442695
      %v8585 = vpow.pop %v8584
      %v8586 = vmul.f32 %v7880, 1.442695
      %v8587 = vpow.pop %v8586
      %v8588 = vmul.f32 %v7881, 1.442695
      %v8589 = vpow.pop %v8588
      %v8590 = vmul.f32 %v7882, 1.442695
      %v8591 = vpow.pop %v8590
      %v8592 = vmul.f32 %v7883, 1.442695
      %v8593 = vpow.pop %v8592
      %v8594 = vmul.f32 %v7884, 1.442695
      %v8595 = vpow.pop %v8594
      %v8596 = vmul.f32 %v7885, 1.442695
      %v8597 = vpow.pop %v8596
      %v8598 = vmul.f32 %v7886, 1.442695
      %v8599 = vpow.pop %v8598
      %v8600 = vmul.f32 %v7887, 1.442695
      %v8601 = vpow.pop %v8600
      %v8602 = vmul.f32 %v7888, 1.442695
      %v8603 = vpow.pop %v8602
      %v8604 = vmul.f32 %v7889, 1.442695
      %v8605 = vpow.pop %v8604
      %v8606 = vmul.f32 %v7890, 1.442695
      %v8607 = vpow.pop %v8606
      %v8608 = vmul.f32 %v7891, 1.442695
      %v8609 = vpow.pop %v8608
      %v8610 = vmul.f32 %v7892, 1.442695
      %v8611 = vpow.pop %v8610
      %v8612 = vmul.f32 %v7893, 1.442695
      %v8613 = vpow.pop %v8612
      %v8614 = vmul.f32 %v7894, 1.442695
      %v8615 = vpow.pop %v8614
      %v8616 = vmul.f32 %v7895, 1.442695
      %v8617 = vpow.pop %v8616
      %v8618 = vmul.f32 %v7896, 1.442695
      %v8619 = vpow.pop %v8618
      %v8620 = vmul.f32 %v7897, 1.442695
      %v8621 = vpow.pop %v8620
      %v8622 = vmul.f32 %v7898, 1.442695
      %v8623 = vpow.pop %v8622
      %v8624 = vmul.f32 %v7899, 1.442695
      %v8625 = vpow.pop %v8624
      %v8626 = vmul.f32 %v7900, 1.442695
      %v8627 = vpow.pop %v8626
      %v8628 = vmul.f32 %v7901, 1.442695
      %v8629 = vpow.pop %v8628
      %v8630 = vmul.f32 %v7902, 1.442695
      %v8631 = vpow.pop %v8630
      %v8632 = vmul.f32 %v7903, 1.442695
      %v8633 = vpow.pop %v8632
      %v8634 = vmul.f32 %v7904, 1.442695
      %v8635 = vpow.pop %v8634
      %v8636 = vmul.f32 %v7905, 1.442695
      %v8637 = vpow.pop %v8636
      %v8638 = vmul.f32 %v7906, 1.442695
      %v8639 = vpow.pop %v8638
      %v8640 = vmul.f32 %v7907, 1.442695
      %v8641 = vpow.pop %v8640
      %v8642 = vmul.f32 %v7908, 1.442695
      %v8643 = vpow.pop %v8642
      %v8644 = vmul.f32 %v7909, 1.442695
      %v8645 = vpow.pop %v8644
      %v8646 = vmul.f32 %v7910, 1.442695
      %v8647 = vpow.pop %v8646
      %v8648 = vmul.f32 %v7911, 1.442695
      %v8649 = vpow.pop %v8648
      %v8650 = vmul.f32 %v7912, 1.442695
      %v8651 = vpow.pop %v8650
      %v8652 = vmul.f32 %v7913, 1.442695
      %v8653 = vpow.pop %v8652
      %v8654 = vmul.f32 %v7914, 1.442695
      %v8655 = vpow.pop %v8654
      %v8656 = vmul.f32 %v7915, 1.442695
      %v8657 = vpow.pop %v8656
      %v8658 = vmul.f32 %v7916, 1.442695
      %v8659 = vpow.pop %v8658
      %v8660 = vmul.f32 %v7917, 1.442695
      %v8661 = vpow.pop %v8660
      %v8662 = vmul.f32 %v7918, 1.442695
      %v8663 = vpow.pop %v8662
      %v8664 = vmul.f32 %v7919, 1.442695
      %v8665 = vpow.pop %v8664
      %v8666 = vmul.f32 %v7920, 1.442695
      %v8667 = vpow.pop %v8666
      %v8668 = vmul.f32 %v7921, 1.442695
      %v8669 = vpow.pop %v8668
      %v8670 = vmul.f32 %v7922, 1.442695
      %v8671 = vpow.pop %v8670
      %v8672 = vmul.f32 %v7923, 1.442695
      %v8673 = vpow.pop %v8672
      %v8674 = vmul.f32 %v7924, 1.442695
      %v8675 = vpow.pop %v8674
      %v8676 = vmul.f32 %v7925, 1.442695
      %v8677 = vpow.pop %v8676
      %v8678 = vmul.f32 %v7926, 1.442695
      %v8679 = vpow.pop %v8678
      %v8680 = vmul.f32 %v7927, 1.442695
      %v8681 = vpow.pop %v8680
      %v8682 = vmul.f32 %v7928, 1.442695
      %v8683 = vpow.pop %v8682
      %v8684 = vmul.f32 %v7929, 1.442695
      %v8685 = vpow.pop %v8684
      %v8686 = vmul.f32 %v7930, 1.442695
      %v8687 = vpow.pop %v8686
      %v8688 = vmul.f32 %v7931, 1.442695
      %v8689 = vpow.pop %v8688
      %v8690 = vmul.f32 %v7932, 1.442695
      %v8691 = vpow.pop %v8690
      %v8692 = vmul.f32 %v7933, 1.442695
      %v8693 = vpow.pop %v8692
      %v8694 = vmul.f32 %v7934, 1.442695
      %v8695 = vpow.pop %v8694
      %v8696 = vmul.f32 %v7935, 1.442695
      %v8697 = vpow.pop %v8696
      %v8698 = vmul.f32 %v7936, 1.442695
      %v8699 = vpow.pop %v8698
      %v8700 = vmul.f32 %v7937, 1.442695
      %v8701 = vpow.pop %v8700
      %v8702 = vmul.f32 %v7938, 1.442695
      %v8703 = vpow.pop %v8702
      %v8704 = vmul.f32 %v7939, 1.442695
      %v8705 = vpow.pop %v8704
      %v8706 = vmul.f32 %v7940, 1.442695
      %v8707 = vpow.pop %v8706
      %v8708 = vmul.f32 %v7941, 1.442695
      %v8709 = vpow.pop %v8708
      %v8710 = vmul.f32 %v7942, 1.442695
      %v8711 = vpow.pop %v8710
      %v8712 = vmul.f32 %v7943, 1.442695
      %v8713 = vpow.pop %v8712
      %v8714 = vmul.f32 %v7944, 1.442695
      %v8715 = vpow.pop %v8714
      %v8716 = vmul.f32 %v7945, 1.442695
      %v8717 = vpow.pop %v8716
      %v8718 = vmul.f32 %v7946, 1.442695
      %v8719 = vpow.pop %v8718
      %v8720 = vmul.f32 %v7947, 1.442695
      %v8721 = vpow.pop %v8720
      %v8722 = vmul.f32 %v7948, 1.442695
      %v8723 = vpow.pop %v8722
      %v8724 = vmul.f32 %v7949, 1.442695
      %v8725 = vpow.pop %v8724
      %v8726 = vmul.f32 %v7950, 1.442695
      %v8727 = vpow.pop %v8726
      %v8728 = vmul.f32 %v7951, 1.442695
      %v8729 = vpow.pop %v8728
      %v8730 = vmul.f32 %v7952, 1.442695
      %v8731 = vpow.pop %v8730
      %v8732 = vmul.f32 %v7953, 1.442695
      %v8733 = vpow.pop %v8732
      %v8734 = vmul.f32 %v7954, 1.442695
      %v8735 = vpow.pop %v8734
      %v8736 = vmul.f32 %v7955, 1.442695
      %v8737 = vpow.pop %v8736
      %v8738 = vmul.f32 %v7956, 1.442695
      %v8739 = vpow.pop %v8738
      %v8740 = vmul.f32 %v7957, 1.442695
      %v8741 = vpow.pop %v8740
      %v8742 = vmul.f32 %v7958, 1.442695
      %v8743 = vpow.pop %v8742
      %v8744 = vmul.f32 %v7959, 1.442695
      %v8745 = vpow.pop %v8744
      %v8746 = vmul.f32 %v7960, 1.442695
      %v8747 = vpow.pop %v8746
      %v8748 = vmul.f32 %v7961, 1.442695
      %v8749 = vpow.pop %v8748
      %v8750 = vmul.f32 %v7962, 1.442695
      %v8751 = vpow.pop %v8750
      %v8752 = vmul.f32 %v7963, 1.442695
      %v8753 = vpow.pop %v8752
      %v8754 = vmul.f32 %v7964, 1.442695
      %v8755 = vpow.pop %v8754
      %v8756 = vmul.f32 %v7965, 1.442695
      %v8757 = vpow.pop %v8756
      %v8758 = vmul.f32 %v7966, 1.442695
      %v8759 = vpow.pop %v8758
      %v8760 = vmul.f32 %v7967, 1.442695
      %v8761 = vpow.pop %v8760
      %v8762 = vmul.f32 %v7968, 1.442695
      %v8763 = vpow.pop %v8762
      %v8764 = vmul.f32 %v7969, 1.442695
      %v8765 = vpow.pop %v8764
      %v8766 = vmul.f32 %v7970, 1.442695
      %v8767 = vpow.pop %v8766
      %v8768 = vmul.f32 %v7971, 1.442695
      %v8769 = vpow.pop %v8768
      %v8770 = vmul.f32 %v7972, 1.442695
      %v8771 = vpow.pop %v8770
      %v8772 = vmul.f32 %v7973, 1.442695
      %v8773 = vpow.pop %v8772
      %v8774 = vmul.f32 %v7974, 1.442695
      %v8775 = vpow.pop %v8774
      %v8776 = vmul.f32 %v7975, 1.442695
      %v8777 = vpow.pop %v8776
      %v8778 = vmul.f32 %v7976, 1.442695
      %v8779 = vpow.pop %v8778
      %v8780 = vmul.f32 %v7977, 1.442695
      %v8781 = vpow.pop %v8780
      %v8782 = vmul.f32 %v7978, 1.442695
      %v8783 = vpow.pop %v8782
      %v8784 = vmul.f32 %v7979, 1.442695
      %v8785 = vpow.pop %v8784
      %v8786 = vmul.f32 %v7980, 1.442695
      %v8787 = vpow.pop %v8786
      %v8788 = vmul.f32 %v7981, 1.442695
      %v8789 = vpow.pop %v8788
      %v8790 = vmul.f32 %v7982, 1.442695
      %v8791 = vpow.pop %v8790
      %v8792 = vmul.f32 %v7983, 1.442695
      %v8793 = vpow.pop %v8792
      %v8794 = vmul.f32 %v7984, 1.442695
      %v8795 = vpow.pop %v8794
      %v8796 = vmul.f32 %v7985, 1.442695
      %v8797 = vpow.pop %v8796
      %v8798 = vmul.f32 %v7986, 1.442695
      %v8799 = vpow.pop %v8798
      %v8800 = vmul.f32 %v7987, 1.442695
      %v8801 = vpow.pop %v8800
      %v8802 = vmul.f32 %v7988, 1.442695
      %v8803 = vpow.pop %v8802
      %v8804 = vmul.f32 %v7989, 1.442695
      %v8805 = vpow.pop %v8804
      %v8806 = vmul.f32 %v7990, 1.442695
      %v8807 = vpow.pop %v8806
      %v8808 = vmul.f32 %v7991, 1.442695
      %v8809 = vpow.pop %v8808
      %v8810 = vmul.f32 %v7992, 1.442695
      %v8811 = vpow.pop %v8810
      %v8812 = vmul.f32 %v7993, 1.442695
      %v8813 = vpow.pop %v8812
      %v8814 = vmul.f32 %v7994, 1.442695
      %v8815 = vpow.pop %v8814
      %v8816 = vmul.f32 %v7995, 1.442695
      %v8817 = vpow.pop %v8816
      %v8818 = vmul.f32 %v7996, 1.442695
      %v8819 = vpow.pop %v8818
      %v8820 = vmul.f32 %v7997, 1.442695
      %v8821 = vpow.pop %v8820
      %v8822 = vmul.f32 %v7998, 1.442695
      %v8823 = vpow.pop %v8822
      %v8824 = vmul.f32 %v7999, 1.442695
      %v8825 = vpow.pop %v8824
      %v8826 = vmul.f32 %v8000, 1.442695
      %v8827 = vpow.pop %v8826
      %v8828 = vmul.f32 %v8001, 1.442695
      %v8829 = vpow.pop %v8828
      %v8830 = vmul.f32 %v8002, 1.442695
      %v8831 = vpow.pop %v8830
      %v8832 = vmul.f32 %v8003, 1.442695
      %v8833 = vpow.pop %v8832
      %v8834 = vmul.f32 %v8004, 1.442695
      %v8835 = vpow.pop %v8834
      %v8836 = vmul.f32 %v8005, 1.442695
      %v8837 = vpow.pop %v8836
      %v8838 = vmul.f32 %v8006, 1.442695
      %v8839 = vpow.pop %v8838
      %v8840 = vmul.f32 %v8007, 1.442695
      %v8841 = vpow.pop %v8840
      %v8842 = vmul.f32 %v8008, 1.442695
      %v8843 = vpow.pop %v8842
      %v8844 = vmul.f32 %v8009, 1.442695
      %v8845 = vpow.pop %v8844
      %v8846 = vmul.f32 %v8010, 1.442695
      %v8847 = vpow.pop %v8846
      %v8848 = vmul.f32 %v8011, 1.442695
      %v8849 = vpow.pop %v8848
      %v8850 = vmul.f32 %v8012, 1.442695
      %v8851 = vpow.pop %v8850
      %v8852 = vmul.f32 %v8013, 1.442695
      %v8853 = vpow.pop %v8852
      %v8854 = vmul.f32 %v8014, 1.442695
      %v8855 = vpow.pop %v8854
      %v8856 = vmul.f32 %v8015, 1.442695
      %v8857 = vpow.pop %v8856
      %v8858 = vmul.f32 %v8016, 1.442695
      %v8859 = vpow.pop %v8858
      %v8860 = vmul.f32 %v8017, 1.442695
      %v8861 = vpow.pop %v8860
      %v8862 = vmul.f32 %v8018, 1.442695
      %v8863 = vpow.pop %v8862
      %v8864 = vmul.f32 %v8019, 1.442695
      %v8865 = vpow.pop %v8864
      %v8866 = vmul.f32 %v8020, 1.442695
      %v8867 = vpow.pop %v8866
      %v8868 = vmul.f32 %v8021, 1.442695
      %v8869 = vpow.pop %v8868
      %v8870 = vmul.f32 %v8022, 1.442695
      %v8871 = vpow.pop %v8870
      %v8872 = vmul.f32 %v8023, 1.442695
      %v8873 = vpow.pop %v8872
      %v8874 = vmul.f32 %v8024, 1.442695
      %v8875 = vpow.pop %v8874
      %v8876 = vmul.f32 %v8025, 1.442695
      %v8877 = vpow.pop %v8876
      %v8878 = vmul.f32 %v8026, 1.442695
      %v8879 = vpow.pop %v8878
      %v8880 = vmul.f32 %v8027, 1.442695
      %v8881 = vpow.pop %v8880
      %v8882 = vmul.f32 %v8028, 1.442695
      %v8883 = vpow.pop %v8882
      %v8884 = vmul.f32 %v8029, 1.442695
      %v8885 = vpow.pop %v8884
      %v8886 = vmul.f32 %v8030, 1.442695
      %v8887 = vpow.pop %v8886
      %v8888 = vmul.f32 %v8031, 1.442695
      %v8889 = vpow.pop %v8888
      %v8890 = vmul.f32 %v8032, 1.442695
      %v8891 = vpow.pop %v8890
      %v8892 = vmul.f32 %v8033, 1.442695
      %v8893 = vpow.pop %v8892
      %v8894 = vmul.f32 %v8034, 1.442695
      %v8895 = vpow.pop %v8894
      %v8896 = vmul.f32 %v8035, 1.442695
      %v8897 = vpow.pop %v8896
      %v8898 = vmul.f32 %v8036, 1.442695
      %v8899 = vpow.pop %v8898
      %v8900 = vmul.f32 %v8037, 1.442695
      %v8901 = vpow.pop %v8900
      %v8902 = vmul.f32 %v8038, 1.442695
      %v8903 = vpow.pop %v8902
      %v8904 = vmul.f32 %v8039, 1.442695
      %v8905 = vpow.pop %v8904
      %v8906 = vmul.f32 %v8040, 1.442695
      %v8907 = vpow.pop %v8906
      %v8908 = vmul.f32 %v8041, 1.442695
      %v8909 = vpow.pop %v8908
      %v8910 = vmul.f32 %v8042, 1.442695
      %v8911 = vpow.pop %v8910
      %v8912 = vmul.f32 %v8043, 1.442695
      %v8913 = vpow.pop %v8912
      %v8914 = vmul.f32 %v8044, 1.442695
      %v8915 = vpow.pop %v8914
      %v8916 = vmul.f32 %v8045, 1.442695
      %v8917 = vpow.pop %v8916
      %v8918 = vmul.f32 %v8046, 1.442695
      %v8919 = vpow.pop %v8918
      %v8920 = vmul.f32 %v8047, 1.442695
      %v8921 = vpow.pop %v8920
      %v8922 = vmul.f32 %v8048, 1.442695
      %v8923 = vpow.pop %v8922
      %v8924 = vmul.f32 %v8049, 1.442695
      %v8925 = vpow.pop %v8924
      %v8926 = vmul.f32 %v8050, 1.442695
      %v8927 = vpow.pop %v8926
      %v8928 = vmul.f32 %v8051, 1.442695
      %v8929 = vpow.pop %v8928
      %v8930 = vmul.f32 %v8052, 1.442695
      %v8931 = vpow.pop %v8930
      %v8932 = vmul.f32 %v8053, 1.442695
      %v8933 = vpow.pop %v8932
      %v8934 = vmul.f32 %v8054, 1.442695
      %v8935 = vpow.pop %v8934
      %v8936 = vmul.f32 %v8055, 1.442695
      %v8937 = vpow.pop %v8936
      %v8938 = vmul.f32 %v8056, 1.442695
      %v8939 = vpow.pop %v8938
      %v8940 = vmul.f32 %v8057, 1.442695
      %v8941 = vpow.pop %v8940
      %v8942 = vmul.f32 %v8058, 1.442695
      %v8943 = vpow.pop %v8942
      %v8944 = vmul.f32 %v8059, 1.442695
      %v8945 = vpow.pop %v8944
      %v8946 = vmul.f32 %v8060, 1.442695
      %v8947 = vpow.pop %v8946
      %v8948 = vmul.f32 %v8061, 1.442695
      %v8949 = vpow.pop %v8948
      %v8950 = vmul.f32 %v8062, 1.442695
      %v8951 = vpow.pop %v8950
      %v8952 = vmul.f32 %v8063, 1.442695
      %v8953 = vpow.pop %v8952
      %v8954 = vmul.f32 %v8064, 1.442695
      %v8955 = vpow.pop %v8954
      %v8956 = vmul.f32 %v8065, 1.442695
      %v8957 = vpow.pop %v8956
      %v8958 = vmul.f32 %v8066, 1.442695
      %v8959 = vpow.pop %v8958
      %v8960 = vmul.f32 %v8067, 1.442695
      %v8961 = vpow.pop %v8960
      %v8962 = vmul.f32 %v8068, 1.442695
      %v8963 = vpow.pop %v8962
      %v8964 = vmul.f32 %v8069, 1.442695
      %v8965 = vpow.pop %v8964
      %v8966 = vadd.f32 %v8071, 1.0
      %v8967 = vadd.f32 %v8073, 1.0
      %v8968 = vadd.f32 %v8075, 1.0
      %v8969 = vadd.f32 %v8077, 1.0
      %v8970 = vadd.f32 %v8079, 1.0
      %v8971 = vadd.f32 %v8081, 1.0
      %v8972 = vadd.f32 %v8083, 1.0
      %v8973 = vadd.f32 %v8085, 1.0
      %v8974 = vadd.f32 %v8087, 1.0
      %v8975 = vadd.f32 %v8089, 1.0
      %v8976 = vadd.f32 %v8091, 1.0
      %v8977 = vadd.f32 %v8093, 1.0
      %v8978 = vadd.f32 %v8095, 1.0
      %v8979 = vadd.f32 %v8097, 1.0
      %v8980 = vadd.f32 %v8099, 1.0
      %v8981 = vadd.f32 %v8101, 1.0
      %v8982 = vadd.f32 %v8103, 1.0
      %v8983 = vadd.f32 %v8105, 1.0
      %v8984 = vadd.f32 %v8107, 1.0
      %v8985 = vadd.f32 %v8109, 1.0
      %v8986 = vadd.f32 %v8111, 1.0
      %v8987 = vadd.f32 %v8113, 1.0
      %v8988 = vadd.f32 %v8115, 1.0
      %v8989 = vadd.f32 %v8117, 1.0
      %v8990 = vadd.f32 %v8119, 1.0
      %v8991 = vadd.f32 %v8121, 1.0
      %v8992 = vadd.f32 %v8123, 1.0
      %v8993 = vadd.f32 %v8125, 1.0
      %v8994 = vadd.f32 %v8127, 1.0
      %v8995 = vadd.f32 %v8129, 1.0
      %v8996 = vadd.f32 %v8131, 1.0
      %v8997 = vadd.f32 %v8133, 1.0
      %v8998 = vadd.f32 %v8135, 1.0
      %v8999 = vadd.f32 %v8137, 1.0
      %v9000 = vadd.f32 %v8139, 1.0
      %v9001 = vadd.f32 %v8141, 1.0
      %v9002 = vadd.f32 %v8143, 1.0
      %v9003 = vadd.f32 %v8145, 1.0
      %v9004 = vadd.f32 %v8147, 1.0
      %v9005 = vadd.f32 %v8149, 1.0
      %v9006 = vadd.f32 %v8151, 1.0
      %v9007 = vadd.f32 %v8153, 1.0
      %v9008 = vadd.f32 %v8155, 1.0
      %v9009 = vadd.f32 %v8157, 1.0
      %v9010 = vadd.f32 %v8159, 1.0
      %v9011 = vadd.f32 %v8161, 1.0
      %v9012 = vadd.f32 %v8163, 1.0
      %v9013 = vadd.f32 %v8165, 1.0
      %v9014 = vadd.f32 %v8167, 1.0
      %v9015 = vadd.f32 %v8169, 1.0
      %v9016 = vadd.f32 %v8171, 1.0
      %v9017 = vadd.f32 %v8173, 1.0
      %v9018 = vadd.f32 %v8175, 1.0
      %v9019 = vadd.f32 %v8177, 1.0
      %v9020 = vadd.f32 %v8179, 1.0
      %v9021 = vadd.f32 %v8181, 1.0
      %v9022 = vadd.f32 %v8183, 1.0
      %v9023 = vadd.f32 %v8185, 1.0
      %v9024 = vadd.f32 %v8187, 1.0
      %v9025 = vadd.f32 %v8189, 1.0
      %v9026 = vadd.f32 %v8191, 1.0
      %v9027 = vadd.f32 %v8193, 1.0
      %v9028 = vadd.f32 %v8195, 1.0
      %v9029 = vadd.f32 %v8197, 1.0
      %v9030 = vadd.f32 %v8199, 1.0
      %v9031 = vadd.f32 %v8201, 1.0
      %v9032 = vadd.f32 %v8203, 1.0
      %v9033 = vadd.f32 %v8205, 1.0
      %v9034 = vadd.f32 %v8207, 1.0
      %v9035 = vadd.f32 %v8209, 1.0
      %v9036 = vadd.f32 %v8211, 1.0
      %v9037 = vadd.f32 %v8213, 1.0
      %v9038 = vadd.f32 %v8215, 1.0
      %v9039 = vadd.f32 %v8217, 1.0
      %v9040 = vadd.f32 %v8219, 1.0
      %v9041 = vadd.f32 %v8221, 1.0
      %v9042 = vadd.f32 %v8223, 1.0
      %v9043 = vadd.f32 %v8225, 1.0
      %v9044 = vadd.f32 %v8227, 1.0
      %v9045 = vadd.f32 %v8229, 1.0
      %v9046 = vadd.f32 %v8231, 1.0
      %v9047 = vadd.f32 %v8233, 1.0
      %v9048 = vadd.f32 %v8235, 1.0
      %v9049 = vadd.f32 %v8237, 1.0
      %v9050 = vadd.f32 %v8239, 1.0
      %v9051 = vadd.f32 %v8241, 1.0
      %v9052 = vadd.f32 %v8243, 1.0
      %v9053 = vadd.f32 %v8245, 1.0
      %v9054 = vadd.f32 %v8247, 1.0
      %v9055 = vadd.f32 %v8249, 1.0
      %v9056 = vadd.f32 %v8251, 1.0
      %v9057 = vadd.f32 %v8253, 1.0
      %v9058 = vadd.f32 %v8255, 1.0
      %v9059 = vadd.f32 %v8257, 1.0
      %v9060 = vadd.f32 %v8259, 1.0
      %v9061 = vadd.f32 %v8261, 1.0
      %v9062 = vadd.f32 %v8263, 1.0
      %v9063 = vadd.f32 %v8265, 1.0
      %v9064 = vadd.f32 %v8267, 1.0
      %v9065 = vadd.f32 %v8269, 1.0
      %v9066 = vadd.f32 %v8271, 1.0
      %v9067 = vadd.f32 %v8273, 1.0
      %v9068 = vadd.f32 %v8275, 1.0
      %v9069 = vadd.f32 %v8277, 1.0
      %v9070 = vadd.f32 %v8279, 1.0
      %v9071 = vadd.f32 %v8281, 1.0
      %v9072 = vadd.f32 %v8283, 1.0
      %v9073 = vadd.f32 %v8285, 1.0
      %v9074 = vadd.f32 %v8287, 1.0
      %v9075 = vadd.f32 %v8289, 1.0
      %v9076 = vadd.f32 %v8291, 1.0
      %v9077 = vadd.f32 %v8293, 1.0
      %v9078 = vadd.f32 %v8295, 1.0
      %v9079 = vadd.f32 %v8297, 1.0
      %v9080 = vadd.f32 %v8299, 1.0
      %v9081 = vadd.f32 %v8301, 1.0
      %v9082 = vadd.f32 %v8303, 1.0
      %v9083 = vadd.f32 %v8305, 1.0
      %v9084 = vadd.f32 %v8307, 1.0
      %v9085 = vadd.f32 %v8309, 1.0
      %v9086 = vadd.f32 %v8311, 1.0
      %v9087 = vadd.f32 %v8313, 1.0
      %v9088 = vadd.f32 %v8315, 1.0
      %v9089 = vadd.f32 %v8317, 1.0
      %v9090 = vadd.f32 %v8319, 1.0
      %v9091 = vadd.f32 %v8321, 1.0
      %v9092 = vadd.f32 %v8323, 1.0
      %v9093 = vadd.f32 %v8325, 1.0
      %v9094 = vadd.f32 %v8327, 1.0
      %v9095 = vadd.f32 %v8329, 1.0
      %v9096 = vadd.f32 %v8331, 1.0
      %v9097 = vadd.f32 %v8333, 1.0
      %v9098 = vadd.f32 %v8335, 1.0
      %v9099 = vadd.f32 %v8337, 1.0
      %v9100 = vadd.f32 %v8339, 1.0
      %v9101 = vadd.f32 %v8341, 1.0
      %v9102 = vadd.f32 %v8343, 1.0
      %v9103 = vadd.f32 %v8345, 1.0
      %v9104 = vadd.f32 %v8347, 1.0
      %v9105 = vadd.f32 %v8349, 1.0
      %v9106 = vadd.f32 %v8351, 1.0
      %v9107 = vadd.f32 %v8353, 1.0
      %v9108 = vadd.f32 %v8355, 1.0
      %v9109 = vadd.f32 %v8357, 1.0
      %v9110 = vadd.f32 %v8359, 1.0
      %v9111 = vadd.f32 %v8361, 1.0
      %v9112 = vadd.f32 %v8363, 1.0
      %v9113 = vadd.f32 %v8365, 1.0
      %v9114 = vadd.f32 %v8367, 1.0
      %v9115 = vadd.f32 %v8369, 1.0
      %v9116 = vadd.f32 %v8371, 1.0
      %v9117 = vadd.f32 %v8373, 1.0
      %v9118 = vadd.f32 %v8375, 1.0
      %v9119 = vadd.f32 %v8377, 1.0
      %v9120 = vadd.f32 %v8379, 1.0
      %v9121 = vadd.f32 %v8381, 1.0
      %v9122 = vadd.f32 %v8383, 1.0
      %v9123 = vadd.f32 %v8385, 1.0
      %v9124 = vadd.f32 %v8387, 1.0
      %v9125 = vadd.f32 %v8389, 1.0
      %v9126 = vadd.f32 %v8391, 1.0
      %v9127 = vadd.f32 %v8393, 1.0
      %v9128 = vadd.f32 %v8395, 1.0
      %v9129 = vadd.f32 %v8397, 1.0
      %v9130 = vadd.f32 %v8399, 1.0
      %v9131 = vadd.f32 %v8401, 1.0
      %v9132 = vadd.f32 %v8403, 1.0
      %v9133 = vadd.f32 %v8405, 1.0
      %v9134 = vadd.f32 %v8407, 1.0
      %v9135 = vadd.f32 %v8409, 1.0
      %v9136 = vadd.f32 %v8411, 1.0
      %v9137 = vadd.f32 %v8413, 1.0
      %v9138 = vadd.f32 %v8415, 1.0
      %v9139 = vadd.f32 %v8417, 1.0
      %v9140 = vadd.f32 %v8419, 1.0
      %v9141 = vadd.f32 %v8421, 1.0
      %v9142 = vadd.f32 %v8423, 1.0
      %v9143 = vadd.f32 %v8425, 1.0
      %v9144 = vadd.f32 %v8427, 1.0
      %v9145 = vadd.f32 %v8429, 1.0
      %v9146 = vadd.f32 %v8431, 1.0
      %v9147 = vadd.f32 %v8433, 1.0
      %v9148 = vadd.f32 %v8435, 1.0
      %v9149 = vadd.f32 %v8437, 1.0
      %v9150 = vadd.f32 %v8439, 1.0
      %v9151 = vadd.f32 %v8441, 1.0
      %v9152 = vadd.f32 %v8443, 1.0
      %v9153 = vadd.f32 %v8445, 1.0
      %v9154 = vadd.f32 %v8447, 1.0
      %v9155 = vadd.f32 %v8449, 1.0
      %v9156 = vadd.f32 %v8451, 1.0
      %v9157 = vadd.f32 %v8453, 1.0
      %v9158 = vadd.f32 %v8455, 1.0
      %v9159 = vadd.f32 %v8457, 1.0
      %v9160 = vadd.f32 %v8459, 1.0
      %v9161 = vadd.f32 %v8461, 1.0
      %v9162 = vadd.f32 %v8463, 1.0
      %v9163 = vadd.f32 %v8465, 1.0
      %v9164 = vadd.f32 %v8467, 1.0
      %v9165 = vadd.f32 %v8469, 1.0
      %v9166 = vadd.f32 %v8471, 1.0
      %v9167 = vadd.f32 %v8473, 1.0
      %v9168 = vadd.f32 %v8475, 1.0
      %v9169 = vadd.f32 %v8477, 1.0
      %v9170 = vadd.f32 %v8479, 1.0
      %v9171 = vadd.f32 %v8481, 1.0
      %v9172 = vadd.f32 %v8483, 1.0
      %v9173 = vadd.f32 %v8485, 1.0
      %v9174 = vadd.f32 %v8487, 1.0
      %v9175 = vadd.f32 %v8489, 1.0
      %v9176 = vadd.f32 %v8491, 1.0
      %v9177 = vadd.f32 %v8493, 1.0
      %v9178 = vadd.f32 %v8495, 1.0
      %v9179 = vadd.f32 %v8497, 1.0
      %v9180 = vadd.f32 %v8499, 1.0
      %v9181 = vadd.f32 %v8501, 1.0
      %v9182 = vadd.f32 %v8503, 1.0
      %v9183 = vadd.f32 %v8505, 1.0
      %v9184 = vadd.f32 %v8507, 1.0
      %v9185 = vadd.f32 %v8509, 1.0
      %v9186 = vadd.f32 %v8511, 1.0
      %v9187 = vadd.f32 %v8513, 1.0
      %v9188 = vadd.f32 %v8515, 1.0
      %v9189 = vadd.f32 %v8517, 1.0
      %v9190 = vadd.f32 %v8519, 1.0
      %v9191 = vadd.f32 %v8521, 1.0
      %v9192 = vadd.f32 %v8523, 1.0
      %v9193 = vadd.f32 %v8525, 1.0
      %v9194 = vadd.f32 %v8527, 1.0
      %v9195 = vadd.f32 %v8529, 1.0
      %v9196 = vadd.f32 %v8531, 1.0
      %v9197 = vadd.f32 %v8533, 1.0
      %v9198 = vadd.f32 %v8535, 1.0
      %v9199 = vadd.f32 %v8537, 1.0
      %v9200 = vadd.f32 %v8539, 1.0
      %v9201 = vadd.f32 %v8541, 1.0
      %v9202 = vadd.f32 %v8543, 1.0
      %v9203 = vadd.f32 %v8545, 1.0
      %v9204 = vadd.f32 %v8547, 1.0
      %v9205 = vadd.f32 %v8549, 1.0
      %v9206 = vadd.f32 %v8551, 1.0
      %v9207 = vadd.f32 %v8553, 1.0
      %v9208 = vadd.f32 %v8555, 1.0
      %v9209 = vadd.f32 %v8557, 1.0
      %v9210 = vadd.f32 %v8559, 1.0
      %v9211 = vadd.f32 %v8561, 1.0
      %v9212 = vadd.f32 %v8563, 1.0
      %v9213 = vadd.f32 %v8565, 1.0
      %v9214 = vadd.f32 %v8567, 1.0
      %v9215 = vadd.f32 %v8569, 1.0
      %v9216 = vadd.f32 %v8571, 1.0
      %v9217 = vadd.f32 %v8573, 1.0
      %v9218 = vadd.f32 %v8575, 1.0
      %v9219 = vadd.f32 %v8577, 1.0
      %v9220 = vadd.f32 %v8579, 1.0
      %v9221 = vadd.f32 %v8581, 1.0
      %v9222 = vadd.f32 %v8583, 1.0
      %v9223 = vadd.f32 %v8585, 1.0
      %v9224 = vadd.f32 %v8587, 1.0
      %v9225 = vadd.f32 %v8589, 1.0
      %v9226 = vadd.f32 %v8591, 1.0
      %v9227 = vadd.f32 %v8593, 1.0
      %v9228 = vadd.f32 %v8595, 1.0
      %v9229 = vadd.f32 %v8597, 1.0
      %v9230 = vadd.f32 %v8599, 1.0
      %v9231 = vadd.f32 %v8601, 1.0
      %v9232 = vadd.f32 %v8603, 1.0
      %v9233 = vadd.f32 %v8605, 1.0
      %v9234 = vadd.f32 %v8607, 1.0
      %v9235 = vadd.f32 %v8609, 1.0
      %v9236 = vadd.f32 %v8611, 1.0
      %v9237 = vadd.f32 %v8613, 1.0
      %v9238 = vadd.f32 %v8615, 1.0
      %v9239 = vadd.f32 %v8617, 1.0
      %v9240 = vadd.f32 %v8619, 1.0
      %v9241 = vadd.f32 %v8621, 1.0
      %v9242 = vadd.f32 %v8623, 1.0
      %v9243 = vadd.f32 %v8625, 1.0
      %v9244 = vadd.f32 %v8627, 1.0
      %v9245 = vadd.f32 %v8629, 1.0
      %v9246 = vadd.f32 %v8631, 1.0
      %v9247 = vadd.f32 %v8633, 1.0
      %v9248 = vadd.f32 %v8635, 1.0
      %v9249 = vadd.f32 %v8637, 1.0
      %v9250 = vadd.f32 %v8639, 1.0
      %v9251 = vadd.f32 %v8641, 1.0
      %v9252 = vadd.f32 %v8643, 1.0
      %v9253 = vadd.f32 %v8645, 1.0
      %v9254 = vadd.f32 %v8647, 1.0
      %v9255 = vadd.f32 %v8649, 1.0
      %v9256 = vadd.f32 %v8651, 1.0
      %v9257 = vadd.f32 %v8653, 1.0
      %v9258 = vadd.f32 %v8655, 1.0
      %v9259 = vadd.f32 %v8657, 1.0
      %v9260 = vadd.f32 %v8659, 1.0
      %v9261 = vadd.f32 %v8661, 1.0
      %v9262 = vadd.f32 %v8663, 1.0
      %v9263 = vadd.f32 %v8665, 1.0
      %v9264 = vadd.f32 %v8667, 1.0
      %v9265 = vadd.f32 %v8669, 1.0
      %v9266 = vadd.f32 %v8671, 1.0
      %v9267 = vadd.f32 %v8673, 1.0
      %v9268 = vadd.f32 %v8675, 1.0
      %v9269 = vadd.f32 %v8677, 1.0
      %v9270 = vadd.f32 %v8679, 1.0
      %v9271 = vadd.f32 %v8681, 1.0
      %v9272 = vadd.f32 %v8683, 1.0
      %v9273 = vadd.f32 %v8685, 1.0
      %v9274 = vadd.f32 %v8687, 1.0
      %v9275 = vadd.f32 %v8689, 1.0
      %v9276 = vadd.f32 %v8691, 1.0
      %v9277 = vadd.f32 %v8693, 1.0
      %v9278 = vadd.f32 %v8695, 1.0
      %v9279 = vadd.f32 %v8697, 1.0
      %v9280 = vadd.f32 %v8699, 1.0
      %v9281 = vadd.f32 %v8701, 1.0
      %v9282 = vadd.f32 %v8703, 1.0
      %v9283 = vadd.f32 %v8705, 1.0
      %v9284 = vadd.f32 %v8707, 1.0
      %v9285 = vadd.f32 %v8709, 1.0
      %v9286 = vadd.f32 %v8711, 1.0
      %v9287 = vadd.f32 %v8713, 1.0
      %v9288 = vadd.f32 %v8715, 1.0
      %v9289 = vadd.f32 %v8717, 1.0
      %v9290 = vadd.f32 %v8719, 1.0
      %v9291 = vadd.f32 %v8721, 1.0
      %v9292 = vadd.f32 %v8723, 1.0
      %v9293 = vadd.f32 %v8725, 1.0
      %v9294 = vadd.f32 %v8727, 1.0
      %v9295 = vadd.f32 %v8729, 1.0
      %v9296 = vadd.f32 %v8731, 1.0
      %v9297 = vadd.f32 %v8733, 1.0
      %v9298 = vadd.f32 %v8735, 1.0
      %v9299 = vadd.f32 %v8737, 1.0
      %v9300 = vadd.f32 %v8739, 1.0
      %v9301 = vadd.f32 %v8741, 1.0
      %v9302 = vadd.f32 %v8743, 1.0
      %v9303 = vadd.f32 %v8745, 1.0
      %v9304 = vadd.f32 %v8747, 1.0
      %v9305 = vadd.f32 %v8749, 1.0
      %v9306 = vadd.f32 %v8751, 1.0
      %v9307 = vadd.f32 %v8753, 1.0
      %v9308 = vadd.f32 %v8755, 1.0
      %v9309 = vadd.f32 %v8757, 1.0
      %v9310 = vadd.f32 %v8759, 1.0
      %v9311 = vadd.f32 %v8761, 1.0
      %v9312 = vadd.f32 %v8763, 1.0
      %v9313 = vadd.f32 %v8765, 1.0
      %v9314 = vadd.f32 %v8767, 1.0
      %v9315 = vadd.f32 %v8769, 1.0
      %v9316 = vadd.f32 %v8771, 1.0
      %v9317 = vadd.f32 %v8773, 1.0
      %v9318 = vadd.f32 %v8775, 1.0
      %v9319 = vadd.f32 %v8777, 1.0
      %v9320 = vadd.f32 %v8779, 1.0
      %v9321 = vadd.f32 %v8781, 1.0
      %v9322 = vadd.f32 %v8783, 1.0
      %v9323 = vadd.f32 %v8785, 1.0
      %v9324 = vadd.f32 %v8787, 1.0
      %v9325 = vadd.f32 %v8789, 1.0
      %v9326 = vadd.f32 %v8791, 1.0
      %v9327 = vadd.f32 %v8793, 1.0
      %v9328 = vadd.f32 %v8795, 1.0
      %v9329 = vadd.f32 %v8797, 1.0
      %v9330 = vadd.f32 %v8799, 1.0
      %v9331 = vadd.f32 %v8801, 1.0
      %v9332 = vadd.f32 %v8803, 1.0
      %v9333 = vadd.f32 %v8805, 1.0
      %v9334 = vadd.f32 %v8807, 1.0
      %v9335 = vadd.f32 %v8809, 1.0
      %v9336 = vadd.f32 %v8811, 1.0
      %v9337 = vadd.f32 %v8813, 1.0
      %v9338 = vadd.f32 %v8815, 1.0
      %v9339 = vadd.f32 %v8817, 1.0
      %v9340 = vadd.f32 %v8819, 1.0
      %v9341 = vadd.f32 %v8821, 1.0
      %v9342 = vadd.f32 %v8823, 1.0
      %v9343 = vadd.f32 %v8825, 1.0
      %v9344 = vadd.f32 %v8827, 1.0
      %v9345 = vadd.f32 %v8829, 1.0
      %v9346 = vadd.f32 %v8831, 1.0
      %v9347 = vadd.f32 %v8833, 1.0
      %v9348 = vadd.f32 %v8835, 1.0
      %v9349 = vadd.f32 %v8837, 1.0
      %v9350 = vadd.f32 %v8839, 1.0
      %v9351 = vadd.f32 %v8841, 1.0
      %v9352 = vadd.f32 %v8843, 1.0
      %v9353 = vadd.f32 %v8845, 1.0
      %v9354 = vadd.f32 %v8847, 1.0
      %v9355 = vadd.f32 %v8849, 1.0
      %v9356 = vadd.f32 %v8851, 1.0
      %v9357 = vadd.f32 %v8853, 1.0
      %v9358 = vadd.f32 %v8855, 1.0
      %v9359 = vadd.f32 %v8857, 1.0
      %v9360 = vadd.f32 %v8859, 1.0
      %v9361 = vadd.f32 %v8861, 1.0
      %v9362 = vadd.f32 %v8863, 1.0
      %v9363 = vadd.f32 %v8865, 1.0
      %v9364 = vadd.f32 %v8867, 1.0
      %v9365 = vadd.f32 %v8869, 1.0
      %v9366 = vadd.f32 %v8871, 1.0
      %v9367 = vadd.f32 %v8873, 1.0
      %v9368 = vadd.f32 %v8875, 1.0
      %v9369 = vadd.f32 %v8877, 1.0
      %v9370 = vadd.f32 %v8879, 1.0
      %v9371 = vadd.f32 %v8881, 1.0
      %v9372 = vadd.f32 %v8883, 1.0
      %v9373 = vadd.f32 %v8885, 1.0
      %v9374 = vadd.f32 %v8887, 1.0
      %v9375 = vadd.f32 %v8889, 1.0
      %v9376 = vadd.f32 %v8891, 1.0
      %v9377 = vadd.f32 %v8893, 1.0
      %v9378 = vadd.f32 %v8895, 1.0
      %v9379 = vadd.f32 %v8897, 1.0
      %v9380 = vadd.f32 %v8899, 1.0
      %v9381 = vadd.f32 %v8901, 1.0
      %v9382 = vadd.f32 %v8903, 1.0
      %v9383 = vadd.f32 %v8905, 1.0
      %v9384 = vadd.f32 %v8907, 1.0
      %v9385 = vadd.f32 %v8909, 1.0
      %v9386 = vadd.f32 %v8911, 1.0
      %v9387 = vadd.f32 %v8913, 1.0
      %v9388 = vadd.f32 %v8915, 1.0
      %v9389 = vadd.f32 %v8917, 1.0
      %v9390 = vadd.f32 %v8919, 1.0
      %v9391 = vadd.f32 %v8921, 1.0
      %v9392 = vadd.f32 %v8923, 1.0
      %v9393 = vadd.f32 %v8925, 1.0
      %v9394 = vadd.f32 %v8927, 1.0
      %v9395 = vadd.f32 %v8929, 1.0
      %v9396 = vadd.f32 %v8931, 1.0
      %v9397 = vadd.f32 %v8933, 1.0
      %v9398 = vadd.f32 %v8935, 1.0
      %v9399 = vadd.f32 %v8937, 1.0
      %v9400 = vadd.f32 %v8939, 1.0
      %v9401 = vadd.f32 %v8941, 1.0
      %v9402 = vadd.f32 %v8943, 1.0
      %v9403 = vadd.f32 %v8945, 1.0
      %v9404 = vadd.f32 %v8947, 1.0
      %v9405 = vadd.f32 %v8949, 1.0
      %v9406 = vadd.f32 %v8951, 1.0
      %v9407 = vadd.f32 %v8953, 1.0
      %v9408 = vadd.f32 %v8955, 1.0
      %v9409 = vadd.f32 %v8957, 1.0
      %v9410 = vadd.f32 %v8959, 1.0
      %v9411 = vadd.f32 %v8961, 1.0
      %v9412 = vadd.f32 %v8963, 1.0
      %v9413 = vadd.f32 %v8965, 1.0
      %v9414 = vrcp.pop %v8966
      %v9415 = vmul.f32 1.0, %v9414
      %v9416 = vrcp.pop %v8967
      %v9417 = vmul.f32 1.0, %v9416
      %v9418 = vrcp.pop %v8968
      %v9419 = vmul.f32 1.0, %v9418
      %v9420 = vrcp.pop %v8969
      %v9421 = vmul.f32 1.0, %v9420
      %v9422 = vrcp.pop %v8970
      %v9423 = vmul.f32 1.0, %v9422
      %v9424 = vrcp.pop %v8971
      %v9425 = vmul.f32 1.0, %v9424
      %v9426 = vrcp.pop %v8972
      %v9427 = vmul.f32 1.0, %v9426
      %v9428 = vrcp.pop %v8973
      %v9429 = vmul.f32 1.0, %v9428
      %v9430 = vrcp.pop %v8974
      %v9431 = vmul.f32 1.0, %v9430
      %v9432 = vrcp.pop %v8975
      %v9433 = vmul.f32 1.0, %v9432
      %v9434 = vrcp.pop %v8976
      %v9435 = vmul.f32 1.0, %v9434
      %v9436 = vrcp.pop %v8977
      %v9437 = vmul.f32 1.0, %v9436
      %v9438 = vrcp.pop %v8978
      %v9439 = vmul.f32 1.0, %v9438
      %v9440 = vrcp.pop %v8979
      %v9441 = vmul.f32 1.0, %v9440
      %v9442 = vrcp.pop %v8980
      %v9443 = vmul.f32 1.0, %v9442
      %v9444 = vrcp.pop %v8981
      %v9445 = vmul.f32 1.0, %v9444
      %v9446 = vrcp.pop %v8982
      %v9447 = vmul.f32 1.0, %v9446
      %v9448 = vrcp.pop %v8983
      %v9449 = vmul.f32 1.0, %v9448
      %v9450 = vrcp.pop %v8984
      %v9451 = vmul.f32 1.0, %v9450
      %v9452 = vrcp.pop %v8985
      %v9453 = vmul.f32 1.0, %v9452
      %v9454 = vrcp.pop %v8986
      %v9455 = vmul.f32 1.0, %v9454
      %v9456 = vrcp.pop %v8987
      %v9457 = vmul.f32 1.0, %v9456
      %v9458 = vrcp.pop %v8988
      %v9459 = vmul.f32 1.0, %v9458
      %v9460 = vrcp.pop %v8989
      %v9461 = vmul.f32 1.0, %v9460
      %v9462 = vrcp.pop %v8990
      %v9463 = vmul.f32 1.0, %v9462
      %v9464 = vrcp.pop %v8991
      %v9465 = vmul.f32 1.0, %v9464
      %v9466 = vrcp.pop %v8992
      %v9467 = vmul.f32 1.0, %v9466
      %v9468 = vrcp.pop %v8993
      %v9469 = vmul.f32 1.0, %v9468
      %v9470 = vrcp.pop %v8994
      %v9471 = vmul.f32 1.0, %v9470
      %v9472 = vrcp.pop %v8995
      %v9473 = vmul.f32 1.0, %v9472
      %v9474 = vrcp.pop %v8996
      %v9475 = vmul.f32 1.0, %v9474
      %v9476 = vrcp.pop %v8997
      %v9477 = vmul.f32 1.0, %v9476
      %v9478 = vrcp.pop %v8998
      %v9479 = vmul.f32 1.0, %v9478
      %v9480 = vrcp.pop %v8999
      %v9481 = vmul.f32 1.0, %v9480
      %v9482 = vrcp.pop %v9000
      %v9483 = vmul.f32 1.0, %v9482
      %v9484 = vrcp.pop %v9001
      %v9485 = vmul.f32 1.0, %v9484
      %v9486 = vrcp.pop %v9002
      %v9487 = vmul.f32 1.0, %v9486
      %v9488 = vrcp.pop %v9003
      %v9489 = vmul.f32 1.0, %v9488
      %v9490 = vrcp.pop %v9004
      %v9491 = vmul.f32 1.0, %v9490
      %v9492 = vrcp.pop %v9005
      %v9493 = vmul.f32 1.0, %v9492
      %v9494 = vrcp.pop %v9006
      %v9495 = vmul.f32 1.0, %v9494
      %v9496 = vrcp.pop %v9007
      %v9497 = vmul.f32 1.0, %v9496
      %v9498 = vrcp.pop %v9008
      %v9499 = vmul.f32 1.0, %v9498
      %v9500 = vrcp.pop %v9009
      %v9501 = vmul.f32 1.0, %v9500
      %v9502 = vrcp.pop %v9010
      %v9503 = vmul.f32 1.0, %v9502
      %v9504 = vrcp.pop %v9011
      %v9505 = vmul.f32 1.0, %v9504
      %v9506 = vrcp.pop %v9012
      %v9507 = vmul.f32 1.0, %v9506
      %v9508 = vrcp.pop %v9013
      %v9509 = vmul.f32 1.0, %v9508
      %v9510 = vrcp.pop %v9014
      %v9511 = vmul.f32 1.0, %v9510
      %v9512 = vrcp.pop %v9015
      %v9513 = vmul.f32 1.0, %v9512
      %v9514 = vrcp.pop %v9016
      %v9515 = vmul.f32 1.0, %v9514
      %v9516 = vrcp.pop %v9017
      %v9517 = vmul.f32 1.0, %v9516
      %v9518 = vrcp.pop %v9018
      %v9519 = vmul.f32 1.0, %v9518
      %v9520 = vrcp.pop %v9019
      %v9521 = vmul.f32 1.0, %v9520
      %v9522 = vrcp.pop %v9020
      %v9523 = vmul.f32 1.0, %v9522
      %v9524 = vrcp.pop %v9021
      %v9525 = vmul.f32 1.0, %v9524
      %v9526 = vrcp.pop %v9022
      %v9527 = vmul.f32 1.0, %v9526
      %v9528 = vrcp.pop %v9023
      %v9529 = vmul.f32 1.0, %v9528
      %v9530 = vrcp.pop %v9024
      %v9531 = vmul.f32 1.0, %v9530
      %v9532 = vrcp.pop %v9025
      %v9533 = vmul.f32 1.0, %v9532
      %v9534 = vrcp.pop %v9026
      %v9535 = vmul.f32 1.0, %v9534
      %v9536 = vrcp.pop %v9027
      %v9537 = vmul.f32 1.0, %v9536
      %v9538 = vrcp.pop %v9028
      %v9539 = vmul.f32 1.0, %v9538
      %v9540 = vrcp.pop %v9029
      %v9541 = vmul.f32 1.0, %v9540
      %v9542 = vrcp.pop %v9030
      %v9543 = vmul.f32 1.0, %v9542
      %v9544 = vrcp.pop %v9031
      %v9545 = vmul.f32 1.0, %v9544
      %v9546 = vrcp.pop %v9032
      %v9547 = vmul.f32 1.0, %v9546
      %v9548 = vrcp.pop %v9033
      %v9549 = vmul.f32 1.0, %v9548
      %v9550 = vrcp.pop %v9034
      %v9551 = vmul.f32 1.0, %v9550
      %v9552 = vrcp.pop %v9035
      %v9553 = vmul.f32 1.0, %v9552
      %v9554 = vrcp.pop %v9036
      %v9555 = vmul.f32 1.0, %v9554
      %v9556 = vrcp.pop %v9037
      %v9557 = vmul.f32 1.0, %v9556
      %v9558 = vrcp.pop %v9038
      %v9559 = vmul.f32 1.0, %v9558
      %v9560 = vrcp.pop %v9039
      %v9561 = vmul.f32 1.0, %v9560
      %v9562 = vrcp.pop %v9040
      %v9563 = vmul.f32 1.0, %v9562
      %v9564 = vrcp.pop %v9041
      %v9565 = vmul.f32 1.0, %v9564
      %v9566 = vrcp.pop %v9042
      %v9567 = vmul.f32 1.0, %v9566
      %v9568 = vrcp.pop %v9043
      %v9569 = vmul.f32 1.0, %v9568
      %v9570 = vrcp.pop %v9044
      %v9571 = vmul.f32 1.0, %v9570
      %v9572 = vrcp.pop %v9045
      %v9573 = vmul.f32 1.0, %v9572
      %v9574 = vrcp.pop %v9046
      %v9575 = vmul.f32 1.0, %v9574
      %v9576 = vrcp.pop %v9047
      %v9577 = vmul.f32 1.0, %v9576
      %v9578 = vrcp.pop %v9048
      %v9579 = vmul.f32 1.0, %v9578
      %v9580 = vrcp.pop %v9049
      %v9581 = vmul.f32 1.0, %v9580
      %v9582 = vrcp.pop %v9050
      %v9583 = vmul.f32 1.0, %v9582
      %v9584 = vrcp.pop %v9051
      %v9585 = vmul.f32 1.0, %v9584
      %v9586 = vrcp.pop %v9052
      %v9587 = vmul.f32 1.0, %v9586
      %v9588 = vrcp.pop %v9053
      %v9589 = vmul.f32 1.0, %v9588
      %v9590 = vrcp.pop %v9054
      %v9591 = vmul.f32 1.0, %v9590
      %v9592 = vrcp.pop %v9055
      %v9593 = vmul.f32 1.0, %v9592
      %v9594 = vrcp.pop %v9056
      %v9595 = vmul.f32 1.0, %v9594
      %v9596 = vrcp.pop %v9057
      %v9597 = vmul.f32 1.0, %v9596
      %v9598 = vrcp.pop %v9058
      %v9599 = vmul.f32 1.0, %v9598
      %v9600 = vrcp.pop %v9059
      %v9601 = vmul.f32 1.0, %v9600
      %v9602 = vrcp.pop %v9060
      %v9603 = vmul.f32 1.0, %v9602
      %v9604 = vrcp.pop %v9061
      %v9605 = vmul.f32 1.0, %v9604
      %v9606 = vrcp.pop %v9062
      %v9607 = vmul.f32 1.0, %v9606
      %v9608 = vrcp.pop %v9063
      %v9609 = vmul.f32 1.0, %v9608
      %v9610 = vrcp.pop %v9064
      %v9611 = vmul.f32 1.0, %v9610
      %v9612 = vrcp.pop %v9065
      %v9613 = vmul.f32 1.0, %v9612
      %v9614 = vrcp.pop %v9066
      %v9615 = vmul.f32 1.0, %v9614
      %v9616 = vrcp.pop %v9067
      %v9617 = vmul.f32 1.0, %v9616
      %v9618 = vrcp.pop %v9068
      %v9619 = vmul.f32 1.0, %v9618
      %v9620 = vrcp.pop %v9069
      %v9621 = vmul.f32 1.0, %v9620
      %v9622 = vrcp.pop %v9070
      %v9623 = vmul.f32 1.0, %v9622
      %v9624 = vrcp.pop %v9071
      %v9625 = vmul.f32 1.0, %v9624
      %v9626 = vrcp.pop %v9072
      %v9627 = vmul.f32 1.0, %v9626
      %v9628 = vrcp.pop %v9073
      %v9629 = vmul.f32 1.0, %v9628
      %v9630 = vrcp.pop %v9074
      %v9631 = vmul.f32 1.0, %v9630
      %v9632 = vrcp.pop %v9075
      %v9633 = vmul.f32 1.0, %v9632
      %v9634 = vrcp.pop %v9076
      %v9635 = vmul.f32 1.0, %v9634
      %v9636 = vrcp.pop %v9077
      %v9637 = vmul.f32 1.0, %v9636
      %v9638 = vrcp.pop %v9078
      %v9639 = vmul.f32 1.0, %v9638
      %v9640 = vrcp.pop %v9079
      %v9641 = vmul.f32 1.0, %v9640
      %v9642 = vrcp.pop %v9080
      %v9643 = vmul.f32 1.0, %v9642
      %v9644 = vrcp.pop %v9081
      %v9645 = vmul.f32 1.0, %v9644
      %v9646 = vrcp.pop %v9082
      %v9647 = vmul.f32 1.0, %v9646
      %v9648 = vrcp.pop %v9083
      %v9649 = vmul.f32 1.0, %v9648
      %v9650 = vrcp.pop %v9084
      %v9651 = vmul.f32 1.0, %v9650
      %v9652 = vrcp.pop %v9085
      %v9653 = vmul.f32 1.0, %v9652
      %v9654 = vrcp.pop %v9086
      %v9655 = vmul.f32 1.0, %v9654
      %v9656 = vrcp.pop %v9087
      %v9657 = vmul.f32 1.0, %v9656
      %v9658 = vrcp.pop %v9088
      %v9659 = vmul.f32 1.0, %v9658
      %v9660 = vrcp.pop %v9089
      %v9661 = vmul.f32 1.0, %v9660
      %v9662 = vrcp.pop %v9090
      %v9663 = vmul.f32 1.0, %v9662
      %v9664 = vrcp.pop %v9091
      %v9665 = vmul.f32 1.0, %v9664
      %v9666 = vrcp.pop %v9092
      %v9667 = vmul.f32 1.0, %v9666
      %v9668 = vrcp.pop %v9093
      %v9669 = vmul.f32 1.0, %v9668
      %v9670 = vrcp.pop %v9094
      %v9671 = vmul.f32 1.0, %v9670
      %v9672 = vrcp.pop %v9095
      %v9673 = vmul.f32 1.0, %v9672
      %v9674 = vrcp.pop %v9096
      %v9675 = vmul.f32 1.0, %v9674
      %v9676 = vrcp.pop %v9097
      %v9677 = vmul.f32 1.0, %v9676
      %v9678 = vrcp.pop %v9098
      %v9679 = vmul.f32 1.0, %v9678
      %v9680 = vrcp.pop %v9099
      %v9681 = vmul.f32 1.0, %v9680
      %v9682 = vrcp.pop %v9100
      %v9683 = vmul.f32 1.0, %v9682
      %v9684 = vrcp.pop %v9101
      %v9685 = vmul.f32 1.0, %v9684
      %v9686 = vrcp.pop %v9102
      %v9687 = vmul.f32 1.0, %v9686
      %v9688 = vrcp.pop %v9103
      %v9689 = vmul.f32 1.0, %v9688
      %v9690 = vrcp.pop %v9104
      %v9691 = vmul.f32 1.0, %v9690
      %v9692 = vrcp.pop %v9105
      %v9693 = vmul.f32 1.0, %v9692
      %v9694 = vrcp.pop %v9106
      %v9695 = vmul.f32 1.0, %v9694
      %v9696 = vrcp.pop %v9107
      %v9697 = vmul.f32 1.0, %v9696
      %v9698 = vrcp.pop %v9108
      %v9699 = vmul.f32 1.0, %v9698
      %v9700 = vrcp.pop %v9109
      %v9701 = vmul.f32 1.0, %v9700
      %v9702 = vrcp.pop %v9110
      %v9703 = vmul.f32 1.0, %v9702
      %v9704 = vrcp.pop %v9111
      %v9705 = vmul.f32 1.0, %v9704
      %v9706 = vrcp.pop %v9112
      %v9707 = vmul.f32 1.0, %v9706
      %v9708 = vrcp.pop %v9113
      %v9709 = vmul.f32 1.0, %v9708
      %v9710 = vrcp.pop %v9114
      %v9711 = vmul.f32 1.0, %v9710
      %v9712 = vrcp.pop %v9115
      %v9713 = vmul.f32 1.0, %v9712
      %v9714 = vrcp.pop %v9116
      %v9715 = vmul.f32 1.0, %v9714
      %v9716 = vrcp.pop %v9117
      %v9717 = vmul.f32 1.0, %v9716
      %v9718 = vrcp.pop %v9118
      %v9719 = vmul.f32 1.0, %v9718
      %v9720 = vrcp.pop %v9119
      %v9721 = vmul.f32 1.0, %v9720
      %v9722 = vrcp.pop %v9120
      %v9723 = vmul.f32 1.0, %v9722
      %v9724 = vrcp.pop %v9121
      %v9725 = vmul.f32 1.0, %v9724
      %v9726 = vrcp.pop %v9122
      %v9727 = vmul.f32 1.0, %v9726
      %v9728 = vrcp.pop %v9123
      %v9729 = vmul.f32 1.0, %v9728
      %v9730 = vrcp.pop %v9124
      %v9731 = vmul.f32 1.0, %v9730
      %v9732 = vrcp.pop %v9125
      %v9733 = vmul.f32 1.0, %v9732
      %v9734 = vrcp.pop %v9126
      %v9735 = vmul.f32 1.0, %v9734
      %v9736 = vrcp.pop %v9127
      %v9737 = vmul.f32 1.0, %v9736
      %v9738 = vrcp.pop %v9128
      %v9739 = vmul.f32 1.0, %v9738
      %v9740 = vrcp.pop %v9129
      %v9741 = vmul.f32 1.0, %v9740
      %v9742 = vrcp.pop %v9130
      %v9743 = vmul.f32 1.0, %v9742
      %v9744 = vrcp.pop %v9131
      %v9745 = vmul.f32 1.0, %v9744
      %v9746 = vrcp.pop %v9132
      %v9747 = vmul.f32 1.0, %v9746
      %v9748 = vrcp.pop %v9133
      %v9749 = vmul.f32 1.0, %v9748
      %v9750 = vrcp.pop %v9134
      %v9751 = vmul.f32 1.0, %v9750
      %v9752 = vrcp.pop %v9135
      %v9753 = vmul.f32 1.0, %v9752
      %v9754 = vrcp.pop %v9136
      %v9755 = vmul.f32 1.0, %v9754
      %v9756 = vrcp.pop %v9137
      %v9757 = vmul.f32 1.0, %v9756
      %v9758 = vrcp.pop %v9138
      %v9759 = vmul.f32 1.0, %v9758
      %v9760 = vrcp.pop %v9139
      %v9761 = vmul.f32 1.0, %v9760
      %v9762 = vrcp.pop %v9140
      %v9763 = vmul.f32 1.0, %v9762
      %v9764 = vrcp.pop %v9141
      %v9765 = vmul.f32 1.0, %v9764
      %v9766 = vrcp.pop %v9142
      %v9767 = vmul.f32 1.0, %v9766
      %v9768 = vrcp.pop %v9143
      %v9769 = vmul.f32 1.0, %v9768
      %v9770 = vrcp.pop %v9144
      %v9771 = vmul.f32 1.0, %v9770
      %v9772 = vrcp.pop %v9145
      %v9773 = vmul.f32 1.0, %v9772
      %v9774 = vrcp.pop %v9146
      %v9775 = vmul.f32 1.0, %v9774
      %v9776 = vrcp.pop %v9147
      %v9777 = vmul.f32 1.0, %v9776
      %v9778 = vrcp.pop %v9148
      %v9779 = vmul.f32 1.0, %v9778
      %v9780 = vrcp.pop %v9149
      %v9781 = vmul.f32 1.0, %v9780
      %v9782 = vrcp.pop %v9150
      %v9783 = vmul.f32 1.0, %v9782
      %v9784 = vrcp.pop %v9151
      %v9785 = vmul.f32 1.0, %v9784
      %v9786 = vrcp.pop %v9152
      %v9787 = vmul.f32 1.0, %v9786
      %v9788 = vrcp.pop %v9153
      %v9789 = vmul.f32 1.0, %v9788
      %v9790 = vrcp.pop %v9154
      %v9791 = vmul.f32 1.0, %v9790
      %v9792 = vrcp.pop %v9155
      %v9793 = vmul.f32 1.0, %v9792
      %v9794 = vrcp.pop %v9156
      %v9795 = vmul.f32 1.0, %v9794
      %v9796 = vrcp.pop %v9157
      %v9797 = vmul.f32 1.0, %v9796
      %v9798 = vrcp.pop %v9158
      %v9799 = vmul.f32 1.0, %v9798
      %v9800 = vrcp.pop %v9159
      %v9801 = vmul.f32 1.0, %v9800
      %v9802 = vrcp.pop %v9160
      %v9803 = vmul.f32 1.0, %v9802
      %v9804 = vrcp.pop %v9161
      %v9805 = vmul.f32 1.0, %v9804
      %v9806 = vrcp.pop %v9162
      %v9807 = vmul.f32 1.0, %v9806
      %v9808 = vrcp.pop %v9163
      %v9809 = vmul.f32 1.0, %v9808
      %v9810 = vrcp.pop %v9164
      %v9811 = vmul.f32 1.0, %v9810
      %v9812 = vrcp.pop %v9165
      %v9813 = vmul.f32 1.0, %v9812
      %v9814 = vrcp.pop %v9166
      %v9815 = vmul.f32 1.0, %v9814
      %v9816 = vrcp.pop %v9167
      %v9817 = vmul.f32 1.0, %v9816
      %v9818 = vrcp.pop %v9168
      %v9819 = vmul.f32 1.0, %v9818
      %v9820 = vrcp.pop %v9169
      %v9821 = vmul.f32 1.0, %v9820
      %v9822 = vrcp.pop %v9170
      %v9823 = vmul.f32 1.0, %v9822
      %v9824 = vrcp.pop %v9171
      %v9825 = vmul.f32 1.0, %v9824
      %v9826 = vrcp.pop %v9172
      %v9827 = vmul.f32 1.0, %v9826
      %v9828 = vrcp.pop %v9173
      %v9829 = vmul.f32 1.0, %v9828
      %v9830 = vrcp.pop %v9174
      %v9831 = vmul.f32 1.0, %v9830
      %v9832 = vrcp.pop %v9175
      %v9833 = vmul.f32 1.0, %v9832
      %v9834 = vrcp.pop %v9176
      %v9835 = vmul.f32 1.0, %v9834
      %v9836 = vrcp.pop %v9177
      %v9837 = vmul.f32 1.0, %v9836
      %v9838 = vrcp.pop %v9178
      %v9839 = vmul.f32 1.0, %v9838
      %v9840 = vrcp.pop %v9179
      %v9841 = vmul.f32 1.0, %v9840
      %v9842 = vrcp.pop %v9180
      %v9843 = vmul.f32 1.0, %v9842
      %v9844 = vrcp.pop %v9181
      %v9845 = vmul.f32 1.0, %v9844
      %v9846 = vrcp.pop %v9182
      %v9847 = vmul.f32 1.0, %v9846
      %v9848 = vrcp.pop %v9183
      %v9849 = vmul.f32 1.0, %v9848
      %v9850 = vrcp.pop %v9184
      %v9851 = vmul.f32 1.0, %v9850
      %v9852 = vrcp.pop %v9185
      %v9853 = vmul.f32 1.0, %v9852
      %v9854 = vrcp.pop %v9186
      %v9855 = vmul.f32 1.0, %v9854
      %v9856 = vrcp.pop %v9187
      %v9857 = vmul.f32 1.0, %v9856
      %v9858 = vrcp.pop %v9188
      %v9859 = vmul.f32 1.0, %v9858
      %v9860 = vrcp.pop %v9189
      %v9861 = vmul.f32 1.0, %v9860
      %v9862 = vrcp.pop %v9190
      %v9863 = vmul.f32 1.0, %v9862
      %v9864 = vrcp.pop %v9191
      %v9865 = vmul.f32 1.0, %v9864
      %v9866 = vrcp.pop %v9192
      %v9867 = vmul.f32 1.0, %v9866
      %v9868 = vrcp.pop %v9193
      %v9869 = vmul.f32 1.0, %v9868
      %v9870 = vrcp.pop %v9194
      %v9871 = vmul.f32 1.0, %v9870
      %v9872 = vrcp.pop %v9195
      %v9873 = vmul.f32 1.0, %v9872
      %v9874 = vrcp.pop %v9196
      %v9875 = vmul.f32 1.0, %v9874
      %v9876 = vrcp.pop %v9197
      %v9877 = vmul.f32 1.0, %v9876
      %v9878 = vrcp.pop %v9198
      %v9879 = vmul.f32 1.0, %v9878
      %v9880 = vrcp.pop %v9199
      %v9881 = vmul.f32 1.0, %v9880
      %v9882 = vrcp.pop %v9200
      %v9883 = vmul.f32 1.0, %v9882
      %v9884 = vrcp.pop %v9201
      %v9885 = vmul.f32 1.0, %v9884
      %v9886 = vrcp.pop %v9202
      %v9887 = vmul.f32 1.0, %v9886
      %v9888 = vrcp.pop %v9203
      %v9889 = vmul.f32 1.0, %v9888
      %v9890 = vrcp.pop %v9204
      %v9891 = vmul.f32 1.0, %v9890
      %v9892 = vrcp.pop %v9205
      %v9893 = vmul.f32 1.0, %v9892
      %v9894 = vrcp.pop %v9206
      %v9895 = vmul.f32 1.0, %v9894
      %v9896 = vrcp.pop %v9207
      %v9897 = vmul.f32 1.0, %v9896
      %v9898 = vrcp.pop %v9208
      %v9899 = vmul.f32 1.0, %v9898
      %v9900 = vrcp.pop %v9209
      %v9901 = vmul.f32 1.0, %v9900
      %v9902 = vrcp.pop %v9210
      %v9903 = vmul.f32 1.0, %v9902
      %v9904 = vrcp.pop %v9211
      %v9905 = vmul.f32 1.0, %v9904
      %v9906 = vrcp.pop %v9212
      %v9907 = vmul.f32 1.0, %v9906
      %v9908 = vrcp.pop %v9213
      %v9909 = vmul.f32 1.0, %v9908
      %v9910 = vrcp.pop %v9214
      %v9911 = vmul.f32 1.0, %v9910
      %v9912 = vrcp.pop %v9215
      %v9913 = vmul.f32 1.0, %v9912
      %v9914 = vrcp.pop %v9216
      %v9915 = vmul.f32 1.0, %v9914
      %v9916 = vrcp.pop %v9217
      %v9917 = vmul.f32 1.0, %v9916
      %v9918 = vrcp.pop %v9218
      %v9919 = vmul.f32 1.0, %v9918
      %v9920 = vrcp.pop %v9219
      %v9921 = vmul.f32 1.0, %v9920
      %v9922 = vrcp.pop %v9220
      %v9923 = vmul.f32 1.0, %v9922
      %v9924 = vrcp.pop %v9221
      %v9925 = vmul.f32 1.0, %v9924
      %v9926 = vrcp.pop %v9222
      %v9927 = vmul.f32 1.0, %v9926
      %v9928 = vrcp.pop %v9223
      %v9929 = vmul.f32 1.0, %v9928
      %v9930 = vrcp.pop %v9224
      %v9931 = vmul.f32 1.0, %v9930
      %v9932 = vrcp.pop %v9225
      %v9933 = vmul.f32 1.0, %v9932
      %v9934 = vrcp.pop %v9226
      %v9935 = vmul.f32 1.0, %v9934
      %v9936 = vrcp.pop %v9227
      %v9937 = vmul.f32 1.0, %v9936
      %v9938 = vrcp.pop %v9228
      %v9939 = vmul.f32 1.0, %v9938
      %v9940 = vrcp.pop %v9229
      %v9941 = vmul.f32 1.0, %v9940
      %v9942 = vrcp.pop %v9230
      %v9943 = vmul.f32 1.0, %v9942
      %v9944 = vrcp.pop %v9231
      %v9945 = vmul.f32 1.0, %v9944
      %v9946 = vrcp.pop %v9232
      %v9947 = vmul.f32 1.0, %v9946
      %v9948 = vrcp.pop %v9233
      %v9949 = vmul.f32 1.0, %v9948
      %v9950 = vrcp.pop %v9234
      %v9951 = vmul.f32 1.0, %v9950
      %v9952 = vrcp.pop %v9235
      %v9953 = vmul.f32 1.0, %v9952
      %v9954 = vrcp.pop %v9236
      %v9955 = vmul.f32 1.0, %v9954
      %v9956 = vrcp.pop %v9237
      %v9957 = vmul.f32 1.0, %v9956
      %v9958 = vrcp.pop %v9238
      %v9959 = vmul.f32 1.0, %v9958
      %v9960 = vrcp.pop %v9239
      %v9961 = vmul.f32 1.0, %v9960
      %v9962 = vrcp.pop %v9240
      %v9963 = vmul.f32 1.0, %v9962
      %v9964 = vrcp.pop %v9241
      %v9965 = vmul.f32 1.0, %v9964
      %v9966 = vrcp.pop %v9242
      %v9967 = vmul.f32 1.0, %v9966
      %v9968 = vrcp.pop %v9243
      %v9969 = vmul.f32 1.0, %v9968
      %v9970 = vrcp.pop %v9244
      %v9971 = vmul.f32 1.0, %v9970
      %v9972 = vrcp.pop %v9245
      %v9973 = vmul.f32 1.0, %v9972
      %v9974 = vrcp.pop %v9246
      %v9975 = vmul.f32 1.0, %v9974
      %v9976 = vrcp.pop %v9247
      %v9977 = vmul.f32 1.0, %v9976
      %v9978 = vrcp.pop %v9248
      %v9979 = vmul.f32 1.0, %v9978
      %v9980 = vrcp.pop %v9249
      %v9981 = vmul.f32 1.0, %v9980
      %v9982 = vrcp.pop %v9250
      %v9983 = vmul.f32 1.0, %v9982
      %v9984 = vrcp.pop %v9251
      %v9985 = vmul.f32 1.0, %v9984
      %v9986 = vrcp.pop %v9252
      %v9987 = vmul.f32 1.0, %v9986
      %v9988 = vrcp.pop %v9253
      %v9989 = vmul.f32 1.0, %v9988
      %v9990 = vrcp.pop %v9254
      %v9991 = vmul.f32 1.0, %v9990
      %v9992 = vrcp.pop %v9255
      %v9993 = vmul.f32 1.0, %v9992
      %v9994 = vrcp.pop %v9256
      %v9995 = vmul.f32 1.0, %v9994
      %v9996 = vrcp.pop %v9257
      %v9997 = vmul.f32 1.0, %v9996
      %v9998 = vrcp.pop %v9258
      %v9999 = vmul.f32 1.0, %v9998
      %v10000 = vrcp.pop %v9259
      %v10001 = vmul.f32 1.0, %v10000
      %v10002 = vrcp.pop %v9260
      %v10003 = vmul.f32 1.0, %v10002
      %v10004 = vrcp.pop %v9261
      %v10005 = vmul.f32 1.0, %v10004
      %v10006 = vrcp.pop %v9262
      %v10007 = vmul.f32 1.0, %v10006
      %v10008 = vrcp.pop %v9263
      %v10009 = vmul.f32 1.0, %v10008
      %v10010 = vrcp.pop %v9264
      %v10011 = vmul.f32 1.0, %v10010
      %v10012 = vrcp.pop %v9265
      %v10013 = vmul.f32 1.0, %v10012
      %v10014 = vrcp.pop %v9266
      %v10015 = vmul.f32 1.0, %v10014
      %v10016 = vrcp.pop %v9267
      %v10017 = vmul.f32 1.0, %v10016
      %v10018 = vrcp.pop %v9268
      %v10019 = vmul.f32 1.0, %v10018
      %v10020 = vrcp.pop %v9269
      %v10021 = vmul.f32 1.0, %v10020
      %v10022 = vrcp.pop %v9270
      %v10023 = vmul.f32 1.0, %v10022
      %v10024 = vrcp.pop %v9271
      %v10025 = vmul.f32 1.0, %v10024
      %v10026 = vrcp.pop %v9272
      %v10027 = vmul.f32 1.0, %v10026
      %v10028 = vrcp.pop %v9273
      %v10029 = vmul.f32 1.0, %v10028
      %v10030 = vrcp.pop %v9274
      %v10031 = vmul.f32 1.0, %v10030
      %v10032 = vrcp.pop %v9275
      %v10033 = vmul.f32 1.0, %v10032
      %v10034 = vrcp.pop %v9276
      %v10035 = vmul.f32 1.0, %v10034
      %v10036 = vrcp.pop %v9277
      %v10037 = vmul.f32 1.0, %v10036
      %v10038 = vrcp.pop %v9278
      %v10039 = vmul.f32 1.0, %v10038
      %v10040 = vrcp.pop %v9279
      %v10041 = vmul.f32 1.0, %v10040
      %v10042 = vrcp.pop %v9280
      %v10043 = vmul.f32 1.0, %v10042
      %v10044 = vrcp.pop %v9281
      %v10045 = vmul.f32 1.0, %v10044
      %v10046 = vrcp.pop %v9282
      %v10047 = vmul.f32 1.0, %v10046
      %v10048 = vrcp.pop %v9283
      %v10049 = vmul.f32 1.0, %v10048
      %v10050 = vrcp.pop %v9284
      %v10051 = vmul.f32 1.0, %v10050
      %v10052 = vrcp.pop %v9285
      %v10053 = vmul.f32 1.0, %v10052
      %v10054 = vrcp.pop %v9286
      %v10055 = vmul.f32 1.0, %v10054
      %v10056 = vrcp.pop %v9287
      %v10057 = vmul.f32 1.0, %v10056
      %v10058 = vrcp.pop %v9288
      %v10059 = vmul.f32 1.0, %v10058
      %v10060 = vrcp.pop %v9289
      %v10061 = vmul.f32 1.0, %v10060
      %v10062 = vrcp.pop %v9290
      %v10063 = vmul.f32 1.0, %v10062
      %v10064 = vrcp.pop %v9291
      %v10065 = vmul.f32 1.0, %v10064
      %v10066 = vrcp.pop %v9292
      %v10067 = vmul.f32 1.0, %v10066
      %v10068 = vrcp.pop %v9293
      %v10069 = vmul.f32 1.0, %v10068
      %v10070 = vrcp.pop %v9294
      %v10071 = vmul.f32 1.0, %v10070
      %v10072 = vrcp.pop %v9295
      %v10073 = vmul.f32 1.0, %v10072
      %v10074 = vrcp.pop %v9296
      %v10075 = vmul.f32 1.0, %v10074
      %v10076 = vrcp.pop %v9297
      %v10077 = vmul.f32 1.0, %v10076
      %v10078 = vrcp.pop %v9298
      %v10079 = vmul.f32 1.0, %v10078
      %v10080 = vrcp.pop %v9299
      %v10081 = vmul.f32 1.0, %v10080
      %v10082 = vrcp.pop %v9300
      %v10083 = vmul.f32 1.0, %v10082
      %v10084 = vrcp.pop %v9301
      %v10085 = vmul.f32 1.0, %v10084
      %v10086 = vrcp.pop %v9302
      %v10087 = vmul.f32 1.0, %v10086
      %v10088 = vrcp.pop %v9303
      %v10089 = vmul.f32 1.0, %v10088
      %v10090 = vrcp.pop %v9304
      %v10091 = vmul.f32 1.0, %v10090
      %v10092 = vrcp.pop %v9305
      %v10093 = vmul.f32 1.0, %v10092
      %v10094 = vrcp.pop %v9306
      %v10095 = vmul.f32 1.0, %v10094
      %v10096 = vrcp.pop %v9307
      %v10097 = vmul.f32 1.0, %v10096
      %v10098 = vrcp.pop %v9308
      %v10099 = vmul.f32 1.0, %v10098
      %v10100 = vrcp.pop %v9309
      %v10101 = vmul.f32 1.0, %v10100
      %v10102 = vrcp.pop %v9310
      %v10103 = vmul.f32 1.0, %v10102
      %v10104 = vrcp.pop %v9311
      %v10105 = vmul.f32 1.0, %v10104
      %v10106 = vrcp.pop %v9312
      %v10107 = vmul.f32 1.0, %v10106
      %v10108 = vrcp.pop %v9313
      %v10109 = vmul.f32 1.0, %v10108
      %v10110 = vrcp.pop %v9314
      %v10111 = vmul.f32 1.0, %v10110
      %v10112 = vrcp.pop %v9315
      %v10113 = vmul.f32 1.0, %v10112
      %v10114 = vrcp.pop %v9316
      %v10115 = vmul.f32 1.0, %v10114
      %v10116 = vrcp.pop %v9317
      %v10117 = vmul.f32 1.0, %v10116
      %v10118 = vrcp.pop %v9318
      %v10119 = vmul.f32 1.0, %v10118
      %v10120 = vrcp.pop %v9319
      %v10121 = vmul.f32 1.0, %v10120
      %v10122 = vrcp.pop %v9320
      %v10123 = vmul.f32 1.0, %v10122
      %v10124 = vrcp.pop %v9321
      %v10125 = vmul.f32 1.0, %v10124
      %v10126 = vrcp.pop %v9322
      %v10127 = vmul.f32 1.0, %v10126
      %v10128 = vrcp.pop %v9323
      %v10129 = vmul.f32 1.0, %v10128
      %v10130 = vrcp.pop %v9324
      %v10131 = vmul.f32 1.0, %v10130
      %v10132 = vrcp.pop %v9325
      %v10133 = vmul.f32 1.0, %v10132
      %v10134 = vrcp.pop %v9326
      %v10135 = vmul.f32 1.0, %v10134
      %v10136 = vrcp.pop %v9327
      %v10137 = vmul.f32 1.0, %v10136
      %v10138 = vrcp.pop %v9328
      %v10139 = vmul.f32 1.0, %v10138
      %v10140 = vrcp.pop %v9329
      %v10141 = vmul.f32 1.0, %v10140
      %v10142 = vrcp.pop %v9330
      %v10143 = vmul.f32 1.0, %v10142
      %v10144 = vrcp.pop %v9331
      %v10145 = vmul.f32 1.0, %v10144
      %v10146 = vrcp.pop %v9332
      %v10147 = vmul.f32 1.0, %v10146
      %v10148 = vrcp.pop %v9333
      %v10149 = vmul.f32 1.0, %v10148
      %v10150 = vrcp.pop %v9334
      %v10151 = vmul.f32 1.0, %v10150
      %v10152 = vrcp.pop %v9335
      %v10153 = vmul.f32 1.0, %v10152
      %v10154 = vrcp.pop %v9336
      %v10155 = vmul.f32 1.0, %v10154
      %v10156 = vrcp.pop %v9337
      %v10157 = vmul.f32 1.0, %v10156
      %v10158 = vrcp.pop %v9338
      %v10159 = vmul.f32 1.0, %v10158
      %v10160 = vrcp.pop %v9339
      %v10161 = vmul.f32 1.0, %v10160
      %v10162 = vrcp.pop %v9340
      %v10163 = vmul.f32 1.0, %v10162
      %v10164 = vrcp.pop %v9341
      %v10165 = vmul.f32 1.0, %v10164
      %v10166 = vrcp.pop %v9342
      %v10167 = vmul.f32 1.0, %v10166
      %v10168 = vrcp.pop %v9343
      %v10169 = vmul.f32 1.0, %v10168
      %v10170 = vrcp.pop %v9344
      %v10171 = vmul.f32 1.0, %v10170
      %v10172 = vrcp.pop %v9345
      %v10173 = vmul.f32 1.0, %v10172
      %v10174 = vrcp.pop %v9346
      %v10175 = vmul.f32 1.0, %v10174
      %v10176 = vrcp.pop %v9347
      %v10177 = vmul.f32 1.0, %v10176
      %v10178 = vrcp.pop %v9348
      %v10179 = vmul.f32 1.0, %v10178
      %v10180 = vrcp.pop %v9349
      %v10181 = vmul.f32 1.0, %v10180
      %v10182 = vrcp.pop %v9350
      %v10183 = vmul.f32 1.0, %v10182
      %v10184 = vrcp.pop %v9351
      %v10185 = vmul.f32 1.0, %v10184
      %v10186 = vrcp.pop %v9352
      %v10187 = vmul.f32 1.0, %v10186
      %v10188 = vrcp.pop %v9353
      %v10189 = vmul.f32 1.0, %v10188
      %v10190 = vrcp.pop %v9354
      %v10191 = vmul.f32 1.0, %v10190
      %v10192 = vrcp.pop %v9355
      %v10193 = vmul.f32 1.0, %v10192
      %v10194 = vrcp.pop %v9356
      %v10195 = vmul.f32 1.0, %v10194
      %v10196 = vrcp.pop %v9357
      %v10197 = vmul.f32 1.0, %v10196
      %v10198 = vrcp.pop %v9358
      %v10199 = vmul.f32 1.0, %v10198
      %v10200 = vrcp.pop %v9359
      %v10201 = vmul.f32 1.0, %v10200
      %v10202 = vrcp.pop %v9360
      %v10203 = vmul.f32 1.0, %v10202
      %v10204 = vrcp.pop %v9361
      %v10205 = vmul.f32 1.0, %v10204
      %v10206 = vrcp.pop %v9362
      %v10207 = vmul.f32 1.0, %v10206
      %v10208 = vrcp.pop %v9363
      %v10209 = vmul.f32 1.0, %v10208
      %v10210 = vrcp.pop %v9364
      %v10211 = vmul.f32 1.0, %v10210
      %v10212 = vrcp.pop %v9365
      %v10213 = vmul.f32 1.0, %v10212
      %v10214 = vrcp.pop %v9366
      %v10215 = vmul.f32 1.0, %v10214
      %v10216 = vrcp.pop %v9367
      %v10217 = vmul.f32 1.0, %v10216
      %v10218 = vrcp.pop %v9368
      %v10219 = vmul.f32 1.0, %v10218
      %v10220 = vrcp.pop %v9369
      %v10221 = vmul.f32 1.0, %v10220
      %v10222 = vrcp.pop %v9370
      %v10223 = vmul.f32 1.0, %v10222
      %v10224 = vrcp.pop %v9371
      %v10225 = vmul.f32 1.0, %v10224
      %v10226 = vrcp.pop %v9372
      %v10227 = vmul.f32 1.0, %v10226
      %v10228 = vrcp.pop %v9373
      %v10229 = vmul.f32 1.0, %v10228
      %v10230 = vrcp.pop %v9374
      %v10231 = vmul.f32 1.0, %v10230
      %v10232 = vrcp.pop %v9375
      %v10233 = vmul.f32 1.0, %v10232
      %v10234 = vrcp.pop %v9376
      %v10235 = vmul.f32 1.0, %v10234
      %v10236 = vrcp.pop %v9377
      %v10237 = vmul.f32 1.0, %v10236
      %v10238 = vrcp.pop %v9378
      %v10239 = vmul.f32 1.0, %v10238
      %v10240 = vrcp.pop %v9379
      %v10241 = vmul.f32 1.0, %v10240
      %v10242 = vrcp.pop %v9380
      %v10243 = vmul.f32 1.0, %v10242
      %v10244 = vrcp.pop %v9381
      %v10245 = vmul.f32 1.0, %v10244
      %v10246 = vrcp.pop %v9382
      %v10247 = vmul.f32 1.0, %v10246
      %v10248 = vrcp.pop %v9383
      %v10249 = vmul.f32 1.0, %v10248
      %v10250 = vrcp.pop %v9384
      %v10251 = vmul.f32 1.0, %v10250
      %v10252 = vrcp.pop %v9385
      %v10253 = vmul.f32 1.0, %v10252
      %v10254 = vrcp.pop %v9386
      %v10255 = vmul.f32 1.0, %v10254
      %v10256 = vrcp.pop %v9387
      %v10257 = vmul.f32 1.0, %v10256
      %v10258 = vrcp.pop %v9388
      %v10259 = vmul.f32 1.0, %v10258
      %v10260 = vrcp.pop %v9389
      %v10261 = vmul.f32 1.0, %v10260
      %v10262 = vrcp.pop %v9390
      %v10263 = vmul.f32 1.0, %v10262
      %v10264 = vrcp.pop %v9391
      %v10265 = vmul.f32 1.0, %v10264
      %v10266 = vrcp.pop %v9392
      %v10267 = vmul.f32 1.0, %v10266
      %v10268 = vrcp.pop %v9393
      %v10269 = vmul.f32 1.0, %v10268
      %v10270 = vrcp.pop %v9394
      %v10271 = vmul.f32 1.0, %v10270
      %v10272 = vrcp.pop %v9395
      %v10273 = vmul.f32 1.0, %v10272
      %v10274 = vrcp.pop %v9396
      %v10275 = vmul.f32 1.0, %v10274
      %v10276 = vrcp.pop %v9397
      %v10277 = vmul.f32 1.0, %v10276
      %v10278 = vrcp.pop %v9398
      %v10279 = vmul.f32 1.0, %v10278
      %v10280 = vrcp.pop %v9399
      %v10281 = vmul.f32 1.0, %v10280
      %v10282 = vrcp.pop %v9400
      %v10283 = vmul.f32 1.0, %v10282
      %v10284 = vrcp.pop %v9401
      %v10285 = vmul.f32 1.0, %v10284
      %v10286 = vrcp.pop %v9402
      %v10287 = vmul.f32 1.0, %v10286
      %v10288 = vrcp.pop %v9403
      %v10289 = vmul.f32 1.0, %v10288
      %v10290 = vrcp.pop %v9404
      %v10291 = vmul.f32 1.0, %v10290
      %v10292 = vrcp.pop %v9405
      %v10293 = vmul.f32 1.0, %v10292
      %v10294 = vrcp.pop %v9406
      %v10295 = vmul.f32 1.0, %v10294
      %v10296 = vrcp.pop %v9407
      %v10297 = vmul.f32 1.0, %v10296
      %v10298 = vrcp.pop %v9408
      %v10299 = vmul.f32 1.0, %v10298
      %v10300 = vrcp.pop %v9409
      %v10301 = vmul.f32 1.0, %v10300
      %v10302 = vrcp.pop %v9410
      %v10303 = vmul.f32 1.0, %v10302
      %v10304 = vrcp.pop %v9411
      %v10305 = vmul.f32 1.0, %v10304
      %v10306 = vrcp.pop %v9412
      %v10307 = vmul.f32 1.0, %v10306
      %v10308 = vrcp.pop %v9413
      %v10309 = vmul.f32 1.0, %v10308
      %v10310 = vpack.c.bf16 %v9429, %v9415
      %v10311 = vpack.c.bf16 %v9431, %v9417
      %v10312 = vpack.c.bf16 %v9433, %v9419
      %v10313 = vpack.c.bf16 %v9435, %v9421
      %v10314 = vpack.c.bf16 %v9437, %v9423
      %v10315 = vpack.c.bf16 %v9439, %v9425
      %v10316 = vpack.c.bf16 %v9441, %v9427
      %v10317 = vpack.c.bf16 %v9457, %v9443
      %v10318 = vpack.c.bf16 %v9459, %v9445
      %v10319 = vpack.c.bf16 %v9461, %v9447
      %v10320 = vpack.c.bf16 %v9463, %v9449
      %v10321 = vpack.c.bf16 %v9465, %v9451
      %v10322 = vpack.c.bf16 %v9467, %v9453
      %v10323 = vpack.c.bf16 %v9469, %v9455
      %v10324 = vpack.c.bf16 %v9485, %v9471
      %v10325 = vpack.c.bf16 %v9487, %v9473
      %v10326 = vpack.c.bf16 %v9489, %v9475
      %v10327 = vpack.c.bf16 %v9491, %v9477
      %v10328 = vpack.c.bf16 %v9493, %v9479
      %v10329 = vpack.c.bf16 %v9495, %v9481
      %v10330 = vpack.c.bf16 %v9497, %v9483
      %v10331 = vpack.c.bf16 %v9513, %v9499
      %v10332 = vpack.c.bf16 %v9515, %v9501
      %v10333 = vpack.c.bf16 %v9517, %v9503
      %v10334 = vpack.c.bf16 %v9519, %v9505
      %v10335 = vpack.c.bf16 %v9521, %v9507
      %v10336 = vpack.c.bf16 %v9523, %v9509
      %v10337 = vpack.c.bf16 %v9525, %v9511
      %v10338 = vpack.c.bf16 %v9541, %v9527
      %v10339 = vpack.c.bf16 %v9543, %v9529
      %v10340 = vpack.c.bf16 %v9545, %v9531
      %v10341 = vpack.c.bf16 %v9547, %v9533
      %v10342 = vpack.c.bf16 %v9549, %v9535
      %v10343 = vpack.c.bf16 %v9551, %v9537
      %v10344 = vpack.c.bf16 %v9553, %v9539
      %v10345 = vpack.c.bf16 %v9569, %v9555
      %v10346 = vpack.c.bf16 %v9571, %v9557
      %v10347 = vpack.c.bf16 %v9573, %v9559
      %v10348 = vpack.c.bf16 %v9575, %v9561
      %v10349 = vpack.c.bf16 %v9577, %v9563
      %v10350 = vpack.c.bf16 %v9579, %v9565
      %v10351 = vpack.c.bf16 %v9581, %v9567
      %v10352 = vpack.c.bf16 %v9597, %v9583
      %v10353 = vpack.c.bf16 %v9599, %v9585
      %v10354 = vpack.c.bf16 %v9601, %v9587
      %v10355 = vpack.c.bf16 %v9603, %v9589
      %v10356 = vpack.c.bf16 %v9605, %v9591
      %v10357 = vpack.c.bf16 %v9607, %v9593
      %v10358 = vpack.c.bf16 %v9609, %v9595
      %v10359 = vpack.c.bf16 %v9625, %v9611
      %v10360 = vpack.c.bf16 %v9627, %v9613
      %v10361 = vpack.c.bf16 %v9629, %v9615
      %v10362 = vpack.c.bf16 %v9631, %v9617
      %v10363 = vpack.c.bf16 %v9633, %v9619
      %v10364 = vpack.c.bf16 %v9635, %v9621
      %v10365 = vpack.c.bf16 %v9637, %v9623
      %v10366 = vpack.c.bf16 %v9653, %v9639
      %v10367 = vpack.c.bf16 %v9655, %v9641
      %v10368 = vpack.c.bf16 %v9657, %v9643
      %v10369 = vpack.c.bf16 %v9659, %v9645
      %v10370 = vpack.c.bf16 %v9661, %v9647
      %v10371 = vpack.c.bf16 %v9663, %v9649
      %v10372 = vpack.c.bf16 %v9665, %v9651
      %v10373 = vpack.c.bf16 %v9681, %v9667
      %v10374 = vpack.c.bf16 %v9683, %v9669
      %v10375 = vpack.c.bf16 %v9685, %v9671
      %v10376 = vpack.c.bf16 %v9687, %v9673
      %v10377 = vpack.c.bf16 %v9689, %v9675
      %v10378 = vpack.c.bf16 %v9691, %v9677
      %v10379 = vpack.c.bf16 %v9693, %v9679
      %v10380 = vpack.c.bf16 %v9709, %v9695
      %v10381 = vpack.c.bf16 %v9711, %v9697
      %v10382 = vpack.c.bf16 %v9713, %v9699
      %v10383 = vpack.c.bf16 %v9715, %v9701
      %v10384 = vpack.c.bf16 %v9717, %v9703
      %v10385 = vpack.c.bf16 %v9719, %v9705
      %v10386 = vpack.c.bf16 %v9721, %v9707
      %v10387 = vpack.c.bf16 %v9737, %v9723
      %v10388 = vpack.c.bf16 %v9739, %v9725
      %v10389 = vpack.c.bf16 %v9741, %v9727
      %v10390 = vpack.c.bf16 %v9743, %v9729
      %v10391 = vpack.c.bf16 %v9745, %v9731
      %v10392 = vpack.c.bf16 %v9747, %v9733
      %v10393 = vpack.c.bf16 %v9749, %v9735
      %v10394 = vpack.c.bf16 %v9765, %v9751
      %v10395 = vpack.c.bf16 %v9767, %v9753
      %v10396 = vpack.c.bf16 %v9769, %v9755
      %v10397 = vpack.c.bf16 %v9771, %v9757
      %v10398 = vpack.c.bf16 %v9773, %v9759
      %v10399 = vpack.c.bf16 %v9775, %v9761
      %v10400 = vpack.c.bf16 %v9777, %v9763
      %v10401 = vpack.c.bf16 %v9793, %v9779
      %v10402 = vpack.c.bf16 %v9795, %v9781
      %v10403 = vpack.c.bf16 %v9797, %v9783
      %v10404 = vpack.c.bf16 %v9799, %v9785
      %v10405 = vpack.c.bf16 %v9801, %v9787
      %v10406 = vpack.c.bf16 %v9803, %v9789
      %v10407 = vpack.c.bf16 %v9805, %v9791
      %v10408 = vpack.c.bf16 %v9821, %v9807
      %v10409 = vpack.c.bf16 %v9823, %v9809
      %v10410 = vpack.c.bf16 %v9825, %v9811
      %v10411 = vpack.c.bf16 %v9827, %v9813
      %v10412 = vpack.c.bf16 %v9829, %v9815
      %v10413 = vpack.c.bf16 %v9831, %v9817
      %v10414 = vpack.c.bf16 %v9833, %v9819
      %v10415 = vpack.c.bf16 %v9849, %v9835
      %v10416 = vpack.c.bf16 %v9851, %v9837
      %v10417 = vpack.c.bf16 %v9853, %v9839
      %v10418 = vpack.c.bf16 %v9855, %v9841
      %v10419 = vpack.c.bf16 %v9857, %v9843
      %v10420 = vpack.c.bf16 %v9859, %v9845
      %v10421 = vpack.c.bf16 %v9861, %v9847
      %v10422 = vpack.c.bf16 %v9877, %v9863
      %v10423 = vpack.c.bf16 %v9879, %v9865
      %v10424 = vpack.c.bf16 %v9881, %v9867
      %v10425 = vpack.c.bf16 %v9883, %v9869
      %v10426 = vpack.c.bf16 %v9885, %v9871
      %v10427 = vpack.c.bf16 %v9887, %v9873
      %v10428 = vpack.c.bf16 %v9889, %v9875
      %v10429 = vpack.c.bf16 %v9905, %v9891
      %v10430 = vpack.c.bf16 %v9907, %v9893
      %v10431 = vpack.c.bf16 %v9909, %v9895
      %v10432 = vpack.c.bf16 %v9911, %v9897
      %v10433 = vpack.c.bf16 %v9913, %v9899
      %v10434 = vpack.c.bf16 %v9915, %v9901
      %v10435 = vpack.c.bf16 %v9917, %v9903
      %v10436 = vpack.c.bf16 %v9933, %v9919
      %v10437 = vpack.c.bf16 %v9935, %v9921
      %v10438 = vpack.c.bf16 %v9937, %v9923
      %v10439 = vpack.c.bf16 %v9939, %v9925
      %v10440 = vpack.c.bf16 %v9941, %v9927
      %v10441 = vpack.c.bf16 %v9943, %v9929
      %v10442 = vpack.c.bf16 %v9945, %v9931
      %v10443 = vpack.c.bf16 %v9961, %v9947
      %v10444 = vpack.c.bf16 %v9963, %v9949
      %v10445 = vpack.c.bf16 %v9965, %v9951
      %v10446 = vpack.c.bf16 %v9967, %v9953
      %v10447 = vpack.c.bf16 %v9969, %v9955
      %v10448 = vpack.c.bf16 %v9971, %v9957
      %v10449 = vpack.c.bf16 %v9973, %v9959
      %v10450 = vpack.c.bf16 %v9989, %v9975
      %v10451 = vpack.c.bf16 %v9991, %v9977
      %v10452 = vpack.c.bf16 %v9993, %v9979
      %v10453 = vpack.c.bf16 %v9995, %v9981
      %v10454 = vpack.c.bf16 %v9997, %v9983
      %v10455 = vpack.c.bf16 %v9999, %v9985
      %v10456 = vpack.c.bf16 %v10001, %v9987
      %v10457 = vpack.c.bf16 %v10017, %v10003
      %v10458 = vpack.c.bf16 %v10019, %v10005
      %v10459 = vpack.c.bf16 %v10021, %v10007
      %v10460 = vpack.c.bf16 %v10023, %v10009
      %v10461 = vpack.c.bf16 %v10025, %v10011
      %v10462 = vpack.c.bf16 %v10027, %v10013
      %v10463 = vpack.c.bf16 %v10029, %v10015
      %v10464 = vpack.c.bf16 %v10045, %v10031
      %v10465 = vpack.c.bf16 %v10047, %v10033
      %v10466 = vpack.c.bf16 %v10049, %v10035
      %v10467 = vpack.c.bf16 %v10051, %v10037
      %v10468 = vpack.c.bf16 %v10053, %v10039
      %v10469 = vpack.c.bf16 %v10055, %v10041
      %v10470 = vpack.c.bf16 %v10057, %v10043
      %v10471 = vpack.c.bf16 %v10073, %v10059
      %v10472 = vpack.c.bf16 %v10075, %v10061
      %v10473 = vpack.c.bf16 %v10077, %v10063
      %v10474 = vpack.c.bf16 %v10079, %v10065
      %v10475 = vpack.c.bf16 %v10081, %v10067
      %v10476 = vpack.c.bf16 %v10083, %v10069
      %v10477 = vpack.c.bf16 %v10085, %v10071
      %v10478 = vpack.c.bf16 %v10101, %v10087
      %v10479 = vpack.c.bf16 %v10103, %v10089
      %v10480 = vpack.c.bf16 %v10105, %v10091
      %v10481 = vpack.c.bf16 %v10107, %v10093
      %v10482 = vpack.c.bf16 %v10109, %v10095
      %v10483 = vpack.c.bf16 %v10111, %v10097
      %v10484 = vpack.c.bf16 %v10113, %v10099
      %v10485 = vpack.c.bf16 %v10129, %v10115
      %v10486 = vpack.c.bf16 %v10131, %v10117
      %v10487 = vpack.c.bf16 %v10133, %v10119
      %v10488 = vpack.c.bf16 %v10135, %v10121
      %v10489 = vpack.c.bf16 %v10137, %v10123
      %v10490 = vpack.c.bf16 %v10139, %v10125
      %v10491 = vpack.c.bf16 %v10141, %v10127
      %v10492 = vpack.c.bf16 %v10157, %v10143
      %v10493 = vpack.c.bf16 %v10159, %v10145
      %v10494 = vpack.c.bf16 %v10161, %v10147
      %v10495 = vpack.c.bf16 %v10163, %v10149
      %v10496 = vpack.c.bf16 %v10165, %v10151
      %v10497 = vpack.c.bf16 %v10167, %v10153
      %v10498 = vpack.c.bf16 %v10169, %v10155
      %v10499 = vpack.c.bf16 %v10185, %v10171
      %v10500 = vpack.c.bf16 %v10187, %v10173
      %v10501 = vpack.c.bf16 %v10189, %v10175
      %v10502 = vpack.c.bf16 %v10191, %v10177
      %v10503 = vpack.c.bf16 %v10193, %v10179
      %v10504 = vpack.c.bf16 %v10195, %v10181
      %v10505 = vpack.c.bf16 %v10197, %v10183
      %v10506 = vpack.c.bf16 %v10213, %v10199
      %v10507 = vpack.c.bf16 %v10215, %v10201
      %v10508 = vpack.c.bf16 %v10217, %v10203
      %v10509 = vpack.c.bf16 %v10219, %v10205
      %v10510 = vpack.c.bf16 %v10221, %v10207
      %v10511 = vpack.c.bf16 %v10223, %v10209
      %v10512 = vpack.c.bf16 %v10225, %v10211
      %v10513 = vpack.c.bf16 %v10241, %v10227
      %v10514 = vpack.c.bf16 %v10243, %v10229
      %v10515 = vpack.c.bf16 %v10245, %v10231
      %v10516 = vpack.c.bf16 %v10247, %v10233
      %v10517 = vpack.c.bf16 %v10249, %v10235
      %v10518 = vpack.c.bf16 %v10251, %v10237
      %v10519 = vpack.c.bf16 %v10253, %v10239
      %v10520 = vpack.c.bf16 %v10269, %v10255
      %v10521 = vpack.c.bf16 %v10271, %v10257
      %v10522 = vpack.c.bf16 %v10273, %v10259
      %v10523 = vpack.c.bf16 %v10275, %v10261
      %v10524 = vpack.c.bf16 %v10277, %v10263
      %v10525 = vpack.c.bf16 %v10279, %v10265
      %v10526 = vpack.c.bf16 %v10281, %v10267
      %v10527 = vpack.c.bf16 %v10297, %v10283
      %v10528 = vpack.c.bf16 %v10299, %v10285
      %v10529 = vpack.c.bf16 %v10301, %v10287
      %v10530 = vpack.c.bf16 %v10303, %v10289
      %v10531 = vpack.c.bf16 %v10305, %v10291
      %v10532 = vpack.c.bf16 %v10307, %v10293
      %v10533 = vpack.c.bf16 %v10309, %v10295
      %v10758 = vunpack.c.l.b16 %v10310
      %v10759 = vunpack.c.l.b16 %v10311
      %v10760 = vunpack.c.l.b16 %v10312
      %v10761 = vunpack.c.l.b16 %v10313
      %v10762 = vunpack.c.l.b16 %v10314
      %v10763 = vunpack.c.l.b16 %v10315
      %v10764 = vunpack.c.l.b16 %v10316
      %v10765 = vunpack.c.h.b16 %v10310
      %v10766 = vunpack.c.h.b16 %v10311
      %v10767 = vunpack.c.h.b16 %v10312
      %v10768 = vunpack.c.h.b16 %v10313
      %v10769 = vunpack.c.h.b16 %v10314
      %v10770 = vunpack.c.h.b16 %v10315
      %v10771 = vunpack.c.h.b16 %v10316
      %v10772 = vunpack.c.l.b16 %v10317
      %v10773 = vunpack.c.l.b16 %v10318
      %v10774 = vunpack.c.l.b16 %v10319
      %v10775 = vunpack.c.l.b16 %v10320
      %v10776 = vunpack.c.l.b16 %v10321
      %v10777 = vunpack.c.l.b16 %v10322
      %v10778 = vunpack.c.l.b16 %v10323
      %v10779 = vunpack.c.h.b16 %v10317
      %v10780 = vunpack.c.h.b16 %v10318
      %v10781 = vunpack.c.h.b16 %v10319
      %v10782 = vunpack.c.h.b16 %v10320
      %v10783 = vunpack.c.h.b16 %v10321
      %v10784 = vunpack.c.h.b16 %v10322
      %v10785 = vunpack.c.h.b16 %v10323
      %v10786 = vunpack.c.l.b16 %v10324
      %v10787 = vunpack.c.l.b16 %v10325
      %v10788 = vunpack.c.l.b16 %v10326
      %v10789 = vunpack.c.l.b16 %v10327
      %v10790 = vunpack.c.l.b16 %v10328
      %v10791 = vunpack.c.l.b16 %v10329
      %v10792 = vunpack.c.l.b16 %v10330
      %v10793 = vunpack.c.h.b16 %v10324
      %v10794 = vunpack.c.h.b16 %v10325
      %v10795 = vunpack.c.h.b16 %v10326
      %v10796 = vunpack.c.h.b16 %v10327
      %v10797 = vunpack.c.h.b16 %v10328
      %v10798 = vunpack.c.h.b16 %v10329
      %v10799 = vunpack.c.h.b16 %v10330
      %v10800 = vunpack.c.l.b16 %v10331
      %v10801 = vunpack.c.l.b16 %v10332
      %v10802 = vunpack.c.l.b16 %v10333
      %v10803 = vunpack.c.l.b16 %v10334
      %v10804 = vunpack.c.l.b16 %v10335
      %v10805 = vunpack.c.l.b16 %v10336
      %v10806 = vunpack.c.l.b16 %v10337
      %v10807 = vunpack.c.h.b16 %v10331
      %v10808 = vunpack.c.h.b16 %v10332
      %v10809 = vunpack.c.h.b16 %v10333
      %v10810 = vunpack.c.h.b16 %v10334
      %v10811 = vunpack.c.h.b16 %v10335
      %v10812 = vunpack.c.h.b16 %v10336
      %v10813 = vunpack.c.h.b16 %v10337
      %v10814 = vunpack.c.l.b16 %v10338
      %v10815 = vunpack.c.l.b16 %v10339
      %v10816 = vunpack.c.l.b16 %v10340
      %v10817 = vunpack.c.l.b16 %v10341
      %v10818 = vunpack.c.l.b16 %v10342
      %v10819 = vunpack.c.l.b16 %v10343
      %v10820 = vunpack.c.l.b16 %v10344
      %v10821 = vunpack.c.h.b16 %v10338
      %v10822 = vunpack.c.h.b16 %v10339
      %v10823 = vunpack.c.h.b16 %v10340
      %v10824 = vunpack.c.h.b16 %v10341
      %v10825 = vunpack.c.h.b16 %v10342
      %v10826 = vunpack.c.h.b16 %v10343
      %v10827 = vunpack.c.h.b16 %v10344
      %v10828 = vunpack.c.l.b16 %v10345
      %v10829 = vunpack.c.l.b16 %v10346
      %v10830 = vunpack.c.l.b16 %v10347
      %v10831 = vunpack.c.l.b16 %v10348
      %v10832 = vunpack.c.l.b16 %v10349
      %v10833 = vunpack.c.l.b16 %v10350
      %v10834 = vunpack.c.l.b16 %v10351
      %v10835 = vunpack.c.h.b16 %v10345
      %v10836 = vunpack.c.h.b16 %v10346
      %v10837 = vunpack.c.h.b16 %v10347
      %v10838 = vunpack.c.h.b16 %v10348
      %v10839 = vunpack.c.h.b16 %v10349
      %v10840 = vunpack.c.h.b16 %v10350
      %v10841 = vunpack.c.h.b16 %v10351
      %v10842 = vunpack.c.l.b16 %v10352
      %v10843 = vunpack.c.l.b16 %v10353
      %v10844 = vunpack.c.l.b16 %v10354
      %v10845 = vunpack.c.l.b16 %v10355
      %v10846 = vunpack.c.l.b16 %v10356
      %v10847 = vunpack.c.l.b16 %v10357
      %v10848 = vunpack.c.l.b16 %v10358
      %v10849 = vunpack.c.h.b16 %v10352
      %v10850 = vunpack.c.h.b16 %v10353
      %v10851 = vunpack.c.h.b16 %v10354
      %v10852 = vunpack.c.h.b16 %v10355
      %v10853 = vunpack.c.h.b16 %v10356
      %v10854 = vunpack.c.h.b16 %v10357
      %v10855 = vunpack.c.h.b16 %v10358
      %v10856 = vunpack.c.l.b16 %v10359
      %v10857 = vunpack.c.l.b16 %v10360
      %v10858 = vunpack.c.l.b16 %v10361
      %v10859 = vunpack.c.l.b16 %v10362
      %v10860 = vunpack.c.l.b16 %v10363
      %v10861 = vunpack.c.l.b16 %v10364
      %v10862 = vunpack.c.l.b16 %v10365
      %v10863 = vunpack.c.h.b16 %v10359
      %v10864 = vunpack.c.h.b16 %v10360
      %v10865 = vunpack.c.h.b16 %v10361
      %v10866 = vunpack.c.h.b16 %v10362
      %v10867 = vunpack.c.h.b16 %v10363
      %v10868 = vunpack.c.h.b16 %v10364
      %v10869 = vunpack.c.h.b16 %v10365
      %v10870 = vunpack.c.l.b16 %v10366
      %v10871 = vunpack.c.l.b16 %v10367
      %v10872 = vunpack.c.l.b16 %v10368
      %v10873 = vunpack.c.l.b16 %v10369
      %v10874 = vunpack.c.l.b16 %v10370
      %v10875 = vunpack.c.l.b16 %v10371
      %v10876 = vunpack.c.l.b16 %v10372
      %v10877 = vunpack.c.h.b16 %v10366
      %v10878 = vunpack.c.h.b16 %v10367
      %v10879 = vunpack.c.h.b16 %v10368
      %v10880 = vunpack.c.h.b16 %v10369
      %v10881 = vunpack.c.h.b16 %v10370
      %v10882 = vunpack.c.h.b16 %v10371
      %v10883 = vunpack.c.h.b16 %v10372
      %v10884 = vunpack.c.l.b16 %v10373
      %v10885 = vunpack.c.l.b16 %v10374
      %v10886 = vunpack.c.l.b16 %v10375
      %v10887 = vunpack.c.l.b16 %v10376
      %v10888 = vunpack.c.l.b16 %v10377
      %v10889 = vunpack.c.l.b16 %v10378
      %v10890 = vunpack.c.l.b16 %v10379
      %v10891 = vunpack.c.h.b16 %v10373
      %v10892 = vunpack.c.h.b16 %v10374
      %v10893 = vunpack.c.h.b16 %v10375
      %v10894 = vunpack.c.h.b16 %v10376
      %v10895 = vunpack.c.h.b16 %v10377
      %v10896 = vunpack.c.h.b16 %v10378
      %v10897 = vunpack.c.h.b16 %v10379
      %v10898 = vunpack.c.l.b16 %v10380
      %v10899 = vunpack.c.l.b16 %v10381
      %v10900 = vunpack.c.l.b16 %v10382
      %v10901 = vunpack.c.l.b16 %v10383
      %v10902 = vunpack.c.l.b16 %v10384
      %v10903 = vunpack.c.l.b16 %v10385
      %v10904 = vunpack.c.l.b16 %v10386
      %v10905 = vunpack.c.h.b16 %v10380
      %v10906 = vunpack.c.h.b16 %v10381
      %v10907 = vunpack.c.h.b16 %v10382
      %v10908 = vunpack.c.h.b16 %v10383
      %v10909 = vunpack.c.h.b16 %v10384
      %v10910 = vunpack.c.h.b16 %v10385
      %v10911 = vunpack.c.h.b16 %v10386
      %v10912 = vunpack.c.l.b16 %v10387
      %v10913 = vunpack.c.l.b16 %v10388
      %v10914 = vunpack.c.l.b16 %v10389
      %v10915 = vunpack.c.l.b16 %v10390
      %v10916 = vunpack.c.l.b16 %v10391
      %v10917 = vunpack.c.l.b16 %v10392
      %v10918 = vunpack.c.l.b16 %v10393
      %v10919 = vunpack.c.h.b16 %v10387
      %v10920 = vunpack.c.h.b16 %v10388
      %v10921 = vunpack.c.h.b16 %v10389
      %v10922 = vunpack.c.h.b16 %v10390
      %v10923 = vunpack.c.h.b16 %v10391
      %v10924 = vunpack.c.h.b16 %v10392
      %v10925 = vunpack.c.h.b16 %v10393
      %v10926 = vunpack.c.l.b16 %v10394
      %v10927 = vunpack.c.l.b16 %v10395
      %v10928 = vunpack.c.l.b16 %v10396
      %v10929 = vunpack.c.l.b16 %v10397
      %v10930 = vunpack.c.l.b16 %v10398
      %v10931 = vunpack.c.l.b16 %v10399
      %v10932 = vunpack.c.l.b16 %v10400
      %v10933 = vunpack.c.h.b16 %v10394
      %v10934 = vunpack.c.h.b16 %v10395
      %v10935 = vunpack.c.h.b16 %v10396
      %v10936 = vunpack.c.h.b16 %v10397
      %v10937 = vunpack.c.h.b16 %v10398
      %v10938 = vunpack.c.h.b16 %v10399
      %v10939 = vunpack.c.h.b16 %v10400
      %v10940 = vunpack.c.l.b16 %v10401
      %v10941 = vunpack.c.l.b16 %v10402
      %v10942 = vunpack.c.l.b16 %v10403
      %v10943 = vunpack.c.l.b16 %v10404
      %v10944 = vunpack.c.l.b16 %v10405
      %v10945 = vunpack.c.l.b16 %v10406
      %v10946 = vunpack.c.l.b16 %v10407
      %v10947 = vunpack.c.h.b16 %v10401
      %v10948 = vunpack.c.h.b16 %v10402
      %v10949 = vunpack.c.h.b16 %v10403
      %v10950 = vunpack.c.h.b16 %v10404
      %v10951 = vunpack.c.h.b16 %v10405
      %v10952 = vunpack.c.h.b16 %v10406
      %v10953 = vunpack.c.h.b16 %v10407
      %v10954 = vunpack.c.l.b16 %v10408
      %v10955 = vunpack.c.l.b16 %v10409
      %v10956 = vunpack.c.l.b16 %v10410
      %v10957 = vunpack.c.l.b16 %v10411
      %v10958 = vunpack.c.l.b16 %v10412
      %v10959 = vunpack.c.l.b16 %v10413
      %v10960 = vunpack.c.l.b16 %v10414
      %v10961 = vunpack.c.h.b16 %v10408
      %v10962 = vunpack.c.h.b16 %v10409
      %v10963 = vunpack.c.h.b16 %v10410
      %v10964 = vunpack.c.h.b16 %v10411
      %v10965 = vunpack.c.h.b16 %v10412
      %v10966 = vunpack.c.h.b16 %v10413
      %v10967 = vunpack.c.h.b16 %v10414
      %v10968 = vunpack.c.l.b16 %v10415
      %v10969 = vunpack.c.l.b16 %v10416
      %v10970 = vunpack.c.l.b16 %v10417
      %v10971 = vunpack.c.l.b16 %v10418
      %v10972 = vunpack.c.l.b16 %v10419
      %v10973 = vunpack.c.l.b16 %v10420
      %v10974 = vunpack.c.l.b16 %v10421
      %v10975 = vunpack.c.h.b16 %v10415
      %v10976 = vunpack.c.h.b16 %v10416
      %v10977 = vunpack.c.h.b16 %v10417
      %v10978 = vunpack.c.h.b16 %v10418
      %v10979 = vunpack.c.h.b16 %v10419
      %v10980 = vunpack.c.h.b16 %v10420
      %v10981 = vunpack.c.h.b16 %v10421
      %v10982 = vunpack.c.l.b16 %v10422
      %v10983 = vunpack.c.l.b16 %v10423
      %v10984 = vunpack.c.l.b16 %v10424
      %v10985 = vunpack.c.l.b16 %v10425
      %v10986 = vunpack.c.l.b16 %v10426
      %v10987 = vunpack.c.l.b16 %v10427
      %v10988 = vunpack.c.l.b16 %v10428
      %v10989 = vunpack.c.h.b16 %v10422
      %v10990 = vunpack.c.h.b16 %v10423
      %v10991 = vunpack.c.h.b16 %v10424
      %v10992 = vunpack.c.h.b16 %v10425
      %v10993 = vunpack.c.h.b16 %v10426
      %v10994 = vunpack.c.h.b16 %v10427
      %v10995 = vunpack.c.h.b16 %v10428
      %v10996 = vunpack.c.l.b16 %v10429
      %v10997 = vunpack.c.l.b16 %v10430
      %v10998 = vunpack.c.l.b16 %v10431
      %v10999 = vunpack.c.l.b16 %v10432
      %v11000 = vunpack.c.l.b16 %v10433
      %v11001 = vunpack.c.l.b16 %v10434
      %v11002 = vunpack.c.l.b16 %v10435
      %v11003 = vunpack.c.h.b16 %v10429
      %v11004 = vunpack.c.h.b16 %v10430
      %v11005 = vunpack.c.h.b16 %v10431
      %v11006 = vunpack.c.h.b16 %v10432
      %v11007 = vunpack.c.h.b16 %v10433
      %v11008 = vunpack.c.h.b16 %v10434
      %v11009 = vunpack.c.h.b16 %v10435
      %v11010 = vunpack.c.l.b16 %v10436
      %v11011 = vunpack.c.l.b16 %v10437
      %v11012 = vunpack.c.l.b16 %v10438
      %v11013 = vunpack.c.l.b16 %v10439
      %v11014 = vunpack.c.l.b16 %v10440
      %v11015 = vunpack.c.l.b16 %v10441
      %v11016 = vunpack.c.l.b16 %v10442
      %v11017 = vunpack.c.h.b16 %v10436
      %v11018 = vunpack.c.h.b16 %v10437
      %v11019 = vunpack.c.h.b16 %v10438
      %v11020 = vunpack.c.h.b16 %v10439
      %v11021 = vunpack.c.h.b16 %v10440
      %v11022 = vunpack.c.h.b16 %v10441
      %v11023 = vunpack.c.h.b16 %v10442
      %v11024 = vunpack.c.l.b16 %v10443
      %v11025 = vunpack.c.l.b16 %v10444
      %v11026 = vunpack.c.l.b16 %v10445
      %v11027 = vunpack.c.l.b16 %v10446
      %v11028 = vunpack.c.l.b16 %v10447
      %v11029 = vunpack.c.l.b16 %v10448
      %v11030 = vunpack.c.l.b16 %v10449
      %v11031 = vunpack.c.h.b16 %v10443
      %v11032 = vunpack.c.h.b16 %v10444
      %v11033 = vunpack.c.h.b16 %v10445
      %v11034 = vunpack.c.h.b16 %v10446
      %v11035 = vunpack.c.h.b16 %v10447
      %v11036 = vunpack.c.h.b16 %v10448
      %v11037 = vunpack.c.h.b16 %v10449
      %v11038 = vunpack.c.l.b16 %v10450
      %v11039 = vunpack.c.l.b16 %v10451
      %v11040 = vunpack.c.l.b16 %v10452
      %v11041 = vunpack.c.l.b16 %v10453
      %v11042 = vunpack.c.l.b16 %v10454
      %v11043 = vunpack.c.l.b16 %v10455
      %v11044 = vunpack.c.l.b16 %v10456
      %v11045 = vunpack.c.h.b16 %v10450
      %v11046 = vunpack.c.h.b16 %v10451
      %v11047 = vunpack.c.h.b16 %v10452
      %v11048 = vunpack.c.h.b16 %v10453
      %v11049 = vunpack.c.h.b16 %v10454
      %v11050 = vunpack.c.h.b16 %v10455
      %v11051 = vunpack.c.h.b16 %v10456
      %v11052 = vunpack.c.l.b16 %v10457
      %v11053 = vunpack.c.l.b16 %v10458
      %v11054 = vunpack.c.l.b16 %v10459
      %v11055 = vunpack.c.l.b16 %v10460
      %v11056 = vunpack.c.l.b16 %v10461
      %v11057 = vunpack.c.l.b16 %v10462
      %v11058 = vunpack.c.l.b16 %v10463
      %v11059 = vunpack.c.h.b16 %v10457
      %v11060 = vunpack.c.h.b16 %v10458
      %v11061 = vunpack.c.h.b16 %v10459
      %v11062 = vunpack.c.h.b16 %v10460
      %v11063 = vunpack.c.h.b16 %v10461
      %v11064 = vunpack.c.h.b16 %v10462
      %v11065 = vunpack.c.h.b16 %v10463
      %v11066 = vunpack.c.l.b16 %v10464
      %v11067 = vunpack.c.l.b16 %v10465
      %v11068 = vunpack.c.l.b16 %v10466
      %v11069 = vunpack.c.l.b16 %v10467
      %v11070 = vunpack.c.l.b16 %v10468
      %v11071 = vunpack.c.l.b16 %v10469
      %v11072 = vunpack.c.l.b16 %v10470
      %v11073 = vunpack.c.h.b16 %v10464
      %v11074 = vunpack.c.h.b16 %v10465
      %v11075 = vunpack.c.h.b16 %v10466
      %v11076 = vunpack.c.h.b16 %v10467
      %v11077 = vunpack.c.h.b16 %v10468
      %v11078 = vunpack.c.h.b16 %v10469
      %v11079 = vunpack.c.h.b16 %v10470
      %v11080 = vunpack.c.l.b16 %v10471
      %v11081 = vunpack.c.l.b16 %v10472
      %v11082 = vunpack.c.l.b16 %v10473
      %v11083 = vunpack.c.l.b16 %v10474
      %v11084 = vunpack.c.l.b16 %v10475
      %v11085 = vunpack.c.l.b16 %v10476
      %v11086 = vunpack.c.l.b16 %v10477
      %v11087 = vunpack.c.h.b16 %v10471
      %v11088 = vunpack.c.h.b16 %v10472
      %v11089 = vunpack.c.h.b16 %v10473
      %v11090 = vunpack.c.h.b16 %v10474
      %v11091 = vunpack.c.h.b16 %v10475
      %v11092 = vunpack.c.h.b16 %v10476
      %v11093 = vunpack.c.h.b16 %v10477
      %v11094 = vunpack.c.l.b16 %v10478
      %v11095 = vunpack.c.l.b16 %v10479
      %v11096 = vunpack.c.l.b16 %v10480
      %v11097 = vunpack.c.l.b16 %v10481
      %v11098 = vunpack.c.l.b16 %v10482
      %v11099 = vunpack.c.l.b16 %v10483
      %v11100 = vunpack.c.l.b16 %v10484
      %v11101 = vunpack.c.h.b16 %v10478
      %v11102 = vunpack.c.h.b16 %v10479
      %v11103 = vunpack.c.h.b16 %v10480
      %v11104 = vunpack.c.h.b16 %v10481
      %v11105 = vunpack.c.h.b16 %v10482
      %v11106 = vunpack.c.h.b16 %v10483
      %v11107 = vunpack.c.h.b16 %v10484
      %v11108 = vunpack.c.l.b16 %v10485
      %v11109 = vunpack.c.l.b16 %v10486
      %v11110 = vunpack.c.l.b16 %v10487
      %v11111 = vunpack.c.l.b16 %v10488
      %v11112 = vunpack.c.l.b16 %v10489
      %v11113 = vunpack.c.l.b16 %v10490
      %v11114 = vunpack.c.l.b16 %v10491
      %v11115 = vunpack.c.h.b16 %v10485
      %v11116 = vunpack.c.h.b16 %v10486
      %v11117 = vunpack.c.h.b16 %v10487
      %v11118 = vunpack.c.h.b16 %v10488
      %v11119 = vunpack.c.h.b16 %v10489
      %v11120 = vunpack.c.h.b16 %v10490
      %v11121 = vunpack.c.h.b16 %v10491
      %v11122 = vunpack.c.l.b16 %v10492
      %v11123 = vunpack.c.l.b16 %v10493
      %v11124 = vunpack.c.l.b16 %v10494
      %v11125 = vunpack.c.l.b16 %v10495
      %v11126 = vunpack.c.l.b16 %v10496
      %v11127 = vunpack.c.l.b16 %v10497
      %v11128 = vunpack.c.l.b16 %v10498
      %v11129 = vunpack.c.h.b16 %v10492
      %v11130 = vunpack.c.h.b16 %v10493
      %v11131 = vunpack.c.h.b16 %v10494
      %v11132 = vunpack.c.h.b16 %v10495
      %v11133 = vunpack.c.h.b16 %v10496
      %v11134 = vunpack.c.h.b16 %v10497
      %v11135 = vunpack.c.h.b16 %v10498
      %v11136 = vunpack.c.l.b16 %v10499
      %v11137 = vunpack.c.l.b16 %v10500
      %v11138 = vunpack.c.l.b16 %v10501
      %v11139 = vunpack.c.l.b16 %v10502
      %v11140 = vunpack.c.l.b16 %v10503
      %v11141 = vunpack.c.l.b16 %v10504
      %v11142 = vunpack.c.l.b16 %v10505
      %v11143 = vunpack.c.h.b16 %v10499
      %v11144 = vunpack.c.h.b16 %v10500
      %v11145 = vunpack.c.h.b16 %v10501
      %v11146 = vunpack.c.h.b16 %v10502
      %v11147 = vunpack.c.h.b16 %v10503
      %v11148 = vunpack.c.h.b16 %v10504
      %v11149 = vunpack.c.h.b16 %v10505
      %v11150 = vunpack.c.l.b16 %v10506
      %v11151 = vunpack.c.l.b16 %v10507
      %v11152 = vunpack.c.l.b16 %v10508
      %v11153 = vunpack.c.l.b16 %v10509
      %v11154 = vunpack.c.l.b16 %v10510
      %v11155 = vunpack.c.l.b16 %v10511
      %v11156 = vunpack.c.l.b16 %v10512
      %v11157 = vunpack.c.h.b16 %v10506
      %v11158 = vunpack.c.h.b16 %v10507
      %v11159 = vunpack.c.h.b16 %v10508
      %v11160 = vunpack.c.h.b16 %v10509
      %v11161 = vunpack.c.h.b16 %v10510
      %v11162 = vunpack.c.h.b16 %v10511
      %v11163 = vunpack.c.h.b16 %v10512
      %v11164 = vunpack.c.l.b16 %v10513
      %v11165 = vunpack.c.l.b16 %v10514
      %v11166 = vunpack.c.l.b16 %v10515
      %v11167 = vunpack.c.l.b16 %v10516
      %v11168 = vunpack.c.l.b16 %v10517
      %v11169 = vunpack.c.l.b16 %v10518
      %v11170 = vunpack.c.l.b16 %v10519
      %v11171 = vunpack.c.h.b16 %v10513
      %v11172 = vunpack.c.h.b16 %v10514
      %v11173 = vunpack.c.h.b16 %v10515
      %v11174 = vunpack.c.h.b16 %v10516
      %v11175 = vunpack.c.h.b16 %v10517
      %v11176 = vunpack.c.h.b16 %v10518
      %v11177 = vunpack.c.h.b16 %v10519
      %v11178 = vunpack.c.l.b16 %v10520
      %v11179 = vunpack.c.l.b16 %v10521
      %v11180 = vunpack.c.l.b16 %v10522
      %v11181 = vunpack.c.l.b16 %v10523
      %v11182 = vunpack.c.l.b16 %v10524
      %v11183 = vunpack.c.l.b16 %v10525
      %v11184 = vunpack.c.l.b16 %v10526
      %v11185 = vunpack.c.h.b16 %v10520
      %v11186 = vunpack.c.h.b16 %v10521
      %v11187 = vunpack.c.h.b16 %v10522
      %v11188 = vunpack.c.h.b16 %v10523
      %v11189 = vunpack.c.h.b16 %v10524
      %v11190 = vunpack.c.h.b16 %v10525
      %v11191 = vunpack.c.h.b16 %v10526
      %v11192 = vunpack.c.l.b16 %v10527
      %v11193 = vunpack.c.l.b16 %v10528
      %v11194 = vunpack.c.l.b16 %v10529
      %v11195 = vunpack.c.l.b16 %v10530
      %v11196 = vunpack.c.l.b16 %v10531
      %v11197 = vunpack.c.l.b16 %v10532
      %v11198 = vunpack.c.l.b16 %v10533
      %v11199 = vunpack.c.h.b16 %v10527
      %v11200 = vunpack.c.h.b16 %v10528
      %v11201 = vunpack.c.h.b16 %v10529
      %v11202 = vunpack.c.h.b16 %v10530
      %v11203 = vunpack.c.h.b16 %v10531
      %v11204 = vunpack.c.h.b16 %v10532
      %v11205 = vunpack.c.h.b16 %v10533
      %v11206 = vpack.c.b16 %v10759, %v10758
      %v11207 = vpack.c.b16 %v10761, %v10760
      %v11208 = vpack.c.b16 %v10763, %v10762
      %v11209 = vpack.c.b16 %v10764, %v10764
      %v11210 = vpack.c.b16 %v10766, %v10765
      %v11211 = vpack.c.b16 %v10768, %v10767
      %v11212 = vpack.c.b16 %v10770, %v10769
      %v11213 = vpack.c.b16 %v10771, %v10771
      %v11214 = vpack.c.b16 %v10773, %v10772
      %v11215 = vpack.c.b16 %v10775, %v10774
      %v11216 = vpack.c.b16 %v10777, %v10776
      %v11217 = vpack.c.b16 %v10778, %v10778
      %v11218 = vpack.c.b16 %v10780, %v10779
      %v11219 = vpack.c.b16 %v10782, %v10781
      %v11220 = vpack.c.b16 %v10784, %v10783
      %v11221 = vpack.c.b16 %v10785, %v10785
      %v11222 = vpack.c.b16 %v10787, %v10786
      %v11223 = vpack.c.b16 %v10789, %v10788
      %v11224 = vpack.c.b16 %v10791, %v10790
      %v11225 = vpack.c.b16 %v10792, %v10792
      %v11226 = vpack.c.b16 %v10794, %v10793
      %v11227 = vpack.c.b16 %v10796, %v10795
      %v11228 = vpack.c.b16 %v10798, %v10797
      %v11229 = vpack.c.b16 %v10799, %v10799
      %v11230 = vpack.c.b16 %v10801, %v10800
      %v11231 = vpack.c.b16 %v10803, %v10802
      %v11232 = vpack.c.b16 %v10805, %v10804
      %v11233 = vpack.c.b16 %v10806, %v10806
      %v11234 = vpack.c.b16 %v10808, %v10807
      %v11235 = vpack.c.b16 %v10810, %v10809
      %v11236 = vpack.c.b16 %v10812, %v10811
      %v11237 = vpack.c.b16 %v10813, %v10813
      %v11238 = vpack.c.b16 %v10815, %v10814
      %v11239 = vpack.c.b16 %v10817, %v10816
      %v11240 = vpack.c.b16 %v10819, %v10818
      %v11241 = vpack.c.b16 %v10820, %v10820
      %v11242 = vpack.c.b16 %v10822, %v10821
      %v11243 = vpack.c.b16 %v10824, %v10823
      %v11244 = vpack.c.b16 %v10826, %v10825
      %v11245 = vpack.c.b16 %v10827, %v10827
      %v11246 = vpack.c.b16 %v10829, %v10828
      %v11247 = vpack.c.b16 %v10831, %v10830
      %v11248 = vpack.c.b16 %v10833, %v10832
      %v11249 = vpack.c.b16 %v10834, %v10834
      %v11250 = vpack.c.b16 %v10836, %v10835
      %v11251 = vpack.c.b16 %v10838, %v10837
      %v11252 = vpack.c.b16 %v10840, %v10839
      %v11253 = vpack.c.b16 %v10841, %v10841
      %v11254 = vpack.c.b16 %v10843, %v10842
      %v11255 = vpack.c.b16 %v10845, %v10844
      %v11256 = vpack.c.b16 %v10847, %v10846
      %v11257 = vpack.c.b16 %v10848, %v10848
      %v11258 = vpack.c.b16 %v10850, %v10849
      %v11259 = vpack.c.b16 %v10852, %v10851
      %v11260 = vpack.c.b16 %v10854, %v10853
      %v11261 = vpack.c.b16 %v10855, %v10855
      %v11262 = vpack.c.b16 %v10857, %v10856
      %v11263 = vpack.c.b16 %v10859, %v10858
      %v11264 = vpack.c.b16 %v10861, %v10860
      %v11265 = vpack.c.b16 %v10862, %v10862
      %v11266 = vpack.c.b16 %v10864, %v10863
      %v11267 = vpack.c.b16 %v10866, %v10865
      %v11268 = vpack.c.b16 %v10868, %v10867
      %v11269 = vpack.c.b16 %v10869, %v10869
      %v11270 = vpack.c.b16 %v10871, %v10870
      %v11271 = vpack.c.b16 %v10873, %v10872
      %v11272 = vpack.c.b16 %v10875, %v10874
      %v11273 = vpack.c.b16 %v10876, %v10876
      %v11274 = vpack.c.b16 %v10878, %v10877
      %v11275 = vpack.c.b16 %v10880, %v10879
      %v11276 = vpack.c.b16 %v10882, %v10881
      %v11277 = vpack.c.b16 %v10883, %v10883
      %v11278 = vpack.c.b16 %v10885, %v10884
      %v11279 = vpack.c.b16 %v10887, %v10886
      %v11280 = vpack.c.b16 %v10889, %v10888
      %v11281 = vpack.c.b16 %v10890, %v10890
      %v11282 = vpack.c.b16 %v10892, %v10891
      %v11283 = vpack.c.b16 %v10894, %v10893
      %v11284 = vpack.c.b16 %v10896, %v10895
      %v11285 = vpack.c.b16 %v10897, %v10897
      %v11286 = vpack.c.b16 %v10899, %v10898
      %v11287 = vpack.c.b16 %v10901, %v10900
      %v11288 = vpack.c.b16 %v10903, %v10902
      %v11289 = vpack.c.b16 %v10904, %v10904
      %v11290 = vpack.c.b16 %v10906, %v10905
      %v11291 = vpack.c.b16 %v10908, %v10907
      %v11292 = vpack.c.b16 %v10910, %v10909
      %v11293 = vpack.c.b16 %v10911, %v10911
      %v11294 = vpack.c.b16 %v10913, %v10912
      %v11295 = vpack.c.b16 %v10915, %v10914
      %v11296 = vpack.c.b16 %v10917, %v10916
      %v11297 = vpack.c.b16 %v10918, %v10918
      %v11298 = vpack.c.b16 %v10920, %v10919
      %v11299 = vpack.c.b16 %v10922, %v10921
      %v11300 = vpack.c.b16 %v10924, %v10923
      %v11301 = vpack.c.b16 %v10925, %v10925
      %v11302 = vpack.c.b16 %v10927, %v10926
      %v11303 = vpack.c.b16 %v10929, %v10928
      %v11304 = vpack.c.b16 %v10931, %v10930
      %v11305 = vpack.c.b16 %v10932, %v10932
      %v11306 = vpack.c.b16 %v10934, %v10933
      %v11307 = vpack.c.b16 %v10936, %v10935
      %v11308 = vpack.c.b16 %v10938, %v10937
      %v11309 = vpack.c.b16 %v10939, %v10939
      %v11310 = vpack.c.b16 %v10941, %v10940
      %v11311 = vpack.c.b16 %v10943, %v10942
      %v11312 = vpack.c.b16 %v10945, %v10944
      %v11313 = vpack.c.b16 %v10946, %v10946
      %v11314 = vpack.c.b16 %v10948, %v10947
      %v11315 = vpack.c.b16 %v10950, %v10949
      %v11316 = vpack.c.b16 %v10952, %v10951
      %v11317 = vpack.c.b16 %v10953, %v10953
      %v11318 = vpack.c.b16 %v10955, %v10954
      %v11319 = vpack.c.b16 %v10957, %v10956
      %v11320 = vpack.c.b16 %v10959, %v10958
      %v11321 = vpack.c.b16 %v10960, %v10960
      %v11322 = vpack.c.b16 %v10962, %v10961
      %v11323 = vpack.c.b16 %v10964, %v10963
      %v11324 = vpack.c.b16 %v10966, %v10965
      %v11325 = vpack.c.b16 %v10967, %v10967
      %v11326 = vpack.c.b16 %v10969, %v10968
      %v11327 = vpack.c.b16 %v10971, %v10970
      %v11328 = vpack.c.b16 %v10973, %v10972
      %v11329 = vpack.c.b16 %v10974, %v10974
      %v11330 = vpack.c.b16 %v10976, %v10975
      %v11331 = vpack.c.b16 %v10978, %v10977
      %v11332 = vpack.c.b16 %v10980, %v10979
      %v11333 = vpack.c.b16 %v10981, %v10981
      %v11334 = vpack.c.b16 %v10983, %v10982
      %v11335 = vpack.c.b16 %v10985, %v10984
      %v11336 = vpack.c.b16 %v10987, %v10986
      %v11337 = vpack.c.b16 %v10988, %v10988
      %v11338 = vpack.c.b16 %v10990, %v10989
      %v11339 = vpack.c.b16 %v10992, %v10991
      %v11340 = vpack.c.b16 %v10994, %v10993
      %v11341 = vpack.c.b16 %v10995, %v10995
      %v11342 = vpack.c.b16 %v10997, %v10996
      %v11343 = vpack.c.b16 %v10999, %v10998
      %v11344 = vpack.c.b16 %v11001, %v11000
      %v11345 = vpack.c.b16 %v11002, %v11002
      %v11346 = vpack.c.b16 %v11004, %v11003
      %v11347 = vpack.c.b16 %v11006, %v11005
      %v11348 = vpack.c.b16 %v11008, %v11007
      %v11349 = vpack.c.b16 %v11009, %v11009
      %v11350 = vpack.c.b16 %v11011, %v11010
      %v11351 = vpack.c.b16 %v11013, %v11012
      %v11352 = vpack.c.b16 %v11015, %v11014
      %v11353 = vpack.c.b16 %v11016, %v11016
      %v11354 = vpack.c.b16 %v11018, %v11017
      %v11355 = vpack.c.b16 %v11020, %v11019
      %v11356 = vpack.c.b16 %v11022, %v11021
      %v11357 = vpack.c.b16 %v11023, %v11023
      %v11358 = vpack.c.b16 %v11025, %v11024
      %v11359 = vpack.c.b16 %v11027, %v11026
      %v11360 = vpack.c.b16 %v11029, %v11028
      %v11361 = vpack.c.b16 %v11030, %v11030
      %v11362 = vpack.c.b16 %v11032, %v11031
      %v11363 = vpack.c.b16 %v11034, %v11033
      %v11364 = vpack.c.b16 %v11036, %v11035
      %v11365 = vpack.c.b16 %v11037, %v11037
      %v11366 = vpack.c.b16 %v11039, %v11038
      %v11367 = vpack.c.b16 %v11041, %v11040
      %v11368 = vpack.c.b16 %v11043, %v11042
      %v11369 = vpack.c.b16 %v11044, %v11044
      %v11370 = vpack.c.b16 %v11046, %v11045
      %v11371 = vpack.c.b16 %v11048, %v11047
      %v11372 = vpack.c.b16 %v11050, %v11049
      %v11373 = vpack.c.b16 %v11051, %v11051
      %v11374 = vpack.c.b16 %v11053, %v11052
      %v11375 = vpack.c.b16 %v11055, %v11054
      %v11376 = vpack.c.b16 %v11057, %v11056
      %v11377 = vpack.c.b16 %v11058, %v11058
      %v11378 = vpack.c.b16 %v11060, %v11059
      %v11379 = vpack.c.b16 %v11062, %v11061
      %v11380 = vpack.c.b16 %v11064, %v11063
      %v11381 = vpack.c.b16 %v11065, %v11065
      %v11382 = vpack.c.b16 %v11067, %v11066
      %v11383 = vpack.c.b16 %v11069, %v11068
      %v11384 = vpack.c.b16 %v11071, %v11070
      %v11385 = vpack.c.b16 %v11072, %v11072
      %v11386 = vpack.c.b16 %v11074, %v11073
      %v11387 = vpack.c.b16 %v11076, %v11075
      %v11388 = vpack.c.b16 %v11078, %v11077
      %v11389 = vpack.c.b16 %v11079, %v11079
      %v11390 = vpack.c.b16 %v11081, %v11080
      %v11391 = vpack.c.b16 %v11083, %v11082
      %v11392 = vpack.c.b16 %v11085, %v11084
      %v11393 = vpack.c.b16 %v11086, %v11086
      %v11394 = vpack.c.b16 %v11088, %v11087
      %v11395 = vpack.c.b16 %v11090, %v11089
      %v11396 = vpack.c.b16 %v11092, %v11091
      %v11397 = vpack.c.b16 %v11093, %v11093
      %v11398 = vpack.c.b16 %v11095, %v11094
      %v11399 = vpack.c.b16 %v11097, %v11096
      %v11400 = vpack.c.b16 %v11099, %v11098
      %v11401 = vpack.c.b16 %v11100, %v11100
      %v11402 = vpack.c.b16 %v11102, %v11101
      %v11403 = vpack.c.b16 %v11104, %v11103
      %v11404 = vpack.c.b16 %v11106, %v11105
      %v11405 = vpack.c.b16 %v11107, %v11107
      %v11406 = vpack.c.b16 %v11109, %v11108
      %v11407 = vpack.c.b16 %v11111, %v11110
      %v11408 = vpack.c.b16 %v11113, %v11112
      %v11409 = vpack.c.b16 %v11114, %v11114
      %v11410 = vpack.c.b16 %v11116, %v11115
      %v11411 = vpack.c.b16 %v11118, %v11117
      %v11412 = vpack.c.b16 %v11120, %v11119
      %v11413 = vpack.c.b16 %v11121, %v11121
      %v11414 = vpack.c.b16 %v11123, %v11122
      %v11415 = vpack.c.b16 %v11125, %v11124
      %v11416 = vpack.c.b16 %v11127, %v11126
      %v11417 = vpack.c.b16 %v11128, %v11128
      %v11418 = vpack.c.b16 %v11130, %v11129
      %v11419 = vpack.c.b16 %v11132, %v11131
      %v11420 = vpack.c.b16 %v11134, %v11133
      %v11421 = vpack.c.b16 %v11135, %v11135
      %v11422 = vpack.c.b16 %v11137, %v11136
      %v11423 = vpack.c.b16 %v11139, %v11138
      %v11424 = vpack.c.b16 %v11141, %v11140
      %v11425 = vpack.c.b16 %v11142, %v11142
      %v11426 = vpack.c.b16 %v11144, %v11143
      %v11427 = vpack.c.b16 %v11146, %v11145
      %v11428 = vpack.c.b16 %v11148, %v11147
      %v11429 = vpack.c.b16 %v11149, %v11149
      %v11430 = vpack.c.b16 %v11151, %v11150
      %v11431 = vpack.c.b16 %v11153, %v11152
      %v11432 = vpack.c.b16 %v11155, %v11154
      %v11433 = vpack.c.b16 %v11156, %v11156
      %v11434 = vpack.c.b16 %v11158, %v11157
      %v11435 = vpack.c.b16 %v11160, %v11159
      %v11436 = vpack.c.b16 %v11162, %v11161
      %v11437 = vpack.c.b16 %v11163, %v11163
      %v11438 = vpack.c.b16 %v11165, %v11164
      %v11439 = vpack.c.b16 %v11167, %v11166
      %v11440 = vpack.c.b16 %v11169, %v11168
      %v11441 = vpack.c.b16 %v11170, %v11170
      %v11442 = vpack.c.b16 %v11172, %v11171
      %v11443 = vpack.c.b16 %v11174, %v11173
      %v11444 = vpack.c.b16 %v11176, %v11175
      %v11445 = vpack.c.b16 %v11177, %v11177
      %v11446 = vpack.c.b16 %v11179, %v11178
      %v11447 = vpack.c.b16 %v11181, %v11180
      %v11448 = vpack.c.b16 %v11183, %v11182
      %v11449 = vpack.c.b16 %v11184, %v11184
      %v11450 = vpack.c.b16 %v11186, %v11185
      %v11451 = vpack.c.b16 %v11188, %v11187
      %v11452 = vpack.c.b16 %v11190, %v11189
      %v11453 = vpack.c.b16 %v11191, %v11191
      %v11454 = vpack.c.b16 %v11193, %v11192
      %v11455 = vpack.c.b16 %v11195, %v11194
      %v11456 = vpack.c.b16 %v11197, %v11196
      %v11457 = vpack.c.b16 %v11198, %v11198
      %v11458 = vpack.c.b16 %v11200, %v11199
      %v11459 = vpack.c.b16 %v11202, %v11201
      %v11460 = vpack.c.b16 %v11204, %v11203
      %v11461 = vpack.c.b16 %v11205, %v11205
      %11718 = vst [vmem:[%s596] sm:$0xff] %v11206
      %11719 = vst [vmem:[%s596 + $0x8] sm:$0xff] %v11207
      %11720 = vst [vmem:[%s596 + $0x10] sm:$0xff] %v11208
      %vm11721 = vcmask 125952
      %11722 = vst.msk [vmem:[%s596 + $0x18] sm:$0xf] %vm11721, %v11209
      %11723 = vst [vmem:[%s596 + $0x1c] sm:$0xff] %v11210
      %11724 = vst [vmem:[%s596 + $0x24] sm:$0xff] %v11211
      %11725 = vst [vmem:[%s596 + $0x2c] sm:$0xff] %v11212
      %11726 = vst.msk [vmem:[%s596 + $0x34] sm:$0xf] %vm11721, %v11213
      %11727 = vst [vmem:[%s596 + $0x38] sm:$0xff] %v11214
      %11728 = vst [vmem:[%s596 + $0x40] sm:$0xff] %v11215
      %11729 = vst [vmem:[%s596 + $0x48] sm:$0xff] %v11216
      %11730 = vst.msk [vmem:[%s596 + $0x50] sm:$0xf] %vm11721, %v11217
      %11731 = vst [vmem:[%s596 + $0x54] sm:$0xff] %v11218
      %11732 = vst [vmem:[%s596 + $0x5c] sm:$0xff] %v11219
      %11733 = vst [vmem:[%s596 + $0x64] sm:$0xff] %v11220
      %11734 = vst.msk [vmem:[%s596 + $0x6c] sm:$0xf] %vm11721, %v11221
      %11735 = vst [vmem:[%s596 + $0x70] sm:$0xff] %v11222
      %11736 = vst [vmem:[%s596 + $0x78] sm:$0xff] %v11223
      %11737 = vst [vmem:[%s596 + $0x80] sm:$0xff] %v11224
      %11738 = vst.msk [vmem:[%s596 + $0x88] sm:$0xf] %vm11721, %v11225
      %11739 = vst [vmem:[%s596 + $0x8c] sm:$0xff] %v11226
      %11740 = vst [vmem:[%s596 + $0x94] sm:$0xff] %v11227
      %11741 = vst [vmem:[%s596 + $0x9c] sm:$0xff] %v11228
      %11742 = vst.msk [vmem:[%s596 + $0xa4] sm:$0xf] %vm11721, %v11229
      %11743 = vst [vmem:[%s596 + $0xa8] sm:$0xff] %v11230
      %11744 = vst [vmem:[%s596 + $0xb0] sm:$0xff] %v11231
      %11745 = vst [vmem:[%s596 + $0xb8] sm:$0xff] %v11232
      %11746 = vst.msk [vmem:[%s596 + $0xc0] sm:$0xf] %vm11721, %v11233
      %11747 = vst [vmem:[%s596 + $0xc4] sm:$0xff] %v11234
      %11748 = vst [vmem:[%s596 + $0xcc] sm:$0xff] %v11235
      %11749 = vst [vmem:[%s596 + $0xd4] sm:$0xff] %v11236
      %11750 = vst.msk [vmem:[%s596 + $0xdc] sm:$0xf] %vm11721, %v11237
      %11751 = vst [vmem:[%s596 + $0xe0] sm:$0xff] %v11238
      %11752 = vst [vmem:[%s596 + $0xe8] sm:$0xff] %v11239
      %11753 = vst [vmem:[%s596 + $0xf0] sm:$0xff] %v11240
      %11754 = vst.msk [vmem:[%s596 + $0xf8] sm:$0xf] %vm11721, %v11241
      %11755 = vst [vmem:[%s596 + $0xfc] sm:$0xff] %v11242
      %11756 = vst [vmem:[%s596 + $0x104] sm:$0xff] %v11243
      %11757 = vst [vmem:[%s596 + $0x10c] sm:$0xff] %v11244
      %11758 = vst.msk [vmem:[%s596 + $0x114] sm:$0xf] %vm11721, %v11245
      %11759 = vst [vmem:[%s596 + $0x118] sm:$0xff] %v11246
      %11760 = vst [vmem:[%s596 + $0x120] sm:$0xff] %v11247
      %11761 = vst [vmem:[%s596 + $0x128] sm:$0xff] %v11248
      %11762 = vst.msk [vmem:[%s596 + $0x130] sm:$0xf] %vm11721, %v11249
      %11763 = vst [vmem:[%s596 + $0x134] sm:$0xff] %v11250
      %11764 = vst [vmem:[%s596 + $0x13c] sm:$0xff] %v11251
      %11765 = vst [vmem:[%s596 + $0x144] sm:$0xff] %v11252
      %11766 = vst.msk [vmem:[%s596 + $0x14c] sm:$0xf] %vm11721, %v11253
      %11767 = vst [vmem:[%s596 + $0x150] sm:$0xff] %v11254
      %11768 = vst [vmem:[%s596 + $0x158] sm:$0xff] %v11255
      %11769 = vst [vmem:[%s596 + $0x160] sm:$0xff] %v11256
      %11770 = vst.msk [vmem:[%s596 + $0x168] sm:$0xf] %vm11721, %v11257
      %11771 = vst [vmem:[%s596 + $0x16c] sm:$0xff] %v11258
      %11772 = vst [vmem:[%s596 + $0x174] sm:$0xff] %v11259
      %11773 = vst [vmem:[%s596 + $0x17c] sm:$0xff] %v11260
      %11774 = vst.msk [vmem:[%s596 + $0x184] sm:$0xf] %vm11721, %v11261
      %11775 = vst [vmem:[%s596 + $0x188] sm:$0xff] %v11262
      %11776 = vst [vmem:[%s596 + $0x190] sm:$0xff] %v11263
      %11777 = vst [vmem:[%s596 + $0x198] sm:$0xff] %v11264
      %11778 = vst.msk [vmem:[%s596 + $0x1a0] sm:$0xf] %vm11721, %v11265
      %11779 = vst [vmem:[%s596 + $0x1a4] sm:$0xff] %v11266
      %11780 = vst [vmem:[%s596 + $0x1ac] sm:$0xff] %v11267
      %11781 = vst [vmem:[%s596 + $0x1b4] sm:$0xff] %v11268
      %11782 = vst.msk [vmem:[%s596 + $0x1bc] sm:$0xf] %vm11721, %v11269
      %11783 = vst [vmem:[%s596 + $0x1c0] sm:$0xff] %v11270
      %11784 = vst [vmem:[%s596 + $0x1c8] sm:$0xff] %v11271
      %11785 = vst [vmem:[%s596 + $0x1d0] sm:$0xff] %v11272
      %11786 = vst.msk [vmem:[%s596 + $0x1d8] sm:$0xf] %vm11721, %v11273
      %11787 = vst [vmem:[%s596 + $0x1dc] sm:$0xff] %v11274
      %11788 = vst [vmem:[%s596 + $0x1e4] sm:$0xff] %v11275
      %11789 = vst [vmem:[%s596 + $0x1ec] sm:$0xff] %v11276
      %11790 = vst.msk [vmem:[%s596 + $0x1f4] sm:$0xf] %vm11721, %v11277
      %11791 = vst [vmem:[%s596 + $0x1f8] sm:$0xff] %v11278
      %11792 = vst [vmem:[%s596 + $0x200] sm:$0xff] %v11279
      %11793 = vst [vmem:[%s596 + $0x208] sm:$0xff] %v11280
      %11794 = vst.msk [vmem:[%s596 + $0x210] sm:$0xf] %vm11721, %v11281
      %11795 = vst [vmem:[%s596 + $0x214] sm:$0xff] %v11282
      %11796 = vst [vmem:[%s596 + $0x21c] sm:$0xff] %v11283
      %11797 = vst [vmem:[%s596 + $0x224] sm:$0xff] %v11284
      %11798 = vst.msk [vmem:[%s596 + $0x22c] sm:$0xf] %vm11721, %v11285
      %11799 = vst [vmem:[%s596 + $0x230] sm:$0xff] %v11286
      %11800 = vst [vmem:[%s596 + $0x238] sm:$0xff] %v11287
      %11801 = vst [vmem:[%s596 + $0x240] sm:$0xff] %v11288
      %11802 = vst.msk [vmem:[%s596 + $0x248] sm:$0xf] %vm11721, %v11289
      %11803 = vst [vmem:[%s596 + $0x24c] sm:$0xff] %v11290
      %11804 = vst [vmem:[%s596 + $0x254] sm:$0xff] %v11291
      %11805 = vst [vmem:[%s596 + $0x25c] sm:$0xff] %v11292
      %11806 = vst.msk [vmem:[%s596 + $0x264] sm:$0xf] %vm11721, %v11293
      %11807 = vst [vmem:[%s596 + $0x268] sm:$0xff] %v11294
      %11808 = vst [vmem:[%s596 + $0x270] sm:$0xff] %v11295
      %11809 = vst [vmem:[%s596 + $0x278] sm:$0xff] %v11296
      %11810 = vst.msk [vmem:[%s596 + $0x280] sm:$0xf] %vm11721, %v11297
      %11811 = vst [vmem:[%s596 + $0x284] sm:$0xff] %v11298
      %11812 = vst [vmem:[%s596 + $0x28c] sm:$0xff] %v11299
      %11813 = vst [vmem:[%s596 + $0x294] sm:$0xff] %v11300
      %11814 = vst.msk [vmem:[%s596 + $0x29c] sm:$0xf] %vm11721, %v11301
      %11815 = vst [vmem:[%s596 + $0x2a0] sm:$0xff] %v11302
      %11816 = vst [vmem:[%s596 + $0x2a8] sm:$0xff] %v11303
      %11817 = vst [vmem:[%s596 + $0x2b0] sm:$0xff] %v11304
      %11818 = vst.msk [vmem:[%s596 + $0x2b8] sm:$0xf] %vm11721, %v11305
      %11819 = vst [vmem:[%s596 + $0x2bc] sm:$0xff] %v11306
      %11820 = vst [vmem:[%s596 + $0x2c4] sm:$0xff] %v11307
      %11821 = vst [vmem:[%s596 + $0x2cc] sm:$0xff] %v11308
      %11822 = vst.msk [vmem:[%s596 + $0x2d4] sm:$0xf] %vm11721, %v11309
      %11823 = vst [vmem:[%s596 + $0x2d8] sm:$0xff] %v11310
      %11824 = vst [vmem:[%s596 + $0x2e0] sm:$0xff] %v11311
      %11825 = vst [vmem:[%s596 + $0x2e8] sm:$0xff] %v11312
      %11826 = vst.msk [vmem:[%s596 + $0x2f0] sm:$0xf] %vm11721, %v11313
      %11827 = vst [vmem:[%s596 + $0x2f4] sm:$0xff] %v11314
      %11828 = vst [vmem:[%s596 + $0x2fc] sm:$0xff] %v11315
      %11829 = vst [vmem:[%s596 + $0x304] sm:$0xff] %v11316
      %11830 = vst.msk [vmem:[%s596 + $0x30c] sm:$0xf] %vm11721, %v11317
      %11831 = vst [vmem:[%s596 + $0x310] sm:$0xff] %v11318
      %11832 = vst [vmem:[%s596 + $0x318] sm:$0xff] %v11319
      %11833 = vst [vmem:[%s596 + $0x320] sm:$0xff] %v11320
      %11834 = vst.msk [vmem:[%s596 + $0x328] sm:$0xf] %vm11721, %v11321
      %11835 = vst [vmem:[%s596 + $0x32c] sm:$0xff] %v11322
      %11836 = vst [vmem:[%s596 + $0x334] sm:$0xff] %v11323
      %11837 = vst [vmem:[%s596 + $0x33c] sm:$0xff] %v11324
      %11838 = vst.msk [vmem:[%s596 + $0x344] sm:$0xf] %vm11721, %v11325
      %11839 = vst [vmem:[%s596 + $0x348] sm:$0xff] %v11326
      %11840 = vst [vmem:[%s596 + $0x350] sm:$0xff] %v11327
      %11841 = vst [vmem:[%s596 + $0x358] sm:$0xff] %v11328
      %11842 = vst.msk [vmem:[%s596 + $0x360] sm:$0xf] %vm11721, %v11329
      %11843 = vst [vmem:[%s596 + $0x364] sm:$0xff] %v11330
      %11844 = vst [vmem:[%s596 + $0x36c] sm:$0xff] %v11331
      %11845 = vst [vmem:[%s596 + $0x374] sm:$0xff] %v11332
      %11846 = vst.msk [vmem:[%s596 + $0x37c] sm:$0xf] %vm11721, %v11333
      %11847 = vst [vmem:[%s596 + $0x380] sm:$0xff] %v11334
      %11848 = vst [vmem:[%s596 + $0x388] sm:$0xff] %v11335
      %11849 = vst [vmem:[%s596 + $0x390] sm:$0xff] %v11336
      %11850 = vst.msk [vmem:[%s596 + $0x398] sm:$0xf] %vm11721, %v11337
      %11851 = vst [vmem:[%s596 + $0x39c] sm:$0xff] %v11338
      %11852 = vst [vmem:[%s596 + $0x3a4] sm:$0xff] %v11339
      %11853 = vst [vmem:[%s596 + $0x3ac] sm:$0xff] %v11340
      %11854 = vst.msk [vmem:[%s596 + $0x3b4] sm:$0xf] %vm11721, %v11341
      %11855 = vst [vmem:[%s596 + $0x3b8] sm:$0xff] %v11342
      %11856 = vst [vmem:[%s596 + $0x3c0] sm:$0xff] %v11343
      %11857 = vst [vmem:[%s596 + $0x3c8] sm:$0xff] %v11344
      %11858 = vst.msk [vmem:[%s596 + $0x3d0] sm:$0xf] %vm11721, %v11345
      %11859 = vst [vmem:[%s596 + $0x3d4] sm:$0xff] %v11346
      %11860 = vst [vmem:[%s596 + $0x3dc] sm:$0xff] %v11347
      %11861 = vst [vmem:[%s596 + $0x3e4] sm:$0xff] %v11348
      %11862 = vst.msk [vmem:[%s596 + $0x3ec] sm:$0xf] %vm11721, %v11349
      %11863 = vst [vmem:[%s596 + $0x3f0] sm:$0xff] %v11350
      %11864 = vst [vmem:[%s596 + $0x3f8] sm:$0xff] %v11351
      %11865 = vst [vmem:[%s596 + $0x400] sm:$0xff] %v11352
      %11866 = vst.msk [vmem:[%s596 + $0x408] sm:$0xf] %vm11721, %v11353
      %11867 = vst [vmem:[%s596 + $0x40c] sm:$0xff] %v11354
      %11868 = vst [vmem:[%s596 + $0x414] sm:$0xff] %v11355
      %11869 = vst [vmem:[%s596 + $0x41c] sm:$0xff] %v11356
      %11870 = vst.msk [vmem:[%s596 + $0x424] sm:$0xf] %vm11721, %v11357
      %11871 = vst [vmem:[%s596 + $0x428] sm:$0xff] %v11358
      %11872 = vst [vmem:[%s596 + $0x430] sm:$0xff] %v11359
      %11873 = vst [vmem:[%s596 + $0x438] sm:$0xff] %v11360
      %11874 = vst.msk [vmem:[%s596 + $0x440] sm:$0xf] %vm11721, %v11361
      %11875 = vst [vmem:[%s596 + $0x444] sm:$0xff] %v11362
      %11876 = vst [vmem:[%s596 + $0x44c] sm:$0xff] %v11363
      %11877 = vst [vmem:[%s596 + $0x454] sm:$0xff] %v11364
      %11878 = vst.msk [vmem:[%s596 + $0x45c] sm:$0xf] %vm11721, %v11365
      %11879 = vst [vmem:[%s596 + $0x460] sm:$0xff] %v11366
      %11880 = vst [vmem:[%s596 + $0x468] sm:$0xff] %v11367
      %11881 = vst [vmem:[%s596 + $0x470] sm:$0xff] %v11368
      %11882 = vst.msk [vmem:[%s596 + $0x478] sm:$0xf] %vm11721, %v11369
      %11883 = vst [vmem:[%s596 + $0x47c] sm:$0xff] %v11370
      %11884 = vst [vmem:[%s596 + $0x484] sm:$0xff] %v11371
      %11885 = vst [vmem:[%s596 + $0x48c] sm:$0xff] %v11372
      %11886 = vst.msk [vmem:[%s596 + $0x494] sm:$0xf] %vm11721, %v11373
      %11887 = vst [vmem:[%s596 + $0x498] sm:$0xff] %v11374
      %11888 = vst [vmem:[%s596 + $0x4a0] sm:$0xff] %v11375
      %11889 = vst [vmem:[%s596 + $0x4a8] sm:$0xff] %v11376
      %11890 = vst.msk [vmem:[%s596 + $0x4b0] sm:$0xf] %vm11721, %v11377
      %11891 = vst [vmem:[%s596 + $0x4b4] sm:$0xff] %v11378
      %11892 = vst [vmem:[%s596 + $0x4bc] sm:$0xff] %v11379
      %11893 = vst [vmem:[%s596 + $0x4c4] sm:$0xff] %v11380
      %11894 = vst.msk [vmem:[%s596 + $0x4cc] sm:$0xf] %vm11721, %v11381
      %11895 = vst [vmem:[%s596 + $0x4d0] sm:$0xff] %v11382
      %11896 = vst [vmem:[%s596 + $0x4d8] sm:$0xff] %v11383
      %11897 = vst [vmem:[%s596 + $0x4e0] sm:$0xff] %v11384
      %11898 = vst.msk [vmem:[%s596 + $0x4e8] sm:$0xf] %vm11721, %v11385
      %11899 = vst [vmem:[%s596 + $0x4ec] sm:$0xff] %v11386
      %11900 = vst [vmem:[%s596 + $0x4f4] sm:$0xff] %v11387
      %11901 = vst [vmem:[%s596 + $0x4fc] sm:$0xff] %v11388
      %11902 = vst.msk [vmem:[%s596 + $0x504] sm:$0xf] %vm11721, %v11389
      %11903 = vst [vmem:[%s596 + $0x508] sm:$0xff] %v11390
      %11904 = vst [vmem:[%s596 + $0x510] sm:$0xff] %v11391
      %11905 = vst [vmem:[%s596 + $0x518] sm:$0xff] %v11392
      %11906 = vst.msk [vmem:[%s596 + $0x520] sm:$0xf] %vm11721, %v11393
      %11907 = vst [vmem:[%s596 + $0x524] sm:$0xff] %v11394
      %11908 = vst [vmem:[%s596 + $0x52c] sm:$0xff] %v11395
      %11909 = vst [vmem:[%s596 + $0x534] sm:$0xff] %v11396
      %11910 = vst.msk [vmem:[%s596 + $0x53c] sm:$0xf] %vm11721, %v11397
      %11911 = vst [vmem:[%s596 + $0x540] sm:$0xff] %v11398
      %11912 = vst [vmem:[%s596 + $0x548] sm:$0xff] %v11399
      %11913 = vst [vmem:[%s596 + $0x550] sm:$0xff] %v11400
      %11914 = vst.msk [vmem:[%s596 + $0x558] sm:$0xf] %vm11721, %v11401
      %11915 = vst [vmem:[%s596 + $0x55c] sm:$0xff] %v11402
      %11916 = vst [vmem:[%s596 + $0x564] sm:$0xff] %v11403
      %11917 = vst [vmem:[%s596 + $0x56c] sm:$0xff] %v11404
      %11918 = vst.msk [vmem:[%s596 + $0x574] sm:$0xf] %vm11721, %v11405
      %11919 = vst [vmem:[%s596 + $0x578] sm:$0xff] %v11406
      %11920 = vst [vmem:[%s596 + $0x580] sm:$0xff] %v11407
      %11921 = vst [vmem:[%s596 + $0x588] sm:$0xff] %v11408
      %11922 = vst.msk [vmem:[%s596 + $0x590] sm:$0xf] %vm11721, %v11409
      %11923 = vst [vmem:[%s596 + $0x594] sm:$0xff] %v11410
      %11924 = vst [vmem:[%s596 + $0x59c] sm:$0xff] %v11411
      %11925 = vst [vmem:[%s596 + $0x5a4] sm:$0xff] %v11412
      %11926 = vst.msk [vmem:[%s596 + $0x5ac] sm:$0xf] %vm11721, %v11413
      %11927 = vst [vmem:[%s596 + $0x5b0] sm:$0xff] %v11414
      %11928 = vst [vmem:[%s596 + $0x5b8] sm:$0xff] %v11415
      %11929 = vst [vmem:[%s596 + $0x5c0] sm:$0xff] %v11416
      %11930 = vst.msk [vmem:[%s596 + $0x5c8] sm:$0xf] %vm11721, %v11417
      %11931 = vst [vmem:[%s596 + $0x5cc] sm:$0xff] %v11418
      %11932 = vst [vmem:[%s596 + $0x5d4] sm:$0xff] %v11419
      %11933 = vst [vmem:[%s596 + $0x5dc] sm:$0xff] %v11420
      %11934 = vst.msk [vmem:[%s596 + $0x5e4] sm:$0xf] %vm11721, %v11421
      %11935 = vst [vmem:[%s596 + $0x5e8] sm:$0xff] %v11422
      %11936 = vst [vmem:[%s596 + $0x5f0] sm:$0xff] %v11423
      %11937 = vst [vmem:[%s596 + $0x5f8] sm:$0xff] %v11424
      %11938 = vst.msk [vmem:[%s596 + $0x600] sm:$0xf] %vm11721, %v11425
      %11939 = vst [vmem:[%s596 + $0x604] sm:$0xff] %v11426
      %11940 = vst [vmem:[%s596 + $0x60c] sm:$0xff] %v11427
      %11941 = vst [vmem:[%s596 + $0x614] sm:$0xff] %v11428
      %11942 = vst.msk [vmem:[%s596 + $0x61c] sm:$0xf] %vm11721, %v11429
      %11943 = vst [vmem:[%s596 + $0x620] sm:$0xff] %v11430
      %11944 = vst [vmem:[%s596 + $0x628] sm:$0xff] %v11431
      %11945 = vst [vmem:[%s596 + $0x630] sm:$0xff] %v11432
      %11946 = vst.msk [vmem:[%s596 + $0x638] sm:$0xf] %vm11721, %v11433
      %11947 = vst [vmem:[%s596 + $0x63c] sm:$0xff] %v11434
      %11948 = vst [vmem:[%s596 + $0x644] sm:$0xff] %v11435
      %11949 = vst [vmem:[%s596 + $0x64c] sm:$0xff] %v11436
      %11950 = vst.msk [vmem:[%s596 + $0x654] sm:$0xf] %vm11721, %v11437
      %11951 = vst [vmem:[%s596 + $0x658] sm:$0xff] %v11438
      %11952 = vst [vmem:[%s596 + $0x660] sm:$0xff] %v11439
      %11953 = vst [vmem:[%s596 + $0x668] sm:$0xff] %v11440
      %11954 = vst.msk [vmem:[%s596 + $0x670] sm:$0xf] %vm11721, %v11441
      %11955 = vst [vmem:[%s596 + $0x674] sm:$0xff] %v11442
      %11956 = vst [vmem:[%s596 + $0x67c] sm:$0xff] %v11443
      %11957 = vst [vmem:[%s596 + $0x684] sm:$0xff] %v11444
      %11958 = vst.msk [vmem:[%s596 + $0x68c] sm:$0xf] %vm11721, %v11445
      %11959 = vst [vmem:[%s596 + $0x690] sm:$0xff] %v11446
      %11960 = vst [vmem:[%s596 + $0x698] sm:$0xff] %v11447
      %11961 = vst [vmem:[%s596 + $0x6a0] sm:$0xff] %v11448
      %11962 = vst.msk [vmem:[%s596 + $0x6a8] sm:$0xf] %vm11721, %v11449
      %11963 = vst [vmem:[%s596 + $0x6ac] sm:$0xff] %v11450
      %11964 = vst [vmem:[%s596 + $0x6b4] sm:$0xff] %v11451
      %11965 = vst [vmem:[%s596 + $0x6bc] sm:$0xff] %v11452
      %11966 = vst.msk [vmem:[%s596 + $0x6c4] sm:$0xf] %vm11721, %v11453
      %11967 = vst [vmem:[%s596 + $0x6c8] sm:$0xff] %v11454
      %11968 = vst [vmem:[%s596 + $0x6d0] sm:$0xff] %v11455
      %11969 = vst [vmem:[%s596 + $0x6d8] sm:$0xff] %v11456
      %11970 = vst.msk [vmem:[%s596 + $0x6e0] sm:$0xf] %vm11721, %v11457
      %11971 = vst [vmem:[%s596 + $0x6e4] sm:$0xff] %v11458
      %11972 = vst [vmem:[%s596 + $0x6ec] sm:$0xff] %v11459
      %11973 = vst [vmem:[%s596 + $0x6f4] sm:$0xff] %v11460
      %11974 = vst.msk [vmem:[%s596 + $0x6fc] sm:$0xf] %vm11721, %v11461
      %s11975 = smul.u32 64, %s30
      %p11976 = scmp.lt.s32.totalorder %s11975, 255
      %s11977 = scalar_select %p11976, %s11975, 255
      %s11978 = smul.addr %s11977, 8
      %s11979 = scalar_lea.vmem %s17, %s11978
      %s11980 = smul.u32 64, %s30
      %p11981 = scmp.lt.s32.totalorder %s11980, 255
      %s11982 = scalar_select %p11981, %s11980, 255
      %s11983 = smul.addr %s11982, 7
      %s11984 = smul.addr %s11983, 4
      %s11985 = scalar_lea.vmem %s18, %s11984
      // Predicated region
      $region89: #{tpu_custom_call.1} parent=87 // pred_check
        %p11986 = pneg %p410
      $region90: #{tpu_custom_call.1} parent=87 // pred_check_branch
        %11988 = sbr.rel (%p11986) target = $region92
      $region91: #{tpu_custom_call.1} parent=87 // pred_region
        %s11989 = smul.u32 64, %s30
      $region92: #{tpu_custom_call.1} parent=87 // pred_fallthru
        _
      // Predicated region
      $region93: #{tpu_custom_call.1} parent=87 // pred_check
        %p11990 = pneg %p436
      $region94: #{tpu_custom_call.1} parent=87 // pred_check_branch
        %11992 = sbr.rel (%p11990) target = $region96
      $region95: #{tpu_custom_call.1} parent=87 // pred_region
        %s11993 = smul.u32 64, %s30
      $region96: #{tpu_custom_call.1} parent=87 // pred_fallthru
        _
    $region88: #{tpu_custom_call.1} parent=5 // pred_fallthru
      _
    %p11994 = scmp.le.s32.totalorder 2, %s25
    // Predicated region
    $region97: #{tpu_custom_call.1} parent=5 // pred_check
      %p11995 = pneg %p11994
    $region98: #{tpu_custom_call.1} parent=5 // pred_check_branch
      %11997 = sbr.rel (%p11995) target = $region100
    $region99: #{tpu_custom_call.1} parent=5 // pred_region
      %s11998 = ssub.s32 %s25, 2
      // Predicated region
      $region101: #{tpu_custom_call.1} parent=99 // pred_check
        %p11999 = pneg %p416
      $region102: #{tpu_custom_call.1} parent=99 // pred_check_branch
        %12001 = sbr.rel (%p11999) target = $region104
      $region103: #{tpu_custom_call.1} parent=99 // pred_region
        %s12002 = smul.u32 64, %s31
        %p12003 = scmp.lt.s32.totalorder %s12002, 255
        %s12004 = scalar_select %p12003, %s12002, 255
        %s12005 = smul.addr %s12004, 8
        %s12006 = scalar_lea.vmem %s17, %s12005
      $region104: #{tpu_custom_call.1} parent=99 // pred_fallthru
        _
      // Predicated region
      $region105: #{tpu_custom_call.1} parent=99 // pred_check
        %p12007 = pneg %p442
      $region106: #{tpu_custom_call.1} parent=99 // pred_check_branch
        %12009 = sbr.rel (%p12007) target = $region108
      $region107: #{tpu_custom_call.1} parent=99 // pred_region
        %s12010 = smul.u32 64, %s31
        %p12011 = scmp.lt.s32.totalorder %s12010, 255
        %s12012 = scalar_select %p12011, %s12010, 255
        %s12013 = smul.addr %s12012, 7
        %s12014 = smul.addr %s12013, 4
        %s12015 = scalar_lea.vmem %s18, %s12014
      $region108: #{tpu_custom_call.1} parent=99 // pred_fallthru
        _
    $region100: #{tpu_custom_call.1} parent=5 // pred_fallthru
      _
  $region6: #{tpu_custom_call.1} parent=0 // loop_footer
    %s29 = sadd.s32 1, %s25
  $region7: #{tpu_custom_call.1} parent=0 // loop_footer_branch
    %24 = sbr.rel target = $region3
  $region8: #{tpu_custom_call.1} parent=0 // loop_exit
    _

</llo_original>
